<compile_context>
chip_gen: v5e
topology: v5e:2x2
jax: 0.10.0
libtpu: 0.0.40
codegen_flags: <defaults>
</compile_context>

<pallas_src>
import math
import functools

import numpy as np
import jax
import jax.numpy as jnp
from jax.experimental import pallas as pl
from jax.experimental.pallas import tpu as pltpu

# ----------------------------- small synthetic config (matches MRTE usage) -------
REF_DIM = 64        # ref_dim  (= model_channels)
DIM = 64            # dim      (= model_channels)
NUM_LATENTS = 32    # RefEncoder default
NUM_HEADS = 8       # RefEncoder default
NUM_BLOCKS = 3      # three AttentionBlocks in self.enc
REL_BUCKETS = 32    # RelativePositionBias num_buckets
REL_MAXDIST = 64    # RelativePositionBias max_distance
GN_GROUPS = 32      # GroupNorm32 groups
EPS = 1e-5


# --------------------------------- helpers ---------------------------------------

def _softmax_rows(s):
    s = s - jnp.max(s, axis=-1, keepdims=True)
    p = jnp.exp(s)
    return p * pl.reciprocal(jnp.sum(p, axis=-1, keepdims=True), approx=True)


def _group_lane_sum(vec, gs, width):
    """Within-group channel sum of a [1, width] row vector (groups of gs adjacent lanes).

    Uses lane rolls + parity select (XLU/VPU) instead of a 1-row MXU matmul.
    Wrapped lanes are never selected, so roll wrap semantics are irrelevant.
    """
    if gs == 1:
        return vec
    lane = jax.lax.broadcasted_iota(jnp.int32, vec.shape, 1) % gs
    out = vec
    for o in range(1, gs):
        fwd = pltpu.roll(vec, shift=(width - o) % width, axis=1)   # lane c -> vec[c + o]
        bwd = pltpu.roll(vec, shift=gs - o, axis=1)                # lane c -> vec[c - (gs - o)]
        out = out + jnp.where(lane < gs - o, fwd, bwd)
    return out


# --------------------------------- fused kernel ----------------------------------

def _ref_encoder_kernel(x_ref, lat_ref, wq_ref, bq_ref, wkv_ref, bkv_ref, wo_ref, bo_ref,
                        we_ref, be_ref, gng_ref, gnb_ref, wqkv_ref, bqkv_ref,
                        wpr_ref, bpr_ref, rel_ref, out_ref, *,
                        heads, num_lat, t_len, ref_dim, dim, n_blocks, gn_groups, eps):
    f32 = jnp.float32
    bf16 = jnp.bfloat16
    L = num_lat + t_len
    d_c = ref_dim // heads          # cross-attention head dim
    d_b = dim // heads              # attention-block head dim
    gs = dim // gn_groups           # GroupNorm group size (channels per group)

    xb = x_ref[0]                   # [T, ref_dim]  time-major, f32
    lat = lat_ref[...]              # [NL, ref_dim] bf16 (pre-cast parameter)

    # ---- cross attention (VITS MultiHeadAttention): query = latents, key/value = x ----
    q = jnp.dot(lat, wq_ref[...], preferred_element_type=f32) + bq_ref[...]          # [NL, C] f32
    kv = jnp.dot(xb.astype(bf16), wkv_ref[...], preferred_element_type=f32) + bkv_ref[...]  # [T, 2C]
    k = kv[:, :ref_dim]
    v_bf = kv[:, ref_dim:].astype(bf16)
    outs = []
    for hh in range(heads):
        sl = slice(hh * d_c, (hh + 1) * d_c)
        # tiny K=8 score dot kept f32 (transposed-rhs path validated in f32)
        s = jax.lax.dot_general(q[:, sl], k[:, sl], (((1,), (1,)), ((), ())),
                                preferred_element_type=f32) * (1.0 / math.sqrt(d_c))
        p = _softmax_rows(s)                                                          # [NL, T] f32
        outs.append(jnp.dot(p.astype(bf16), v_bf[:, sl], preferred_element_type=f32))
    o_merged = jnp.concatenate(outs, axis=1)                                          # [NL, C] head-major
    lat_o = (jnp.dot(o_merged.astype(bf16), wo_ref[...], preferred_element_type=f32)
             + bo_ref[...])                                                           # [NL, C]

    # ---- concat along time: [latents_out ; x] -> [L, ref_dim] (in registers) ----
    h_seq = jnp.concatenate([lat_o, xb], axis=0)                                      # [L, ref_dim] f32

    # ---- Conv1d(ref_dim -> dim, kernel=3, padding=1): sublane rolls + masked taps ----
    row = jax.lax.broadcasted_iota(jnp.int32, (L, ref_dim), 0)
    prev = jnp.where(row == 0, 0.0, pltpu.roll(h_seq, shift=1, axis=0))       # prev[t] = h[t-1]
    nxt = jnp.where(row == L - 1, 0.0, pltpu.roll(h_seq, shift=L - 1, axis=0))  # next[t] = h[t+1]
    h = (jnp.dot(prev.astype(bf16), we_ref[0], preferred_element_type=f32)
         + jnp.dot(h_seq.astype(bf16), we_ref[1], preferred_element_type=f32)
         + jnp.dot(nxt.astype(bf16), we_ref[2], preferred_element_type=f32)
         + be_ref[...])                                                               # [L, dim] f32

    # ---- 3x AttentionBlock: GN -> qkv -> rel-pos attention -> proj -> residual ----
    inv_gn = 1.0 / (gs * L)
    for blk in range(n_blocks):
        # GroupNorm32 (f32 stats, two-pass variance, group reduce via lane rolls)
        ts = jnp.sum(h, axis=0, keepdims=True)                                        # [1, dim]
        mean = _group_lane_sum(ts, gs, dim) * inv_gn
        xc = h - mean
        var = _group_lane_sum(jnp.sum(xc * xc, axis=0, keepdims=True), gs, dim) * inv_gn
        hn = xc * jax.lax.rsqrt(var + eps) * gng_ref[blk] + gnb_ref[blk]

        # qkv weights are pre-permuted to grouped [Q_all | K_all | V_all], head-major inside.
        qkv = jnp.dot(hn.astype(bf16), wqkv_ref[blk], preferred_element_type=f32) + bqkv_ref[blk]
        q_all = qkv[:, 0:dim]
        k_all = qkv[:, dim:2 * dim]
        v_bf = qkv[:, 2 * dim:3 * dim].astype(bf16)
        outs = []
        for hh in range(heads):
            sl = slice(hh * d_b, (hh + 1) * d_b)
            s = jax.lax.dot_general(q_all[:, sl], k_all[:, sl], (((1,), (1,)), ((), ())),
                                    preferred_element_type=f32) * (1.0 / math.sqrt(d_b))
            s = s + rel_ref[blk, hh]                  # rel-pos bias (pre-scaled by sqrt(ch))
            p = _softmax_rows(s)                      # [L, L] f32
            outs.append(jnp.dot(p.astype(bf16), v_bf[:, sl], preferred_element_type=f32))
        o_merged = jnp.concatenate(outs, axis=1)      # [L, dim] head-major, f32
        h = (h + jnp.dot(o_merged.astype(bf16), wpr_ref[blk], preferred_element_type=f32)
             + bpr_ref[blk])                          # residual (f32)

    # ---- channel slice to ref_dim, then mean over time (fused epilogue) ----
    out_ref[0] = jnp.mean(h[:, :ref_dim], axis=0, keepdims=True)                      # [1, ref_dim]


# --------------------------------- JAX glue ---------------------------------------

def rel_pos_bias(emb, length, heads, num_buckets=REL_BUCKETS, max_distance=REL_MAXDIST):
    # T5-style relative-position buckets (non-causal); integer gather glue stays in JAX.
    pos = jnp.arange(length)
    n = -(pos[None, :] - pos[:, None])              # q_pos - k_pos
    nb = num_buckets // 2
    ret = (n < 0).astype(jnp.int32) * nb
    n = jnp.abs(n)
    max_exact = nb // 2
    is_small = n < max_exact
    val_large = max_exact + (
        jnp.log(jnp.maximum(n, 1).astype(jnp.float32) / max_exact)
        / math.log(max_distance / max_exact) * (nb - max_exact)
    ).astype(jnp.int32)
    val_large = jnp.minimum(val_large, nb - 1)
    bucket = ret + jnp.where(is_small, n, val_large)
    values = emb[bucket]                            # [L, L, heads]
    return jnp.transpose(values, (2, 0, 1))         # [heads, L, L]


def ref_encoder_forward(p, x):
    """RefEncoder.forward: x [B, ref_dim, T] -> [B, ref_dim]."""
    B, ref_dim, T = x.shape
    latents = p["latents"]                          # [NL, ref_dim]
    NL = latents.shape[0]
    dim = p["enc_conv_w"].shape[0]
    H = NUM_HEADS
    L = NL + T
    n_blocks = len(p["blocks"])
    d_b = dim // H
    bf16 = jnp.bfloat16

    x_tm = jnp.transpose(x, (0, 2, 1))              # only layout change: [B, T, ref_dim]
    lat_bf = latents.astype(bf16)

    # ---- weights reshaped once into kernel-ready (time-major, bf16) matrices ----
    ca = p["cross"]
    wq = jnp.transpose(ca["q_w"][:, :, 0]).astype(bf16)
    bq = ca["q_b"].reshape(1, ref_dim)
    wkv = jnp.concatenate([jnp.transpose(ca["k_w"][:, :, 0]),
                           jnp.transpose(ca["v_w"][:, :, 0])], axis=1).astype(bf16)   # [C, 2C]
    bkv = jnp.concatenate([ca["k_b"], ca["v_b"]]).reshape(1, 2 * ref_dim)
    wo = jnp.transpose(ca["o_w"][:, :, 0]).astype(bf16)
    bo = ca["o_b"].reshape(1, ref_dim)

    w_enc = jnp.transpose(p["enc_conv_w"], (2, 1, 0)).astype(bf16)                    # [3, ref_dim, dim]
    b_enc = p["enc_conv_b"].reshape(1, dim)

    # qkv output-channel permutation: per-head [q|k|v] interleave -> grouped [Q_all|K_all|V_all]
    perm = np.concatenate([
        np.concatenate([np.arange(d_b) + 3 * d_b * h + comp * d_b for h in range(H)])
        for comp in range(3)
    ])

    gn_g = jnp.stack([b["norm_g"].reshape(1, dim) for b in p["blocks"]])
    gn_b = jnp.stack([b["norm_b"].reshape(1, dim) for b in p["blocks"]])
    w_qkv = jnp.stack([jnp.transpose(b["qkv_w"][:, :, 0])[:, perm]
                       for b in p["blocks"]]).astype(bf16)                            # [nb, dim, 3*dim]
    b_qkv = jnp.stack([b["qkv_b"][perm].reshape(1, 3 * dim) for b in p["blocks"]])
    w_pr = jnp.stack([jnp.transpose(b["proj_w"][:, :, 0])
                      for b in p["blocks"]]).astype(bf16)                             # [nb, dim, dim]
    b_pr = jnp.stack([b["proj_b"].reshape(1, dim) for b in p["blocks"]])

    rel = jnp.stack([rel_pos_bias(b["rel_emb"], L, H) for b in p["blocks"]])          # [nb, H, L, L]
    rel = (rel * math.sqrt(d_b)).astype(bf16)       # RelativePositionBias scale folded in once

    kern = functools.partial(_ref_encoder_kernel, heads=H, num_lat=NL, t_len=T,
                             ref_dim=ref_dim, dim=dim, n_blocks=n_blocks,
                             gn_groups=GN_GROUPS, eps=EPS)

    out = pl.pallas_call(
        kern,
        out_shape=jax.ShapeDtypeStruct((B, 1, ref_dim), jnp.float32),
        grid=(B,),
        in_specs=[
            pl.BlockSpec((1, T, ref_dim), lambda b: (b, 0, 0)),          # x (time-major, f32)
            pl.BlockSpec((NL, ref_dim), lambda b: (0, 0)),               # latents (bf16, shared)
            pl.BlockSpec((ref_dim, ref_dim), lambda b: (0, 0)),          # wq (bf16)
            pl.BlockSpec((1, ref_dim), lambda b: (0, 0)),                # bq
            pl.BlockSpec((ref_dim, 2 * ref_dim), lambda b: (0, 0)),      # wkv (bf16, concat k|v)
            pl.BlockSpec((1, 2 * ref_dim), lambda b: (0, 0)),            # bkv
            pl.BlockSpec((ref_dim, ref_dim), lambda b: (0, 0)),          # wo (bf16)
            pl.BlockSpec((1, ref_dim), lambda b: (0, 0)),                # bo
            pl.BlockSpec((3, ref_dim, dim), lambda b: (0, 0, 0)),        # enc conv taps (bf16)
            pl.BlockSpec((1, dim), lambda b: (0, 0)),                    # enc conv bias
            pl.BlockSpec((n_blocks, 1, dim), lambda b: (0, 0, 0)),       # GN gamma
            pl.BlockSpec((n_blocks, 1, dim), lambda b: (0, 0, 0)),       # GN beta
            pl.BlockSpec((n_blocks, dim, 3 * dim), lambda b: (0, 0, 0)), # qkv weights (bf16, grouped)
            pl.BlockSpec((n_blocks, 1, 3 * dim), lambda b: (0, 0, 0)),   # qkv bias (grouped)
            pl.BlockSpec((n_blocks, dim, dim), lambda b: (0, 0, 0)),     # proj weights (bf16)
            pl.BlockSpec((n_blocks, 1, dim), lambda b: (0, 0, 0)),       # proj bias
            pl.BlockSpec((n_blocks, H, L, L), lambda b: (0, 0, 0, 0)),   # rel-pos bias (bf16, shared)
        ],
        out_specs=pl.BlockSpec((1, 1, ref_dim), lambda b: (b, 0, 0)),
        compiler_params=pltpu.CompilerParams(dimension_semantics=("parallel",)),
    )(x_tm, lat_bf, wq, bq, wkv, bkv, wo, bo, w_enc, b_enc,
      gn_g, gn_b, w_qkv, b_qkv, w_pr, b_pr, rel)
    return out[:, 0, :]


# ------------------------------- parameter init -----------------------------------

class KeyGen:
    def __init__(self, key):
        self.key = key

    def __call__(self):
        self.key, k = jax.random.split(self.key)
        return k


def nrm(key, shape, std=0.05):
    return jax.random.normal(key, shape, dtype=jnp.float32) * std


def init_mha(kg, channels, out_channels):
    return {
        "q_w": nrm(kg(), (channels, channels, 1)), "q_b": nrm(kg(), (channels,)),
        "k_w": nrm(kg(), (channels, channels, 1)), "k_b": nrm(kg(), (channels,)),
        "v_w": nrm(kg(), (channels, channels, 1)), "v_b": nrm(kg(), (channels,)),
        "o_w": nrm(kg(), (out_channels, channels, 1)), "o_b": nrm(kg(), (out_channels,)),
    }


def init_attn_block(kg, channels, heads):
    return {
        "norm_g": jnp.ones((channels,), jnp.float32),
        "norm_b": jnp.zeros((channels,), jnp.float32),
        "qkv_w": nrm(kg(), (3 * channels, channels, 1)), "qkv_b": nrm(kg(), (3 * channels,)),
        # TODO(synk): original module zero-inits proj_out (zero_module); random here to exercise path.
        "proj_w": nrm(kg(), (channels, channels, 1)), "proj_b": nrm(kg(), (channels,)),
        "rel_emb": nrm(kg(), (REL_BUCKETS, heads), std=0.02),
    }


def init_ref_encoder(kg, ref_dim, dim):
    return {
        "latents": nrm(kg(), (NUM_LATENTS, ref_dim), std=0.02),
        "cross": init_mha(kg, ref_dim, ref_dim),
        "enc_conv_w": nrm(kg(), (dim, ref_dim, 3)), "enc_conv_b": nrm(kg(), (dim,)),
        "blocks": [init_attn_block(kg, dim, NUM_HEADS) for _ in range(NUM_BLOCKS)],
    }


# ------------------------------------ main -----------------------------------------

if __name__ == "__main__":
    key = jax.random.PRNGKey(0)
    kp, kx = jax.random.split(key)
    params = init_ref_encoder(KeyGen(kp), REF_DIM, DIM)

    B, T = 2, 16
    x = jax.random.normal(kx, (B, REF_DIM, T), jnp.float32)

    out = jax.jit(ref_encoder_forward)(params, x)
    out = jax.block_until_ready(out)

    assert out.shape == (B, REF_DIM), out.shape
    assert bool(jnp.all(jnp.isfinite(out)))
    print("KERNEL_OK")
</pallas_src>

<mosaic_0001>
module attributes {stable_mosaic.version = 11 : i64} {
  func.func @_ref_encoder_kernel(%arg0: i32, %arg1: memref<1x16x64xf32, #tpu.memory_space<vmem>>, %arg2: memref<32x64xbf16, #tpu.memory_space<vmem>>, %arg3: memref<64x64xbf16, #tpu.memory_space<vmem>>, %arg4: memref<1x64xf32, #tpu.memory_space<vmem>>, %arg5: memref<64x128xbf16, #tpu.memory_space<vmem>>, %arg6: memref<1x128xf32, #tpu.memory_space<vmem>>, %arg7: memref<64x64xbf16, #tpu.memory_space<vmem>>, %arg8: memref<1x64xf32, #tpu.memory_space<vmem>>, %arg9: memref<3x64x64xbf16, #tpu.memory_space<vmem>>, %arg10: memref<1x64xf32, #tpu.memory_space<vmem>>, %arg11: memref<3x1x64xf32, #tpu.memory_space<vmem>>, %arg12: memref<3x1x64xf32, #tpu.memory_space<vmem>>, %arg13: memref<3x64x192xbf16, #tpu.memory_space<vmem>>, %arg14: memref<3x1x192xf32, #tpu.memory_space<vmem>>, %arg15: memref<3x64x64xbf16, #tpu.memory_space<vmem>>, %arg16: memref<3x1x64xf32, #tpu.memory_space<vmem>>, %arg17: memref<3x8x48x48xbf16, #tpu.memory_space<vmem>>, %arg18: memref<1x1x64xf32, #tpu.memory_space<vmem>>) attributes {dimension_semantics = [#tpu.dimension_semantics<parallel>], iteration_bounds = array<i64: 2>, scalar_prefetch = 0 : i64, scratch_operands = 0 : i64, tpu.core_type = #tpu.core_type<tc>, window_params = [{transform_indices = @transform_0, window_bounds = array<i64: 1, 16, 64>}, {pipeline_mode = #tpu.pipeline_mode<synchronous>, transform_indices = @transform_1, window_bounds = array<i64: 32, 64>}, {pipeline_mode = #tpu.pipeline_mode<synchronous>, transform_indices = @transform_2, window_bounds = array<i64: 64, 64>}, {pipeline_mode = #tpu.pipeline_mode<synchronous>, transform_indices = @transform_3, window_bounds = array<i64: 1, 64>}, {pipeline_mode = #tpu.pipeline_mode<synchronous>, transform_indices = @transform_4, window_bounds = array<i64: 64, 128>}, {pipeline_mode = #tpu.pipeline_mode<synchronous>, transform_indices = @transform_5, window_bounds = array<i64: 1, 128>}, {pipeline_mode = #tpu.pipeline_mode<synchronous>, transform_indices = @transform_6, window_bounds = array<i64: 64, 64>}, {pipeline_mode = #tpu.pipeline_mode<synchronous>, transform_indices = @transform_7, window_bounds = array<i64: 1, 64>}, {pipeline_mode = #tpu.pipeline_mode<synchronous>, transform_indices = @transform_8, window_bounds = array<i64: 3, 64, 64>}, {pipeline_mode = #tpu.pipeline_mode<synchronous>, transform_indices = @transform_9, window_bounds = array<i64: 1, 64>}, {pipeline_mode = #tpu.pipeline_mode<synchronous>, transform_indices = @transform_10, window_bounds = array<i64: 3, 1, 64>}, {pipeline_mode = #tpu.pipeline_mode<synchronous>, transform_indices = @transform_11, window_bounds = array<i64: 3, 1, 64>}, {pipeline_mode = #tpu.pipeline_mode<synchronous>, transform_indices = @transform_12, window_bounds = array<i64: 3, 64, 192>}, {pipeline_mode = #tpu.pipeline_mode<synchronous>, transform_indices = @transform_13, window_bounds = array<i64: 3, 1, 192>}, {pipeline_mode = #tpu.pipeline_mode<synchronous>, transform_indices = @transform_14, window_bounds = array<i64: 3, 64, 64>}, {pipeline_mode = #tpu.pipeline_mode<synchronous>, transform_indices = @transform_15, window_bounds = array<i64: 3, 1, 64>}, {pipeline_mode = #tpu.pipeline_mode<synchronous>, transform_indices = @transform_16, window_bounds = array<i64: 3, 8, 48, 48>}, {transform_indices = @transform_17, window_bounds = array<i64: 1, 1, 64>}]} {
    %c0 = arith.constant 0 : index
    %c0_0 = arith.constant 0 : index
    %c0_1 = arith.constant 0 : index
    %0 = vector.load %arg1[%c0, %c0_0, %c0_1] : memref<1x16x64xf32, #tpu.memory_space<vmem>>, vector<1x16x64xf32>
    %1 = vector.shape_cast %0 : vector<1x16x64xf32> to vector<16x64xf32>
    %c0_2 = arith.constant 0 : index
    %c0_3 = arith.constant 0 : index
    %2 = vector.load %arg2[%c0_2, %c0_3] : memref<32x64xbf16, #tpu.memory_space<vmem>>, vector<32x64xbf16>
    %c0_4 = arith.constant 0 : index
    %c0_5 = arith.constant 0 : index
    %3 = vector.load %arg3[%c0_4, %c0_5] : memref<64x64xbf16, #tpu.memory_space<vmem>>, vector<64x64xbf16>
    %cst = arith.constant dense<0.000000e+00> : vector<32x64xf32>
    %4 = tpu.matmul %2, %3, %cst {dimension_numbers = #tpu.dot_dimension_numbers<[1], [0], [0], [1], [0, 0, 1, 1], [], []>} : vector<32x64xbf16>, vector<64x64xbf16>, vector<32x64xf32> -> vector<32x64xf32>
    %c0_6 = arith.constant 0 : index
    %c0_7 = arith.constant 0 : index
    %5 = vector.load %arg4[%c0_6, %c0_7] : memref<1x64xf32, #tpu.memory_space<vmem>>, vector<1x64xf32>
    %6 = vector.broadcast %5 : vector<1x64xf32> to vector<32x64xf32>
    %7 = arith.addf %4, %6 : vector<32x64xf32>
    %8 = arith.truncf %1 : vector<16x64xf32> to vector<16x64xbf16>
    %c0_8 = arith.constant 0 : index
    %c0_9 = arith.constant 0 : index
    %9 = vector.load %arg5[%c0_8, %c0_9] : memref<64x128xbf16, #tpu.memory_space<vmem>>, vector<64x128xbf16>
    %cst_10 = arith.constant dense<0.000000e+00> : vector<16x128xf32>
    %10 = tpu.matmul %8, %9, %cst_10 {dimension_numbers = #tpu.dot_dimension_numbers<[1], [0], [0], [1], [0, 0, 1, 1], [], []>} : vector<16x64xbf16>, vector<64x128xbf16>, vector<16x128xf32> -> vector<16x128xf32>
    %c0_11 = arith.constant 0 : index
    %c0_12 = arith.constant 0 : index
    %11 = vector.load %arg6[%c0_11, %c0_12] : memref<1x128xf32, #tpu.memory_space<vmem>>, vector<1x128xf32>
    %12 = vector.broadcast %11 : vector<1x128xf32> to vector<16x128xf32>
    %13 = arith.addf %10, %12 : vector<16x128xf32>
    %14 = vector.extract_strided_slice %13 {offsets = [0, 0], sizes = [16, 64], strides = [1, 1]} : vector<16x128xf32> to vector<16x64xf32>
    %15 = vector.extract_strided_slice %13 {offsets = [0, 64], sizes = [16, 64], strides = [1, 1]} : vector<16x128xf32> to vector<16x64xf32>
    %16 = arith.truncf %15 : vector<16x64xf32> to vector<16x64xbf16>
    %17 = vector.extract_strided_slice %7 {offsets = [0, 0], sizes = [32, 8], strides = [1, 1]} : vector<32x64xf32> to vector<32x8xf32>
    %18 = vector.extract_strided_slice %14 {offsets = [0, 0], sizes = [16, 8], strides = [1, 1]} : vector<16x64xf32> to vector<16x8xf32>
    %cst_13 = arith.constant dense<0.000000e+00> : vector<32x16xf32>
    %19 = tpu.matmul %17, %18, %cst_13 {dimension_numbers = #tpu.dot_dimension_numbers<[1], [1], [0], [0], [0, 0, 1, 0], [], []>} : vector<32x8xf32>, vector<16x8xf32>, vector<32x16xf32> -> vector<32x16xf32>
    %cst_14 = arith.constant 0.353553385 : f32
    %20 = vector.broadcast %cst_14 : f32 to vector<32x16xf32>
    %21 = arith.mulf %19, %20 : vector<32x16xf32>
    %cst_15 = arith.constant dense<0xFF800000> : vector<32xf32>
    %22 = vector.multi_reduction <maximumf>, %21, %cst_15 [1] : vector<32x16xf32> to vector<32xf32>
    %23 = vector.shape_cast %22 : vector<32xf32> to vector<32x1xf32>
    %24 = vector.broadcast %23 : vector<32x1xf32> to vector<32x16xf32>
    %25 = arith.subf %21, %24 : vector<32x16xf32>
    %26 = math.exp %25 : vector<32x16xf32>
    %cst_16 = arith.constant dense<0.000000e+00> : vector<32xf32>
    %27 = vector.multi_reduction <add>, %26, %cst_16 [1] : vector<32x16xf32> to vector<32xf32>
    %28 = vector.shape_cast %27 : vector<32xf32> to vector<32x1xf32>
    %29 = tpu.reciprocal %28 {approx = true} : vector<32x1xf32> -> vector<32x1xf32>
    %30 = vector.broadcast %29 : vector<32x1xf32> to vector<32x16xf32>
    %31 = arith.mulf %26, %30 : vector<32x16xf32>
    %32 = arith.truncf %31 : vector<32x16xf32> to vector<32x16xbf16>
    %33 = vector.extract_strided_slice %16 {offsets = [0, 0], sizes = [16, 8], strides = [1, 1]} : vector<16x64xbf16> to vector<16x8xbf16>
    %cst_17 = arith.constant dense<0.000000e+00> : vector<32x8xf32>
    %34 = tpu.matmul %32, %33, %cst_17 {dimension_numbers = #tpu.dot_dimension_numbers<[1], [0], [0], [1], [0, 0, 1, 1], [], []>} : vector<32x16xbf16>, vector<16x8xbf16>, vector<32x8xf32> -> vector<32x8xf32>
    %35 = vector.extract_strided_slice %7 {offsets = [0, 8], sizes = [32, 8], strides = [1, 1]} : vector<32x64xf32> to vector<32x8xf32>
    %36 = vector.extract_strided_slice %14 {offsets = [0, 8], sizes = [16, 8], strides = [1, 1]} : vector<16x64xf32> to vector<16x8xf32>
    %cst_18 = arith.constant dense<0.000000e+00> : vector<32x16xf32>
    %37 = tpu.matmul %35, %36, %cst_18 {dimension_numbers = #tpu.dot_dimension_numbers<[1], [1], [0], [0], [0, 0, 1, 0], [], []>} : vector<32x8xf32>, vector<16x8xf32>, vector<32x16xf32> -> vector<32x16xf32>
    %cst_19 = arith.constant 0.353553385 : f32
    %38 = vector.broadcast %cst_19 : f32 to vector<32x16xf32>
    %39 = arith.mulf %37, %38 : vector<32x16xf32>
    %cst_20 = arith.constant dense<0xFF800000> : vector<32xf32>
    %40 = vector.multi_reduction <maximumf>, %39, %cst_20 [1] : vector<32x16xf32> to vector<32xf32>
    %41 = vector.shape_cast %40 : vector<32xf32> to vector<32x1xf32>
    %42 = vector.broadcast %41 : vector<32x1xf32> to vector<32x16xf32>
    %43 = arith.subf %39, %42 : vector<32x16xf32>
    %44 = math.exp %43 : vector<32x16xf32>
    %cst_21 = arith.constant dense<0.000000e+00> : vector<32xf32>
    %45 = vector.multi_reduction <add>, %44, %cst_21 [1] : vector<32x16xf32> to vector<32xf32>
    %46 = vector.shape_cast %45 : vector<32xf32> to vector<32x1xf32>
    %47 = tpu.reciprocal %46 {approx = true} : vector<32x1xf32> -> vector<32x1xf32>
    %48 = vector.broadcast %47 : vector<32x1xf32> to vector<32x16xf32>
    %49 = arith.mulf %44, %48 : vector<32x16xf32>
    %50 = arith.truncf %49 : vector<32x16xf32> to vector<32x16xbf16>
    %51 = vector.extract_strided_slice %16 {offsets = [0, 8], sizes = [16, 8], strides = [1, 1]} : vector<16x64xbf16> to vector<16x8xbf16>
    %cst_22 = arith.constant dense<0.000000e+00> : vector<32x8xf32>
    %52 = tpu.matmul %50, %51, %cst_22 {dimension_numbers = #tpu.dot_dimension_numbers<[1], [0], [0], [1], [0, 0, 1, 1], [], []>} : vector<32x16xbf16>, vector<16x8xbf16>, vector<32x8xf32> -> vector<32x8xf32>
    %53 = vector.extract_strided_slice %7 {offsets = [0, 16], sizes = [32, 8], strides = [1, 1]} : vector<32x64xf32> to vector<32x8xf32>
    %54 = vector.extract_strided_slice %14 {offsets = [0, 16], sizes = [16, 8], strides = [1, 1]} : vector<16x64xf32> to vector<16x8xf32>
    %cst_23 = arith.constant dense<0.000000e+00> : vector<32x16xf32>
    %55 = tpu.matmul %53, %54, %cst_23 {dimension_numbers = #tpu.dot_dimension_numbers<[1], [1], [0], [0], [0, 0, 1, 0], [], []>} : vector<32x8xf32>, vector<16x8xf32>, vector<32x16xf32> -> vector<32x16xf32>
    %cst_24 = arith.constant 0.353553385 : f32
    %56 = vector.broadcast %cst_24 : f32 to vector<32x16xf32>
    %57 = arith.mulf %55, %56 : vector<32x16xf32>
    %cst_25 = arith.constant dense<0xFF800000> : vector<32xf32>
    %58 = vector.multi_reduction <maximumf>, %57, %cst_25 [1] : vector<32x16xf32> to vector<32xf32>
    %59 = vector.shape_cast %58 : vector<32xf32> to vector<32x1xf32>
    %60 = vector.broadcast %59 : vector<32x1xf32> to vector<32x16xf32>
    %61 = arith.subf %57, %60 : vector<32x16xf32>
    %62 = math.exp %61 : vector<32x16xf32>
    %cst_26 = arith.constant dense<0.000000e+00> : vector<32xf32>
    %63 = vector.multi_reduction <add>, %62, %cst_26 [1] : vector<32x16xf32> to vector<32xf32>
    %64 = vector.shape_cast %63 : vector<32xf32> to vector<32x1xf32>
    %65 = tpu.reciprocal %64 {approx = true} : vector<32x1xf32> -> vector<32x1xf32>
    %66 = vector.broadcast %65 : vector<32x1xf32> to vector<32x16xf32>
    %67 = arith.mulf %62, %66 : vector<32x16xf32>
    %68 = arith.truncf %67 : vector<32x16xf32> to vector<32x16xbf16>
    %69 = vector.extract_strided_slice %16 {offsets = [0, 16], sizes = [16, 8], strides = [1, 1]} : vector<16x64xbf16> to vector<16x8xbf16>
    %cst_27 = arith.constant dense<0.000000e+00> : vector<32x8xf32>
    %70 = tpu.matmul %68, %69, %cst_27 {dimension_numbers = #tpu.dot_dimension_numbers<[1], [0], [0], [1], [0, 0, 1, 1], [], []>} : vector<32x16xbf16>, vector<16x8xbf16>, vector<32x8xf32> -> vector<32x8xf32>
    %71 = vector.extract_strided_slice %7 {offsets = [0, 24], sizes = [32, 8], strides = [1, 1]} : vector<32x64xf32> to vector<32x8xf32>
    %72 = vector.extract_strided_slice %14 {offsets = [0, 24], sizes = [16, 8], strides = [1, 1]} : vector<16x64xf32> to vector<16x8xf32>
    %cst_28 = arith.constant dense<0.000000e+00> : vector<32x16xf32>
    %73 = tpu.matmul %71, %72, %cst_28 {dimension_numbers = #tpu.dot_dimension_numbers<[1], [1], [0], [0], [0, 0, 1, 0], [], []>} : vector<32x8xf32>, vector<16x8xf32>, vector<32x16xf32> -> vector<32x16xf32>
    %cst_29 = arith.constant 0.353553385 : f32
    %74 = vector.broadcast %cst_29 : f32 to vector<32x16xf32>
    %75 = arith.mulf %73, %74 : vector<32x16xf32>
    %cst_30 = arith.constant dense<0xFF800000> : vector<32xf32>
    %76 = vector.multi_reduction <maximumf>, %75, %cst_30 [1] : vector<32x16xf32> to vector<32xf32>
    %77 = vector.shape_cast %76 : vector<32xf32> to vector<32x1xf32>
    %78 = vector.broadcast %77 : vector<32x1xf32> to vector<32x16xf32>
    %79 = arith.subf %75, %78 : vector<32x16xf32>
    %80 = math.exp %79 : vector<32x16xf32>
    %cst_31 = arith.constant dense<0.000000e+00> : vector<32xf32>
    %81 = vector.multi_reduction <add>, %80, %cst_31 [1] : vector<32x16xf32> to vector<32xf32>
    %82 = vector.shape_cast %81 : vector<32xf32> to vector<32x1xf32>
    %83 = tpu.reciprocal %82 {approx = true} : vector<32x1xf32> -> vector<32x1xf32>
    %84 = vector.broadcast %83 : vector<32x1xf32> to vector<32x16xf32>
    %85 = arith.mulf %80, %84 : vector<32x16xf32>
    %86 = arith.truncf %85 : vector<32x16xf32> to vector<32x16xbf16>
    %87 = vector.extract_strided_slice %16 {offsets = [0, 24], sizes = [16, 8], strides = [1, 1]} : vector<16x64xbf16> to vector<16x8xbf16>
    %cst_32 = arith.constant dense<0.000000e+00> : vector<32x8xf32>
    %88 = tpu.matmul %86, %87, %cst_32 {dimension_numbers = #tpu.dot_dimension_numbers<[1], [0], [0], [1], [0, 0, 1, 1], [], []>} : vector<32x16xbf16>, vector<16x8xbf16>, vector<32x8xf32> -> vector<32x8xf32>
    %89 = vector.extract_strided_slice %7 {offsets = [0, 32], sizes = [32, 8], strides = [1, 1]} : vector<32x64xf32> to vector<32x8xf32>
    %90 = vector.extract_strided_slice %14 {offsets = [0, 32], sizes = [16, 8], strides = [1, 1]} : vector<16x64xf32> to vector<16x8xf32>
    %cst_33 = arith.constant dense<0.000000e+00> : vector<32x16xf32>
    %91 = tpu.matmul %89, %90, %cst_33 {dimension_numbers = #tpu.dot_dimension_numbers<[1], [1], [0], [0], [0, 0, 1, 0], [], []>} : vector<32x8xf32>, vector<16x8xf32>, vector<32x16xf32> -> vector<32x16xf32>
    %cst_34 = arith.constant 0.353553385 : f32
    %92 = vector.broadcast %cst_34 : f32 to vector<32x16xf32>
    %93 = arith.mulf %91, %92 : vector<32x16xf32>
    %cst_35 = arith.constant dense<0xFF800000> : vector<32xf32>
    %94 = vector.multi_reduction <maximumf>, %93, %cst_35 [1] : vector<32x16xf32> to vector<32xf32>
    %95 = vector.shape_cast %94 : vector<32xf32> to vector<32x1xf32>
    %96 = vector.broadcast %95 : vector<32x1xf32> to vector<32x16xf32>
    %97 = arith.subf %93, %96 : vector<32x16xf32>
    %98 = math.exp %97 : vector<32x16xf32>
    %cst_36 = arith.constant dense<0.000000e+00> : vector<32xf32>
    %99 = vector.multi_reduction <add>, %98, %cst_36 [1] : vector<32x16xf32> to vector<32xf32>
    %100 = vector.shape_cast %99 : vector<32xf32> to vector<32x1xf32>
    %101 = tpu.reciprocal %100 {approx = true} : vector<32x1xf32> -> vector<32x1xf32>
    %102 = vector.broadcast %101 : vector<32x1xf32> to vector<32x16xf32>
    %103 = arith.mulf %98, %102 : vector<32x16xf32>
    %104 = arith.truncf %103 : vector<32x16xf32> to vector<32x16xbf16>
    %105 = vector.extract_strided_slice %16 {offsets = [0, 32], sizes = [16, 8], strides = [1, 1]} : vector<16x64xbf16> to vector<16x8xbf16>
    %cst_37 = arith.constant dense<0.000000e+00> : vector<32x8xf32>
    %106 = tpu.matmul %104, %105, %cst_37 {dimension_numbers = #tpu.dot_dimension_numbers<[1], [0], [0], [1], [0, 0, 1, 1], [], []>} : vector<32x16xbf16>, vector<16x8xbf16>, vector<32x8xf32> -> vector<32x8xf32>
    %107 = vector.extract_strided_slice %7 {offsets = [0, 40], sizes = [32, 8], strides = [1, 1]} : vector<32x64xf32> to vector<32x8xf32>
    %108 = vector.extract_strided_slice %14 {offsets = [0, 40], sizes = [16, 8], strides = [1, 1]} : vector<16x64xf32> to vector<16x8xf32>
    %cst_38 = arith.constant dense<0.000000e+00> : vector<32x16xf32>
    %109 = tpu.matmul %107, %108, %cst_38 {dimension_numbers = #tpu.dot_dimension_numbers<[1], [1], [0], [0], [0, 0, 1, 0], [], []>} : vector<32x8xf32>, vector<16x8xf32>, vector<32x16xf32> -> vector<32x16xf32>
    %cst_39 = arith.constant 0.353553385 : f32
    %110 = vector.broadcast %cst_39 : f32 to vector<32x16xf32>
    %111 = arith.mulf %109, %110 : vector<32x16xf32>
    %cst_40 = arith.constant dense<0xFF800000> : vector<32xf32>
    %112 = vector.multi_reduction <maximumf>, %111, %cst_40 [1] : vector<32x16xf32> to vector<32xf32>
    %113 = vector.shape_cast %112 : vector<32xf32> to vector<32x1xf32>
    %114 = vector.broadcast %113 : vector<32x1xf32> to vector<32x16xf32>
    %115 = arith.subf %111, %114 : vector<32x16xf32>
    %116 = math.exp %115 : vector<32x16xf32>
    %cst_41 = arith.constant dense<0.000000e+00> : vector<32xf32>
    %117 = vector.multi_reduction <add>, %116, %cst_41 [1] : vector<32x16xf32> to vector<32xf32>
    %118 = vector.shape_cast %117 : vector<32xf32> to vector<32x1xf32>
    %119 = tpu.reciprocal %118 {approx = true} : vector<32x1xf32> -> vector<32x1xf32>
    %120 = vector.broadcast %119 : vector<32x1xf32> to vector<32x16xf32>
    %121 = arith.mulf %116, %120 : vector<32x16xf32>
    %122 = arith.truncf %121 : vector<32x16xf32> to vector<32x16xbf16>
    %123 = vector.extract_strided_slice %16 {offsets = [0, 40], sizes = [16, 8], strides = [1, 1]} : vector<16x64xbf16> to vector<16x8xbf16>
    %cst_42 = arith.constant dense<0.000000e+00> : vector<32x8xf32>
    %124 = tpu.matmul %122, %123, %cst_42 {dimension_numbers = #tpu.dot_dimension_numbers<[1], [0], [0], [1], [0, 0, 1, 1], [], []>} : vector<32x16xbf16>, vector<16x8xbf16>, vector<32x8xf32> -> vector<32x8xf32>
    %125 = vector.extract_strided_slice %7 {offsets = [0, 48], sizes = [32, 8], strides = [1, 1]} : vector<32x64xf32> to vector<32x8xf32>
    %126 = vector.extract_strided_slice %14 {offsets = [0, 48], sizes = [16, 8], strides = [1, 1]} : vector<16x64xf32> to vector<16x8xf32>
    %cst_43 = arith.constant dense<0.000000e+00> : vector<32x16xf32>
    %127 = tpu.matmul %125, %126, %cst_43 {dimension_numbers = #tpu.dot_dimension_numbers<[1], [1], [0], [0], [0, 0, 1, 0], [], []>} : vector<32x8xf32>, vector<16x8xf32>, vector<32x16xf32> -> vector<32x16xf32>
    %cst_44 = arith.constant 0.353553385 : f32
    %128 = vector.broadcast %cst_44 : f32 to vector<32x16xf32>
    %129 = arith.mulf %127, %128 : vector<32x16xf32>
    %cst_45 = arith.constant dense<0xFF800000> : vector<32xf32>
    %130 = vector.multi_reduction <maximumf>, %129, %cst_45 [1] : vector<32x16xf32> to vector<32xf32>
    %131 = vector.shape_cast %130 : vector<32xf32> to vector<32x1xf32>
    %132 = vector.broadcast %131 : vector<32x1xf32> to vector<32x16xf32>
    %133 = arith.subf %129, %132 : vector<32x16xf32>
    %134 = math.exp %133 : vector<32x16xf32>
    %cst_46 = arith.constant dense<0.000000e+00> : vector<32xf32>
    %135 = vector.multi_reduction <add>, %134, %cst_46 [1] : vector<32x16xf32> to vector<32xf32>
    %136 = vector.shape_cast %135 : vector<32xf32> to vector<32x1xf32>
    %137 = tpu.reciprocal %136 {approx = true} : vector<32x1xf32> -> vector<32x1xf32>
    %138 = vector.broadcast %137 : vector<32x1xf32> to vector<32x16xf32>
    %139 = arith.mulf %134, %138 : vector<32x16xf32>
    %140 = arith.truncf %139 : vector<32x16xf32> to vector<32x16xbf16>
    %141 = vector.extract_strided_slice %16 {offsets = [0, 48], sizes = [16, 8], strides = [1, 1]} : vector<16x64xbf16> to vector<16x8xbf16>
    %cst_47 = arith.constant dense<0.000000e+00> : vector<32x8xf32>
    %142 = tpu.matmul %140, %141, %cst_47 {dimension_numbers = #tpu.dot_dimension_numbers<[1], [0], [0], [1], [0, 0, 1, 1], [], []>} : vector<32x16xbf16>, vector<16x8xbf16>, vector<32x8xf32> -> vector<32x8xf32>
    %143 = vector.extract_strided_slice %7 {offsets = [0, 56], sizes = [32, 8], strides = [1, 1]} : vector<32x64xf32> to vector<32x8xf32>
    %144 = vector.extract_strided_slice %14 {offsets = [0, 56], sizes = [16, 8], strides = [1, 1]} : vector<16x64xf32> to vector<16x8xf32>
    %cst_48 = arith.constant dense<0.000000e+00> : vector<32x16xf32>
    %145 = tpu.matmul %143, %144, %cst_48 {dimension_numbers = #tpu.dot_dimension_numbers<[1], [1], [0], [0], [0, 0, 1, 0], [], []>} : vector<32x8xf32>, vector<16x8xf32>, vector<32x16xf32> -> vector<32x16xf32>
    %cst_49 = arith.constant 0.353553385 : f32
    %146 = vector.broadcast %cst_49 : f32 to vector<32x16xf32>
    %147 = arith.mulf %145, %146 : vector<32x16xf32>
    %cst_50 = arith.constant dense<0xFF800000> : vector<32xf32>
    %148 = vector.multi_reduction <maximumf>, %147, %cst_50 [1] : vector<32x16xf32> to vector<32xf32>
    %149 = vector.shape_cast %148 : vector<32xf32> to vector<32x1xf32>
    %150 = vector.broadcast %149 : vector<32x1xf32> to vector<32x16xf32>
    %151 = arith.subf %147, %150 : vector<32x16xf32>
    %152 = math.exp %151 : vector<32x16xf32>
    %cst_51 = arith.constant dense<0.000000e+00> : vector<32xf32>
    %153 = vector.multi_reduction <add>, %152, %cst_51 [1] : vector<32x16xf32> to vector<32xf32>
    %154 = vector.shape_cast %153 : vector<32xf32> to vector<32x1xf32>
    %155 = tpu.reciprocal %154 {approx = true} : vector<32x1xf32> -> vector<32x1xf32>
    %156 = vector.broadcast %155 : vector<32x1xf32> to vector<32x16xf32>
    %157 = arith.mulf %152, %156 : vector<32x16xf32>
    %158 = arith.truncf %157 : vector<32x16xf32> to vector<32x16xbf16>
    %159 = vector.extract_strided_slice %16 {offsets = [0, 56], sizes = [16, 8], strides = [1, 1]} : vector<16x64xbf16> to vector<16x8xbf16>
    %cst_52 = arith.constant dense<0.000000e+00> : vector<32x8xf32>
    %160 = tpu.matmul %158, %159, %cst_52 {dimension_numbers = #tpu.dot_dimension_numbers<[1], [0], [0], [1], [0, 0, 1, 1], [], []>} : vector<32x16xbf16>, vector<16x8xbf16>, vector<32x8xf32> -> vector<32x8xf32>
    %161 = tpu.concatenate %34, %52, %70, %88, %106, %124, %142, %160 in 1 : vector<32x8xf32>, vector<32x8xf32>, vector<32x8xf32>, vector<32x8xf32>, vector<32x8xf32>, vector<32x8xf32>, vector<32x8xf32>, vector<32x8xf32> -> vector<32x64xf32>
    %162 = arith.truncf %161 : vector<32x64xf32> to vector<32x64xbf16>
    %c0_53 = arith.constant 0 : index
    %c0_54 = arith.constant 0 : index
    %163 = vector.load %arg7[%c0_53, %c0_54] : memref<64x64xbf16, #tpu.memory_space<vmem>>, vector<64x64xbf16>
    %cst_55 = arith.constant dense<0.000000e+00> : vector<32x64xf32>
    %164 = tpu.matmul %162, %163, %cst_55 {dimension_numbers = #tpu.dot_dimension_numbers<[1], [0], [0], [1], [0, 0, 1, 1], [], []>} : vector<32x64xbf16>, vector<64x64xbf16>, vector<32x64xf32> -> vector<32x64xf32>
    %c0_56 = arith.constant 0 : index
    %c0_57 = arith.constant 0 : index
    %165 = vector.load %arg8[%c0_56, %c0_57] : memref<1x64xf32, #tpu.memory_space<vmem>>, vector<1x64xf32>
    %166 = vector.broadcast %165 : vector<1x64xf32> to vector<32x64xf32>
    %167 = arith.addf %164, %166 : vector<32x64xf32>
    %168 = tpu.concatenate %167, %1 in 0 : vector<32x64xf32>, vector<16x64xf32> -> vector<48x64xf32>
    %169 = tpu.iota {dimensions = array<i32: 0>} : vector<48x64xi32>
    %c0_i32 = arith.constant 0 : i32
    %170 = vector.broadcast %c0_i32 : i32 to vector<48x64xi32>
    %171 = arith.cmpi eq, %169, %170 : vector<48x64xi32>
    %c1_i32 = arith.constant 1 : i32
    %172 = tpu.dynamic_rotate %168 by %c1_i32 dim 0 : vector<48x64xf32>, i32 -> vector<48x64xf32>
    %cst_58 = arith.constant 0.000000e+00 : f32
    %173 = vector.broadcast %cst_58 : f32 to vector<48x64xf32>
    %174 = arith.select %171, %173, %172 : vector<48x64xi1>, vector<48x64xf32>
    %c47_i32 = arith.constant 47 : i32
    %175 = vector.broadcast %c47_i32 : i32 to vector<48x64xi32>
    %176 = arith.cmpi eq, %169, %175 : vector<48x64xi32>
    %c47_i32_59 = arith.constant 47 : i32
    %177 = tpu.dynamic_rotate %168 by %c47_i32_59 dim 0 : vector<48x64xf32>, i32 -> vector<48x64xf32>
    %cst_60 = arith.constant 0.000000e+00 : f32
    %178 = vector.broadcast %cst_60 : f32 to vector<48x64xf32>
    %179 = arith.select %176, %178, %177 : vector<48x64xi1>, vector<48x64xf32>
    %180 = arith.truncf %174 : vector<48x64xf32> to vector<48x64xbf16>
    %c0_61 = arith.constant 0 : index
    %c0_62 = arith.constant 0 : index
    %c0_63 = arith.constant 0 : index
    %181 = vector.load %arg9[%c0_61, %c0_62, %c0_63] : memref<3x64x64xbf16, #tpu.memory_space<vmem>>, vector<1x64x64xbf16>
    %182 = vector.shape_cast %181 : vector<1x64x64xbf16> to vector<64x64xbf16>
    %cst_64 = arith.constant dense<0.000000e+00> : vector<48x64xf32>
    %183 = tpu.matmul %180, %182, %cst_64 {dimension_numbers = #tpu.dot_dimension_numbers<[1], [0], [0], [1], [0, 0, 1, 1], [], []>} : vector<48x64xbf16>, vector<64x64xbf16>, vector<48x64xf32> -> vector<48x64xf32>
    %184 = arith.truncf %168 : vector<48x64xf32> to vector<48x64xbf16>
    %c1 = arith.constant 1 : index
    %c0_65 = arith.constant 0 : index
    %c0_66 = arith.constant 0 : index
    %185 = vector.load %arg9[%c1, %c0_65, %c0_66] : memref<3x64x64xbf16, #tpu.memory_space<vmem>>, vector<1x64x64xbf16>
    %186 = vector.shape_cast %185 : vector<1x64x64xbf16> to vector<64x64xbf16>
    %cst_67 = arith.constant dense<0.000000e+00> : vector<48x64xf32>
    %187 = tpu.matmul %184, %186, %cst_67 {dimension_numbers = #tpu.dot_dimension_numbers<[1], [0], [0], [1], [0, 0, 1, 1], [], []>} : vector<48x64xbf16>, vector<64x64xbf16>, vector<48x64xf32> -> vector<48x64xf32>
    %188 = arith.addf %183, %187 : vector<48x64xf32>
    %189 = arith.truncf %179 : vector<48x64xf32> to vector<48x64xbf16>
    %c2 = arith.constant 2 : index
    %c0_68 = arith.constant 0 : index
    %c0_69 = arith.constant 0 : index
    %190 = vector.load %arg9[%c2, %c0_68, %c0_69] : memref<3x64x64xbf16, #tpu.memory_space<vmem>>, vector<1x64x64xbf16>
    %191 = vector.shape_cast %190 : vector<1x64x64xbf16> to vector<64x64xbf16>
    %cst_70 = arith.constant dense<0.000000e+00> : vector<48x64xf32>
    %192 = tpu.matmul %189, %191, %cst_70 {dimension_numbers = #tpu.dot_dimension_numbers<[1], [0], [0], [1], [0, 0, 1, 1], [], []>} : vector<48x64xbf16>, vector<64x64xbf16>, vector<48x64xf32> -> vector<48x64xf32>
    %193 = arith.addf %188, %192 : vector<48x64xf32>
    %c0_71 = arith.constant 0 : index
    %c0_72 = arith.constant 0 : index
    %194 = vector.load %arg10[%c0_71, %c0_72] : memref<1x64xf32, #tpu.memory_space<vmem>>, vector<1x64xf32>
    %195 = vector.broadcast %194 : vector<1x64xf32> to vector<48x64xf32>
    %196 = arith.addf %193, %195 : vector<48x64xf32>
    %cst_73 = arith.constant dense<0.000000e+00> : vector<64xf32>
    %197 = vector.multi_reduction <add>, %196, %cst_73 [0] : vector<48x64xf32> to vector<64xf32>
    %198 = vector.shape_cast %197 : vector<64xf32> to vector<1x64xf32>
    %199 = tpu.iota {dimensions = array<i32: 1>} : vector<1x64xi32>
    %c2_i32 = arith.constant 2 : i32
    %c0_i32_74 = arith.constant 0 : i32
    %200 = arith.cmpi eq, %c2_i32, %c0_i32_74 : i32
    %c1_i32_75 = arith.constant 1 : i32
    %201 = arith.select %200, %c1_i32_75, %c2_i32 : i32
    %202 = vector.broadcast %201 : i32 to vector<1x64xi32>
    %203 = arith.remsi %199, %202 : vector<1x64xi32>
    %c0_i32_76 = arith.constant 0 : i32
    %204 = vector.broadcast %c0_i32_76 : i32 to vector<1x64xi32>
    %205 = arith.cmpi ne, %203, %204 : vector<1x64xi32>
    %c0_i32_77 = arith.constant 0 : i32
    %206 = vector.broadcast %c0_i32_77 : i32 to vector<1x64xi32>
    %207 = arith.cmpi slt, %203, %206 : vector<1x64xi32>
    %c0_i32_78 = arith.constant 0 : i32
    %208 = arith.cmpi slt, %201, %c0_i32_78 : i32
    %209 = vector.broadcast %208 : i1 to vector<1x64xi1>
    %210 = vector.broadcast %209 : vector<1x64xi1> to vector<1x64xi1>
    %211 = arith.xori %207, %210 : vector<1x64xi1>
    %212 = arith.andi %211, %205 : vector<1x64xi1>
    %213 = vector.broadcast %201 : i32 to vector<1x64xi32>
    %214 = arith.addi %203, %213 : vector<1x64xi32>
    %215 = arith.select %212, %214, %203 : vector<1x64xi1>, vector<1x64xi32>
    %c63_i32 = arith.constant 63 : i32
    %216 = tpu.dynamic_rotate %198 by %c63_i32 dim 1 : vector<1x64xf32>, i32 -> vector<1x64xf32>
    %c1_i32_79 = arith.constant 1 : i32
    %217 = tpu.dynamic_rotate %198 by %c1_i32_79 dim 1 : vector<1x64xf32>, i32 -> vector<1x64xf32>
    %c1_i32_80 = arith.constant 1 : i32
    %218 = vector.broadcast %c1_i32_80 : i32 to vector<1x64xi32>
    %219 = arith.cmpi slt, %215, %218 : vector<1x64xi32>
    %220 = arith.select %219, %216, %217 : vector<1x64xi1>, vector<1x64xf32>
    %221 = arith.addf %198, %220 : vector<1x64xf32>
    %cst_81 = arith.constant 0.010416667 : f32
    %222 = vector.broadcast %cst_81 : f32 to vector<1x64xf32>
    %223 = arith.mulf %221, %222 : vector<1x64xf32>
    %224 = vector.broadcast %223 : vector<1x64xf32> to vector<48x64xf32>
    %225 = arith.subf %196, %224 : vector<48x64xf32>
    %226 = arith.mulf %225, %225 : vector<48x64xf32>
    %cst_82 = arith.constant dense<0.000000e+00> : vector<64xf32>
    %227 = vector.multi_reduction <add>, %226, %cst_82 [0] : vector<48x64xf32> to vector<64xf32>
    %228 = vector.shape_cast %227 : vector<64xf32> to vector<1x64xf32>
    %229 = tpu.iota {dimensions = array<i32: 1>} : vector<1x64xi32>
    %c2_i32_83 = arith.constant 2 : i32
    %c0_i32_84 = arith.constant 0 : i32
    %230 = arith.cmpi eq, %c2_i32_83, %c0_i32_84 : i32
    %c1_i32_85 = arith.constant 1 : i32
    %231 = arith.select %230, %c1_i32_85, %c2_i32_83 : i32
    %232 = vector.broadcast %231 : i32 to vector<1x64xi32>
    %233 = arith.remsi %229, %232 : vector<1x64xi32>
    %c0_i32_86 = arith.constant 0 : i32
    %234 = vector.broadcast %c0_i32_86 : i32 to vector<1x64xi32>
    %235 = arith.cmpi ne, %233, %234 : vector<1x64xi32>
    %c0_i32_87 = arith.constant 0 : i32
    %236 = vector.broadcast %c0_i32_87 : i32 to vector<1x64xi32>
    %237 = arith.cmpi slt, %233, %236 : vector<1x64xi32>
    %c0_i32_88 = arith.constant 0 : i32
    %238 = arith.cmpi slt, %231, %c0_i32_88 : i32
    %239 = vector.broadcast %238 : i1 to vector<1x64xi1>
    %240 = vector.broadcast %239 : vector<1x64xi1> to vector<1x64xi1>
    %241 = arith.xori %237, %240 : vector<1x64xi1>
    %242 = arith.andi %241, %235 : vector<1x64xi1>
    %243 = vector.broadcast %231 : i32 to vector<1x64xi32>
    %244 = arith.addi %233, %243 : vector<1x64xi32>
    %245 = arith.select %242, %244, %233 : vector<1x64xi1>, vector<1x64xi32>
    %c63_i32_89 = arith.constant 63 : i32
    %246 = tpu.dynamic_rotate %228 by %c63_i32_89 dim 1 : vector<1x64xf32>, i32 -> vector<1x64xf32>
    %c1_i32_90 = arith.constant 1 : i32
    %247 = tpu.dynamic_rotate %228 by %c1_i32_90 dim 1 : vector<1x64xf32>, i32 -> vector<1x64xf32>
    %c1_i32_91 = arith.constant 1 : i32
    %248 = vector.broadcast %c1_i32_91 : i32 to vector<1x64xi32>
    %249 = arith.cmpi slt, %245, %248 : vector<1x64xi32>
    %250 = arith.select %249, %246, %247 : vector<1x64xi1>, vector<1x64xf32>
    %251 = arith.addf %228, %250 : vector<1x64xf32>
    %cst_92 = arith.constant 0.010416667 : f32
    %252 = vector.broadcast %cst_92 : f32 to vector<1x64xf32>
    %253 = arith.mulf %251, %252 : vector<1x64xf32>
    %cst_93 = arith.constant 9.99999974E-6 : f32
    %254 = vector.broadcast %cst_93 : f32 to vector<1x64xf32>
    %255 = arith.addf %253, %254 : vector<1x64xf32>
    %256 = math.rsqrt %255 : vector<1x64xf32>
    %257 = vector.broadcast %256 : vector<1x64xf32> to vector<48x64xf32>
    %258 = arith.mulf %225, %257 : vector<48x64xf32>
    %c0_94 = arith.constant 0 : index
    %c0_95 = arith.constant 0 : index
    %c0_96 = arith.constant 0 : index
    %259 = vector.load %arg11[%c0_94, %c0_95, %c0_96] : memref<3x1x64xf32, #tpu.memory_space<vmem>>, vector<1x1x64xf32>
    %260 = vector.shape_cast %259 : vector<1x1x64xf32> to vector<1x64xf32>
    %261 = vector.broadcast %260 : vector<1x64xf32> to vector<48x64xf32>
    %262 = arith.mulf %258, %261 : vector<48x64xf32>
    %c0_97 = arith.constant 0 : index
    %c0_98 = arith.constant 0 : index
    %c0_99 = arith.constant 0 : index
    %263 = vector.load %arg12[%c0_97, %c0_98, %c0_99] : memref<3x1x64xf32, #tpu.memory_space<vmem>>, vector<1x1x64xf32>
    %264 = vector.shape_cast %263 : vector<1x1x64xf32> to vector<1x64xf32>
    %265 = vector.broadcast %264 : vector<1x64xf32> to vector<48x64xf32>
    %266 = arith.addf %262, %265 : vector<48x64xf32>
    %267 = arith.truncf %266 : vector<48x64xf32> to vector<48x64xbf16>
    %c0_100 = arith.constant 0 : index
    %c0_101 = arith.constant 0 : index
    %c0_102 = arith.constant 0 : index
    %268 = vector.load %arg13[%c0_100, %c0_101, %c0_102] : memref<3x64x192xbf16, #tpu.memory_space<vmem>>, vector<1x64x192xbf16>
    %269 = vector.shape_cast %268 : vector<1x64x192xbf16> to vector<64x192xbf16>
    %cst_103 = arith.constant dense<0.000000e+00> : vector<48x192xf32>
    %270 = tpu.matmul %267, %269, %cst_103 {dimension_numbers = #tpu.dot_dimension_numbers<[1], [0], [0], [1], [0, 0, 1, 1], [], []>} : vector<48x64xbf16>, vector<64x192xbf16>, vector<48x192xf32> -> vector<48x192xf32>
    %c0_104 = arith.constant 0 : index
    %c0_105 = arith.constant 0 : index
    %c0_106 = arith.constant 0 : index
    %271 = vector.load %arg14[%c0_104, %c0_105, %c0_106] : memref<3x1x192xf32, #tpu.memory_space<vmem>>, vector<1x1x192xf32>
    %272 = vector.shape_cast %271 : vector<1x1x192xf32> to vector<1x192xf32>
    %273 = vector.broadcast %272 : vector<1x192xf32> to vector<48x192xf32>
    %274 = arith.addf %270, %273 : vector<48x192xf32>
    %275 = vector.extract_strided_slice %274 {offsets = [0, 0], sizes = [48, 64], strides = [1, 1]} : vector<48x192xf32> to vector<48x64xf32>
    %276 = vector.extract_strided_slice %274 {offsets = [0, 64], sizes = [48, 64], strides = [1, 1]} : vector<48x192xf32> to vector<48x64xf32>
    %277 = vector.extract_strided_slice %274 {offsets = [0, 128], sizes = [48, 64], strides = [1, 1]} : vector<48x192xf32> to vector<48x64xf32>
    %278 = arith.truncf %277 : vector<48x64xf32> to vector<48x64xbf16>
    %279 = vector.extract_strided_slice %275 {offsets = [0, 0], sizes = [48, 8], strides = [1, 1]} : vector<48x64xf32> to vector<48x8xf32>
    %280 = vector.extract_strided_slice %276 {offsets = [0, 0], sizes = [48, 8], strides = [1, 1]} : vector<48x64xf32> to vector<48x8xf32>
    %cst_107 = arith.constant dense<0.000000e+00> : vector<48x48xf32>
    %281 = tpu.matmul %279, %280, %cst_107 {dimension_numbers = #tpu.dot_dimension_numbers<[1], [1], [0], [0], [0, 0, 1, 0], [], []>} : vector<48x8xf32>, vector<48x8xf32>, vector<48x48xf32> -> vector<48x48xf32>
    %cst_108 = arith.constant 0.353553385 : f32
    %282 = vector.broadcast %cst_108 : f32 to vector<48x48xf32>
    %283 = arith.mulf %281, %282 : vector<48x48xf32>
    %c0_109 = arith.constant 0 : index
    %c0_110 = arith.constant 0 : index
    %c0_111 = arith.constant 0 : index
    %c0_112 = arith.constant 0 : index
    %284 = vector.load %arg17[%c0_109, %c0_110, %c0_111, %c0_112] : memref<3x8x48x48xbf16, #tpu.memory_space<vmem>>, vector<1x1x48x48xbf16>
    %285 = vector.shape_cast %284 : vector<1x1x48x48xbf16> to vector<48x48xbf16>
    %286 = arith.extf %285 : vector<48x48xbf16> to vector<48x48xf32>
    %287 = arith.addf %283, %286 : vector<48x48xf32>
    %cst_113 = arith.constant dense<0xFF800000> : vector<48xf32>
    %288 = vector.multi_reduction <maximumf>, %287, %cst_113 [1] : vector<48x48xf32> to vector<48xf32>
    %289 = vector.shape_cast %288 : vector<48xf32> to vector<48x1xf32>
    %290 = vector.broadcast %289 : vector<48x1xf32> to vector<48x48xf32>
    %291 = arith.subf %287, %290 : vector<48x48xf32>
    %292 = math.exp %291 : vector<48x48xf32>
    %cst_114 = arith.constant dense<0.000000e+00> : vector<48xf32>
    %293 = vector.multi_reduction <add>, %292, %cst_114 [1] : vector<48x48xf32> to vector<48xf32>
    %294 = vector.shape_cast %293 : vector<48xf32> to vector<48x1xf32>
    %295 = tpu.reciprocal %294 {approx = true} : vector<48x1xf32> -> vector<48x1xf32>
    %296 = vector.broadcast %295 : vector<48x1xf32> to vector<48x48xf32>
    %297 = arith.mulf %292, %296 : vector<48x48xf32>
    %298 = arith.truncf %297 : vector<48x48xf32> to vector<48x48xbf16>
    %299 = vector.extract_strided_slice %278 {offsets = [0, 0], sizes = [48, 8], strides = [1, 1]} : vector<48x64xbf16> to vector<48x8xbf16>
    %cst_115 = arith.constant dense<0.000000e+00> : vector<48x8xf32>
    %300 = tpu.matmul %298, %299, %cst_115 {dimension_numbers = #tpu.dot_dimension_numbers<[1], [0], [0], [1], [0, 0, 1, 1], [], []>} : vector<48x48xbf16>, vector<48x8xbf16>, vector<48x8xf32> -> vector<48x8xf32>
    %301 = vector.extract_strided_slice %275 {offsets = [0, 8], sizes = [48, 8], strides = [1, 1]} : vector<48x64xf32> to vector<48x8xf32>
    %302 = vector.extract_strided_slice %276 {offsets = [0, 8], sizes = [48, 8], strides = [1, 1]} : vector<48x64xf32> to vector<48x8xf32>
    %cst_116 = arith.constant dense<0.000000e+00> : vector<48x48xf32>
    %303 = tpu.matmul %301, %302, %cst_116 {dimension_numbers = #tpu.dot_dimension_numbers<[1], [1], [0], [0], [0, 0, 1, 0], [], []>} : vector<48x8xf32>, vector<48x8xf32>, vector<48x48xf32> -> vector<48x48xf32>
    %cst_117 = arith.constant 0.353553385 : f32
    %304 = vector.broadcast %cst_117 : f32 to vector<48x48xf32>
    %305 = arith.mulf %303, %304 : vector<48x48xf32>
    %c0_118 = arith.constant 0 : index
    %c1_119 = arith.constant 1 : index
    %c0_120 = arith.constant 0 : index
    %c0_121 = arith.constant 0 : index
    %306 = vector.load %arg17[%c0_118, %c1_119, %c0_120, %c0_121] : memref<3x8x48x48xbf16, #tpu.memory_space<vmem>>, vector<1x1x48x48xbf16>
    %307 = vector.shape_cast %306 : vector<1x1x48x48xbf16> to vector<48x48xbf16>
    %308 = arith.extf %307 : vector<48x48xbf16> to vector<48x48xf32>
    %309 = arith.addf %305, %308 : vector<48x48xf32>
    %cst_122 = arith.constant dense<0xFF800000> : vector<48xf32>
    %310 = vector.multi_reduction <maximumf>, %309, %cst_122 [1] : vector<48x48xf32> to vector<48xf32>
    %311 = vector.shape_cast %310 : vector<48xf32> to vector<48x1xf32>
    %312 = vector.broadcast %311 : vector<48x1xf32> to vector<48x48xf32>
    %313 = arith.subf %309, %312 : vector<48x48xf32>
    %314 = math.exp %313 : vector<48x48xf32>
    %cst_123 = arith.constant dense<0.000000e+00> : vector<48xf32>
    %315 = vector.multi_reduction <add>, %314, %cst_123 [1] : vector<48x48xf32> to vector<48xf32>
    %316 = vector.shape_cast %315 : vector<48xf32> to vector<48x1xf32>
    %317 = tpu.reciprocal %316 {approx = true} : vector<48x1xf32> -> vector<48x1xf32>
    %318 = vector.broadcast %317 : vector<48x1xf32> to vector<48x48xf32>
    %319 = arith.mulf %314, %318 : vector<48x48xf32>
    %320 = arith.truncf %319 : vector<48x48xf32> to vector<48x48xbf16>
    %321 = vector.extract_strided_slice %278 {offsets = [0, 8], sizes = [48, 8], strides = [1, 1]} : vector<48x64xbf16> to vector<48x8xbf16>
    %cst_124 = arith.constant dense<0.000000e+00> : vector<48x8xf32>
    %322 = tpu.matmul %320, %321, %cst_124 {dimension_numbers = #tpu.dot_dimension_numbers<[1], [0], [0], [1], [0, 0, 1, 1], [], []>} : vector<48x48xbf16>, vector<48x8xbf16>, vector<48x8xf32> -> vector<48x8xf32>
    %323 = vector.extract_strided_slice %275 {offsets = [0, 16], sizes = [48, 8], strides = [1, 1]} : vector<48x64xf32> to vector<48x8xf32>
    %324 = vector.extract_strided_slice %276 {offsets = [0, 16], sizes = [48, 8], strides = [1, 1]} : vector<48x64xf32> to vector<48x8xf32>
    %cst_125 = arith.constant dense<0.000000e+00> : vector<48x48xf32>
    %325 = tpu.matmul %323, %324, %cst_125 {dimension_numbers = #tpu.dot_dimension_numbers<[1], [1], [0], [0], [0, 0, 1, 0], [], []>} : vector<48x8xf32>, vector<48x8xf32>, vector<48x48xf32> -> vector<48x48xf32>
    %cst_126 = arith.constant 0.353553385 : f32
    %326 = vector.broadcast %cst_126 : f32 to vector<48x48xf32>
    %327 = arith.mulf %325, %326 : vector<48x48xf32>
    %c0_127 = arith.constant 0 : index
    %c2_128 = arith.constant 2 : index
    %c0_129 = arith.constant 0 : index
    %c0_130 = arith.constant 0 : index
    %328 = vector.load %arg17[%c0_127, %c2_128, %c0_129, %c0_130] : memref<3x8x48x48xbf16, #tpu.memory_space<vmem>>, vector<1x1x48x48xbf16>
    %329 = vector.shape_cast %328 : vector<1x1x48x48xbf16> to vector<48x48xbf16>
    %330 = arith.extf %329 : vector<48x48xbf16> to vector<48x48xf32>
    %331 = arith.addf %327, %330 : vector<48x48xf32>
    %cst_131 = arith.constant dense<0xFF800000> : vector<48xf32>
    %332 = vector.multi_reduction <maximumf>, %331, %cst_131 [1] : vector<48x48xf32> to vector<48xf32>
    %333 = vector.shape_cast %332 : vector<48xf32> to vector<48x1xf32>
    %334 = vector.broadcast %333 : vector<48x1xf32> to vector<48x48xf32>
    %335 = arith.subf %331, %334 : vector<48x48xf32>
    %336 = math.exp %335 : vector<48x48xf32>
    %cst_132 = arith.constant dense<0.000000e+00> : vector<48xf32>
    %337 = vector.multi_reduction <add>, %336, %cst_132 [1] : vector<48x48xf32> to vector<48xf32>
    %338 = vector.shape_cast %337 : vector<48xf32> to vector<48x1xf32>
    %339 = tpu.reciprocal %338 {approx = true} : vector<48x1xf32> -> vector<48x1xf32>
    %340 = vector.broadcast %339 : vector<48x1xf32> to vector<48x48xf32>
    %341 = arith.mulf %336, %340 : vector<48x48xf32>
    %342 = arith.truncf %341 : vector<48x48xf32> to vector<48x48xbf16>
    %343 = vector.extract_strided_slice %278 {offsets = [0, 16], sizes = [48, 8], strides = [1, 1]} : vector<48x64xbf16> to vector<48x8xbf16>
    %cst_133 = arith.constant dense<0.000000e+00> : vector<48x8xf32>
    %344 = tpu.matmul %342, %343, %cst_133 {dimension_numbers = #tpu.dot_dimension_numbers<[1], [0], [0], [1], [0, 0, 1, 1], [], []>} : vector<48x48xbf16>, vector<48x8xbf16>, vector<48x8xf32> -> vector<48x8xf32>
    %345 = vector.extract_strided_slice %275 {offsets = [0, 24], sizes = [48, 8], strides = [1, 1]} : vector<48x64xf32> to vector<48x8xf32>
    %346 = vector.extract_strided_slice %276 {offsets = [0, 24], sizes = [48, 8], strides = [1, 1]} : vector<48x64xf32> to vector<48x8xf32>
    %cst_134 = arith.constant dense<0.000000e+00> : vector<48x48xf32>
    %347 = tpu.matmul %345, %346, %cst_134 {dimension_numbers = #tpu.dot_dimension_numbers<[1], [1], [0], [0], [0, 0, 1, 0], [], []>} : vector<48x8xf32>, vector<48x8xf32>, vector<48x48xf32> -> vector<48x48xf32>
    %cst_135 = arith.constant 0.353553385 : f32
    %348 = vector.broadcast %cst_135 : f32 to vector<48x48xf32>
    %349 = arith.mulf %347, %348 : vector<48x48xf32>
    %c0_136 = arith.constant 0 : index
    %c3 = arith.constant 3 : index
    %c0_137 = arith.constant 0 : index
    %c0_138 = arith.constant 0 : index
    %350 = vector.load %arg17[%c0_136, %c3, %c0_137, %c0_138] : memref<3x8x48x48xbf16, #tpu.memory_space<vmem>>, vector<1x1x48x48xbf16>
    %351 = vector.shape_cast %350 : vector<1x1x48x48xbf16> to vector<48x48xbf16>
    %352 = arith.extf %351 : vector<48x48xbf16> to vector<48x48xf32>
    %353 = arith.addf %349, %352 : vector<48x48xf32>
    %cst_139 = arith.constant dense<0xFF800000> : vector<48xf32>
    %354 = vector.multi_reduction <maximumf>, %353, %cst_139 [1] : vector<48x48xf32> to vector<48xf32>
    %355 = vector.shape_cast %354 : vector<48xf32> to vector<48x1xf32>
    %356 = vector.broadcast %355 : vector<48x1xf32> to vector<48x48xf32>
    %357 = arith.subf %353, %356 : vector<48x48xf32>
    %358 = math.exp %357 : vector<48x48xf32>
    %cst_140 = arith.constant dense<0.000000e+00> : vector<48xf32>
    %359 = vector.multi_reduction <add>, %358, %cst_140 [1] : vector<48x48xf32> to vector<48xf32>
    %360 = vector.shape_cast %359 : vector<48xf32> to vector<48x1xf32>
    %361 = tpu.reciprocal %360 {approx = true} : vector<48x1xf32> -> vector<48x1xf32>
    %362 = vector.broadcast %361 : vector<48x1xf32> to vector<48x48xf32>
    %363 = arith.mulf %358, %362 : vector<48x48xf32>
    %364 = arith.truncf %363 : vector<48x48xf32> to vector<48x48xbf16>
    %365 = vector.extract_strided_slice %278 {offsets = [0, 24], sizes = [48, 8], strides = [1, 1]} : vector<48x64xbf16> to vector<48x8xbf16>
    %cst_141 = arith.constant dense<0.000000e+00> : vector<48x8xf32>
    %366 = tpu.matmul %364, %365, %cst_141 {dimension_numbers = #tpu.dot_dimension_numbers<[1], [0], [0], [1], [0, 0, 1, 1], [], []>} : vector<48x48xbf16>, vector<48x8xbf16>, vector<48x8xf32> -> vector<48x8xf32>
    %367 = vector.extract_strided_slice %275 {offsets = [0, 32], sizes = [48, 8], strides = [1, 1]} : vector<48x64xf32> to vector<48x8xf32>
    %368 = vector.extract_strided_slice %276 {offsets = [0, 32], sizes = [48, 8], strides = [1, 1]} : vector<48x64xf32> to vector<48x8xf32>
    %cst_142 = arith.constant dense<0.000000e+00> : vector<48x48xf32>
    %369 = tpu.matmul %367, %368, %cst_142 {dimension_numbers = #tpu.dot_dimension_numbers<[1], [1], [0], [0], [0, 0, 1, 0], [], []>} : vector<48x8xf32>, vector<48x8xf32>, vector<48x48xf32> -> vector<48x48xf32>
    %cst_143 = arith.constant 0.353553385 : f32
    %370 = vector.broadcast %cst_143 : f32 to vector<48x48xf32>
    %371 = arith.mulf %369, %370 : vector<48x48xf32>
    %c0_144 = arith.constant 0 : index
    %c4 = arith.constant 4 : index
    %c0_145 = arith.constant 0 : index
    %c0_146 = arith.constant 0 : index
    %372 = vector.load %arg17[%c0_144, %c4, %c0_145, %c0_146] : memref<3x8x48x48xbf16, #tpu.memory_space<vmem>>, vector<1x1x48x48xbf16>
    %373 = vector.shape_cast %372 : vector<1x1x48x48xbf16> to vector<48x48xbf16>
    %374 = arith.extf %373 : vector<48x48xbf16> to vector<48x48xf32>
    %375 = arith.addf %371, %374 : vector<48x48xf32>
    %cst_147 = arith.constant dense<0xFF800000> : vector<48xf32>
    %376 = vector.multi_reduction <maximumf>, %375, %cst_147 [1] : vector<48x48xf32> to vector<48xf32>
    %377 = vector.shape_cast %376 : vector<48xf32> to vector<48x1xf32>
    %378 = vector.broadcast %377 : vector<48x1xf32> to vector<48x48xf32>
    %379 = arith.subf %375, %378 : vector<48x48xf32>
    %380 = math.exp %379 : vector<48x48xf32>
    %cst_148 = arith.constant dense<0.000000e+00> : vector<48xf32>
    %381 = vector.multi_reduction <add>, %380, %cst_148 [1] : vector<48x48xf32> to vector<48xf32>
    %382 = vector.shape_cast %381 : vector<48xf32> to vector<48x1xf32>
    %383 = tpu.reciprocal %382 {approx = true} : vector<48x1xf32> -> vector<48x1xf32>
    %384 = vector.broadcast %383 : vector<48x1xf32> to vector<48x48xf32>
    %385 = arith.mulf %380, %384 : vector<48x48xf32>
    %386 = arith.truncf %385 : vector<48x48xf32> to vector<48x48xbf16>
    %387 = vector.extract_strided_slice %278 {offsets = [0, 32], sizes = [48, 8], strides = [1, 1]} : vector<48x64xbf16> to vector<48x8xbf16>
    %cst_149 = arith.constant dense<0.000000e+00> : vector<48x8xf32>
    %388 = tpu.matmul %386, %387, %cst_149 {dimension_numbers = #tpu.dot_dimension_numbers<[1], [0], [0], [1], [0, 0, 1, 1], [], []>} : vector<48x48xbf16>, vector<48x8xbf16>, vector<48x8xf32> -> vector<48x8xf32>
    %389 = vector.extract_strided_slice %275 {offsets = [0, 40], sizes = [48, 8], strides = [1, 1]} : vector<48x64xf32> to vector<48x8xf32>
    %390 = vector.extract_strided_slice %276 {offsets = [0, 40], sizes = [48, 8], strides = [1, 1]} : vector<48x64xf32> to vector<48x8xf32>
    %cst_150 = arith.constant dense<0.000000e+00> : vector<48x48xf32>
    %391 = tpu.matmul %389, %390, %cst_150 {dimension_numbers = #tpu.dot_dimension_numbers<[1], [1], [0], [0], [0, 0, 1, 0], [], []>} : vector<48x8xf32>, vector<48x8xf32>, vector<48x48xf32> -> vector<48x48xf32>
    %cst_151 = arith.constant 0.353553385 : f32
    %392 = vector.broadcast %cst_151 : f32 to vector<48x48xf32>
    %393 = arith.mulf %391, %392 : vector<48x48xf32>
    %c0_152 = arith.constant 0 : index
    %c5 = arith.constant 5 : index
    %c0_153 = arith.constant 0 : index
    %c0_154 = arith.constant 0 : index
    %394 = vector.load %arg17[%c0_152, %c5, %c0_153, %c0_154] : memref<3x8x48x48xbf16, #tpu.memory_space<vmem>>, vector<1x1x48x48xbf16>
    %395 = vector.shape_cast %394 : vector<1x1x48x48xbf16> to vector<48x48xbf16>
    %396 = arith.extf %395 : vector<48x48xbf16> to vector<48x48xf32>
    %397 = arith.addf %393, %396 : vector<48x48xf32>
    %cst_155 = arith.constant dense<0xFF800000> : vector<48xf32>
    %398 = vector.multi_reduction <maximumf>, %397, %cst_155 [1] : vector<48x48xf32> to vector<48xf32>
    %399 = vector.shape_cast %398 : vector<48xf32> to vector<48x1xf32>
    %400 = vector.broadcast %399 : vector<48x1xf32> to vector<48x48xf32>
    %401 = arith.subf %397, %400 : vector<48x48xf32>
    %402 = math.exp %401 : vector<48x48xf32>
    %cst_156 = arith.constant dense<0.000000e+00> : vector<48xf32>
    %403 = vector.multi_reduction <add>, %402, %cst_156 [1] : vector<48x48xf32> to vector<48xf32>
    %404 = vector.shape_cast %403 : vector<48xf32> to vector<48x1xf32>
    %405 = tpu.reciprocal %404 {approx = true} : vector<48x1xf32> -> vector<48x1xf32>
    %406 = vector.broadcast %405 : vector<48x1xf32> to vector<48x48xf32>
    %407 = arith.mulf %402, %406 : vector<48x48xf32>
    %408 = arith.truncf %407 : vector<48x48xf32> to vector<48x48xbf16>
    %409 = vector.extract_strided_slice %278 {offsets = [0, 40], sizes = [48, 8], strides = [1, 1]} : vector<48x64xbf16> to vector<48x8xbf16>
    %cst_157 = arith.constant dense<0.000000e+00> : vector<48x8xf32>
    %410 = tpu.matmul %408, %409, %cst_157 {dimension_numbers = #tpu.dot_dimension_numbers<[1], [0], [0], [1], [0, 0, 1, 1], [], []>} : vector<48x48xbf16>, vector<48x8xbf16>, vector<48x8xf32> -> vector<48x8xf32>
    %411 = vector.extract_strided_slice %275 {offsets = [0, 48], sizes = [48, 8], strides = [1, 1]} : vector<48x64xf32> to vector<48x8xf32>
    %412 = vector.extract_strided_slice %276 {offsets = [0, 48], sizes = [48, 8], strides = [1, 1]} : vector<48x64xf32> to vector<48x8xf32>
    %cst_158 = arith.constant dense<0.000000e+00> : vector<48x48xf32>
    %413 = tpu.matmul %411, %412, %cst_158 {dimension_numbers = #tpu.dot_dimension_numbers<[1], [1], [0], [0], [0, 0, 1, 0], [], []>} : vector<48x8xf32>, vector<48x8xf32>, vector<48x48xf32> -> vector<48x48xf32>
    %cst_159 = arith.constant 0.353553385 : f32
    %414 = vector.broadcast %cst_159 : f32 to vector<48x48xf32>
    %415 = arith.mulf %413, %414 : vector<48x48xf32>
    %c0_160 = arith.constant 0 : index
    %c6 = arith.constant 6 : index
    %c0_161 = arith.constant 0 : index
    %c0_162 = arith.constant 0 : index
    %416 = vector.load %arg17[%c0_160, %c6, %c0_161, %c0_162] : memref<3x8x48x48xbf16, #tpu.memory_space<vmem>>, vector<1x1x48x48xbf16>
    %417 = vector.shape_cast %416 : vector<1x1x48x48xbf16> to vector<48x48xbf16>
    %418 = arith.extf %417 : vector<48x48xbf16> to vector<48x48xf32>
    %419 = arith.addf %415, %418 : vector<48x48xf32>
    %cst_163 = arith.constant dense<0xFF800000> : vector<48xf32>
    %420 = vector.multi_reduction <maximumf>, %419, %cst_163 [1] : vector<48x48xf32> to vector<48xf32>
    %421 = vector.shape_cast %420 : vector<48xf32> to vector<48x1xf32>
    %422 = vector.broadcast %421 : vector<48x1xf32> to vector<48x48xf32>
    %423 = arith.subf %419, %422 : vector<48x48xf32>
    %424 = math.exp %423 : vector<48x48xf32>
    %cst_164 = arith.constant dense<0.000000e+00> : vector<48xf32>
    %425 = vector.multi_reduction <add>, %424, %cst_164 [1] : vector<48x48xf32> to vector<48xf32>
    %426 = vector.shape_cast %425 : vector<48xf32> to vector<48x1xf32>
    %427 = tpu.reciprocal %426 {approx = true} : vector<48x1xf32> -> vector<48x1xf32>
    %428 = vector.broadcast %427 : vector<48x1xf32> to vector<48x48xf32>
    %429 = arith.mulf %424, %428 : vector<48x48xf32>
    %430 = arith.truncf %429 : vector<48x48xf32> to vector<48x48xbf16>
    %431 = vector.extract_strided_slice %278 {offsets = [0, 48], sizes = [48, 8], strides = [1, 1]} : vector<48x64xbf16> to vector<48x8xbf16>
    %cst_165 = arith.constant dense<0.000000e+00> : vector<48x8xf32>
    %432 = tpu.matmul %430, %431, %cst_165 {dimension_numbers = #tpu.dot_dimension_numbers<[1], [0], [0], [1], [0, 0, 1, 1], [], []>} : vector<48x48xbf16>, vector<48x8xbf16>, vector<48x8xf32> -> vector<48x8xf32>
    %433 = vector.extract_strided_slice %275 {offsets = [0, 56], sizes = [48, 8], strides = [1, 1]} : vector<48x64xf32> to vector<48x8xf32>
    %434 = vector.extract_strided_slice %276 {offsets = [0, 56], sizes = [48, 8], strides = [1, 1]} : vector<48x64xf32> to vector<48x8xf32>
    %cst_166 = arith.constant dense<0.000000e+00> : vector<48x48xf32>
    %435 = tpu.matmul %433, %434, %cst_166 {dimension_numbers = #tpu.dot_dimension_numbers<[1], [1], [0], [0], [0, 0, 1, 0], [], []>} : vector<48x8xf32>, vector<48x8xf32>, vector<48x48xf32> -> vector<48x48xf32>
    %cst_167 = arith.constant 0.353553385 : f32
    %436 = vector.broadcast %cst_167 : f32 to vector<48x48xf32>
    %437 = arith.mulf %435, %436 : vector<48x48xf32>
    %c0_168 = arith.constant 0 : index
    %c7 = arith.constant 7 : index
    %c0_169 = arith.constant 0 : index
    %c0_170 = arith.constant 0 : index
    %438 = vector.load %arg17[%c0_168, %c7, %c0_169, %c0_170] : memref<3x8x48x48xbf16, #tpu.memory_space<vmem>>, vector<1x1x48x48xbf16>
    %439 = vector.shape_cast %438 : vector<1x1x48x48xbf16> to vector<48x48xbf16>
    %440 = arith.extf %439 : vector<48x48xbf16> to vector<48x48xf32>
    %441 = arith.addf %437, %440 : vector<48x48xf32>
    %cst_171 = arith.constant dense<0xFF800000> : vector<48xf32>
    %442 = vector.multi_reduction <maximumf>, %441, %cst_171 [1] : vector<48x48xf32> to vector<48xf32>
    %443 = vector.shape_cast %442 : vector<48xf32> to vector<48x1xf32>
    %444 = vector.broadcast %443 : vector<48x1xf32> to vector<48x48xf32>
    %445 = arith.subf %441, %444 : vector<48x48xf32>
    %446 = math.exp %445 : vector<48x48xf32>
    %cst_172 = arith.constant dense<0.000000e+00> : vector<48xf32>
    %447 = vector.multi_reduction <add>, %446, %cst_172 [1] : vector<48x48xf32> to vector<48xf32>
    %448 = vector.shape_cast %447 : vector<48xf32> to vector<48x1xf32>
    %449 = tpu.reciprocal %448 {approx = true} : vector<48x1xf32> -> vector<48x1xf32>
    %450 = vector.broadcast %449 : vector<48x1xf32> to vector<48x48xf32>
    %451 = arith.mulf %446, %450 : vector<48x48xf32>
    %452 = arith.truncf %451 : vector<48x48xf32> to vector<48x48xbf16>
    %453 = vector.extract_strided_slice %278 {offsets = [0, 56], sizes = [48, 8], strides = [1, 1]} : vector<48x64xbf16> to vector<48x8xbf16>
    %cst_173 = arith.constant dense<0.000000e+00> : vector<48x8xf32>
    %454 = tpu.matmul %452, %453, %cst_173 {dimension_numbers = #tpu.dot_dimension_numbers<[1], [0], [0], [1], [0, 0, 1, 1], [], []>} : vector<48x48xbf16>, vector<48x8xbf16>, vector<48x8xf32> -> vector<48x8xf32>
    %455 = tpu.concatenate %300, %322, %344, %366, %388, %410, %432, %454 in 1 : vector<48x8xf32>, vector<48x8xf32>, vector<48x8xf32>, vector<48x8xf32>, vector<48x8xf32>, vector<48x8xf32>, vector<48x8xf32>, vector<48x8xf32> -> vector<48x64xf32>
    %456 = arith.truncf %455 : vector<48x64xf32> to vector<48x64xbf16>
    %c0_174 = arith.constant 0 : index
    %c0_175 = arith.constant 0 : index
    %c0_176 = arith.constant 0 : index
    %457 = vector.load %arg15[%c0_174, %c0_175, %c0_176] : memref<3x64x64xbf16, #tpu.memory_space<vmem>>, vector<1x64x64xbf16>
    %458 = vector.shape_cast %457 : vector<1x64x64xbf16> to vector<64x64xbf16>
    %cst_177 = arith.constant dense<0.000000e+00> : vector<48x64xf32>
    %459 = tpu.matmul %456, %458, %cst_177 {dimension_numbers = #tpu.dot_dimension_numbers<[1], [0], [0], [1], [0, 0, 1, 1], [], []>} : vector<48x64xbf16>, vector<64x64xbf16>, vector<48x64xf32> -> vector<48x64xf32>
    %460 = arith.addf %196, %459 : vector<48x64xf32>
    %c0_178 = arith.constant 0 : index
    %c0_179 = arith.constant 0 : index
    %c0_180 = arith.constant 0 : index
    %461 = vector.load %arg16[%c0_178, %c0_179, %c0_180] : memref<3x1x64xf32, #tpu.memory_space<vmem>>, vector<1x1x64xf32>
    %462 = vector.shape_cast %461 : vector<1x1x64xf32> to vector<1x64xf32>
    %463 = vector.broadcast %462 : vector<1x64xf32> to vector<48x64xf32>
    %464 = arith.addf %460, %463 : vector<48x64xf32>
    %cst_181 = arith.constant dense<0.000000e+00> : vector<64xf32>
    %465 = vector.multi_reduction <add>, %464, %cst_181 [0] : vector<48x64xf32> to vector<64xf32>
    %466 = vector.shape_cast %465 : vector<64xf32> to vector<1x64xf32>
    %467 = tpu.iota {dimensions = array<i32: 1>} : vector<1x64xi32>
    %c2_i32_182 = arith.constant 2 : i32
    %c0_i32_183 = arith.constant 0 : i32
    %468 = arith.cmpi eq, %c2_i32_182, %c0_i32_183 : i32
    %c1_i32_184 = arith.constant 1 : i32
    %469 = arith.select %468, %c1_i32_184, %c2_i32_182 : i32
    %470 = vector.broadcast %469 : i32 to vector<1x64xi32>
    %471 = arith.remsi %467, %470 : vector<1x64xi32>
    %c0_i32_185 = arith.constant 0 : i32
    %472 = vector.broadcast %c0_i32_185 : i32 to vector<1x64xi32>
    %473 = arith.cmpi ne, %471, %472 : vector<1x64xi32>
    %c0_i32_186 = arith.constant 0 : i32
    %474 = vector.broadcast %c0_i32_186 : i32 to vector<1x64xi32>
    %475 = arith.cmpi slt, %471, %474 : vector<1x64xi32>
    %c0_i32_187 = arith.constant 0 : i32
    %476 = arith.cmpi slt, %469, %c0_i32_187 : i32
    %477 = vector.broadcast %476 : i1 to vector<1x64xi1>
    %478 = vector.broadcast %477 : vector<1x64xi1> to vector<1x64xi1>
    %479 = arith.xori %475, %478 : vector<1x64xi1>
    %480 = arith.andi %479, %473 : vector<1x64xi1>
    %481 = vector.broadcast %469 : i32 to vector<1x64xi32>
    %482 = arith.addi %471, %481 : vector<1x64xi32>
    %483 = arith.select %480, %482, %471 : vector<1x64xi1>, vector<1x64xi32>
    %c63_i32_188 = arith.constant 63 : i32
    %484 = tpu.dynamic_rotate %466 by %c63_i32_188 dim 1 : vector<1x64xf32>, i32 -> vector<1x64xf32>
    %c1_i32_189 = arith.constant 1 : i32
    %485 = tpu.dynamic_rotate %466 by %c1_i32_189 dim 1 : vector<1x64xf32>, i32 -> vector<1x64xf32>
    %c1_i32_190 = arith.constant 1 : i32
    %486 = vector.broadcast %c1_i32_190 : i32 to vector<1x64xi32>
    %487 = arith.cmpi slt, %483, %486 : vector<1x64xi32>
    %488 = arith.select %487, %484, %485 : vector<1x64xi1>, vector<1x64xf32>
    %489 = arith.addf %466, %488 : vector<1x64xf32>
    %cst_191 = arith.constant 0.010416667 : f32
    %490 = vector.broadcast %cst_191 : f32 to vector<1x64xf32>
    %491 = arith.mulf %489, %490 : vector<1x64xf32>
    %492 = vector.broadcast %491 : vector<1x64xf32> to vector<48x64xf32>
    %493 = arith.subf %464, %492 : vector<48x64xf32>
    %494 = arith.mulf %493, %493 : vector<48x64xf32>
    %cst_192 = arith.constant dense<0.000000e+00> : vector<64xf32>
    %495 = vector.multi_reduction <add>, %494, %cst_192 [0] : vector<48x64xf32> to vector<64xf32>
    %496 = vector.shape_cast %495 : vector<64xf32> to vector<1x64xf32>
    %497 = tpu.iota {dimensions = array<i32: 1>} : vector<1x64xi32>
    %c2_i32_193 = arith.constant 2 : i32
    %c0_i32_194 = arith.constant 0 : i32
    %498 = arith.cmpi eq, %c2_i32_193, %c0_i32_194 : i32
    %c1_i32_195 = arith.constant 1 : i32
    %499 = arith.select %498, %c1_i32_195, %c2_i32_193 : i32
    %500 = vector.broadcast %499 : i32 to vector<1x64xi32>
    %501 = arith.remsi %497, %500 : vector<1x64xi32>
    %c0_i32_196 = arith.constant 0 : i32
    %502 = vector.broadcast %c0_i32_196 : i32 to vector<1x64xi32>
    %503 = arith.cmpi ne, %501, %502 : vector<1x64xi32>
    %c0_i32_197 = arith.constant 0 : i32
    %504 = vector.broadcast %c0_i32_197 : i32 to vector<1x64xi32>
    %505 = arith.cmpi slt, %501, %504 : vector<1x64xi32>
    %c0_i32_198 = arith.constant 0 : i32
    %506 = arith.cmpi slt, %499, %c0_i32_198 : i32
    %507 = vector.broadcast %506 : i1 to vector<1x64xi1>
    %508 = vector.broadcast %507 : vector<1x64xi1> to vector<1x64xi1>
    %509 = arith.xori %505, %508 : vector<1x64xi1>
    %510 = arith.andi %509, %503 : vector<1x64xi1>
    %511 = vector.broadcast %499 : i32 to vector<1x64xi32>
    %512 = arith.addi %501, %511 : vector<1x64xi32>
    %513 = arith.select %510, %512, %501 : vector<1x64xi1>, vector<1x64xi32>
    %c63_i32_199 = arith.constant 63 : i32
    %514 = tpu.dynamic_rotate %496 by %c63_i32_199 dim 1 : vector<1x64xf32>, i32 -> vector<1x64xf32>
    %c1_i32_200 = arith.constant 1 : i32
    %515 = tpu.dynamic_rotate %496 by %c1_i32_200 dim 1 : vector<1x64xf32>, i32 -> vector<1x64xf32>
    %c1_i32_201 = arith.constant 1 : i32
    %516 = vector.broadcast %c1_i32_201 : i32 to vector<1x64xi32>
    %517 = arith.cmpi slt, %513, %516 : vector<1x64xi32>
    %518 = arith.select %517, %514, %515 : vector<1x64xi1>, vector<1x64xf32>
    %519 = arith.addf %496, %518 : vector<1x64xf32>
    %cst_202 = arith.constant 0.010416667 : f32
    %520 = vector.broadcast %cst_202 : f32 to vector<1x64xf32>
    %521 = arith.mulf %519, %520 : vector<1x64xf32>
    %cst_203 = arith.constant 9.99999974E-6 : f32
    %522 = vector.broadcast %cst_203 : f32 to vector<1x64xf32>
    %523 = arith.addf %521, %522 : vector<1x64xf32>
    %524 = math.rsqrt %523 : vector<1x64xf32>
    %525 = vector.broadcast %524 : vector<1x64xf32> to vector<48x64xf32>
    %526 = arith.mulf %493, %525 : vector<48x64xf32>
    %c1_204 = arith.constant 1 : index
    %c0_205 = arith.constant 0 : index
    %c0_206 = arith.constant 0 : index
    %527 = vector.load %arg11[%c1_204, %c0_205, %c0_206] : memref<3x1x64xf32, #tpu.memory_space<vmem>>, vector<1x1x64xf32>
    %528 = vector.shape_cast %527 : vector<1x1x64xf32> to vector<1x64xf32>
    %529 = vector.broadcast %528 : vector<1x64xf32> to vector<48x64xf32>
    %530 = arith.mulf %526, %529 : vector<48x64xf32>
    %c1_207 = arith.constant 1 : index
    %c0_208 = arith.constant 0 : index
    %c0_209 = arith.constant 0 : index
    %531 = vector.load %arg12[%c1_207, %c0_208, %c0_209] : memref<3x1x64xf32, #tpu.memory_space<vmem>>, vector<1x1x64xf32>
    %532 = vector.shape_cast %531 : vector<1x1x64xf32> to vector<1x64xf32>
    %533 = vector.broadcast %532 : vector<1x64xf32> to vector<48x64xf32>
    %534 = arith.addf %530, %533 : vector<48x64xf32>
    %535 = arith.truncf %534 : vector<48x64xf32> to vector<48x64xbf16>
    %c1_210 = arith.constant 1 : index
    %c0_211 = arith.constant 0 : index
    %c0_212 = arith.constant 0 : index
    %536 = vector.load %arg13[%c1_210, %c0_211, %c0_212] : memref<3x64x192xbf16, #tpu.memory_space<vmem>>, vector<1x64x192xbf16>
    %537 = vector.shape_cast %536 : vector<1x64x192xbf16> to vector<64x192xbf16>
    %cst_213 = arith.constant dense<0.000000e+00> : vector<48x192xf32>
    %538 = tpu.matmul %535, %537, %cst_213 {dimension_numbers = #tpu.dot_dimension_numbers<[1], [0], [0], [1], [0, 0, 1, 1], [], []>} : vector<48x64xbf16>, vector<64x192xbf16>, vector<48x192xf32> -> vector<48x192xf32>
    %c1_214 = arith.constant 1 : index
    %c0_215 = arith.constant 0 : index
    %c0_216 = arith.constant 0 : index
    %539 = vector.load %arg14[%c1_214, %c0_215, %c0_216] : memref<3x1x192xf32, #tpu.memory_space<vmem>>, vector<1x1x192xf32>
    %540 = vector.shape_cast %539 : vector<1x1x192xf32> to vector<1x192xf32>
    %541 = vector.broadcast %540 : vector<1x192xf32> to vector<48x192xf32>
    %542 = arith.addf %538, %541 : vector<48x192xf32>
    %543 = vector.extract_strided_slice %542 {offsets = [0, 0], sizes = [48, 64], strides = [1, 1]} : vector<48x192xf32> to vector<48x64xf32>
    %544 = vector.extract_strided_slice %542 {offsets = [0, 64], sizes = [48, 64], strides = [1, 1]} : vector<48x192xf32> to vector<48x64xf32>
    %545 = vector.extract_strided_slice %542 {offsets = [0, 128], sizes = [48, 64], strides = [1, 1]} : vector<48x192xf32> to vector<48x64xf32>
    %546 = arith.truncf %545 : vector<48x64xf32> to vector<48x64xbf16>
    %547 = vector.extract_strided_slice %543 {offsets = [0, 0], sizes = [48, 8], strides = [1, 1]} : vector<48x64xf32> to vector<48x8xf32>
    %548 = vector.extract_strided_slice %544 {offsets = [0, 0], sizes = [48, 8], strides = [1, 1]} : vector<48x64xf32> to vector<48x8xf32>
    %cst_217 = arith.constant dense<0.000000e+00> : vector<48x48xf32>
    %549 = tpu.matmul %547, %548, %cst_217 {dimension_numbers = #tpu.dot_dimension_numbers<[1], [1], [0], [0], [0, 0, 1, 0], [], []>} : vector<48x8xf32>, vector<48x8xf32>, vector<48x48xf32> -> vector<48x48xf32>
    %cst_218 = arith.constant 0.353553385 : f32
    %550 = vector.broadcast %cst_218 : f32 to vector<48x48xf32>
    %551 = arith.mulf %549, %550 : vector<48x48xf32>
    %c1_219 = arith.constant 1 : index
    %c0_220 = arith.constant 0 : index
    %c0_221 = arith.constant 0 : index
    %c0_222 = arith.constant 0 : index
    %552 = vector.load %arg17[%c1_219, %c0_220, %c0_221, %c0_222] : memref<3x8x48x48xbf16, #tpu.memory_space<vmem>>, vector<1x1x48x48xbf16>
    %553 = vector.shape_cast %552 : vector<1x1x48x48xbf16> to vector<48x48xbf16>
    %554 = arith.extf %553 : vector<48x48xbf16> to vector<48x48xf32>
    %555 = arith.addf %551, %554 : vector<48x48xf32>
    %cst_223 = arith.constant dense<0xFF800000> : vector<48xf32>
    %556 = vector.multi_reduction <maximumf>, %555, %cst_223 [1] : vector<48x48xf32> to vector<48xf32>
    %557 = vector.shape_cast %556 : vector<48xf32> to vector<48x1xf32>
    %558 = vector.broadcast %557 : vector<48x1xf32> to vector<48x48xf32>
    %559 = arith.subf %555, %558 : vector<48x48xf32>
    %560 = math.exp %559 : vector<48x48xf32>
    %cst_224 = arith.constant dense<0.000000e+00> : vector<48xf32>
    %561 = vector.multi_reduction <add>, %560, %cst_224 [1] : vector<48x48xf32> to vector<48xf32>
    %562 = vector.shape_cast %561 : vector<48xf32> to vector<48x1xf32>
    %563 = tpu.reciprocal %562 {approx = true} : vector<48x1xf32> -> vector<48x1xf32>
    %564 = vector.broadcast %563 : vector<48x1xf32> to vector<48x48xf32>
    %565 = arith.mulf %560, %564 : vector<48x48xf32>
    %566 = arith.truncf %565 : vector<48x48xf32> to vector<48x48xbf16>
    %567 = vector.extract_strided_slice %546 {offsets = [0, 0], sizes = [48, 8], strides = [1, 1]} : vector<48x64xbf16> to vector<48x8xbf16>
    %cst_225 = arith.constant dense<0.000000e+00> : vector<48x8xf32>
    %568 = tpu.matmul %566, %567, %cst_225 {dimension_numbers = #tpu.dot_dimension_numbers<[1], [0], [0], [1], [0, 0, 1, 1], [], []>} : vector<48x48xbf16>, vector<48x8xbf16>, vector<48x8xf32> -> vector<48x8xf32>
    %569 = vector.extract_strided_slice %543 {offsets = [0, 8], sizes = [48, 8], strides = [1, 1]} : vector<48x64xf32> to vector<48x8xf32>
    %570 = vector.extract_strided_slice %544 {offsets = [0, 8], sizes = [48, 8], strides = [1, 1]} : vector<48x64xf32> to vector<48x8xf32>
    %cst_226 = arith.constant dense<0.000000e+00> : vector<48x48xf32>
    %571 = tpu.matmul %569, %570, %cst_226 {dimension_numbers = #tpu.dot_dimension_numbers<[1], [1], [0], [0], [0, 0, 1, 0], [], []>} : vector<48x8xf32>, vector<48x8xf32>, vector<48x48xf32> -> vector<48x48xf32>
    %cst_227 = arith.constant 0.353553385 : f32
    %572 = vector.broadcast %cst_227 : f32 to vector<48x48xf32>
    %573 = arith.mulf %571, %572 : vector<48x48xf32>
    %c1_228 = arith.constant 1 : index
    %c1_229 = arith.constant 1 : index
    %c0_230 = arith.constant 0 : index
    %c0_231 = arith.constant 0 : index
    %574 = vector.load %arg17[%c1_228, %c1_229, %c0_230, %c0_231] : memref<3x8x48x48xbf16, #tpu.memory_space<vmem>>, vector<1x1x48x48xbf16>
    %575 = vector.shape_cast %574 : vector<1x1x48x48xbf16> to vector<48x48xbf16>
    %576 = arith.extf %575 : vector<48x48xbf16> to vector<48x48xf32>
    %577 = arith.addf %573, %576 : vector<48x48xf32>
    %cst_232 = arith.constant dense<0xFF800000> : vector<48xf32>
    %578 = vector.multi_reduction <maximumf>, %577, %cst_232 [1] : vector<48x48xf32> to vector<48xf32>
    %579 = vector.shape_cast %578 : vector<48xf32> to vector<48x1xf32>
    %580 = vector.broadcast %579 : vector<48x1xf32> to vector<48x48xf32>
    %581 = arith.subf %577, %580 : vector<48x48xf32>
    %582 = math.exp %581 : vector<48x48xf32>
    %cst_233 = arith.constant dense<0.000000e+00> : vector<48xf32>
    %583 = vector.multi_reduction <add>, %582, %cst_233 [1] : vector<48x48xf32> to vector<48xf32>
    %584 = vector.shape_cast %583 : vector<48xf32> to vector<48x1xf32>
    %585 = tpu.reciprocal %584 {approx = true} : vector<48x1xf32> -> vector<48x1xf32>
    %586 = vector.broadcast %585 : vector<48x1xf32> to vector<48x48xf32>
    %587 = arith.mulf %582, %586 : vector<48x48xf32>
    %588 = arith.truncf %587 : vector<48x48xf32> to vector<48x48xbf16>
    %589 = vector.extract_strided_slice %546 {offsets = [0, 8], sizes = [48, 8], strides = [1, 1]} : vector<48x64xbf16> to vector<48x8xbf16>
    %cst_234 = arith.constant dense<0.000000e+00> : vector<48x8xf32>
    %590 = tpu.matmul %588, %589, %cst_234 {dimension_numbers = #tpu.dot_dimension_numbers<[1], [0], [0], [1], [0, 0, 1, 1], [], []>} : vector<48x48xbf16>, vector<48x8xbf16>, vector<48x8xf32> -> vector<48x8xf32>
    %591 = vector.extract_strided_slice %543 {offsets = [0, 16], sizes = [48, 8], strides = [1, 1]} : vector<48x64xf32> to vector<48x8xf32>
    %592 = vector.extract_strided_slice %544 {offsets = [0, 16], sizes = [48, 8], strides = [1, 1]} : vector<48x64xf32> to vector<48x8xf32>
    %cst_235 = arith.constant dense<0.000000e+00> : vector<48x48xf32>
    %593 = tpu.matmul %591, %592, %cst_235 {dimension_numbers = #tpu.dot_dimension_numbers<[1], [1], [0], [0], [0, 0, 1, 0], [], []>} : vector<48x8xf32>, vector<48x8xf32>, vector<48x48xf32> -> vector<48x48xf32>
    %cst_236 = arith.constant 0.353553385 : f32
    %594 = vector.broadcast %cst_236 : f32 to vector<48x48xf32>
    %595 = arith.mulf %593, %594 : vector<48x48xf32>
    %c1_237 = arith.constant 1 : index
    %c2_238 = arith.constant 2 : index
    %c0_239 = arith.constant 0 : index
    %c0_240 = arith.constant 0 : index
    %596 = vector.load %arg17[%c1_237, %c2_238, %c0_239, %c0_240] : memref<3x8x48x48xbf16, #tpu.memory_space<vmem>>, vector<1x1x48x48xbf16>
    %597 = vector.shape_cast %596 : vector<1x1x48x48xbf16> to vector<48x48xbf16>
    %598 = arith.extf %597 : vector<48x48xbf16> to vector<48x48xf32>
    %599 = arith.addf %595, %598 : vector<48x48xf32>
    %cst_241 = arith.constant dense<0xFF800000> : vector<48xf32>
    %600 = vector.multi_reduction <maximumf>, %599, %cst_241 [1] : vector<48x48xf32> to vector<48xf32>
    %601 = vector.shape_cast %600 : vector<48xf32> to vector<48x1xf32>
    %602 = vector.broadcast %601 : vector<48x1xf32> to vector<48x48xf32>
    %603 = arith.subf %599, %602 : vector<48x48xf32>
    %604 = math.exp %603 : vector<48x48xf32>
    %cst_242 = arith.constant dense<0.000000e+00> : vector<48xf32>
    %605 = vector.multi_reduction <add>, %604, %cst_242 [1] : vector<48x48xf32> to vector<48xf32>
    %606 = vector.shape_cast %605 : vector<48xf32> to vector<48x1xf32>
    %607 = tpu.reciprocal %606 {approx = true} : vector<48x1xf32> -> vector<48x1xf32>
    %608 = vector.broadcast %607 : vector<48x1xf32> to vector<48x48xf32>
    %609 = arith.mulf %604, %608 : vector<48x48xf32>
    %610 = arith.truncf %609 : vector<48x48xf32> to vector<48x48xbf16>
    %611 = vector.extract_strided_slice %546 {offsets = [0, 16], sizes = [48, 8], strides = [1, 1]} : vector<48x64xbf16> to vector<48x8xbf16>
    %cst_243 = arith.constant dense<0.000000e+00> : vector<48x8xf32>
    %612 = tpu.matmul %610, %611, %cst_243 {dimension_numbers = #tpu.dot_dimension_numbers<[1], [0], [0], [1], [0, 0, 1, 1], [], []>} : vector<48x48xbf16>, vector<48x8xbf16>, vector<48x8xf32> -> vector<48x8xf32>
    %613 = vector.extract_strided_slice %543 {offsets = [0, 24], sizes = [48, 8], strides = [1, 1]} : vector<48x64xf32> to vector<48x8xf32>
    %614 = vector.extract_strided_slice %544 {offsets = [0, 24], sizes = [48, 8], strides = [1, 1]} : vector<48x64xf32> to vector<48x8xf32>
    %cst_244 = arith.constant dense<0.000000e+00> : vector<48x48xf32>
    %615 = tpu.matmul %613, %614, %cst_244 {dimension_numbers = #tpu.dot_dimension_numbers<[1], [1], [0], [0], [0, 0, 1, 0], [], []>} : vector<48x8xf32>, vector<48x8xf32>, vector<48x48xf32> -> vector<48x48xf32>
    %cst_245 = arith.constant 0.353553385 : f32
    %616 = vector.broadcast %cst_245 : f32 to vector<48x48xf32>
    %617 = arith.mulf %615, %616 : vector<48x48xf32>
    %c1_246 = arith.constant 1 : index
    %c3_247 = arith.constant 3 : index
    %c0_248 = arith.constant 0 : index
    %c0_249 = arith.constant 0 : index
    %618 = vector.load %arg17[%c1_246, %c3_247, %c0_248, %c0_249] : memref<3x8x48x48xbf16, #tpu.memory_space<vmem>>, vector<1x1x48x48xbf16>
    %619 = vector.shape_cast %618 : vector<1x1x48x48xbf16> to vector<48x48xbf16>
    %620 = arith.extf %619 : vector<48x48xbf16> to vector<48x48xf32>
    %621 = arith.addf %617, %620 : vector<48x48xf32>
    %cst_250 = arith.constant dense<0xFF800000> : vector<48xf32>
    %622 = vector.multi_reduction <maximumf>, %621, %cst_250 [1] : vector<48x48xf32> to vector<48xf32>
    %623 = vector.shape_cast %622 : vector<48xf32> to vector<48x1xf32>
    %624 = vector.broadcast %623 : vector<48x1xf32> to vector<48x48xf32>
    %625 = arith.subf %621, %624 : vector<48x48xf32>
    %626 = math.exp %625 : vector<48x48xf32>
    %cst_251 = arith.constant dense<0.000000e+00> : vector<48xf32>
    %627 = vector.multi_reduction <add>, %626, %cst_251 [1] : vector<48x48xf32> to vector<48xf32>
    %628 = vector.shape_cast %627 : vector<48xf32> to vector<48x1xf32>
    %629 = tpu.reciprocal %628 {approx = true} : vector<48x1xf32> -> vector<48x1xf32>
    %630 = vector.broadcast %629 : vector<48x1xf32> to vector<48x48xf32>
    %631 = arith.mulf %626, %630 : vector<48x48xf32>
    %632 = arith.truncf %631 : vector<48x48xf32> to vector<48x48xbf16>
    %633 = vector.extract_strided_slice %546 {offsets = [0, 24], sizes = [48, 8], strides = [1, 1]} : vector<48x64xbf16> to vector<48x8xbf16>
    %cst_252 = arith.constant dense<0.000000e+00> : vector<48x8xf32>
    %634 = tpu.matmul %632, %633, %cst_252 {dimension_numbers = #tpu.dot_dimension_numbers<[1], [0], [0], [1], [0, 0, 1, 1], [], []>} : vector<48x48xbf16>, vector<48x8xbf16>, vector<48x8xf32> -> vector<48x8xf32>
    %635 = vector.extract_strided_slice %543 {offsets = [0, 32], sizes = [48, 8], strides = [1, 1]} : vector<48x64xf32> to vector<48x8xf32>
    %636 = vector.extract_strided_slice %544 {offsets = [0, 32], sizes = [48, 8], strides = [1, 1]} : vector<48x64xf32> to vector<48x8xf32>
    %cst_253 = arith.constant dense<0.000000e+00> : vector<48x48xf32>
    %637 = tpu.matmul %635, %636, %cst_253 {dimension_numbers = #tpu.dot_dimension_numbers<[1], [1], [0], [0], [0, 0, 1, 0], [], []>} : vector<48x8xf32>, vector<48x8xf32>, vector<48x48xf32> -> vector<48x48xf32>
    %cst_254 = arith.constant 0.353553385 : f32
    %638 = vector.broadcast %cst_254 : f32 to vector<48x48xf32>
    %639 = arith.mulf %637, %638 : vector<48x48xf32>
    %c1_255 = arith.constant 1 : index
    %c4_256 = arith.constant 4 : index
    %c0_257 = arith.constant 0 : index
    %c0_258 = arith.constant 0 : index
    %640 = vector.load %arg17[%c1_255, %c4_256, %c0_257, %c0_258] : memref<3x8x48x48xbf16, #tpu.memory_space<vmem>>, vector<1x1x48x48xbf16>
    %641 = vector.shape_cast %640 : vector<1x1x48x48xbf16> to vector<48x48xbf16>
    %642 = arith.extf %641 : vector<48x48xbf16> to vector<48x48xf32>
    %643 = arith.addf %639, %642 : vector<48x48xf32>
    %cst_259 = arith.constant dense<0xFF800000> : vector<48xf32>
    %644 = vector.multi_reduction <maximumf>, %643, %cst_259 [1] : vector<48x48xf32> to vector<48xf32>
    %645 = vector.shape_cast %644 : vector<48xf32> to vector<48x1xf32>
    %646 = vector.broadcast %645 : vector<48x1xf32> to vector<48x48xf32>
    %647 = arith.subf %643, %646 : vector<48x48xf32>
    %648 = math.exp %647 : vector<48x48xf32>
    %cst_260 = arith.constant dense<0.000000e+00> : vector<48xf32>
    %649 = vector.multi_reduction <add>, %648, %cst_260 [1] : vector<48x48xf32> to vector<48xf32>
    %650 = vector.shape_cast %649 : vector<48xf32> to vector<48x1xf32>
    %651 = tpu.reciprocal %650 {approx = true} : vector<48x1xf32> -> vector<48x1xf32>
    %652 = vector.broadcast %651 : vector<48x1xf32> to vector<48x48xf32>
    %653 = arith.mulf %648, %652 : vector<48x48xf32>
    %654 = arith.truncf %653 : vector<48x48xf32> to vector<48x48xbf16>
    %655 = vector.extract_strided_slice %546 {offsets = [0, 32], sizes = [48, 8], strides = [1, 1]} : vector<48x64xbf16> to vector<48x8xbf16>
    %cst_261 = arith.constant dense<0.000000e+00> : vector<48x8xf32>
    %656 = tpu.matmul %654, %655, %cst_261 {dimension_numbers = #tpu.dot_dimension_numbers<[1], [0], [0], [1], [0, 0, 1, 1], [], []>} : vector<48x48xbf16>, vector<48x8xbf16>, vector<48x8xf32> -> vector<48x8xf32>
    %657 = vector.extract_strided_slice %543 {offsets = [0, 40], sizes = [48, 8], strides = [1, 1]} : vector<48x64xf32> to vector<48x8xf32>
    %658 = vector.extract_strided_slice %544 {offsets = [0, 40], sizes = [48, 8], strides = [1, 1]} : vector<48x64xf32> to vector<48x8xf32>
    %cst_262 = arith.constant dense<0.000000e+00> : vector<48x48xf32>
    %659 = tpu.matmul %657, %658, %cst_262 {dimension_numbers = #tpu.dot_dimension_numbers<[1], [1], [0], [0], [0, 0, 1, 0], [], []>} : vector<48x8xf32>, vector<48x8xf32>, vector<48x48xf32> -> vector<48x48xf32>
    %cst_263 = arith.constant 0.353553385 : f32
    %660 = vector.broadcast %cst_263 : f32 to vector<48x48xf32>
    %661 = arith.mulf %659, %660 : vector<48x48xf32>
    %c1_264 = arith.constant 1 : index
    %c5_265 = arith.constant 5 : index
    %c0_266 = arith.constant 0 : index
    %c0_267 = arith.constant 0 : index
    %662 = vector.load %arg17[%c1_264, %c5_265, %c0_266, %c0_267] : memref<3x8x48x48xbf16, #tpu.memory_space<vmem>>, vector<1x1x48x48xbf16>
    %663 = vector.shape_cast %662 : vector<1x1x48x48xbf16> to vector<48x48xbf16>
    %664 = arith.extf %663 : vector<48x48xbf16> to vector<48x48xf32>
    %665 = arith.addf %661, %664 : vector<48x48xf32>
    %cst_268 = arith.constant dense<0xFF800000> : vector<48xf32>
    %666 = vector.multi_reduction <maximumf>, %665, %cst_268 [1] : vector<48x48xf32> to vector<48xf32>
    %667 = vector.shape_cast %666 : vector<48xf32> to vector<48x1xf32>
    %668 = vector.broadcast %667 : vector<48x1xf32> to vector<48x48xf32>
    %669 = arith.subf %665, %668 : vector<48x48xf32>
    %670 = math.exp %669 : vector<48x48xf32>
    %cst_269 = arith.constant dense<0.000000e+00> : vector<48xf32>
    %671 = vector.multi_reduction <add>, %670, %cst_269 [1] : vector<48x48xf32> to vector<48xf32>
    %672 = vector.shape_cast %671 : vector<48xf32> to vector<48x1xf32>
    %673 = tpu.reciprocal %672 {approx = true} : vector<48x1xf32> -> vector<48x1xf32>
    %674 = vector.broadcast %673 : vector<48x1xf32> to vector<48x48xf32>
    %675 = arith.mulf %670, %674 : vector<48x48xf32>
    %676 = arith.truncf %675 : vector<48x48xf32> to vector<48x48xbf16>
    %677 = vector.extract_strided_slice %546 {offsets = [0, 40], sizes = [48, 8], strides = [1, 1]} : vector<48x64xbf16> to vector<48x8xbf16>
    %cst_270 = arith.constant dense<0.000000e+00> : vector<48x8xf32>
    %678 = tpu.matmul %676, %677, %cst_270 {dimension_numbers = #tpu.dot_dimension_numbers<[1], [0], [0], [1], [0, 0, 1, 1], [], []>} : vector<48x48xbf16>, vector<48x8xbf16>, vector<48x8xf32> -> vector<48x8xf32>
    %679 = vector.extract_strided_slice %543 {offsets = [0, 48], sizes = [48, 8], strides = [1, 1]} : vector<48x64xf32> to vector<48x8xf32>
    %680 = vector.extract_strided_slice %544 {offsets = [0, 48], sizes = [48, 8], strides = [1, 1]} : vector<48x64xf32> to vector<48x8xf32>
    %cst_271 = arith.constant dense<0.000000e+00> : vector<48x48xf32>
    %681 = tpu.matmul %679, %680, %cst_271 {dimension_numbers = #tpu.dot_dimension_numbers<[1], [1], [0], [0], [0, 0, 1, 0], [], []>} : vector<48x8xf32>, vector<48x8xf32>, vector<48x48xf32> -> vector<48x48xf32>
    %cst_272 = arith.constant 0.353553385 : f32
    %682 = vector.broadcast %cst_272 : f32 to vector<48x48xf32>
    %683 = arith.mulf %681, %682 : vector<48x48xf32>
    %c1_273 = arith.constant 1 : index
    %c6_274 = arith.constant 6 : index
    %c0_275 = arith.constant 0 : index
    %c0_276 = arith.constant 0 : index
    %684 = vector.load %arg17[%c1_273, %c6_274, %c0_275, %c0_276] : memref<3x8x48x48xbf16, #tpu.memory_space<vmem>>, vector<1x1x48x48xbf16>
    %685 = vector.shape_cast %684 : vector<1x1x48x48xbf16> to vector<48x48xbf16>
    %686 = arith.extf %685 : vector<48x48xbf16> to vector<48x48xf32>
    %687 = arith.addf %683, %686 : vector<48x48xf32>
    %cst_277 = arith.constant dense<0xFF800000> : vector<48xf32>
    %688 = vector.multi_reduction <maximumf>, %687, %cst_277 [1] : vector<48x48xf32> to vector<48xf32>
    %689 = vector.shape_cast %688 : vector<48xf32> to vector<48x1xf32>
    %690 = vector.broadcast %689 : vector<48x1xf32> to vector<48x48xf32>
    %691 = arith.subf %687, %690 : vector<48x48xf32>
    %692 = math.exp %691 : vector<48x48xf32>
    %cst_278 = arith.constant dense<0.000000e+00> : vector<48xf32>
    %693 = vector.multi_reduction <add>, %692, %cst_278 [1] : vector<48x48xf32> to vector<48xf32>
    %694 = vector.shape_cast %693 : vector<48xf32> to vector<48x1xf32>
    %695 = tpu.reciprocal %694 {approx = true} : vector<48x1xf32> -> vector<48x1xf32>
    %696 = vector.broadcast %695 : vector<48x1xf32> to vector<48x48xf32>
    %697 = arith.mulf %692, %696 : vector<48x48xf32>
    %698 = arith.truncf %697 : vector<48x48xf32> to vector<48x48xbf16>
    %699 = vector.extract_strided_slice %546 {offsets = [0, 48], sizes = [48, 8], strides = [1, 1]} : vector<48x64xbf16> to vector<48x8xbf16>
    %cst_279 = arith.constant dense<0.000000e+00> : vector<48x8xf32>
    %700 = tpu.matmul %698, %699, %cst_279 {dimension_numbers = #tpu.dot_dimension_numbers<[1], [0], [0], [1], [0, 0, 1, 1], [], []>} : vector<48x48xbf16>, vector<48x8xbf16>, vector<48x8xf32> -> vector<48x8xf32>
    %701 = vector.extract_strided_slice %543 {offsets = [0, 56], sizes = [48, 8], strides = [1, 1]} : vector<48x64xf32> to vector<48x8xf32>
    %702 = vector.extract_strided_slice %544 {offsets = [0, 56], sizes = [48, 8], strides = [1, 1]} : vector<48x64xf32> to vector<48x8xf32>
    %cst_280 = arith.constant dense<0.000000e+00> : vector<48x48xf32>
    %703 = tpu.matmul %701, %702, %cst_280 {dimension_numbers = #tpu.dot_dimension_numbers<[1], [1], [0], [0], [0, 0, 1, 0], [], []>} : vector<48x8xf32>, vector<48x8xf32>, vector<48x48xf32> -> vector<48x48xf32>
    %cst_281 = arith.constant 0.353553385 : f32
    %704 = vector.broadcast %cst_281 : f32 to vector<48x48xf32>
    %705 = arith.mulf %703, %704 : vector<48x48xf32>
    %c1_282 = arith.constant 1 : index
    %c7_283 = arith.constant 7 : index
    %c0_284 = arith.constant 0 : index
    %c0_285 = arith.constant 0 : index
    %706 = vector.load %arg17[%c1_282, %c7_283, %c0_284, %c0_285] : memref<3x8x48x48xbf16, #tpu.memory_space<vmem>>, vector<1x1x48x48xbf16>
    %707 = vector.shape_cast %706 : vector<1x1x48x48xbf16> to vector<48x48xbf16>
    %708 = arith.extf %707 : vector<48x48xbf16> to vector<48x48xf32>
    %709 = arith.addf %705, %708 : vector<48x48xf32>
    %cst_286 = arith.constant dense<0xFF800000> : vector<48xf32>
    %710 = vector.multi_reduction <maximumf>, %709, %cst_286 [1] : vector<48x48xf32> to vector<48xf32>
    %711 = vector.shape_cast %710 : vector<48xf32> to vector<48x1xf32>
    %712 = vector.broadcast %711 : vector<48x1xf32> to vector<48x48xf32>
    %713 = arith.subf %709, %712 : vector<48x48xf32>
    %714 = math.exp %713 : vector<48x48xf32>
    %cst_287 = arith.constant dense<0.000000e+00> : vector<48xf32>
    %715 = vector.multi_reduction <add>, %714, %cst_287 [1] : vector<48x48xf32> to vector<48xf32>
    %716 = vector.shape_cast %715 : vector<48xf32> to vector<48x1xf32>
    %717 = tpu.reciprocal %716 {approx = true} : vector<48x1xf32> -> vector<48x1xf32>
    %718 = vector.broadcast %717 : vector<48x1xf32> to vector<48x48xf32>
    %719 = arith.mulf %714, %718 : vector<48x48xf32>
    %720 = arith.truncf %719 : vector<48x48xf32> to vector<48x48xbf16>
    %721 = vector.extract_strided_slice %546 {offsets = [0, 56], sizes = [48, 8], strides = [1, 1]} : vector<48x64xbf16> to vector<48x8xbf16>
    %cst_288 = arith.constant dense<0.000000e+00> : vector<48x8xf32>
    %722 = tpu.matmul %720, %721, %cst_288 {dimension_numbers = #tpu.dot_dimension_numbers<[1], [0], [0], [1], [0, 0, 1, 1], [], []>} : vector<48x48xbf16>, vector<48x8xbf16>, vector<48x8xf32> -> vector<48x8xf32>
    %723 = tpu.concatenate %568, %590, %612, %634, %656, %678, %700, %722 in 1 : vector<48x8xf32>, vector<48x8xf32>, vector<48x8xf32>, vector<48x8xf32>, vector<48x8xf32>, vector<48x8xf32>, vector<48x8xf32>, vector<48x8xf32> -> vector<48x64xf32>
    %724 = arith.truncf %723 : vector<48x64xf32> to vector<48x64xbf16>
    %c1_289 = arith.constant 1 : index
    %c0_290 = arith.constant 0 : index
    %c0_291 = arith.constant 0 : index
    %725 = vector.load %arg15[%c1_289, %c0_290, %c0_291] : memref<3x64x64xbf16, #tpu.memory_space<vmem>>, vector<1x64x64xbf16>
    %726 = vector.shape_cast %725 : vector<1x64x64xbf16> to vector<64x64xbf16>
    %cst_292 = arith.constant dense<0.000000e+00> : vector<48x64xf32>
    %727 = tpu.matmul %724, %726, %cst_292 {dimension_numbers = #tpu.dot_dimension_numbers<[1], [0], [0], [1], [0, 0, 1, 1], [], []>} : vector<48x64xbf16>, vector<64x64xbf16>, vector<48x64xf32> -> vector<48x64xf32>
    %728 = arith.addf %464, %727 : vector<48x64xf32>
    %c1_293 = arith.constant 1 : index
    %c0_294 = arith.constant 0 : index
    %c0_295 = arith.constant 0 : index
    %729 = vector.load %arg16[%c1_293, %c0_294, %c0_295] : memref<3x1x64xf32, #tpu.memory_space<vmem>>, vector<1x1x64xf32>
    %730 = vector.shape_cast %729 : vector<1x1x64xf32> to vector<1x64xf32>
    %731 = vector.broadcast %730 : vector<1x64xf32> to vector<48x64xf32>
    %732 = arith.addf %728, %731 : vector<48x64xf32>
    %cst_296 = arith.constant dense<0.000000e+00> : vector<64xf32>
    %733 = vector.multi_reduction <add>, %732, %cst_296 [0] : vector<48x64xf32> to vector<64xf32>
    %734 = vector.shape_cast %733 : vector<64xf32> to vector<1x64xf32>
    %735 = tpu.iota {dimensions = array<i32: 1>} : vector<1x64xi32>
    %c2_i32_297 = arith.constant 2 : i32
    %c0_i32_298 = arith.constant 0 : i32
    %736 = arith.cmpi eq, %c2_i32_297, %c0_i32_298 : i32
    %c1_i32_299 = arith.constant 1 : i32
    %737 = arith.select %736, %c1_i32_299, %c2_i32_297 : i32
    %738 = vector.broadcast %737 : i32 to vector<1x64xi32>
    %739 = arith.remsi %735, %738 : vector<1x64xi32>
    %c0_i32_300 = arith.constant 0 : i32
    %740 = vector.broadcast %c0_i32_300 : i32 to vector<1x64xi32>
    %741 = arith.cmpi ne, %739, %740 : vector<1x64xi32>
    %c0_i32_301 = arith.constant 0 : i32
    %742 = vector.broadcast %c0_i32_301 : i32 to vector<1x64xi32>
    %743 = arith.cmpi slt, %739, %742 : vector<1x64xi32>
    %c0_i32_302 = arith.constant 0 : i32
    %744 = arith.cmpi slt, %737, %c0_i32_302 : i32
    %745 = vector.broadcast %744 : i1 to vector<1x64xi1>
    %746 = vector.broadcast %745 : vector<1x64xi1> to vector<1x64xi1>
    %747 = arith.xori %743, %746 : vector<1x64xi1>
    %748 = arith.andi %747, %741 : vector<1x64xi1>
    %749 = vector.broadcast %737 : i32 to vector<1x64xi32>
    %750 = arith.addi %739, %749 : vector<1x64xi32>
    %751 = arith.select %748, %750, %739 : vector<1x64xi1>, vector<1x64xi32>
    %c63_i32_303 = arith.constant 63 : i32
    %752 = tpu.dynamic_rotate %734 by %c63_i32_303 dim 1 : vector<1x64xf32>, i32 -> vector<1x64xf32>
    %c1_i32_304 = arith.constant 1 : i32
    %753 = tpu.dynamic_rotate %734 by %c1_i32_304 dim 1 : vector<1x64xf32>, i32 -> vector<1x64xf32>
    %c1_i32_305 = arith.constant 1 : i32
    %754 = vector.broadcast %c1_i32_305 : i32 to vector<1x64xi32>
    %755 = arith.cmpi slt, %751, %754 : vector<1x64xi32>
    %756 = arith.select %755, %752, %753 : vector<1x64xi1>, vector<1x64xf32>
    %757 = arith.addf %734, %756 : vector<1x64xf32>
    %cst_306 = arith.constant 0.010416667 : f32
    %758 = vector.broadcast %cst_306 : f32 to vector<1x64xf32>
    %759 = arith.mulf %757, %758 : vector<1x64xf32>
    %760 = vector.broadcast %759 : vector<1x64xf32> to vector<48x64xf32>
    %761 = arith.subf %732, %760 : vector<48x64xf32>
    %762 = arith.mulf %761, %761 : vector<48x64xf32>
    %cst_307 = arith.constant dense<0.000000e+00> : vector<64xf32>
    %763 = vector.multi_reduction <add>, %762, %cst_307 [0] : vector<48x64xf32> to vector<64xf32>
    %764 = vector.shape_cast %763 : vector<64xf32> to vector<1x64xf32>
    %765 = tpu.iota {dimensions = array<i32: 1>} : vector<1x64xi32>
    %c2_i32_308 = arith.constant 2 : i32
    %c0_i32_309 = arith.constant 0 : i32
    %766 = arith.cmpi eq, %c2_i32_308, %c0_i32_309 : i32
    %c1_i32_310 = arith.constant 1 : i32
    %767 = arith.select %766, %c1_i32_310, %c2_i32_308 : i32
    %768 = vector.broadcast %767 : i32 to vector<1x64xi32>
    %769 = arith.remsi %765, %768 : vector<1x64xi32>
    %c0_i32_311 = arith.constant 0 : i32
    %770 = vector.broadcast %c0_i32_311 : i32 to vector<1x64xi32>
    %771 = arith.cmpi ne, %769, %770 : vector<1x64xi32>
    %c0_i32_312 = arith.constant 0 : i32
    %772 = vector.broadcast %c0_i32_312 : i32 to vector<1x64xi32>
    %773 = arith.cmpi slt, %769, %772 : vector<1x64xi32>
    %c0_i32_313 = arith.constant 0 : i32
    %774 = arith.cmpi slt, %767, %c0_i32_313 : i32
    %775 = vector.broadcast %774 : i1 to vector<1x64xi1>
    %776 = vector.broadcast %775 : vector<1x64xi1> to vector<1x64xi1>
    %777 = arith.xori %773, %776 : vector<1x64xi1>
    %778 = arith.andi %777, %771 : vector<1x64xi1>
    %779 = vector.broadcast %767 : i32 to vector<1x64xi32>
    %780 = arith.addi %769, %779 : vector<1x64xi32>
    %781 = arith.select %778, %780, %769 : vector<1x64xi1>, vector<1x64xi32>
    %c63_i32_314 = arith.constant 63 : i32
    %782 = tpu.dynamic_rotate %764 by %c63_i32_314 dim 1 : vector<1x64xf32>, i32 -> vector<1x64xf32>
    %c1_i32_315 = arith.constant 1 : i32
    %783 = tpu.dynamic_rotate %764 by %c1_i32_315 dim 1 : vector<1x64xf32>, i32 -> vector<1x64xf32>
    %c1_i32_316 = arith.constant 1 : i32
    %784 = vector.broadcast %c1_i32_316 : i32 to vector<1x64xi32>
    %785 = arith.cmpi slt, %781, %784 : vector<1x64xi32>
    %786 = arith.select %785, %782, %783 : vector<1x64xi1>, vector<1x64xf32>
    %787 = arith.addf %764, %786 : vector<1x64xf32>
    %cst_317 = arith.constant 0.010416667 : f32
    %788 = vector.broadcast %cst_317 : f32 to vector<1x64xf32>
    %789 = arith.mulf %787, %788 : vector<1x64xf32>
    %cst_318 = arith.constant 9.99999974E-6 : f32
    %790 = vector.broadcast %cst_318 : f32 to vector<1x64xf32>
    %791 = arith.addf %789, %790 : vector<1x64xf32>
    %792 = math.rsqrt %791 : vector<1x64xf32>
    %793 = vector.broadcast %792 : vector<1x64xf32> to vector<48x64xf32>
    %794 = arith.mulf %761, %793 : vector<48x64xf32>
    %c2_319 = arith.constant 2 : index
    %c0_320 = arith.constant 0 : index
    %c0_321 = arith.constant 0 : index
    %795 = vector.load %arg11[%c2_319, %c0_320, %c0_321] : memref<3x1x64xf32, #tpu.memory_space<vmem>>, vector<1x1x64xf32>
    %796 = vector.shape_cast %795 : vector<1x1x64xf32> to vector<1x64xf32>
    %797 = vector.broadcast %796 : vector<1x64xf32> to vector<48x64xf32>
    %798 = arith.mulf %794, %797 : vector<48x64xf32>
    %c2_322 = arith.constant 2 : index
    %c0_323 = arith.constant 0 : index
    %c0_324 = arith.constant 0 : index
    %799 = vector.load %arg12[%c2_322, %c0_323, %c0_324] : memref<3x1x64xf32, #tpu.memory_space<vmem>>, vector<1x1x64xf32>
    %800 = vector.shape_cast %799 : vector<1x1x64xf32> to vector<1x64xf32>
    %801 = vector.broadcast %800 : vector<1x64xf32> to vector<48x64xf32>
    %802 = arith.addf %798, %801 : vector<48x64xf32>
    %803 = arith.truncf %802 : vector<48x64xf32> to vector<48x64xbf16>
    %c2_325 = arith.constant 2 : index
    %c0_326 = arith.constant 0 : index
    %c0_327 = arith.constant 0 : index
    %804 = vector.load %arg13[%c2_325, %c0_326, %c0_327] : memref<3x64x192xbf16, #tpu.memory_space<vmem>>, vector<1x64x192xbf16>
    %805 = vector.shape_cast %804 : vector<1x64x192xbf16> to vector<64x192xbf16>
    %cst_328 = arith.constant dense<0.000000e+00> : vector<48x192xf32>
    %806 = tpu.matmul %803, %805, %cst_328 {dimension_numbers = #tpu.dot_dimension_numbers<[1], [0], [0], [1], [0, 0, 1, 1], [], []>} : vector<48x64xbf16>, vector<64x192xbf16>, vector<48x192xf32> -> vector<48x192xf32>
    %c2_329 = arith.constant 2 : index
    %c0_330 = arith.constant 0 : index
    %c0_331 = arith.constant 0 : index
    %807 = vector.load %arg14[%c2_329, %c0_330, %c0_331] : memref<3x1x192xf32, #tpu.memory_space<vmem>>, vector<1x1x192xf32>
    %808 = vector.shape_cast %807 : vector<1x1x192xf32> to vector<1x192xf32>
    %809 = vector.broadcast %808 : vector<1x192xf32> to vector<48x192xf32>
    %810 = arith.addf %806, %809 : vector<48x192xf32>
    %811 = vector.extract_strided_slice %810 {offsets = [0, 0], sizes = [48, 64], strides = [1, 1]} : vector<48x192xf32> to vector<48x64xf32>
    %812 = vector.extract_strided_slice %810 {offsets = [0, 64], sizes = [48, 64], strides = [1, 1]} : vector<48x192xf32> to vector<48x64xf32>
    %813 = vector.extract_strided_slice %810 {offsets = [0, 128], sizes = [48, 64], strides = [1, 1]} : vector<48x192xf32> to vector<48x64xf32>
    %814 = arith.truncf %813 : vector<48x64xf32> to vector<48x64xbf16>
    %815 = vector.extract_strided_slice %811 {offsets = [0, 0], sizes = [48, 8], strides = [1, 1]} : vector<48x64xf32> to vector<48x8xf32>
    %816 = vector.extract_strided_slice %812 {offsets = [0, 0], sizes = [48, 8], strides = [1, 1]} : vector<48x64xf32> to vector<48x8xf32>
    %cst_332 = arith.constant dense<0.000000e+00> : vector<48x48xf32>
    %817 = tpu.matmul %815, %816, %cst_332 {dimension_numbers = #tpu.dot_dimension_numbers<[1], [1], [0], [0], [0, 0, 1, 0], [], []>} : vector<48x8xf32>, vector<48x8xf32>, vector<48x48xf32> -> vector<48x48xf32>
    %cst_333 = arith.constant 0.353553385 : f32
    %818 = vector.broadcast %cst_333 : f32 to vector<48x48xf32>
    %819 = arith.mulf %817, %818 : vector<48x48xf32>
    %c2_334 = arith.constant 2 : index
    %c0_335 = arith.constant 0 : index
    %c0_336 = arith.constant 0 : index
    %c0_337 = arith.constant 0 : index
    %820 = vector.load %arg17[%c2_334, %c0_335, %c0_336, %c0_337] : memref<3x8x48x48xbf16, #tpu.memory_space<vmem>>, vector<1x1x48x48xbf16>
    %821 = vector.shape_cast %820 : vector<1x1x48x48xbf16> to vector<48x48xbf16>
    %822 = arith.extf %821 : vector<48x48xbf16> to vector<48x48xf32>
    %823 = arith.addf %819, %822 : vector<48x48xf32>
    %cst_338 = arith.constant dense<0xFF800000> : vector<48xf32>
    %824 = vector.multi_reduction <maximumf>, %823, %cst_338 [1] : vector<48x48xf32> to vector<48xf32>
    %825 = vector.shape_cast %824 : vector<48xf32> to vector<48x1xf32>
    %826 = vector.broadcast %825 : vector<48x1xf32> to vector<48x48xf32>
    %827 = arith.subf %823, %826 : vector<48x48xf32>
    %828 = math.exp %827 : vector<48x48xf32>
    %cst_339 = arith.constant dense<0.000000e+00> : vector<48xf32>
    %829 = vector.multi_reduction <add>, %828, %cst_339 [1] : vector<48x48xf32> to vector<48xf32>
    %830 = vector.shape_cast %829 : vector<48xf32> to vector<48x1xf32>
    %831 = tpu.reciprocal %830 {approx = true} : vector<48x1xf32> -> vector<48x1xf32>
    %832 = vector.broadcast %831 : vector<48x1xf32> to vector<48x48xf32>
    %833 = arith.mulf %828, %832 : vector<48x48xf32>
    %834 = arith.truncf %833 : vector<48x48xf32> to vector<48x48xbf16>
    %835 = vector.extract_strided_slice %814 {offsets = [0, 0], sizes = [48, 8], strides = [1, 1]} : vector<48x64xbf16> to vector<48x8xbf16>
    %cst_340 = arith.constant dense<0.000000e+00> : vector<48x8xf32>
    %836 = tpu.matmul %834, %835, %cst_340 {dimension_numbers = #tpu.dot_dimension_numbers<[1], [0], [0], [1], [0, 0, 1, 1], [], []>} : vector<48x48xbf16>, vector<48x8xbf16>, vector<48x8xf32> -> vector<48x8xf32>
    %837 = vector.extract_strided_slice %811 {offsets = [0, 8], sizes = [48, 8], strides = [1, 1]} : vector<48x64xf32> to vector<48x8xf32>
    %838 = vector.extract_strided_slice %812 {offsets = [0, 8], sizes = [48, 8], strides = [1, 1]} : vector<48x64xf32> to vector<48x8xf32>
    %cst_341 = arith.constant dense<0.000000e+00> : vector<48x48xf32>
    %839 = tpu.matmul %837, %838, %cst_341 {dimension_numbers = #tpu.dot_dimension_numbers<[1], [1], [0], [0], [0, 0, 1, 0], [], []>} : vector<48x8xf32>, vector<48x8xf32>, vector<48x48xf32> -> vector<48x48xf32>
    %cst_342 = arith.constant 0.353553385 : f32
    %840 = vector.broadcast %cst_342 : f32 to vector<48x48xf32>
    %841 = arith.mulf %839, %840 : vector<48x48xf32>
    %c2_343 = arith.constant 2 : index
    %c1_344 = arith.constant 1 : index
    %c0_345 = arith.constant 0 : index
    %c0_346 = arith.constant 0 : index
    %842 = vector.load %arg17[%c2_343, %c1_344, %c0_345, %c0_346] : memref<3x8x48x48xbf16, #tpu.memory_space<vmem>>, vector<1x1x48x48xbf16>
    %843 = vector.shape_cast %842 : vector<1x1x48x48xbf16> to vector<48x48xbf16>
    %844 = arith.extf %843 : vector<48x48xbf16> to vector<48x48xf32>
    %845 = arith.addf %841, %844 : vector<48x48xf32>
    %cst_347 = arith.constant dense<0xFF800000> : vector<48xf32>
    %846 = vector.multi_reduction <maximumf>, %845, %cst_347 [1] : vector<48x48xf32> to vector<48xf32>
    %847 = vector.shape_cast %846 : vector<48xf32> to vector<48x1xf32>
    %848 = vector.broadcast %847 : vector<48x1xf32> to vector<48x48xf32>
    %849 = arith.subf %845, %848 : vector<48x48xf32>
    %850 = math.exp %849 : vector<48x48xf32>
    %cst_348 = arith.constant dense<0.000000e+00> : vector<48xf32>
    %851 = vector.multi_reduction <add>, %850, %cst_348 [1] : vector<48x48xf32> to vector<48xf32>
    %852 = vector.shape_cast %851 : vector<48xf32> to vector<48x1xf32>
    %853 = tpu.reciprocal %852 {approx = true} : vector<48x1xf32> -> vector<48x1xf32>
    %854 = vector.broadcast %853 : vector<48x1xf32> to vector<48x48xf32>
    %855 = arith.mulf %850, %854 : vector<48x48xf32>
    %856 = arith.truncf %855 : vector<48x48xf32> to vector<48x48xbf16>
    %857 = vector.extract_strided_slice %814 {offsets = [0, 8], sizes = [48, 8], strides = [1, 1]} : vector<48x64xbf16> to vector<48x8xbf16>
    %cst_349 = arith.constant dense<0.000000e+00> : vector<48x8xf32>
    %858 = tpu.matmul %856, %857, %cst_349 {dimension_numbers = #tpu.dot_dimension_numbers<[1], [0], [0], [1], [0, 0, 1, 1], [], []>} : vector<48x48xbf16>, vector<48x8xbf16>, vector<48x8xf32> -> vector<48x8xf32>
    %859 = vector.extract_strided_slice %811 {offsets = [0, 16], sizes = [48, 8], strides = [1, 1]} : vector<48x64xf32> to vector<48x8xf32>
    %860 = vector.extract_strided_slice %812 {offsets = [0, 16], sizes = [48, 8], strides = [1, 1]} : vector<48x64xf32> to vector<48x8xf32>
    %cst_350 = arith.constant dense<0.000000e+00> : vector<48x48xf32>
    %861 = tpu.matmul %859, %860, %cst_350 {dimension_numbers = #tpu.dot_dimension_numbers<[1], [1], [0], [0], [0, 0, 1, 0], [], []>} : vector<48x8xf32>, vector<48x8xf32>, vector<48x48xf32> -> vector<48x48xf32>
    %cst_351 = arith.constant 0.353553385 : f32
    %862 = vector.broadcast %cst_351 : f32 to vector<48x48xf32>
    %863 = arith.mulf %861, %862 : vector<48x48xf32>
    %c2_352 = arith.constant 2 : index
    %c2_353 = arith.constant 2 : index
    %c0_354 = arith.constant 0 : index
    %c0_355 = arith.constant 0 : index
    %864 = vector.load %arg17[%c2_352, %c2_353, %c0_354, %c0_355] : memref<3x8x48x48xbf16, #tpu.memory_space<vmem>>, vector<1x1x48x48xbf16>
    %865 = vector.shape_cast %864 : vector<1x1x48x48xbf16> to vector<48x48xbf16>
    %866 = arith.extf %865 : vector<48x48xbf16> to vector<48x48xf32>
    %867 = arith.addf %863, %866 : vector<48x48xf32>
    %cst_356 = arith.constant dense<0xFF800000> : vector<48xf32>
    %868 = vector.multi_reduction <maximumf>, %867, %cst_356 [1] : vector<48x48xf32> to vector<48xf32>
    %869 = vector.shape_cast %868 : vector<48xf32> to vector<48x1xf32>
    %870 = vector.broadcast %869 : vector<48x1xf32> to vector<48x48xf32>
    %871 = arith.subf %867, %870 : vector<48x48xf32>
    %872 = math.exp %871 : vector<48x48xf32>
    %cst_357 = arith.constant dense<0.000000e+00> : vector<48xf32>
    %873 = vector.multi_reduction <add>, %872, %cst_357 [1] : vector<48x48xf32> to vector<48xf32>
    %874 = vector.shape_cast %873 : vector<48xf32> to vector<48x1xf32>
    %875 = tpu.reciprocal %874 {approx = true} : vector<48x1xf32> -> vector<48x1xf32>
    %876 = vector.broadcast %875 : vector<48x1xf32> to vector<48x48xf32>
    %877 = arith.mulf %872, %876 : vector<48x48xf32>
    %878 = arith.truncf %877 : vector<48x48xf32> to vector<48x48xbf16>
    %879 = vector.extract_strided_slice %814 {offsets = [0, 16], sizes = [48, 8], strides = [1, 1]} : vector<48x64xbf16> to vector<48x8xbf16>
    %cst_358 = arith.constant dense<0.000000e+00> : vector<48x8xf32>
    %880 = tpu.matmul %878, %879, %cst_358 {dimension_numbers = #tpu.dot_dimension_numbers<[1], [0], [0], [1], [0, 0, 1, 1], [], []>} : vector<48x48xbf16>, vector<48x8xbf16>, vector<48x8xf32> -> vector<48x8xf32>
    %881 = vector.extract_strided_slice %811 {offsets = [0, 24], sizes = [48, 8], strides = [1, 1]} : vector<48x64xf32> to vector<48x8xf32>
    %882 = vector.extract_strided_slice %812 {offsets = [0, 24], sizes = [48, 8], strides = [1, 1]} : vector<48x64xf32> to vector<48x8xf32>
    %cst_359 = arith.constant dense<0.000000e+00> : vector<48x48xf32>
    %883 = tpu.matmul %881, %882, %cst_359 {dimension_numbers = #tpu.dot_dimension_numbers<[1], [1], [0], [0], [0, 0, 1, 0], [], []>} : vector<48x8xf32>, vector<48x8xf32>, vector<48x48xf32> -> vector<48x48xf32>
    %cst_360 = arith.constant 0.353553385 : f32
    %884 = vector.broadcast %cst_360 : f32 to vector<48x48xf32>
    %885 = arith.mulf %883, %884 : vector<48x48xf32>
    %c2_361 = arith.constant 2 : index
    %c3_362 = arith.constant 3 : index
    %c0_363 = arith.constant 0 : index
    %c0_364 = arith.constant 0 : index
    %886 = vector.load %arg17[%c2_361, %c3_362, %c0_363, %c0_364] : memref<3x8x48x48xbf16, #tpu.memory_space<vmem>>, vector<1x1x48x48xbf16>
    %887 = vector.shape_cast %886 : vector<1x1x48x48xbf16> to vector<48x48xbf16>
    %888 = arith.extf %887 : vector<48x48xbf16> to vector<48x48xf32>
    %889 = arith.addf %885, %888 : vector<48x48xf32>
    %cst_365 = arith.constant dense<0xFF800000> : vector<48xf32>
    %890 = vector.multi_reduction <maximumf>, %889, %cst_365 [1] : vector<48x48xf32> to vector<48xf32>
    %891 = vector.shape_cast %890 : vector<48xf32> to vector<48x1xf32>
    %892 = vector.broadcast %891 : vector<48x1xf32> to vector<48x48xf32>
    %893 = arith.subf %889, %892 : vector<48x48xf32>
    %894 = math.exp %893 : vector<48x48xf32>
    %cst_366 = arith.constant dense<0.000000e+00> : vector<48xf32>
    %895 = vector.multi_reduction <add>, %894, %cst_366 [1] : vector<48x48xf32> to vector<48xf32>
    %896 = vector.shape_cast %895 : vector<48xf32> to vector<48x1xf32>
    %897 = tpu.reciprocal %896 {approx = true} : vector<48x1xf32> -> vector<48x1xf32>
    %898 = vector.broadcast %897 : vector<48x1xf32> to vector<48x48xf32>
    %899 = arith.mulf %894, %898 : vector<48x48xf32>
    %900 = arith.truncf %899 : vector<48x48xf32> to vector<48x48xbf16>
    %901 = vector.extract_strided_slice %814 {offsets = [0, 24], sizes = [48, 8], strides = [1, 1]} : vector<48x64xbf16> to vector<48x8xbf16>
    %cst_367 = arith.constant dense<0.000000e+00> : vector<48x8xf32>
    %902 = tpu.matmul %900, %901, %cst_367 {dimension_numbers = #tpu.dot_dimension_numbers<[1], [0], [0], [1], [0, 0, 1, 1], [], []>} : vector<48x48xbf16>, vector<48x8xbf16>, vector<48x8xf32> -> vector<48x8xf32>
    %903 = vector.extract_strided_slice %811 {offsets = [0, 32], sizes = [48, 8], strides = [1, 1]} : vector<48x64xf32> to vector<48x8xf32>
    %904 = vector.extract_strided_slice %812 {offsets = [0, 32], sizes = [48, 8], strides = [1, 1]} : vector<48x64xf32> to vector<48x8xf32>
    %cst_368 = arith.constant dense<0.000000e+00> : vector<48x48xf32>
    %905 = tpu.matmul %903, %904, %cst_368 {dimension_numbers = #tpu.dot_dimension_numbers<[1], [1], [0], [0], [0, 0, 1, 0], [], []>} : vector<48x8xf32>, vector<48x8xf32>, vector<48x48xf32> -> vector<48x48xf32>
    %cst_369 = arith.constant 0.353553385 : f32
    %906 = vector.broadcast %cst_369 : f32 to vector<48x48xf32>
    %907 = arith.mulf %905, %906 : vector<48x48xf32>
    %c2_370 = arith.constant 2 : index
    %c4_371 = arith.constant 4 : index
    %c0_372 = arith.constant 0 : index
    %c0_373 = arith.constant 0 : index
    %908 = vector.load %arg17[%c2_370, %c4_371, %c0_372, %c0_373] : memref<3x8x48x48xbf16, #tpu.memory_space<vmem>>, vector<1x1x48x48xbf16>
    %909 = vector.shape_cast %908 : vector<1x1x48x48xbf16> to vector<48x48xbf16>
    %910 = arith.extf %909 : vector<48x48xbf16> to vector<48x48xf32>
    %911 = arith.addf %907, %910 : vector<48x48xf32>
    %cst_374 = arith.constant dense<0xFF800000> : vector<48xf32>
    %912 = vector.multi_reduction <maximumf>, %911, %cst_374 [1] : vector<48x48xf32> to vector<48xf32>
    %913 = vector.shape_cast %912 : vector<48xf32> to vector<48x1xf32>
    %914 = vector.broadcast %913 : vector<48x1xf32> to vector<48x48xf32>
    %915 = arith.subf %911, %914 : vector<48x48xf32>
    %916 = math.exp %915 : vector<48x48xf32>
    %cst_375 = arith.constant dense<0.000000e+00> : vector<48xf32>
    %917 = vector.multi_reduction <add>, %916, %cst_375 [1] : vector<48x48xf32> to vector<48xf32>
    %918 = vector.shape_cast %917 : vector<48xf32> to vector<48x1xf32>
    %919 = tpu.reciprocal %918 {approx = true} : vector<48x1xf32> -> vector<48x1xf32>
    %920 = vector.broadcast %919 : vector<48x1xf32> to vector<48x48xf32>
    %921 = arith.mulf %916, %920 : vector<48x48xf32>
    %922 = arith.truncf %921 : vector<48x48xf32> to vector<48x48xbf16>
    %923 = vector.extract_strided_slice %814 {offsets = [0, 32], sizes = [48, 8], strides = [1, 1]} : vector<48x64xbf16> to vector<48x8xbf16>
    %cst_376 = arith.constant dense<0.000000e+00> : vector<48x8xf32>
    %924 = tpu.matmul %922, %923, %cst_376 {dimension_numbers = #tpu.dot_dimension_numbers<[1], [0], [0], [1], [0, 0, 1, 1], [], []>} : vector<48x48xbf16>, vector<48x8xbf16>, vector<48x8xf32> -> vector<48x8xf32>
    %925 = vector.extract_strided_slice %811 {offsets = [0, 40], sizes = [48, 8], strides = [1, 1]} : vector<48x64xf32> to vector<48x8xf32>
    %926 = vector.extract_strided_slice %812 {offsets = [0, 40], sizes = [48, 8], strides = [1, 1]} : vector<48x64xf32> to vector<48x8xf32>
    %cst_377 = arith.constant dense<0.000000e+00> : vector<48x48xf32>
    %927 = tpu.matmul %925, %926, %cst_377 {dimension_numbers = #tpu.dot_dimension_numbers<[1], [1], [0], [0], [0, 0, 1, 0], [], []>} : vector<48x8xf32>, vector<48x8xf32>, vector<48x48xf32> -> vector<48x48xf32>
    %cst_378 = arith.constant 0.353553385 : f32
    %928 = vector.broadcast %cst_378 : f32 to vector<48x48xf32>
    %929 = arith.mulf %927, %928 : vector<48x48xf32>
    %c2_379 = arith.constant 2 : index
    %c5_380 = arith.constant 5 : index
    %c0_381 = arith.constant 0 : index
    %c0_382 = arith.constant 0 : index
    %930 = vector.load %arg17[%c2_379, %c5_380, %c0_381, %c0_382] : memref<3x8x48x48xbf16, #tpu.memory_space<vmem>>, vector<1x1x48x48xbf16>
    %931 = vector.shape_cast %930 : vector<1x1x48x48xbf16> to vector<48x48xbf16>
    %932 = arith.extf %931 : vector<48x48xbf16> to vector<48x48xf32>
    %933 = arith.addf %929, %932 : vector<48x48xf32>
    %cst_383 = arith.constant dense<0xFF800000> : vector<48xf32>
    %934 = vector.multi_reduction <maximumf>, %933, %cst_383 [1] : vector<48x48xf32> to vector<48xf32>
    %935 = vector.shape_cast %934 : vector<48xf32> to vector<48x1xf32>
    %936 = vector.broadcast %935 : vector<48x1xf32> to vector<48x48xf32>
    %937 = arith.subf %933, %936 : vector<48x48xf32>
    %938 = math.exp %937 : vector<48x48xf32>
    %cst_384 = arith.constant dense<0.000000e+00> : vector<48xf32>
    %939 = vector.multi_reduction <add>, %938, %cst_384 [1] : vector<48x48xf32> to vector<48xf32>
    %940 = vector.shape_cast %939 : vector<48xf32> to vector<48x1xf32>
    %941 = tpu.reciprocal %940 {approx = true} : vector<48x1xf32> -> vector<48x1xf32>
    %942 = vector.broadcast %941 : vector<48x1xf32> to vector<48x48xf32>
    %943 = arith.mulf %938, %942 : vector<48x48xf32>
    %944 = arith.truncf %943 : vector<48x48xf32> to vector<48x48xbf16>
    %945 = vector.extract_strided_slice %814 {offsets = [0, 40], sizes = [48, 8], strides = [1, 1]} : vector<48x64xbf16> to vector<48x8xbf16>
    %cst_385 = arith.constant dense<0.000000e+00> : vector<48x8xf32>
    %946 = tpu.matmul %944, %945, %cst_385 {dimension_numbers = #tpu.dot_dimension_numbers<[1], [0], [0], [1], [0, 0, 1, 1], [], []>} : vector<48x48xbf16>, vector<48x8xbf16>, vector<48x8xf32> -> vector<48x8xf32>
    %947 = vector.extract_strided_slice %811 {offsets = [0, 48], sizes = [48, 8], strides = [1, 1]} : vector<48x64xf32> to vector<48x8xf32>
    %948 = vector.extract_strided_slice %812 {offsets = [0, 48], sizes = [48, 8], strides = [1, 1]} : vector<48x64xf32> to vector<48x8xf32>
    %cst_386 = arith.constant dense<0.000000e+00> : vector<48x48xf32>
    %949 = tpu.matmul %947, %948, %cst_386 {dimension_numbers = #tpu.dot_dimension_numbers<[1], [1], [0], [0], [0, 0, 1, 0], [], []>} : vector<48x8xf32>, vector<48x8xf32>, vector<48x48xf32> -> vector<48x48xf32>
    %cst_387 = arith.constant 0.353553385 : f32
    %950 = vector.broadcast %cst_387 : f32 to vector<48x48xf32>
    %951 = arith.mulf %949, %950 : vector<48x48xf32>
    %c2_388 = arith.constant 2 : index
    %c6_389 = arith.constant 6 : index
    %c0_390 = arith.constant 0 : index
    %c0_391 = arith.constant 0 : index
    %952 = vector.load %arg17[%c2_388, %c6_389, %c0_390, %c0_391] : memref<3x8x48x48xbf16, #tpu.memory_space<vmem>>, vector<1x1x48x48xbf16>
    %953 = vector.shape_cast %952 : vector<1x1x48x48xbf16> to vector<48x48xbf16>
    %954 = arith.extf %953 : vector<48x48xbf16> to vector<48x48xf32>
    %955 = arith.addf %951, %954 : vector<48x48xf32>
    %cst_392 = arith.constant dense<0xFF800000> : vector<48xf32>
    %956 = vector.multi_reduction <maximumf>, %955, %cst_392 [1] : vector<48x48xf32> to vector<48xf32>
    %957 = vector.shape_cast %956 : vector<48xf32> to vector<48x1xf32>
    %958 = vector.broadcast %957 : vector<48x1xf32> to vector<48x48xf32>
    %959 = arith.subf %955, %958 : vector<48x48xf32>
    %960 = math.exp %959 : vector<48x48xf32>
    %cst_393 = arith.constant dense<0.000000e+00> : vector<48xf32>
    %961 = vector.multi_reduction <add>, %960, %cst_393 [1] : vector<48x48xf32> to vector<48xf32>
    %962 = vector.shape_cast %961 : vector<48xf32> to vector<48x1xf32>
    %963 = tpu.reciprocal %962 {approx = true} : vector<48x1xf32> -> vector<48x1xf32>
    %964 = vector.broadcast %963 : vector<48x1xf32> to vector<48x48xf32>
    %965 = arith.mulf %960, %964 : vector<48x48xf32>
    %966 = arith.truncf %965 : vector<48x48xf32> to vector<48x48xbf16>
    %967 = vector.extract_strided_slice %814 {offsets = [0, 48], sizes = [48, 8], strides = [1, 1]} : vector<48x64xbf16> to vector<48x8xbf16>
    %cst_394 = arith.constant dense<0.000000e+00> : vector<48x8xf32>
    %968 = tpu.matmul %966, %967, %cst_394 {dimension_numbers = #tpu.dot_dimension_numbers<[1], [0], [0], [1], [0, 0, 1, 1], [], []>} : vector<48x48xbf16>, vector<48x8xbf16>, vector<48x8xf32> -> vector<48x8xf32>
    %969 = vector.extract_strided_slice %811 {offsets = [0, 56], sizes = [48, 8], strides = [1, 1]} : vector<48x64xf32> to vector<48x8xf32>
    %970 = vector.extract_strided_slice %812 {offsets = [0, 56], sizes = [48, 8], strides = [1, 1]} : vector<48x64xf32> to vector<48x8xf32>
    %cst_395 = arith.constant dense<0.000000e+00> : vector<48x48xf32>
    %971 = tpu.matmul %969, %970, %cst_395 {dimension_numbers = #tpu.dot_dimension_numbers<[1], [1], [0], [0], [0, 0, 1, 0], [], []>} : vector<48x8xf32>, vector<48x8xf32>, vector<48x48xf32> -> vector<48x48xf32>
    %cst_396 = arith.constant 0.353553385 : f32
    %972 = vector.broadcast %cst_396 : f32 to vector<48x48xf32>
    %973 = arith.mulf %971, %972 : vector<48x48xf32>
    %c2_397 = arith.constant 2 : index
    %c7_398 = arith.constant 7 : index
    %c0_399 = arith.constant 0 : index
    %c0_400 = arith.constant 0 : index
    %974 = vector.load %arg17[%c2_397, %c7_398, %c0_399, %c0_400] : memref<3x8x48x48xbf16, #tpu.memory_space<vmem>>, vector<1x1x48x48xbf16>
    %975 = vector.shape_cast %974 : vector<1x1x48x48xbf16> to vector<48x48xbf16>
    %976 = arith.extf %975 : vector<48x48xbf16> to vector<48x48xf32>
    %977 = arith.addf %973, %976 : vector<48x48xf32>
    %cst_401 = arith.constant dense<0xFF800000> : vector<48xf32>
    %978 = vector.multi_reduction <maximumf>, %977, %cst_401 [1] : vector<48x48xf32> to vector<48xf32>
    %979 = vector.shape_cast %978 : vector<48xf32> to vector<48x1xf32>
    %980 = vector.broadcast %979 : vector<48x1xf32> to vector<48x48xf32>
    %981 = arith.subf %977, %980 : vector<48x48xf32>
    %982 = math.exp %981 : vector<48x48xf32>
    %cst_402 = arith.constant dense<0.000000e+00> : vector<48xf32>
    %983 = vector.multi_reduction <add>, %982, %cst_402 [1] : vector<48x48xf32> to vector<48xf32>
    %984 = vector.shape_cast %983 : vector<48xf32> to vector<48x1xf32>
    %985 = tpu.reciprocal %984 {approx = true} : vector<48x1xf32> -> vector<48x1xf32>
    %986 = vector.broadcast %985 : vector<48x1xf32> to vector<48x48xf32>
    %987 = arith.mulf %982, %986 : vector<48x48xf32>
    %988 = arith.truncf %987 : vector<48x48xf32> to vector<48x48xbf16>
    %989 = vector.extract_strided_slice %814 {offsets = [0, 56], sizes = [48, 8], strides = [1, 1]} : vector<48x64xbf16> to vector<48x8xbf16>
    %cst_403 = arith.constant dense<0.000000e+00> : vector<48x8xf32>
    %990 = tpu.matmul %988, %989, %cst_403 {dimension_numbers = #tpu.dot_dimension_numbers<[1], [0], [0], [1], [0, 0, 1, 1], [], []>} : vector<48x48xbf16>, vector<48x8xbf16>, vector<48x8xf32> -> vector<48x8xf32>
    %991 = tpu.concatenate %836, %858, %880, %902, %924, %946, %968, %990 in 1 : vector<48x8xf32>, vector<48x8xf32>, vector<48x8xf32>, vector<48x8xf32>, vector<48x8xf32>, vector<48x8xf32>, vector<48x8xf32>, vector<48x8xf32> -> vector<48x64xf32>
    %992 = arith.truncf %991 : vector<48x64xf32> to vector<48x64xbf16>
    %c2_404 = arith.constant 2 : index
    %c0_405 = arith.constant 0 : index
    %c0_406 = arith.constant 0 : index
    %993 = vector.load %arg15[%c2_404, %c0_405, %c0_406] : memref<3x64x64xbf16, #tpu.memory_space<vmem>>, vector<1x64x64xbf16>
    %994 = vector.shape_cast %993 : vector<1x64x64xbf16> to vector<64x64xbf16>
    %cst_407 = arith.constant dense<0.000000e+00> : vector<48x64xf32>
    %995 = tpu.matmul %992, %994, %cst_407 {dimension_numbers = #tpu.dot_dimension_numbers<[1], [0], [0], [1], [0, 0, 1, 1], [], []>} : vector<48x64xbf16>, vector<64x64xbf16>, vector<48x64xf32> -> vector<48x64xf32>
    %996 = arith.addf %732, %995 : vector<48x64xf32>
    %c2_408 = arith.constant 2 : index
    %c0_409 = arith.constant 0 : index
    %c0_410 = arith.constant 0 : index
    %997 = vector.load %arg16[%c2_408, %c0_409, %c0_410] : memref<3x1x64xf32, #tpu.memory_space<vmem>>, vector<1x1x64xf32>
    %998 = vector.shape_cast %997 : vector<1x1x64xf32> to vector<1x64xf32>
    %999 = vector.broadcast %998 : vector<1x64xf32> to vector<48x64xf32>
    %1000 = arith.addf %996, %999 : vector<48x64xf32>
    %cst_411 = arith.constant dense<0.000000e+00> : vector<64xf32>
    %1001 = vector.multi_reduction <add>, %1000, %cst_411 [0] : vector<48x64xf32> to vector<64xf32>
    %1002 = vector.shape_cast %1001 : vector<64xf32> to vector<1x64xf32>
    %cst_412 = arith.constant 4.800000e+01 : f32
    %1003 = vector.broadcast %cst_412 : f32 to vector<1x64xf32>
    %1004 = arith.divf %1002, %1003 : vector<1x64xf32>
    %c0_413 = arith.constant 0 : index
    %c0_414 = arith.constant 0 : index
    %c0_415 = arith.constant 0 : index
    %1005 = vector.load %arg18[%c0_413, %c0_414, %c0_415] : memref<1x1x64xf32, #tpu.memory_space<vmem>>, vector<1x1x64xf32>
    %1006 = vector.shape_cast %1005 : vector<1x1x64xf32> to vector<1x64xf32>
    %1007 = vector.shape_cast %1004 : vector<1x64xf32> to vector<1x1x64xf32>
    tpu.vector_store %arg18[%c0_413, %c0_414, %c0_415], %1007 {strides = array<i32>} : memref<1x1x64xf32, #tpu.memory_space<vmem>>, vector<1x1x64xf32>,
    return
  }
  func.func @transform_0(%arg0: i32) -> (i32, i32, i32) {
    %c0_i32 = arith.constant 0 : i32
    %c0_i32_0 = arith.constant 0 : i32
    %c0_i32_1 = arith.constant 0 : i32
    return %arg0, %c0_i32, %c0_i32_0 : i32, i32, i32
  }
  func.func @transform_1(%arg0: i32) -> (i32, i32) {
    %c0_i32 = arith.constant 0 : i32
    %c0_i32_0 = arith.constant 0 : i32
    %c0_i32_1 = arith.constant 0 : i32
    return %c0_i32, %c0_i32_0 : i32, i32
  }
  func.func @transform_2(%arg0: i32) -> (i32, i32) {
    %c0_i32 = arith.constant 0 : i32
    %c0_i32_0 = arith.constant 0 : i32
    %c0_i32_1 = arith.constant 0 : i32
    return %c0_i32, %c0_i32_0 : i32, i32
  }
  func.func @transform_3(%arg0: i32) -> (i32, i32) {
    %c0_i32 = arith.constant 0 : i32
    %c0_i32_0 = arith.constant 0 : i32
    %c0_i32_1 = arith.constant 0 : i32
    return %c0_i32, %c0_i32_0 : i32, i32
  }
  func.func @transform_4(%arg0: i32) -> (i32, i32) {
    %c0_i32 = arith.constant 0 : i32
    %c0_i32_0 = arith.constant 0 : i32
    %c0_i32_1 = arith.constant 0 : i32
    return %c0_i32, %c0_i32_0 : i32, i32
  }
  func.func @transform_5(%arg0: i32) -> (i32, i32) {
    %c0_i32 = arith.constant 0 : i32
    %c0_i32_0 = arith.constant 0 : i32
    %c0_i32_1 = arith.constant 0 : i32
    return %c0_i32, %c0_i32_0 : i32, i32
  }
  func.func @transform_6(%arg0: i32) -> (i32, i32) {
    %c0_i32 = arith.constant 0 : i32
    %c0_i32_0 = arith.constant 0 : i32
    %c0_i32_1 = arith.constant 0 : i32
    return %c0_i32, %c0_i32_0 : i32, i32
  }
  func.func @transform_7(%arg0: i32) -> (i32, i32) {
    %c0_i32 = arith.constant 0 : i32
    %c0_i32_0 = arith.constant 0 : i32
    %c0_i32_1 = arith.constant 0 : i32
    return %c0_i32, %c0_i32_0 : i32, i32
  }
  func.func @transform_8(%arg0: i32) -> (i32, i32, i32) {
    %c0_i32 = arith.constant 0 : i32
    %c0_i32_0 = arith.constant 0 : i32
    %c0_i32_1 = arith.constant 0 : i32
    %c0_i32_2 = arith.constant 0 : i32
    return %c0_i32, %c0_i32_0, %c0_i32_1 : i32, i32, i32
  }
  func.func @transform_9(%arg0: i32) -> (i32, i32) {
    %c0_i32 = arith.constant 0 : i32
    %c0_i32_0 = arith.constant 0 : i32
    %c0_i32_1 = arith.constant 0 : i32
    return %c0_i32, %c0_i32_0 : i32, i32
  }
  func.func @transform_10(%arg0: i32) -> (i32, i32, i32) {
    %c0_i32 = arith.constant 0 : i32
    %c0_i32_0 = arith.constant 0 : i32
    %c0_i32_1 = arith.constant 0 : i32
    %c0_i32_2 = arith.constant 0 : i32
    return %c0_i32, %c0_i32_0, %c0_i32_1 : i32, i32, i32
  }
  func.func @transform_11(%arg0: i32) -> (i32, i32, i32) {
    %c0_i32 = arith.constant 0 : i32
    %c0_i32_0 = arith.constant 0 : i32
    %c0_i32_1 = arith.constant 0 : i32
    %c0_i32_2 = arith.constant 0 : i32
    return %c0_i32, %c0_i32_0, %c0_i32_1 : i32, i32, i32
  }
  func.func @transform_12(%arg0: i32) -> (i32, i32, i32) {
    %c0_i32 = arith.constant 0 : i32
    %c0_i32_0 = arith.constant 0 : i32
    %c0_i32_1 = arith.constant 0 : i32
    %c0_i32_2 = arith.constant 0 : i32
    return %c0_i32, %c0_i32_0, %c0_i32_1 : i32, i32, i32
  }
  func.func @transform_13(%arg0: i32) -> (i32, i32, i32) {
    %c0_i32 = arith.constant 0 : i32
    %c0_i32_0 = arith.constant 0 : i32
    %c0_i32_1 = arith.constant 0 : i32
    %c0_i32_2 = arith.constant 0 : i32
    return %c0_i32, %c0_i32_0, %c0_i32_1 : i32, i32, i32
  }
  func.func @transform_14(%arg0: i32) -> (i32, i32, i32) {
    %c0_i32 = arith.constant 0 : i32
    %c0_i32_0 = arith.constant 0 : i32
    %c0_i32_1 = arith.constant 0 : i32
    %c0_i32_2 = arith.constant 0 : i32
    return %c0_i32, %c0_i32_0, %c0_i32_1 : i32, i32, i32
  }
  func.func @transform_15(%arg0: i32) -> (i32, i32, i32) {
    %c0_i32 = arith.constant 0 : i32
    %c0_i32_0 = arith.constant 0 : i32
    %c0_i32_1 = arith.constant 0 : i32
    %c0_i32_2 = arith.constant 0 : i32
    return %c0_i32, %c0_i32_0, %c0_i32_1 : i32, i32, i32
  }
  func.func @transform_16(%arg0: i32) -> (i32, i32, i32, i32) {
    %c0_i32 = arith.constant 0 : i32
    %c0_i32_0 = arith.constant 0 : i32
    %c0_i32_1 = arith.constant 0 : i32
    %c0_i32_2 = arith.constant 0 : i32
    %c0_i32_3 = arith.constant 0 : i32
    return %c0_i32, %c0_i32_0, %c0_i32_1, %c0_i32_2 : i32, i32, i32, i32
  }
  func.func @transform_17(%arg0: i32) -> (i32, i32, i32) {
    %c0_i32 = arith.constant 0 : i32
    %c0_i32_0 = arith.constant 0 : i32
    %c0_i32_1 = arith.constant 0 : i32
    return %arg0, %c0_i32, %c0_i32_0 : i32, i32, i32
  }
}

</mosaic_0001>

<llo_original>
// kernel: ref_encoder_forward.1
$region0: #{ref_encoder_forward.1}
  #allocation0 [shape = 'u32[]', space=smem, size = 0x4, offset = 0x4, fixed_abs, tag = 'smem constant byte address 0x4 - core index']
  #allocation1 [shape = 'u32[72,128]{1,0:T(1,128)}', space=vmem, size = 0x9000, scoped, tag = 'internal scratch']
  %s0 = inlined_call_operand.vmem [shape: f32[2,16,64], index: 0, kind: input, shape index: {}]
  %s1 = inlined_call_operand.vmem [shape: bf16[32,64], index: 1, kind: input, shape index: {}]
  %s2 = inlined_call_operand.vmem [shape: bf16[64,64], index: 2, kind: input, shape index: {}]
  %s3 = inlined_call_operand.vmem [shape: f32[1,64], index: 3, kind: input, shape index: {}]
  %s4 = inlined_call_operand.vmem [shape: bf16[64,128], index: 4, kind: input, shape index: {}]
  %s5 = inlined_call_operand.vmem [shape: f32[1,128], index: 5, kind: input, shape index: {}]
  %s6 = inlined_call_operand.vmem [shape: bf16[64,64], index: 6, kind: input, shape index: {}]
  %s7 = inlined_call_operand.vmem [shape: f32[1,64], index: 7, kind: input, shape index: {}]
  %s8 = inlined_call_operand.vmem [shape: bf16[3,64,64], index: 8, kind: input, shape index: {}]
  %s9 = inlined_call_operand.vmem [shape: f32[1,64], index: 9, kind: input, shape index: {}]
  %s10 = inlined_call_operand.vmem [shape: f32[3,1,64], index: 10, kind: input, shape index: {}]
  %s11 = inlined_call_operand.vmem [shape: f32[3,1,64], index: 11, kind: input, shape index: {}]
  %s12 = inlined_call_operand.vmem [shape: bf16[3,64,192], index: 12, kind: input, shape index: {}]
  %s13 = inlined_call_operand.vmem [shape: f32[3,1,192], index: 13, kind: input, shape index: {}]
  %s14 = inlined_call_operand.vmem [shape: bf16[3,64,64], index: 14, kind: input, shape index: {}]
  %s15 = inlined_call_operand.vmem [shape: f32[3,1,64], index: 15, kind: input, shape index: {}]
  %s16 = inlined_call_operand.vmem [shape: bf16[3,8,48,48], index: 16, kind: input, shape index: {}]
  %s17 = inlined_call_operand.hbm [shape: f32[2,1,64], index: 17, kind: output, shape index: {}]
  %s18 = sld [smem:[#allocation0]]
  $region101: #{ref_encoder_forward.1} parent=0
    _
  %s20 = ssub.s32 1, %s18
  %s21 = scalar_select 0, %s20, %s18
  $region1: #{ref_encoder_forward.1} parent=0
    #allocation2 [shape = 'u8[1024]{0}', space=vmem, size = 0x400, scoped, tag = 'output window, operand 0']
    #allocation3 [shape = 's32[2]{0}', space=sflag, size = 0x8, scoped, tag = 'scoped memory for ref_encoder_forward.1']
    %22 = vsyncpa [#allocation3], 0
    %s23 = scalar_lea.sflag [#allocation3], 1
    %24 = vsyncpa %s23, 0
    loop: start=0, step=1, limit=4
    $region2: #{ref_encoder_forward.1} parent=1 // loop_pre_header
      _
    $region3: #{ref_encoder_forward.1} parent=1 // loop_header
      %s26 = sphi 0, %s30
      %p27 = scmp.ge.s32.totalorder %s26, 4
      %s36 = sphi 0, %s38
      %s39 = sphi 0, %s36
      %s40 = sphi 0, %s39
      %s56 = sphi 0, %s40
      %s60 = sphi 0, %s60
      %s62 = sphi 0, %s60
      %s63 = sphi 0, %s62
      %s77 = sphi 0, %s63
      %s81 = sphi 0, %s81
      %s83 = sphi 0, %s81
      %s84 = sphi 0, %s83
      %s98 = sphi 0, %s84
      %s102 = sphi 0, %s102
      %s104 = sphi 0, %s102
      %s105 = sphi 0, %s104
      %s119 = sphi 0, %s105
      %s123 = sphi 0, %s123
      %s125 = sphi 0, %s123
      %s126 = sphi 0, %s125
      %s140 = sphi 0, %s126
      %s144 = sphi 0, %s144
      %s146 = sphi 0, %s144
      %s147 = sphi 0, %s146
      %s161 = sphi 0, %s147
      %s165 = sphi 0, %s165
      %s167 = sphi 0, %s165
      %s168 = sphi 0, %s167
      %s182 = sphi 0, %s168
      %s186 = sphi 0, %s186
      %s188 = sphi 0, %s186
      %s189 = sphi 0, %s188
      %s203 = sphi 0, %s189
      %s207 = sphi 0, %s207
      %s209 = sphi 0, %s207
      %s210 = sphi 0, %s209
      %s224 = sphi 0, %s210
      %s228 = sphi 0, %s228
      %s230 = sphi 0, %s228
      %s231 = sphi 0, %s230
      %s245 = sphi 0, %s231
      %s249 = sphi 0, %s249
      %s251 = sphi 0, %s249
      %s252 = sphi 0, %s251
      %s266 = sphi 0, %s252
      %s270 = sphi 0, %s270
      %s272 = sphi 0, %s270
      %s273 = sphi 0, %s272
      %s287 = sphi 0, %s273
      %s291 = sphi 0, %s291
      %s293 = sphi 0, %s291
      %s294 = sphi 0, %s293
      %s308 = sphi 0, %s294
      %s312 = sphi 0, %s312
      %s314 = sphi 0, %s312
      %s315 = sphi 0, %s314
      %s329 = sphi 0, %s315
      %s333 = sphi 0, %s333
      %s335 = sphi 0, %s333
      %s336 = sphi 0, %s335
      %s350 = sphi 0, %s336
      %s354 = sphi 0, %s354
      %s356 = sphi 0, %s354
      %s357 = sphi 0, %s356
      %s371 = sphi 0, %s357
      %s375 = sphi 0, %s375
      %s377 = sphi 0, %s375
      %s378 = sphi 0, %s377
      %s392 = sphi 0, %s378
      %s398 = sphi 0, %s400
      %s401 = sphi 0, %s398
      %s402 = sphi 0, %s401
      %s418 = sphi 0, %s402
    $region4: #{ref_encoder_forward.1} parent=1 // loop_header_branch
      %29 = sbr.rel (%p27) target = $region8
    $region5: #{ref_encoder_forward.1} parent=1 // loop_body
      %s31 = ssub.s32 %s26, 1
      %s32 = ssub.s32 %s26, 2
      %s33 = sadd.s32 %s26, 1
      %s34 = ssub.s32 %s26, %s33
      %p35 = scmp.eq.s32.totalorder %s34, 0
      %s37 = sadd.s32 %s36, 1
      %s38 = scalar_select %p35, %s36, %s37
      %p41 = pneg %p35
      %p42 = scmp.eq.s32.totalorder %s26, 1
      %p43 = por %p41, %p42
      %p44 = scmp.ne.s32.totalorder %s36, %s39
      %p45 = scmp.eq.s32.totalorder %s26, 0
      %p46 = por %p44, %p45
      %p47 = scmp.ne.s32.totalorder %s36, %s39
      %p48 = scmp.eq.s32.totalorder %s31, 1
      %p49 = por %p47, %p48
      %p50 = scmp.ne.s32.totalorder %s39, %s40
      %p51 = scmp.eq.s32.totalorder %s31, 0
      %p52 = por %p50, %p51
      %p53 = scmp.ne.s32.totalorder %s39, %s40
      %p54 = scmp.eq.s32.totalorder %s32, 1
      %p55 = por %p53, %p54
      %p57 = scmp.ne.s32.totalorder %s40, %s56
      %p58 = scmp.eq.s32.totalorder %s32, 0
      %p59 = por %p57, %p58
      %s61 = sadd.s32 %s60, 1
      %p64 = scmp.eq.s32.totalorder %s26, 1
      %p65 = scmp.ne.s32.totalorder %s60, %s62
      %p66 = scmp.eq.s32.totalorder %s26, 0
      %p67 = por %p65, %p66
      %p68 = scmp.ne.s32.totalorder %s60, %s62
      %p69 = scmp.eq.s32.totalorder %s31, 1
      %p70 = por %p68, %p69
      %p71 = scmp.ne.s32.totalorder %s62, %s63
      %p72 = scmp.eq.s32.totalorder %s31, 0
      %p73 = por %p71, %p72
      %p74 = scmp.ne.s32.totalorder %s62, %s63
      %p75 = scmp.eq.s32.totalorder %s32, 1
      %p76 = por %p74, %p75
      %p78 = scmp.ne.s32.totalorder %s63, %s77
      %p79 = scmp.eq.s32.totalorder %s32, 0
      %p80 = por %p78, %p79
      %s82 = sadd.s32 %s81, 1
      %p85 = scmp.eq.s32.totalorder %s26, 1
      %p86 = scmp.ne.s32.totalorder %s81, %s83
      %p87 = scmp.eq.s32.totalorder %s26, 0
      %p88 = por %p86, %p87
      %p89 = scmp.ne.s32.totalorder %s81, %s83
      %p90 = scmp.eq.s32.totalorder %s31, 1
      %p91 = por %p89, %p90
      %p92 = scmp.ne.s32.totalorder %s83, %s84
      %p93 = scmp.eq.s32.totalorder %s31, 0
      %p94 = por %p92, %p93
      %p95 = scmp.ne.s32.totalorder %s83, %s84
      %p96 = scmp.eq.s32.totalorder %s32, 1
      %p97 = por %p95, %p96
      %p99 = scmp.ne.s32.totalorder %s84, %s98
      %p100 = scmp.eq.s32.totalorder %s32, 0
      %p101 = por %p99, %p100
      %s103 = sadd.s32 %s102, 1
      %p106 = scmp.eq.s32.totalorder %s26, 1
      %p107 = scmp.ne.s32.totalorder %s102, %s104
      %p108 = scmp.eq.s32.totalorder %s26, 0
      %p109 = por %p107, %p108
      %p110 = scmp.ne.s32.totalorder %s102, %s104
      %p111 = scmp.eq.s32.totalorder %s31, 1
      %p112 = por %p110, %p111
      %p113 = scmp.ne.s32.totalorder %s104, %s105
      %p114 = scmp.eq.s32.totalorder %s31, 0
      %p115 = por %p113, %p114
      %p116 = scmp.ne.s32.totalorder %s104, %s105
      %p117 = scmp.eq.s32.totalorder %s32, 1
      %p118 = por %p116, %p117
      %p120 = scmp.ne.s32.totalorder %s105, %s119
      %p121 = scmp.eq.s32.totalorder %s32, 0
      %p122 = por %p120, %p121
      %s124 = sadd.s32 %s123, 1
      %p127 = scmp.eq.s32.totalorder %s26, 1
      %p128 = scmp.ne.s32.totalorder %s123, %s125
      %p129 = scmp.eq.s32.totalorder %s26, 0
      %p130 = por %p128, %p129
      %p131 = scmp.ne.s32.totalorder %s123, %s125
      %p132 = scmp.eq.s32.totalorder %s31, 1
      %p133 = por %p131, %p132
      %p134 = scmp.ne.s32.totalorder %s125, %s126
      %p135 = scmp.eq.s32.totalorder %s31, 0
      %p136 = por %p134, %p135
      %p137 = scmp.ne.s32.totalorder %s125, %s126
      %p138 = scmp.eq.s32.totalorder %s32, 1
      %p139 = por %p137, %p138
      %p141 = scmp.ne.s32.totalorder %s126, %s140
      %p142 = scmp.eq.s32.totalorder %s32, 0
      %p143 = por %p141, %p142
      %s145 = sadd.s32 %s144, 1
      %p148 = scmp.eq.s32.totalorder %s26, 1
      %p149 = scmp.ne.s32.totalorder %s144, %s146
      %p150 = scmp.eq.s32.totalorder %s26, 0
      %p151 = por %p149, %p150
      %p152 = scmp.ne.s32.totalorder %s144, %s146
      %p153 = scmp.eq.s32.totalorder %s31, 1
      %p154 = por %p152, %p153
      %p155 = scmp.ne.s32.totalorder %s146, %s147
      %p156 = scmp.eq.s32.totalorder %s31, 0
      %p157 = por %p155, %p156
      %p158 = scmp.ne.s32.totalorder %s146, %s147
      %p159 = scmp.eq.s32.totalorder %s32, 1
      %p160 = por %p158, %p159
      %p162 = scmp.ne.s32.totalorder %s147, %s161
      %p163 = scmp.eq.s32.totalorder %s32, 0
      %p164 = por %p162, %p163
      %s166 = sadd.s32 %s165, 1
      %p169 = scmp.eq.s32.totalorder %s26, 1
      %p170 = scmp.ne.s32.totalorder %s165, %s167
      %p171 = scmp.eq.s32.totalorder %s26, 0
      %p172 = por %p170, %p171
      %p173 = scmp.ne.s32.totalorder %s165, %s167
      %p174 = scmp.eq.s32.totalorder %s31, 1
      %p175 = por %p173, %p174
      %p176 = scmp.ne.s32.totalorder %s167, %s168
      %p177 = scmp.eq.s32.totalorder %s31, 0
      %p178 = por %p176, %p177
      %p179 = scmp.ne.s32.totalorder %s167, %s168
      %p180 = scmp.eq.s32.totalorder %s32, 1
      %p181 = por %p179, %p180
      %p183 = scmp.ne.s32.totalorder %s168, %s182
      %p184 = scmp.eq.s32.totalorder %s32, 0
      %p185 = por %p183, %p184
      %s187 = sadd.s32 %s186, 1
      %p190 = scmp.eq.s32.totalorder %s26, 1
      %p191 = scmp.ne.s32.totalorder %s186, %s188
      %p192 = scmp.eq.s32.totalorder %s26, 0
      %p193 = por %p191, %p192
      %p194 = scmp.ne.s32.totalorder %s186, %s188
      %p195 = scmp.eq.s32.totalorder %s31, 1
      %p196 = por %p194, %p195
      %p197 = scmp.ne.s32.totalorder %s188, %s189
      %p198 = scmp.eq.s32.totalorder %s31, 0
      %p199 = por %p197, %p198
      %p200 = scmp.ne.s32.totalorder %s188, %s189
      %p201 = scmp.eq.s32.totalorder %s32, 1
      %p202 = por %p200, %p201
      %p204 = scmp.ne.s32.totalorder %s189, %s203
      %p205 = scmp.eq.s32.totalorder %s32, 0
      %p206 = por %p204, %p205
      %s208 = sadd.s32 %s207, 1
      %p211 = scmp.eq.s32.totalorder %s26, 1
      %p212 = scmp.ne.s32.totalorder %s207, %s209
      %p213 = scmp.eq.s32.totalorder %s26, 0
      %p214 = por %p212, %p213
      %p215 = scmp.ne.s32.totalorder %s207, %s209
      %p216 = scmp.eq.s32.totalorder %s31, 1
      %p217 = por %p215, %p216
      %p218 = scmp.ne.s32.totalorder %s209, %s210
      %p219 = scmp.eq.s32.totalorder %s31, 0
      %p220 = por %p218, %p219
      %p221 = scmp.ne.s32.totalorder %s209, %s210
      %p222 = scmp.eq.s32.totalorder %s32, 1
      %p223 = por %p221, %p222
      %p225 = scmp.ne.s32.totalorder %s210, %s224
      %p226 = scmp.eq.s32.totalorder %s32, 0
      %p227 = por %p225, %p226
      %s229 = sadd.s32 %s228, 1
      %p232 = scmp.eq.s32.totalorder %s26, 1
      %p233 = scmp.ne.s32.totalorder %s228, %s230
      %p234 = scmp.eq.s32.totalorder %s26, 0
      %p235 = por %p233, %p234
      %p236 = scmp.ne.s32.totalorder %s228, %s230
      %p237 = scmp.eq.s32.totalorder %s31, 1
      %p238 = por %p236, %p237
      %p239 = scmp.ne.s32.totalorder %s230, %s231
      %p240 = scmp.eq.s32.totalorder %s31, 0
      %p241 = por %p239, %p240
      %p242 = scmp.ne.s32.totalorder %s230, %s231
      %p243 = scmp.eq.s32.totalorder %s32, 1
      %p244 = por %p242, %p243
      %p246 = scmp.ne.s32.totalorder %s231, %s245
      %p247 = scmp.eq.s32.totalorder %s32, 0
      %p248 = por %p246, %p247
      %s250 = sadd.s32 %s249, 1
      %p253 = scmp.eq.s32.totalorder %s26, 1
      %p254 = scmp.ne.s32.totalorder %s249, %s251
      %p255 = scmp.eq.s32.totalorder %s26, 0
      %p256 = por %p254, %p255
      %p257 = scmp.ne.s32.totalorder %s249, %s251
      %p258 = scmp.eq.s32.totalorder %s31, 1
      %p259 = por %p257, %p258
      %p260 = scmp.ne.s32.totalorder %s251, %s252
      %p261 = scmp.eq.s32.totalorder %s31, 0
      %p262 = por %p260, %p261
      %p263 = scmp.ne.s32.totalorder %s251, %s252
      %p264 = scmp.eq.s32.totalorder %s32, 1
      %p265 = por %p263, %p264
      %p267 = scmp.ne.s32.totalorder %s252, %s266
      %p268 = scmp.eq.s32.totalorder %s32, 0
      %p269 = por %p267, %p268
      %s271 = sadd.s32 %s270, 1
      %p274 = scmp.eq.s32.totalorder %s26, 1
      %p275 = scmp.ne.s32.totalorder %s270, %s272
      %p276 = scmp.eq.s32.totalorder %s26, 0
      %p277 = por %p275, %p276
      %p278 = scmp.ne.s32.totalorder %s270, %s272
      %p279 = scmp.eq.s32.totalorder %s31, 1
      %p280 = por %p278, %p279
      %p281 = scmp.ne.s32.totalorder %s272, %s273
      %p282 = scmp.eq.s32.totalorder %s31, 0
      %p283 = por %p281, %p282
      %p284 = scmp.ne.s32.totalorder %s272, %s273
      %p285 = scmp.eq.s32.totalorder %s32, 1
      %p286 = por %p284, %p285
      %p288 = scmp.ne.s32.totalorder %s273, %s287
      %p289 = scmp.eq.s32.totalorder %s32, 0
      %p290 = por %p288, %p289
      %s292 = sadd.s32 %s291, 1
      %p295 = scmp.eq.s32.totalorder %s26, 1
      %p296 = scmp.ne.s32.totalorder %s291, %s293
      %p297 = scmp.eq.s32.totalorder %s26, 0
      %p298 = por %p296, %p297
      %p299 = scmp.ne.s32.totalorder %s291, %s293
      %p300 = scmp.eq.s32.totalorder %s31, 1
      %p301 = por %p299, %p300
      %p302 = scmp.ne.s32.totalorder %s293, %s294
      %p303 = scmp.eq.s32.totalorder %s31, 0
      %p304 = por %p302, %p303
      %p305 = scmp.ne.s32.totalorder %s293, %s294
      %p306 = scmp.eq.s32.totalorder %s32, 1
      %p307 = por %p305, %p306
      %p309 = scmp.ne.s32.totalorder %s294, %s308
      %p310 = scmp.eq.s32.totalorder %s32, 0
      %p311 = por %p309, %p310
      %s313 = sadd.s32 %s312, 1
      %p316 = scmp.eq.s32.totalorder %s26, 1
      %p317 = scmp.ne.s32.totalorder %s312, %s314
      %p318 = scmp.eq.s32.totalorder %s26, 0
      %p319 = por %p317, %p318
      %p320 = scmp.ne.s32.totalorder %s312, %s314
      %p321 = scmp.eq.s32.totalorder %s31, 1
      %p322 = por %p320, %p321
      %p323 = scmp.ne.s32.totalorder %s314, %s315
      %p324 = scmp.eq.s32.totalorder %s31, 0
      %p325 = por %p323, %p324
      %p326 = scmp.ne.s32.totalorder %s314, %s315
      %p327 = scmp.eq.s32.totalorder %s32, 1
      %p328 = por %p326, %p327
      %p330 = scmp.ne.s32.totalorder %s315, %s329
      %p331 = scmp.eq.s32.totalorder %s32, 0
      %p332 = por %p330, %p331
      %s334 = sadd.s32 %s333, 1
      %p337 = scmp.eq.s32.totalorder %s26, 1
      %p338 = scmp.ne.s32.totalorder %s333, %s335
      %p339 = scmp.eq.s32.totalorder %s26, 0
      %p340 = por %p338, %p339
      %p341 = scmp.ne.s32.totalorder %s333, %s335
      %p342 = scmp.eq.s32.totalorder %s31, 1
      %p343 = por %p341, %p342
      %p344 = scmp.ne.s32.totalorder %s335, %s336
      %p345 = scmp.eq.s32.totalorder %s31, 0
      %p346 = por %p344, %p345
      %p347 = scmp.ne.s32.totalorder %s335, %s336
      %p348 = scmp.eq.s32.totalorder %s32, 1
      %p349 = por %p347, %p348
      %p351 = scmp.ne.s32.totalorder %s336, %s350
      %p352 = scmp.eq.s32.totalorder %s32, 0
      %p353 = por %p351, %p352
      %s355 = sadd.s32 %s354, 1
      %p358 = scmp.eq.s32.totalorder %s26, 1
      %p359 = scmp.ne.s32.totalorder %s354, %s356
      %p360 = scmp.eq.s32.totalorder %s26, 0
      %p361 = por %p359, %p360
      %p362 = scmp.ne.s32.totalorder %s354, %s356
      %p363 = scmp.eq.s32.totalorder %s31, 1
      %p364 = por %p362, %p363
      %p365 = scmp.ne.s32.totalorder %s356, %s357
      %p366 = scmp.eq.s32.totalorder %s31, 0
      %p367 = por %p365, %p366
      %p368 = scmp.ne.s32.totalorder %s356, %s357
      %p369 = scmp.eq.s32.totalorder %s32, 1
      %p370 = por %p368, %p369
      %p372 = scmp.ne.s32.totalorder %s357, %s371
      %p373 = scmp.eq.s32.totalorder %s32, 0
      %p374 = por %p372, %p373
      %s376 = sadd.s32 %s375, 1
      %p379 = scmp.eq.s32.totalorder %s26, 1
      %p380 = scmp.ne.s32.totalorder %s375, %s377
      %p381 = scmp.eq.s32.totalorder %s26, 0
      %p382 = por %p380, %p381
      %p383 = scmp.ne.s32.totalorder %s375, %s377
      %p384 = scmp.eq.s32.totalorder %s31, 1
      %p385 = por %p383, %p384
      %p386 = scmp.ne.s32.totalorder %s377, %s378
      %p387 = scmp.eq.s32.totalorder %s31, 0
      %p388 = por %p386, %p387
      %p389 = scmp.ne.s32.totalorder %s377, %s378
      %p390 = scmp.eq.s32.totalorder %s32, 1
      %p391 = por %p389, %p390
      %p393 = scmp.ne.s32.totalorder %s378, %s392
      %p394 = scmp.eq.s32.totalorder %s32, 0
      %p395 = por %p393, %p394
      %s396 = ssub.s32 %s26, %s33
      %p397 = scmp.eq.s32.totalorder %s396, 0
      %s399 = sadd.s32 %s398, 1
      %s400 = scalar_select %p397, %s398, %s399
      %p403 = pneg %p397
      %p404 = scmp.eq.s32.totalorder %s26, 1
      %p405 = por %p403, %p404
      %p406 = scmp.ne.s32.totalorder %s398, %s401
      %p407 = scmp.eq.s32.totalorder %s26, 0
      %p408 = por %p406, %p407
      %p409 = scmp.ne.s32.totalorder %s398, %s401
      %p410 = scmp.eq.s32.totalorder %s31, 1
      %p411 = por %p409, %p410
      %p412 = scmp.ne.s32.totalorder %s401, %s402
      %p413 = scmp.eq.s32.totalorder %s31, 0
      %p414 = por %p412, %p413
      %p415 = scmp.ne.s32.totalorder %s401, %s402
      %p416 = scmp.eq.s32.totalorder %s32, 1
      %p417 = por %p415, %p416
      %p419 = scmp.ne.s32.totalorder %s402, %s418
      %p420 = scmp.eq.s32.totalorder %s32, 0
      %p421 = por %p419, %p420
      %p422 = scmp.le.s32.totalorder 1, %s26
      %p423 = scmp.lt.s32.totalorder %s26, 3
      %p424 = pnand %p422, %p423
      %p425 = pneg %p424
      // Predicated region
      $region9: #{ref_encoder_forward.1} parent=5 // pred_check
        _
      $region10: #{ref_encoder_forward.1} parent=5 // pred_check_branch
        %427 = sbr.rel (%p424) target = $region12
      $region11: #{ref_encoder_forward.1} parent=5 // pred_region
        %s428 = ssub.s32 %s26, 1
        // Predicated region
        $region13: #{ref_encoder_forward.1} parent=11 // pred_check
          %p429 = pneg %p73
        $region14: #{ref_encoder_forward.1} parent=11 // pred_check_branch
          %431 = sbr.rel (%p429) target = $region16
        $region15: #{ref_encoder_forward.1} parent=11 // pred_region
          _
        $region16: #{ref_encoder_forward.1} parent=11 // pred_fallthru
          _
        // Predicated region
        $region17: #{ref_encoder_forward.1} parent=11 // pred_check
          %p432 = pneg %p94
        $region18: #{ref_encoder_forward.1} parent=11 // pred_check_branch
          %434 = sbr.rel (%p432) target = $region20
        $region19: #{ref_encoder_forward.1} parent=11 // pred_region
          _
        $region20: #{ref_encoder_forward.1} parent=11 // pred_fallthru
          _
        // Predicated region
        $region21: #{ref_encoder_forward.1} parent=11 // pred_check
          %p435 = pneg %p115
        $region22: #{ref_encoder_forward.1} parent=11 // pred_check_branch
          %437 = sbr.rel (%p435) target = $region24
        $region23: #{ref_encoder_forward.1} parent=11 // pred_region
          _
        $region24: #{ref_encoder_forward.1} parent=11 // pred_fallthru
          _
        // Predicated region
        $region25: #{ref_encoder_forward.1} parent=11 // pred_check
          %p438 = pneg %p136
        $region26: #{ref_encoder_forward.1} parent=11 // pred_check_branch
          %440 = sbr.rel (%p438) target = $region28
        $region27: #{ref_encoder_forward.1} parent=11 // pred_region
          _
        $region28: #{ref_encoder_forward.1} parent=11 // pred_fallthru
          _
        // Predicated region
        $region29: #{ref_encoder_forward.1} parent=11 // pred_check
          %p441 = pneg %p157
        $region30: #{ref_encoder_forward.1} parent=11 // pred_check_branch
          %443 = sbr.rel (%p441) target = $region32
        $region31: #{ref_encoder_forward.1} parent=11 // pred_region
          _
        $region32: #{ref_encoder_forward.1} parent=11 // pred_fallthru
          _
        // Predicated region
        $region33: #{ref_encoder_forward.1} parent=11 // pred_check
          %p444 = pneg %p178
        $region34: #{ref_encoder_forward.1} parent=11 // pred_check_branch
          %446 = sbr.rel (%p444) target = $region36
        $region35: #{ref_encoder_forward.1} parent=11 // pred_region
          _
        $region36: #{ref_encoder_forward.1} parent=11 // pred_fallthru
          _
        // Predicated region
        $region37: #{ref_encoder_forward.1} parent=11 // pred_check
          %p447 = pneg %p199
        $region38: #{ref_encoder_forward.1} parent=11 // pred_check_branch
          %449 = sbr.rel (%p447) target = $region40
        $region39: #{ref_encoder_forward.1} parent=11 // pred_region
          _
        $region40: #{ref_encoder_forward.1} parent=11 // pred_fallthru
          _
        // Predicated region
        $region41: #{ref_encoder_forward.1} parent=11 // pred_check
          %p450 = pneg %p220
        $region42: #{ref_encoder_forward.1} parent=11 // pred_check_branch
          %452 = sbr.rel (%p450) target = $region44
        $region43: #{ref_encoder_forward.1} parent=11 // pred_region
          _
        $region44: #{ref_encoder_forward.1} parent=11 // pred_fallthru
          _
        // Predicated region
        $region45: #{ref_encoder_forward.1} parent=11 // pred_check
          %p453 = pneg %p241
        $region46: #{ref_encoder_forward.1} parent=11 // pred_check_branch
          %455 = sbr.rel (%p453) target = $region48
        $region47: #{ref_encoder_forward.1} parent=11 // pred_region
          _
        $region48: #{ref_encoder_forward.1} parent=11 // pred_fallthru
          _
        // Predicated region
        $region49: #{ref_encoder_forward.1} parent=11 // pred_check
          %p456 = pneg %p262
        $region50: #{ref_encoder_forward.1} parent=11 // pred_check_branch
          %458 = sbr.rel (%p456) target = $region52
        $region51: #{ref_encoder_forward.1} parent=11 // pred_region
          _
        $region52: #{ref_encoder_forward.1} parent=11 // pred_fallthru
          _
        // Predicated region
        $region53: #{ref_encoder_forward.1} parent=11 // pred_check
          %p459 = pneg %p283
        $region54: #{ref_encoder_forward.1} parent=11 // pred_check_branch
          %461 = sbr.rel (%p459) target = $region56
        $region55: #{ref_encoder_forward.1} parent=11 // pred_region
          _
        $region56: #{ref_encoder_forward.1} parent=11 // pred_fallthru
          _
        // Predicated region
        $region57: #{ref_encoder_forward.1} parent=11 // pred_check
          %p462 = pneg %p304
        $region58: #{ref_encoder_forward.1} parent=11 // pred_check_branch
          %464 = sbr.rel (%p462) target = $region60
        $region59: #{ref_encoder_forward.1} parent=11 // pred_region
          _
        $region60: #{ref_encoder_forward.1} parent=11 // pred_fallthru
          _
        // Predicated region
        $region61: #{ref_encoder_forward.1} parent=11 // pred_check
          %p465 = pneg %p325
        $region62: #{ref_encoder_forward.1} parent=11 // pred_check_branch
          %467 = sbr.rel (%p465) target = $region64
        $region63: #{ref_encoder_forward.1} parent=11 // pred_region
          _
        $region64: #{ref_encoder_forward.1} parent=11 // pred_fallthru
          _
        // Predicated region
        $region65: #{ref_encoder_forward.1} parent=11 // pred_check
          %p468 = pneg %p346
        $region66: #{ref_encoder_forward.1} parent=11 // pred_check_branch
          %470 = sbr.rel (%p468) target = $region68
        $region67: #{ref_encoder_forward.1} parent=11 // pred_region
          _
        $region68: #{ref_encoder_forward.1} parent=11 // pred_fallthru
          _
        // Predicated region
        $region69: #{ref_encoder_forward.1} parent=11 // pred_check
          %p471 = pneg %p367
        $region70: #{ref_encoder_forward.1} parent=11 // pred_check_branch
          %473 = sbr.rel (%p471) target = $region72
        $region71: #{ref_encoder_forward.1} parent=11 // pred_region
          _
        $region72: #{ref_encoder_forward.1} parent=11 // pred_fallthru
          _
        // Predicated region
        $region73: #{ref_encoder_forward.1} parent=11 // pred_check
          %p474 = pneg %p388
        $region74: #{ref_encoder_forward.1} parent=11 // pred_check_branch
          %476 = sbr.rel (%p474) target = $region76
        $region75: #{ref_encoder_forward.1} parent=11 // pred_region
          _
        $region76: #{ref_encoder_forward.1} parent=11 // pred_fallthru
          _
      $region12: #{ref_encoder_forward.1} parent=5 // pred_fallthru
        _
      %p477 = scmp.lt.s32.totalorder %s26, 2
      // Predicated region
      $region77: #{ref_encoder_forward.1} parent=5 // pred_check
        %p478 = pneg %p477
      $region78: #{ref_encoder_forward.1} parent=5 // pred_check_branch
        %480 = sbr.rel (%p478) target = $region80
      $region79: #{ref_encoder_forward.1} parent=5 // pred_region
        // Predicated region
        $region81: #{ref_encoder_forward.1} parent=79 // pred_check
          %p481 = pneg %p46
        $region82: #{ref_encoder_forward.1} parent=79 // pred_check_branch
          %483 = sbr.rel (%p481) target = $region84
        $region83: #{ref_encoder_forward.1} parent=79 // pred_region
          %p484 = scmp.lt.s32.totalorder %s26, 1
          %s485 = scalar_select %p484, %s26, 1
          %s486 = smul.addr %s485, 2
          %s487 = smul.addr %s486, 8
          %s488 = scalar_lea.vmem %s0, %s487
        $region84: #{ref_encoder_forward.1} parent=79 // pred_fallthru
          _
      $region80: #{ref_encoder_forward.1} parent=5 // pred_fallthru
        _
      %p489 = scmp.le.s32.totalorder 1, %s26
      %p490 = scmp.lt.s32.totalorder %s26, 3
      %p491 = pnand %p489, %p490
      %p492 = pneg %p491
      // Predicated region
      $region85: #{ref_encoder_forward.1} parent=5 // pred_check
        _
      $region86: #{ref_encoder_forward.1} parent=5 // pred_check_branch
        %494 = sbr.rel (%p491) target = $region88
      $region87: #{ref_encoder_forward.1} parent=5 // pred_region
        %s495 = ssub.s32 %s26, 1
        %p496 = scmp.lt.s32.totalorder %s31, 1
        %s497 = scalar_select %p496, %s31, 1
        %s498 = smul.addr %s497, 2
        %s499 = smul.addr %s498, 8
        %s500 = scalar_lea.vmem %s0, %s499
        %p501 = pneg %p52
        %p502 = pneg %p49
        %p503 = pneg %p73
        %p504 = pneg %p70
        %p505 = pneg %p94
        %p506 = pneg %p91
        %p507 = pneg %p115
        %p508 = pneg %p112
        %p509 = pneg %p136
        %p510 = pneg %p133
        %p511 = pneg %p157
        %p512 = pneg %p154
        %p513 = pneg %p178
        %p514 = pneg %p175
        %p515 = pneg %p199
        %p516 = pneg %p196
        %p517 = pneg %p220
        %p518 = pneg %p217
        %p519 = pneg %p241
        %p520 = pneg %p238
        %p521 = pneg %p262
        %p522 = pneg %p259
        %p523 = pneg %p283
        %p524 = pneg %p280
        %p525 = pneg %p304
        %p526 = pneg %p301
        %p527 = pneg %p325
        %p528 = pneg %p322
        %p529 = pneg %p346
        %p530 = pneg %p343
        %p531 = pneg %p367
        %p532 = pneg %p364
        %p533 = pneg %p388
        %p534 = pneg %p385
        %p535 = pneg %p414
        %p536 = pneg %p411
        %s537 = sand.u32 %s401, 1
        %s538 = scalar_lea.sflag [#allocation3], %s537
        %s539 = sand.u32 %s401, 1
        %s540 = scalar_lea.vmem [#allocation2], %s539
        %p541 = scmp.lt.s32.totalorder %s31, 1
        %s542 = scalar_select %p541, %s31, 1
        %s543 = smul.addr %s542, 2
        %s544 = smul.addr %s543, 8
        %s545 = scalar_lea.vmem %s0, %s544
        %v547 = vld [vmem:[%s545] sm:$0xff]
        %v548 = vld [vmem:[%s545 + $0x8] sm:$0xff]
        %v549 = vld [vmem:[%s1] sm:$0xf]
        %v550 = vld [vmem:[%s1 + $0x4] sm:$0xf]
        %v551 = vld [vmem:[%s1 + $0x8] sm:$0xf]
        %v552 = vld [vmem:[%s1 + $0xc] sm:$0xf]
        %v553 = vld [vmem:[%s2] sm:$0xf]
        %v554 = vld [vmem:[%s2 + $0x4] sm:$0xf]
        %v555 = vld [vmem:[%s2 + $0x8] sm:$0xf]
        %v556 = vld [vmem:[%s2 + $0xc] sm:$0xf]
        %v557 = vld [vmem:[%s2 + $0x10] sm:$0xf]
        %v558 = vld [vmem:[%s2 + $0x14] sm:$0xf]
        %v559 = vld [vmem:[%s2 + $0x18] sm:$0xf]
        %v560 = vld [vmem:[%s2 + $0x1c] sm:$0xf]
        %v561 = vld [vmem:[%s3] sm:$0x1]
        %v563 = vperm.slane %v561, 0
        %v569 = vunpack.c.l.b16 %v549
        %v570 = vunpack.c.l.b16 %v550
        %v571 = vunpack.c.l.b16 %v551
        %v572 = vunpack.c.l.b16 %v552
        %v573 = vpack.c.b16 %v570, %v569
        %v574 = vpack.c.b16 %v572, %v571
        %v583 = vunpack.c.l.b16 %v553
        %v584 = vunpack.c.l.b16 %v554
        %v585 = vunpack.c.l.b16 %v555
        %v586 = vunpack.c.l.b16 %v556
        %v587 = vunpack.c.l.b16 %v557
        %v588 = vunpack.c.l.b16 %v558
        %v589 = vunpack.c.l.b16 %v559
        %v590 = vunpack.c.l.b16 %v560
        %v591 = vpack.c.b16 %v584, %v583
        %v592 = vpack.c.b16 %v586, %v585
        %v593 = vpack.c.b16 %v588, %v587
        %v594 = vpack.c.b16 %v590, %v589
        %vm599 = vcmask 523264
        %v601 = vsel %vm599, %v573, 0
        %v604 = vsel %vm599, %v574, 0
        %606 = vmatpush.bf16.msra.mxu0 0
        %607 = vmatpush.bf16.msra.mxu0 0
        %608 = vmatpush.bf16.msra.mxu0 0
        %609 = vmatpush.bf16.msra.mxu0 0
        %610 = vmatpush.bf16.msra.mxu0 %v594
        %611 = vmatpush.bf16.msra.mxu0 %v593
        %612 = vmatpush.bf16.msra.mxu0 %v592
        %613 = vmatpush.bf16.msra.mxu0 %v591
        %614 = vmatmul.bf16.gmra.mxu0 %v601
        %v615 = vpop.f32.mrf.mxu0
        %v616 = vadd.f32 %v563, %v615
        %v617 = vpop.f32.mrf.mxu0
        %v618 = vadd.f32 %v563, %v617
        %619 = vmatmul.bf16.gmra.mxu0 %v604
        %v620 = vpop.f32.mrf.mxu0
        %v621 = vadd.f32 %v563, %v620
        %v622 = vpop.f32.mrf.mxu0
        %v623 = vadd.f32 %v563, %v622
        %624 = vdwg.mxu0
        %v625 = vpack.c.bf16 %v548, %v547
        %v626 = vld [vmem:[%s4] sm:$0xf]
        %v627 = vld [vmem:[%s4 + $0x4] sm:$0xf]
        %v628 = vld [vmem:[%s4 + $0x8] sm:$0xf]
        %v629 = vld [vmem:[%s4 + $0xc] sm:$0xf]
        %v630 = vld [vmem:[%s4 + $0x10] sm:$0xf]
        %v631 = vld [vmem:[%s4 + $0x14] sm:$0xf]
        %v632 = vld [vmem:[%s4 + $0x18] sm:$0xf]
        %v633 = vld [vmem:[%s4 + $0x1c] sm:$0xf]
        %v634 = vld [vmem:[%s5] sm:$0x1]
        %v636 = vperm.slane %v634, 0
        %v646 = vunpack.c.l.b16 %v626
        %v647 = vunpack.c.l.b16 %v627
        %v648 = vunpack.c.l.b16 %v628
        %v649 = vunpack.c.l.b16 %v629
        %v650 = vunpack.c.l.b16 %v630
        %v651 = vunpack.c.l.b16 %v631
        %v652 = vunpack.c.l.b16 %v632
        %v653 = vunpack.c.l.b16 %v633
        %v654 = vpack.c.b16 %v647, %v646
        %v655 = vpack.c.b16 %v649, %v648
        %v656 = vpack.c.b16 %v651, %v650
        %v657 = vpack.c.b16 %v653, %v652
        %v663 = vsel %vm599, %v625, 0
        %665 = vmatpush.bf16.msra.mxu0 0
        %666 = vmatpush.bf16.msra.mxu0 0
        %667 = vmatpush.bf16.msra.mxu0 0
        %668 = vmatpush.bf16.msra.mxu0 0
        %669 = vmatpush.bf16.msra.mxu0 %v657
        %670 = vmatpush.bf16.msra.mxu0 %v656
        %671 = vmatpush.bf16.msra.mxu0 %v655
        %672 = vmatpush.bf16.msra.mxu0 %v654
        %673 = vmatmul.bf16.gmra.mxu0 %v663
        %v674 = vpop.f32.mrf.mxu0
        %v675 = vadd.f32 %v636, %v674
        %v676 = vpop.f32.mrf.mxu0
        %v677 = vadd.f32 %v636, %v676
        %678 = vdwg.mxu0
        %v679 = vpack.c.bf16 %v675, %v675
        %v680 = vpack.c.bf16 %v677, %v677
        %vm681 = vcmask 64512
        %v683 = vsel %vm681, %v616, 0
        %v686 = vsel %vm681, %v618, 0
        %v689 = vsel %vm681, %v621, 0
        %v692 = vsel %vm681, %v623, 0
        %v695 = vsel %vm681, %v675, 0
        %v698 = vsel %vm681, %v677, 0
        %700 = vmatpush.xpose.msra.mxu0 0.0
        %701 = vmatpush.xpose.msra.mxu0 0.0
        %702 = vmatpush.xpose.msra.mxu0 0.0
        %703 = vmatpush.xpose.msra.mxu0 0.0
        %704 = vmatpush.xpose.msra.mxu0 0.0
        %705 = vmatpush.xpose.msra.mxu0 0.0
        %706 = vmatpush.xpose.msra.mxu0 0.0
        %707 = vmatpush.xpose.msra.mxu0 0.0
        %708 = vmatpush.xpose.msra.mxu0 0.0
        %709 = vmatpush.xpose.msra.mxu0 0.0
        %710 = vmatpush.xpose.msra.mxu0 0.0
        %711 = vmatpush.xpose.msra.mxu0 0.0
        %712 = vmatpush.xpose.msra.mxu0 0.0
        %713 = vmatpush.xpose.msra.mxu0 0.0
        %714 = vmatpush.xpose.msra.mxu0 %v698
        %715 = vmatpush.xpose.msra.mxu0 %v695
        %716 = vmatmul.f32.gmra.mxu0 %v683
        %v717 = vpop.f32.mrf.mxu0
        %v718 = vadd.f32 0.0, %v717
        %719 = vmatmul.f32.gmra.mxu0 %v686
        %v720 = vpop.f32.mrf.mxu0
        %v721 = vadd.f32 0.0, %v720
        %722 = vmatmul.f32.gmra.mxu0 %v689
        %v723 = vpop.f32.mrf.mxu0
        %v724 = vadd.f32 0.0, %v723
        %725 = vmatmul.f32.gmra.mxu0 %v692
        %v726 = vpop.f32.mrf.mxu0
        %v727 = vadd.f32 0.0, %v726
        %728 = vdwg.mxu0
        %v729 = vmul.f32 %v718, 0.35355338
        %v730 = vmul.f32 %v721, 0.35355338
        %v731 = vmul.f32 %v724, 0.35355338
        %v732 = vmul.f32 %v727, 0.35355338
        %vm733 = vcmask 130048
        %v734 = vsel %vm733, %v729, -inf
        %735 = vmax.xlane.f32.xlu0 %v734
        %v736 = vpop.xlane.xlu0 %735
        %v737 = vsel %vm733, %v730, -inf
        %738 = vmax.xlane.f32.xlu0 %v737
        %v739 = vpop.xlane.xlu0 %738
        %v740 = vsel %vm733, %v731, -inf
        %741 = vmax.xlane.f32.xlu0 %v740
        %v742 = vpop.xlane.xlu0 %741
        %v743 = vsel %vm733, %v732, -inf
        %744 = vmax.xlane.f32.xlu0 %v743
        %v745 = vpop.xlane.xlu0 %744
        %v746 = vsub.f32 %v729, %v736
        %v747 = vsub.f32 %v730, %v739
        %v748 = vsub.f32 %v731, %v742
        %v749 = vsub.f32 %v732, %v745
        %v750 = vmul.f32 %v746, 1.442695
        %v751 = vpow.pop %v750
        %v752 = vmul.f32 %v747, 1.442695
        %v753 = vpow.pop %v752
        %v754 = vmul.f32 %v748, 1.442695
        %v755 = vpow.pop %v754
        %v756 = vmul.f32 %v749, 1.442695
        %v757 = vpow.pop %v756
        %v758 = vsel %vm733, %v751, 0.0
        %759 = vadd.xlane.f32.xlu0 %v758
        %v760 = vpop.xlane.xlu0 %759
        %v761 = vsel %vm733, %v753, 0.0
        %762 = vadd.xlane.f32.xlu0 %v761
        %v763 = vpop.xlane.xlu0 %762
        %v764 = vsel %vm733, %v755, 0.0
        %765 = vadd.xlane.f32.xlu0 %v764
        %v766 = vpop.xlane.xlu0 %765
        %v767 = vsel %vm733, %v757, 0.0
        %768 = vadd.xlane.f32.xlu0 %v767
        %v769 = vpop.xlane.xlu0 %768
        %v770 = vrcp.pop %v760
        %v771 = vrcp.pop %v763
        %v772 = vrcp.pop %v766
        %v773 = vrcp.pop %v769
        %v774 = vmul.f32 %v751, %v770
        %v775 = vmul.f32 %v753, %v771
        %v776 = vmul.f32 %v755, %v772
        %v777 = vmul.f32 %v757, %v773
        %v778 = vpack.c.bf16 %v775, %v774
        %v779 = vpack.c.bf16 %v777, %v776
        %v782 = vunpack.c.l.b16 %v679
        %v783 = vunpack.c.l.b16 %v680
        %v784 = vpack.c.b16 %v783, %v782
        %785 = vrot.lane.b32.xlu0 %v784, 64
        %v786 = vpop.permute.xlu0 %785
        %v789 = vsel %vm733, %v778, 0
        %v792 = vsel %vm733, %v779, 0
        %794 = vmatpush.bf16.msra.mxu0 0
        %795 = vmatpush.bf16.msra.mxu0 0
        %796 = vmatpush.bf16.msra.mxu0 0
        %797 = vmatpush.bf16.msra.mxu0 0
        %798 = vmatpush.bf16.msra.mxu0 0
        %799 = vmatpush.bf16.msra.mxu0 0
        %800 = vmatpush.bf16.msra.mxu0 0
        %801 = vmatpush.bf16.msra.mxu0 %v786
        %802 = vmatmul.bf16.gmra.mxu0 %v789
        %v803 = vpop.f32.mrf.mxu0
        %v804 = vadd.f32 0.0, %v803
        %v805 = vpop.f32.mrf.mxu0
        %v806 = vadd.f32 0.0, %v805
        %807 = vmatmul.bf16.gmra.mxu0 %v792
        %v808 = vpop.f32.mrf.mxu0
        %v809 = vadd.f32 0.0, %v808
        %v810 = vpop.f32.mrf.mxu0
        %v811 = vadd.f32 0.0, %v810
        %812 = vdwg.mxu0
        %813 = vrot.lane.b32.xlu0 %v616, 120
        %v814 = vpop.permute.xlu0 %813
        %815 = vrot.lane.b32.xlu0 %v618, 120
        %v816 = vpop.permute.xlu0 %815
        %817 = vrot.lane.b32.xlu0 %v621, 120
        %v818 = vpop.permute.xlu0 %817
        %819 = vrot.lane.b32.xlu0 %v623, 120
        %v820 = vpop.permute.xlu0 %819
        %821 = vrot.lane.b32.xlu0 %v675, 120
        %v822 = vpop.permute.xlu0 %821
        %823 = vrot.lane.b32.xlu0 %v677, 120
        %v824 = vpop.permute.xlu0 %823
        %v825 = vsel %vm681, %v814, 0
        %v827 = vsel %vm681, %v816, 0
        %v829 = vsel %vm681, %v818, 0
        %v831 = vsel %vm681, %v820, 0
        %v833 = vsel %vm681, %v822, 0
        %v835 = vsel %vm681, %v824, 0
        %837 = vmatpush.xpose.msra.mxu0 0.0
        %838 = vmatpush.xpose.msra.mxu0 0.0
        %839 = vmatpush.xpose.msra.mxu0 0.0
        %840 = vmatpush.xpose.msra.mxu0 0.0
        %841 = vmatpush.xpose.msra.mxu0 0.0
        %842 = vmatpush.xpose.msra.mxu0 0.0
        %843 = vmatpush.xpose.msra.mxu0 0.0
        %844 = vmatpush.xpose.msra.mxu0 0.0
        %845 = vmatpush.xpose.msra.mxu0 0.0
        %846 = vmatpush.xpose.msra.mxu0 0.0
        %847 = vmatpush.xpose.msra.mxu0 0.0
        %848 = vmatpush.xpose.msra.mxu0 0.0
        %849 = vmatpush.xpose.msra.mxu0 0.0
        %850 = vmatpush.xpose.msra.mxu0 0.0
        %851 = vmatpush.xpose.msra.mxu0 %v835
        %852 = vmatpush.xpose.msra.mxu0 %v833
        %853 = vmatmul.f32.gmra.mxu0 %v825
        %v854 = vpop.f32.mrf.mxu0
        %v855 = vadd.f32 0.0, %v854
        %856 = vmatmul.f32.gmra.mxu0 %v827
        %v857 = vpop.f32.mrf.mxu0
        %v858 = vadd.f32 0.0, %v857
        %859 = vmatmul.f32.gmra.mxu0 %v829
        %v860 = vpop.f32.mrf.mxu0
        %v861 = vadd.f32 0.0, %v860
        %862 = vmatmul.f32.gmra.mxu0 %v831
        %v863 = vpop.f32.mrf.mxu0
        %v864 = vadd.f32 0.0, %v863
        %865 = vdwg.mxu0
        %v866 = vmul.f32 %v855, 0.35355338
        %v867 = vmul.f32 %v858, 0.35355338
        %v868 = vmul.f32 %v861, 0.35355338
        %v869 = vmul.f32 %v864, 0.35355338
        %v870 = vsel %vm733, %v866, -inf
        %871 = vmax.xlane.f32.xlu0 %v870
        %v872 = vpop.xlane.xlu0 %871
        %v873 = vsel %vm733, %v867, -inf
        %874 = vmax.xlane.f32.xlu0 %v873
        %v875 = vpop.xlane.xlu0 %874
        %v876 = vsel %vm733, %v868, -inf
        %877 = vmax.xlane.f32.xlu0 %v876
        %v878 = vpop.xlane.xlu0 %877
        %v879 = vsel %vm733, %v869, -inf
        %880 = vmax.xlane.f32.xlu0 %v879
        %v881 = vpop.xlane.xlu0 %880
        %v882 = vsub.f32 %v866, %v872
        %v883 = vsub.f32 %v867, %v875
        %v884 = vsub.f32 %v868, %v878
        %v885 = vsub.f32 %v869, %v881
        %v886 = vmul.f32 %v882, 1.442695
        %v887 = vpow.pop %v886
        %v888 = vmul.f32 %v883, 1.442695
        %v889 = vpow.pop %v888
        %v890 = vmul.f32 %v884, 1.442695
        %v891 = vpow.pop %v890
        %v892 = vmul.f32 %v885, 1.442695
        %v893 = vpow.pop %v892
        %v894 = vsel %vm733, %v887, 0.0
        %895 = vadd.xlane.f32.xlu0 %v894
        %v896 = vpop.xlane.xlu0 %895
        %v897 = vsel %vm733, %v889, 0.0
        %898 = vadd.xlane.f32.xlu0 %v897
        %v899 = vpop.xlane.xlu0 %898
        %v900 = vsel %vm733, %v891, 0.0
        %901 = vadd.xlane.f32.xlu0 %v900
        %v902 = vpop.xlane.xlu0 %901
        %v903 = vsel %vm733, %v893, 0.0
        %904 = vadd.xlane.f32.xlu0 %v903
        %v905 = vpop.xlane.xlu0 %904
        %v906 = vrcp.pop %v896
        %v907 = vrcp.pop %v899
        %v908 = vrcp.pop %v902
        %v909 = vrcp.pop %v905
        %v910 = vmul.f32 %v887, %v906
        %v911 = vmul.f32 %v889, %v907
        %v912 = vmul.f32 %v891, %v908
        %v913 = vmul.f32 %v893, %v909
        %v914 = vpack.c.bf16 %v911, %v910
        %v915 = vpack.c.bf16 %v913, %v912
        %916 = vrot.lane.b32.xlu0 %v784, 56
        %v917 = vpop.permute.xlu0 %916
        %v920 = vsel %vm733, %v914, 0
        %v923 = vsel %vm733, %v915, 0
        %925 = vmatpush.bf16.msra.mxu0 0
        %926 = vmatpush.bf16.msra.mxu0 0
        %927 = vmatpush.bf16.msra.mxu0 0
        %928 = vmatpush.bf16.msra.mxu0 0
        %929 = vmatpush.bf16.msra.mxu0 0
        %930 = vmatpush.bf16.msra.mxu0 0
        %931 = vmatpush.bf16.msra.mxu0 0
        %932 = vmatpush.bf16.msra.mxu0 %v917
        %933 = vmatmul.bf16.gmra.mxu0 %v920
        %v934 = vpop.f32.mrf.mxu0
        %v935 = vadd.f32 0.0, %v934
        %v936 = vpop.f32.mrf.mxu0
        %v937 = vadd.f32 0.0, %v936
        %938 = vmatmul.bf16.gmra.mxu0 %v923
        %v939 = vpop.f32.mrf.mxu0
        %v940 = vadd.f32 0.0, %v939
        %v941 = vpop.f32.mrf.mxu0
        %v942 = vadd.f32 0.0, %v941
        %943 = vdwg.mxu0
        %944 = vrot.lane.b32.xlu0 %v616, 112
        %v945 = vpop.permute.xlu0 %944
        %946 = vrot.lane.b32.xlu0 %v618, 112
        %v947 = vpop.permute.xlu0 %946
        %948 = vrot.lane.b32.xlu0 %v621, 112
        %v949 = vpop.permute.xlu0 %948
        %950 = vrot.lane.b32.xlu0 %v623, 112
        %v951 = vpop.permute.xlu0 %950
        %952 = vrot.lane.b32.xlu0 %v675, 112
        %v953 = vpop.permute.xlu0 %952
        %954 = vrot.lane.b32.xlu0 %v677, 112
        %v955 = vpop.permute.xlu0 %954
        %v956 = vsel %vm681, %v945, 0
        %v958 = vsel %vm681, %v947, 0
        %v960 = vsel %vm681, %v949, 0
        %v962 = vsel %vm681, %v951, 0
        %v964 = vsel %vm681, %v953, 0
        %v966 = vsel %vm681, %v955, 0
        %968 = vmatpush.xpose.msra.mxu0 0.0
        %969 = vmatpush.xpose.msra.mxu0 0.0
        %970 = vmatpush.xpose.msra.mxu0 0.0
        %971 = vmatpush.xpose.msra.mxu0 0.0
        %972 = vmatpush.xpose.msra.mxu0 0.0
        %973 = vmatpush.xpose.msra.mxu0 0.0
        %974 = vmatpush.xpose.msra.mxu0 0.0
        %975 = vmatpush.xpose.msra.mxu0 0.0
        %976 = vmatpush.xpose.msra.mxu0 0.0
        %977 = vmatpush.xpose.msra.mxu0 0.0
        %978 = vmatpush.xpose.msra.mxu0 0.0
        %979 = vmatpush.xpose.msra.mxu0 0.0
        %980 = vmatpush.xpose.msra.mxu0 0.0
        %981 = vmatpush.xpose.msra.mxu0 0.0
        %982 = vmatpush.xpose.msra.mxu0 %v966
        %983 = vmatpush.xpose.msra.mxu0 %v964
        %984 = vmatmul.f32.gmra.mxu0 %v956
        %v985 = vpop.f32.mrf.mxu0
        %v986 = vadd.f32 0.0, %v985
        %987 = vmatmul.f32.gmra.mxu0 %v958
        %v988 = vpop.f32.mrf.mxu0
        %v989 = vadd.f32 0.0, %v988
        %990 = vmatmul.f32.gmra.mxu0 %v960
        %v991 = vpop.f32.mrf.mxu0
        %v992 = vadd.f32 0.0, %v991
        %993 = vmatmul.f32.gmra.mxu0 %v962
        %v994 = vpop.f32.mrf.mxu0
        %v995 = vadd.f32 0.0, %v994
        %996 = vdwg.mxu0
        %v997 = vmul.f32 %v986, 0.35355338
        %v998 = vmul.f32 %v989, 0.35355338
        %v999 = vmul.f32 %v992, 0.35355338
        %v1000 = vmul.f32 %v995, 0.35355338
        %v1001 = vsel %vm733, %v997, -inf
        %1002 = vmax.xlane.f32.xlu0 %v1001
        %v1003 = vpop.xlane.xlu0 %1002
        %v1004 = vsel %vm733, %v998, -inf
        %1005 = vmax.xlane.f32.xlu0 %v1004
        %v1006 = vpop.xlane.xlu0 %1005
        %v1007 = vsel %vm733, %v999, -inf
        %1008 = vmax.xlane.f32.xlu0 %v1007
        %v1009 = vpop.xlane.xlu0 %1008
        %v1010 = vsel %vm733, %v1000, -inf
        %1011 = vmax.xlane.f32.xlu0 %v1010
        %v1012 = vpop.xlane.xlu0 %1011
        %v1013 = vsub.f32 %v997, %v1003
        %v1014 = vsub.f32 %v998, %v1006
        %v1015 = vsub.f32 %v999, %v1009
        %v1016 = vsub.f32 %v1000, %v1012
        %v1017 = vmul.f32 %v1013, 1.442695
        %v1018 = vpow.pop %v1017
        %v1019 = vmul.f32 %v1014, 1.442695
        %v1020 = vpow.pop %v1019
        %v1021 = vmul.f32 %v1015, 1.442695
        %v1022 = vpow.pop %v1021
        %v1023 = vmul.f32 %v1016, 1.442695
        %v1024 = vpow.pop %v1023
        %v1025 = vsel %vm733, %v1018, 0.0
        %1026 = vadd.xlane.f32.xlu0 %v1025
        %v1027 = vpop.xlane.xlu0 %1026
        %v1028 = vsel %vm733, %v1020, 0.0
        %1029 = vadd.xlane.f32.xlu0 %v1028
        %v1030 = vpop.xlane.xlu0 %1029
        %v1031 = vsel %vm733, %v1022, 0.0
        %1032 = vadd.xlane.f32.xlu0 %v1031
        %v1033 = vpop.xlane.xlu0 %1032
        %v1034 = vsel %vm733, %v1024, 0.0
        %1035 = vadd.xlane.f32.xlu0 %v1034
        %v1036 = vpop.xlane.xlu0 %1035
        %v1037 = vrcp.pop %v1027
        %v1038 = vrcp.pop %v1030
        %v1039 = vrcp.pop %v1033
        %v1040 = vrcp.pop %v1036
        %v1041 = vmul.f32 %v1018, %v1037
        %v1042 = vmul.f32 %v1020, %v1038
        %v1043 = vmul.f32 %v1022, %v1039
        %v1044 = vmul.f32 %v1024, %v1040
        %v1045 = vpack.c.bf16 %v1042, %v1041
        %v1046 = vpack.c.bf16 %v1044, %v1043
        %1047 = vrot.lane.b32.xlu0 %v784, 48
        %v1048 = vpop.permute.xlu0 %1047
        %v1051 = vsel %vm733, %v1045, 0
        %v1054 = vsel %vm733, %v1046, 0
        %1056 = vmatpush.bf16.msra.mxu0 0
        %1057 = vmatpush.bf16.msra.mxu0 0
        %1058 = vmatpush.bf16.msra.mxu0 0
        %1059 = vmatpush.bf16.msra.mxu0 0
        %1060 = vmatpush.bf16.msra.mxu0 0
        %1061 = vmatpush.bf16.msra.mxu0 0
        %1062 = vmatpush.bf16.msra.mxu0 0
        %1063 = vmatpush.bf16.msra.mxu0 %v1048
        %1064 = vmatmul.bf16.gmra.mxu0 %v1051
        %v1065 = vpop.f32.mrf.mxu0
        %v1066 = vadd.f32 0.0, %v1065
        %v1067 = vpop.f32.mrf.mxu0
        %v1068 = vadd.f32 0.0, %v1067
        %1069 = vmatmul.bf16.gmra.mxu0 %v1054
        %v1070 = vpop.f32.mrf.mxu0
        %v1071 = vadd.f32 0.0, %v1070
        %v1072 = vpop.f32.mrf.mxu0
        %v1073 = vadd.f32 0.0, %v1072
        %1074 = vdwg.mxu0
        %1075 = vrot.lane.b32.xlu0 %v616, 104
        %v1076 = vpop.permute.xlu0 %1075
        %1077 = vrot.lane.b32.xlu0 %v618, 104
        %v1078 = vpop.permute.xlu0 %1077
        %1079 = vrot.lane.b32.xlu0 %v621, 104
        %v1080 = vpop.permute.xlu0 %1079
        %1081 = vrot.lane.b32.xlu0 %v623, 104
        %v1082 = vpop.permute.xlu0 %1081
        %1083 = vrot.lane.b32.xlu0 %v675, 104
        %v1084 = vpop.permute.xlu0 %1083
        %1085 = vrot.lane.b32.xlu0 %v677, 104
        %v1086 = vpop.permute.xlu0 %1085
        %v1087 = vsel %vm681, %v1076, 0
        %v1089 = vsel %vm681, %v1078, 0
        %v1091 = vsel %vm681, %v1080, 0
        %v1093 = vsel %vm681, %v1082, 0
        %v1095 = vsel %vm681, %v1084, 0
        %v1097 = vsel %vm681, %v1086, 0
        %1099 = vmatpush.xpose.msra.mxu0 0.0
        %1100 = vmatpush.xpose.msra.mxu0 0.0
        %1101 = vmatpush.xpose.msra.mxu0 0.0
        %1102 = vmatpush.xpose.msra.mxu0 0.0
        %1103 = vmatpush.xpose.msra.mxu0 0.0
        %1104 = vmatpush.xpose.msra.mxu0 0.0
        %1105 = vmatpush.xpose.msra.mxu0 0.0
        %1106 = vmatpush.xpose.msra.mxu0 0.0
        %1107 = vmatpush.xpose.msra.mxu0 0.0
        %1108 = vmatpush.xpose.msra.mxu0 0.0
        %1109 = vmatpush.xpose.msra.mxu0 0.0
        %1110 = vmatpush.xpose.msra.mxu0 0.0
        %1111 = vmatpush.xpose.msra.mxu0 0.0
        %1112 = vmatpush.xpose.msra.mxu0 0.0
        %1113 = vmatpush.xpose.msra.mxu0 %v1097
        %1114 = vmatpush.xpose.msra.mxu0 %v1095
        %1115 = vmatmul.f32.gmra.mxu0 %v1087
        %v1116 = vpop.f32.mrf.mxu0
        %v1117 = vadd.f32 0.0, %v1116
        %1118 = vmatmul.f32.gmra.mxu0 %v1089
        %v1119 = vpop.f32.mrf.mxu0
        %v1120 = vadd.f32 0.0, %v1119
        %1121 = vmatmul.f32.gmra.mxu0 %v1091
        %v1122 = vpop.f32.mrf.mxu0
        %v1123 = vadd.f32 0.0, %v1122
        %1124 = vmatmul.f32.gmra.mxu0 %v1093
        %v1125 = vpop.f32.mrf.mxu0
        %v1126 = vadd.f32 0.0, %v1125
        %1127 = vdwg.mxu0
        %v1128 = vmul.f32 %v1117, 0.35355338
        %v1129 = vmul.f32 %v1120, 0.35355338
        %v1130 = vmul.f32 %v1123, 0.35355338
        %v1131 = vmul.f32 %v1126, 0.35355338
        %v1132 = vsel %vm733, %v1128, -inf
        %1133 = vmax.xlane.f32.xlu0 %v1132
        %v1134 = vpop.xlane.xlu0 %1133
        %v1135 = vsel %vm733, %v1129, -inf
        %1136 = vmax.xlane.f32.xlu0 %v1135
        %v1137 = vpop.xlane.xlu0 %1136
        %v1138 = vsel %vm733, %v1130, -inf
        %1139 = vmax.xlane.f32.xlu0 %v1138
        %v1140 = vpop.xlane.xlu0 %1139
        %v1141 = vsel %vm733, %v1131, -inf
        %1142 = vmax.xlane.f32.xlu0 %v1141
        %v1143 = vpop.xlane.xlu0 %1142
        %v1144 = vsub.f32 %v1128, %v1134
        %v1145 = vsub.f32 %v1129, %v1137
        %v1146 = vsub.f32 %v1130, %v1140
        %v1147 = vsub.f32 %v1131, %v1143
        %v1148 = vmul.f32 %v1144, 1.442695
        %v1149 = vpow.pop %v1148
        %v1150 = vmul.f32 %v1145, 1.442695
        %v1151 = vpow.pop %v1150
        %v1152 = vmul.f32 %v1146, 1.442695
        %v1153 = vpow.pop %v1152
        %v1154 = vmul.f32 %v1147, 1.442695
        %v1155 = vpow.pop %v1154
        %v1156 = vsel %vm733, %v1149, 0.0
        %1157 = vadd.xlane.f32.xlu0 %v1156
        %v1158 = vpop.xlane.xlu0 %1157
        %v1159 = vsel %vm733, %v1151, 0.0
        %1160 = vadd.xlane.f32.xlu0 %v1159
        %v1161 = vpop.xlane.xlu0 %1160
        %v1162 = vsel %vm733, %v1153, 0.0
        %1163 = vadd.xlane.f32.xlu0 %v1162
        %v1164 = vpop.xlane.xlu0 %1163
        %v1165 = vsel %vm733, %v1155, 0.0
        %1166 = vadd.xlane.f32.xlu0 %v1165
        %v1167 = vpop.xlane.xlu0 %1166
        %v1168 = vrcp.pop %v1158
        %v1169 = vrcp.pop %v1161
        %v1170 = vrcp.pop %v1164
        %v1171 = vrcp.pop %v1167
        %v1172 = vmul.f32 %v1149, %v1168
        %v1173 = vmul.f32 %v1151, %v1169
        %v1174 = vmul.f32 %v1153, %v1170
        %v1175 = vmul.f32 %v1155, %v1171
        %v1176 = vpack.c.bf16 %v1173, %v1172
        %v1177 = vpack.c.bf16 %v1175, %v1174
        %1178 = vrot.lane.b32.xlu0 %v784, 40
        %v1179 = vpop.permute.xlu0 %1178
        %v1182 = vsel %vm733, %v1176, 0
        %v1185 = vsel %vm733, %v1177, 0
        %1187 = vmatpush.bf16.msra.mxu0 0
        %1188 = vmatpush.bf16.msra.mxu0 0
        %1189 = vmatpush.bf16.msra.mxu0 0
        %1190 = vmatpush.bf16.msra.mxu0 0
        %1191 = vmatpush.bf16.msra.mxu0 0
        %1192 = vmatpush.bf16.msra.mxu0 0
        %1193 = vmatpush.bf16.msra.mxu0 0
        %1194 = vmatpush.bf16.msra.mxu0 %v1179
        %1195 = vmatmul.bf16.gmra.mxu0 %v1182
        %v1196 = vpop.f32.mrf.mxu0
        %v1197 = vadd.f32 0.0, %v1196
        %v1198 = vpop.f32.mrf.mxu0
        %v1199 = vadd.f32 0.0, %v1198
        %1200 = vmatmul.bf16.gmra.mxu0 %v1185
        %v1201 = vpop.f32.mrf.mxu0
        %v1202 = vadd.f32 0.0, %v1201
        %v1203 = vpop.f32.mrf.mxu0
        %v1204 = vadd.f32 0.0, %v1203
        %1205 = vdwg.mxu0
        %1206 = vrot.lane.b32.xlu0 %v616, 96
        %v1207 = vpop.permute.xlu0 %1206
        %1208 = vrot.lane.b32.xlu0 %v618, 96
        %v1209 = vpop.permute.xlu0 %1208
        %1210 = vrot.lane.b32.xlu0 %v621, 96
        %v1211 = vpop.permute.xlu0 %1210
        %1212 = vrot.lane.b32.xlu0 %v623, 96
        %v1213 = vpop.permute.xlu0 %1212
        %1214 = vrot.lane.b32.xlu0 %v675, 96
        %v1215 = vpop.permute.xlu0 %1214
        %1216 = vrot.lane.b32.xlu0 %v677, 96
        %v1217 = vpop.permute.xlu0 %1216
        %v1218 = vsel %vm681, %v1207, 0
        %v1220 = vsel %vm681, %v1209, 0
        %v1222 = vsel %vm681, %v1211, 0
        %v1224 = vsel %vm681, %v1213, 0
        %v1226 = vsel %vm681, %v1215, 0
        %v1228 = vsel %vm681, %v1217, 0
        %1230 = vmatpush.xpose.msra.mxu0 0.0
        %1231 = vmatpush.xpose.msra.mxu0 0.0
        %1232 = vmatpush.xpose.msra.mxu0 0.0
        %1233 = vmatpush.xpose.msra.mxu0 0.0
        %1234 = vmatpush.xpose.msra.mxu0 0.0
        %1235 = vmatpush.xpose.msra.mxu0 0.0
        %1236 = vmatpush.xpose.msra.mxu0 0.0
        %1237 = vmatpush.xpose.msra.mxu0 0.0
        %1238 = vmatpush.xpose.msra.mxu0 0.0
        %1239 = vmatpush.xpose.msra.mxu0 0.0
        %1240 = vmatpush.xpose.msra.mxu0 0.0
        %1241 = vmatpush.xpose.msra.mxu0 0.0
        %1242 = vmatpush.xpose.msra.mxu0 0.0
        %1243 = vmatpush.xpose.msra.mxu0 0.0
        %1244 = vmatpush.xpose.msra.mxu0 %v1228
        %1245 = vmatpush.xpose.msra.mxu0 %v1226
        %1246 = vmatmul.f32.gmra.mxu0 %v1218
        %v1247 = vpop.f32.mrf.mxu0
        %v1248 = vadd.f32 0.0, %v1247
        %1249 = vmatmul.f32.gmra.mxu0 %v1220
        %v1250 = vpop.f32.mrf.mxu0
        %v1251 = vadd.f32 0.0, %v1250
        %1252 = vmatmul.f32.gmra.mxu0 %v1222
        %v1253 = vpop.f32.mrf.mxu0
        %v1254 = vadd.f32 0.0, %v1253
        %1255 = vmatmul.f32.gmra.mxu0 %v1224
        %v1256 = vpop.f32.mrf.mxu0
        %v1257 = vadd.f32 0.0, %v1256
        %1258 = vdwg.mxu0
        %v1259 = vmul.f32 %v1248, 0.35355338
        %v1260 = vmul.f32 %v1251, 0.35355338
        %v1261 = vmul.f32 %v1254, 0.35355338
        %v1262 = vmul.f32 %v1257, 0.35355338
        %v1263 = vsel %vm733, %v1259, -inf
        %1264 = vmax.xlane.f32.xlu0 %v1263
        %v1265 = vpop.xlane.xlu0 %1264
        %v1266 = vsel %vm733, %v1260, -inf
        %1267 = vmax.xlane.f32.xlu0 %v1266
        %v1268 = vpop.xlane.xlu0 %1267
        %v1269 = vsel %vm733, %v1261, -inf
        %1270 = vmax.xlane.f32.xlu0 %v1269
        %v1271 = vpop.xlane.xlu0 %1270
        %v1272 = vsel %vm733, %v1262, -inf
        %1273 = vmax.xlane.f32.xlu0 %v1272
        %v1274 = vpop.xlane.xlu0 %1273
        %v1275 = vsub.f32 %v1259, %v1265
        %v1276 = vsub.f32 %v1260, %v1268
        %v1277 = vsub.f32 %v1261, %v1271
        %v1278 = vsub.f32 %v1262, %v1274
        %v1279 = vmul.f32 %v1275, 1.442695
        %v1280 = vpow.pop %v1279
        %v1281 = vmul.f32 %v1276, 1.442695
        %v1282 = vpow.pop %v1281
        %v1283 = vmul.f32 %v1277, 1.442695
        %v1284 = vpow.pop %v1283
        %v1285 = vmul.f32 %v1278, 1.442695
        %v1286 = vpow.pop %v1285
        %v1287 = vsel %vm733, %v1280, 0.0
        %1288 = vadd.xlane.f32.xlu0 %v1287
        %v1289 = vpop.xlane.xlu0 %1288
        %v1290 = vsel %vm733, %v1282, 0.0
        %1291 = vadd.xlane.f32.xlu0 %v1290
        %v1292 = vpop.xlane.xlu0 %1291
        %v1293 = vsel %vm733, %v1284, 0.0
        %1294 = vadd.xlane.f32.xlu0 %v1293
        %v1295 = vpop.xlane.xlu0 %1294
        %v1296 = vsel %vm733, %v1286, 0.0
        %1297 = vadd.xlane.f32.xlu0 %v1296
        %v1298 = vpop.xlane.xlu0 %1297
        %v1299 = vrcp.pop %v1289
        %v1300 = vrcp.pop %v1292
        %v1301 = vrcp.pop %v1295
        %v1302 = vrcp.pop %v1298
        %v1303 = vmul.f32 %v1280, %v1299
        %v1304 = vmul.f32 %v1282, %v1300
        %v1305 = vmul.f32 %v1284, %v1301
        %v1306 = vmul.f32 %v1286, %v1302
        %v1307 = vpack.c.bf16 %v1304, %v1303
        %v1308 = vpack.c.bf16 %v1306, %v1305
        %1309 = vrot.lane.b32.xlu0 %v784, 32
        %v1310 = vpop.permute.xlu0 %1309
        %v1313 = vsel %vm733, %v1307, 0
        %v1316 = vsel %vm733, %v1308, 0
        %1318 = vmatpush.bf16.msra.mxu0 0
        %1319 = vmatpush.bf16.msra.mxu0 0
        %1320 = vmatpush.bf16.msra.mxu0 0
        %1321 = vmatpush.bf16.msra.mxu0 0
        %1322 = vmatpush.bf16.msra.mxu0 0
        %1323 = vmatpush.bf16.msra.mxu0 0
        %1324 = vmatpush.bf16.msra.mxu0 0
        %1325 = vmatpush.bf16.msra.mxu0 %v1310
        %1326 = vmatmul.bf16.gmra.mxu0 %v1313
        %v1327 = vpop.f32.mrf.mxu0
        %v1328 = vadd.f32 0.0, %v1327
        %v1329 = vpop.f32.mrf.mxu0
        %v1330 = vadd.f32 0.0, %v1329
        %1331 = vmatmul.bf16.gmra.mxu0 %v1316
        %v1332 = vpop.f32.mrf.mxu0
        %v1333 = vadd.f32 0.0, %v1332
        %v1334 = vpop.f32.mrf.mxu0
        %v1335 = vadd.f32 0.0, %v1334
        %1336 = vdwg.mxu0
        %1337 = vrot.lane.b32.xlu0 %v616, 88
        %v1338 = vpop.permute.xlu0 %1337
        %1339 = vrot.lane.b32.xlu0 %v618, 88
        %v1340 = vpop.permute.xlu0 %1339
        %1341 = vrot.lane.b32.xlu0 %v621, 88
        %v1342 = vpop.permute.xlu0 %1341
        %1343 = vrot.lane.b32.xlu0 %v623, 88
        %v1344 = vpop.permute.xlu0 %1343
        %1345 = vrot.lane.b32.xlu0 %v675, 88
        %v1346 = vpop.permute.xlu0 %1345
        %1347 = vrot.lane.b32.xlu0 %v677, 88
        %v1348 = vpop.permute.xlu0 %1347
        %v1349 = vsel %vm681, %v1338, 0
        %v1351 = vsel %vm681, %v1340, 0
        %v1353 = vsel %vm681, %v1342, 0
        %v1355 = vsel %vm681, %v1344, 0
        %v1357 = vsel %vm681, %v1346, 0
        %v1359 = vsel %vm681, %v1348, 0
        %1361 = vmatpush.xpose.msra.mxu0 0.0
        %1362 = vmatpush.xpose.msra.mxu0 0.0
        %1363 = vmatpush.xpose.msra.mxu0 0.0
        %1364 = vmatpush.xpose.msra.mxu0 0.0
        %1365 = vmatpush.xpose.msra.mxu0 0.0
        %1366 = vmatpush.xpose.msra.mxu0 0.0
        %1367 = vmatpush.xpose.msra.mxu0 0.0
        %1368 = vmatpush.xpose.msra.mxu0 0.0
        %1369 = vmatpush.xpose.msra.mxu0 0.0
        %1370 = vmatpush.xpose.msra.mxu0 0.0
        %1371 = vmatpush.xpose.msra.mxu0 0.0
        %1372 = vmatpush.xpose.msra.mxu0 0.0
        %1373 = vmatpush.xpose.msra.mxu0 0.0
        %1374 = vmatpush.xpose.msra.mxu0 0.0
        %1375 = vmatpush.xpose.msra.mxu0 %v1359
        %1376 = vmatpush.xpose.msra.mxu0 %v1357
        %1377 = vmatmul.f32.gmra.mxu0 %v1349
        %v1378 = vpop.f32.mrf.mxu0
        %v1379 = vadd.f32 0.0, %v1378
        %1380 = vmatmul.f32.gmra.mxu0 %v1351
        %v1381 = vpop.f32.mrf.mxu0
        %v1382 = vadd.f32 0.0, %v1381
        %1383 = vmatmul.f32.gmra.mxu0 %v1353
        %v1384 = vpop.f32.mrf.mxu0
        %v1385 = vadd.f32 0.0, %v1384
        %1386 = vmatmul.f32.gmra.mxu0 %v1355
        %v1387 = vpop.f32.mrf.mxu0
        %v1388 = vadd.f32 0.0, %v1387
        %1389 = vdwg.mxu0
        %v1390 = vmul.f32 %v1379, 0.35355338
        %v1391 = vmul.f32 %v1382, 0.35355338
        %v1392 = vmul.f32 %v1385, 0.35355338
        %v1393 = vmul.f32 %v1388, 0.35355338
        %v1394 = vsel %vm733, %v1390, -inf
        %1395 = vmax.xlane.f32.xlu0 %v1394
        %v1396 = vpop.xlane.xlu0 %1395
        %v1397 = vsel %vm733, %v1391, -inf
        %1398 = vmax.xlane.f32.xlu0 %v1397
        %v1399 = vpop.xlane.xlu0 %1398
        %v1400 = vsel %vm733, %v1392, -inf
        %1401 = vmax.xlane.f32.xlu0 %v1400
        %v1402 = vpop.xlane.xlu0 %1401
        %v1403 = vsel %vm733, %v1393, -inf
        %1404 = vmax.xlane.f32.xlu0 %v1403
        %v1405 = vpop.xlane.xlu0 %1404
        %v1406 = vsub.f32 %v1390, %v1396
        %v1407 = vsub.f32 %v1391, %v1399
        %v1408 = vsub.f32 %v1392, %v1402
        %v1409 = vsub.f32 %v1393, %v1405
        %v1410 = vmul.f32 %v1406, 1.442695
        %v1411 = vpow.pop %v1410
        %v1412 = vmul.f32 %v1407, 1.442695
        %v1413 = vpow.pop %v1412
        %v1414 = vmul.f32 %v1408, 1.442695
        %v1415 = vpow.pop %v1414
        %v1416 = vmul.f32 %v1409, 1.442695
        %v1417 = vpow.pop %v1416
        %v1418 = vsel %vm733, %v1411, 0.0
        %1419 = vadd.xlane.f32.xlu0 %v1418
        %v1420 = vpop.xlane.xlu0 %1419
        %v1421 = vsel %vm733, %v1413, 0.0
        %1422 = vadd.xlane.f32.xlu0 %v1421
        %v1423 = vpop.xlane.xlu0 %1422
        %v1424 = vsel %vm733, %v1415, 0.0
        %1425 = vadd.xlane.f32.xlu0 %v1424
        %v1426 = vpop.xlane.xlu0 %1425
        %v1427 = vsel %vm733, %v1417, 0.0
        %1428 = vadd.xlane.f32.xlu0 %v1427
        %v1429 = vpop.xlane.xlu0 %1428
        %v1430 = vrcp.pop %v1420
        %v1431 = vrcp.pop %v1423
        %v1432 = vrcp.pop %v1426
        %v1433 = vrcp.pop %v1429
        %v1434 = vmul.f32 %v1411, %v1430
        %v1435 = vmul.f32 %v1413, %v1431
        %v1436 = vmul.f32 %v1415, %v1432
        %v1437 = vmul.f32 %v1417, %v1433
        %v1438 = vpack.c.bf16 %v1435, %v1434
        %v1439 = vpack.c.bf16 %v1437, %v1436
        %1440 = vrot.lane.b32.xlu0 %v784, 24
        %v1441 = vpop.permute.xlu0 %1440
        %v1444 = vsel %vm733, %v1438, 0
        %v1447 = vsel %vm733, %v1439, 0
        %1449 = vmatpush.bf16.msra.mxu0 0
        %1450 = vmatpush.bf16.msra.mxu0 0
        %1451 = vmatpush.bf16.msra.mxu0 0
        %1452 = vmatpush.bf16.msra.mxu0 0
        %1453 = vmatpush.bf16.msra.mxu0 0
        %1454 = vmatpush.bf16.msra.mxu0 0
        %1455 = vmatpush.bf16.msra.mxu0 0
        %1456 = vmatpush.bf16.msra.mxu0 %v1441
        %1457 = vmatmul.bf16.gmra.mxu0 %v1444
        %v1458 = vpop.f32.mrf.mxu0
        %v1459 = vadd.f32 0.0, %v1458
        %v1460 = vpop.f32.mrf.mxu0
        %v1461 = vadd.f32 0.0, %v1460
        %1462 = vmatmul.bf16.gmra.mxu0 %v1447
        %v1463 = vpop.f32.mrf.mxu0
        %v1464 = vadd.f32 0.0, %v1463
        %v1465 = vpop.f32.mrf.mxu0
        %v1466 = vadd.f32 0.0, %v1465
        %1467 = vdwg.mxu0
        %1468 = vrot.lane.b32.xlu0 %v616, 80
        %v1469 = vpop.permute.xlu0 %1468
        %1470 = vrot.lane.b32.xlu0 %v618, 80
        %v1471 = vpop.permute.xlu0 %1470
        %1472 = vrot.lane.b32.xlu0 %v621, 80
        %v1473 = vpop.permute.xlu0 %1472
        %1474 = vrot.lane.b32.xlu0 %v623, 80
        %v1475 = vpop.permute.xlu0 %1474
        %1476 = vrot.lane.b32.xlu0 %v675, 80
        %v1477 = vpop.permute.xlu0 %1476
        %1478 = vrot.lane.b32.xlu0 %v677, 80
        %v1479 = vpop.permute.xlu0 %1478
        %v1480 = vsel %vm681, %v1469, 0
        %v1482 = vsel %vm681, %v1471, 0
        %v1484 = vsel %vm681, %v1473, 0
        %v1486 = vsel %vm681, %v1475, 0
        %v1488 = vsel %vm681, %v1477, 0
        %v1490 = vsel %vm681, %v1479, 0
        %1492 = vmatpush.xpose.msra.mxu0 0.0
        %1493 = vmatpush.xpose.msra.mxu0 0.0
        %1494 = vmatpush.xpose.msra.mxu0 0.0
        %1495 = vmatpush.xpose.msra.mxu0 0.0
        %1496 = vmatpush.xpose.msra.mxu0 0.0
        %1497 = vmatpush.xpose.msra.mxu0 0.0
        %1498 = vmatpush.xpose.msra.mxu0 0.0
        %1499 = vmatpush.xpose.msra.mxu0 0.0
        %1500 = vmatpush.xpose.msra.mxu0 0.0
        %1501 = vmatpush.xpose.msra.mxu0 0.0
        %1502 = vmatpush.xpose.msra.mxu0 0.0
        %1503 = vmatpush.xpose.msra.mxu0 0.0
        %1504 = vmatpush.xpose.msra.mxu0 0.0
        %1505 = vmatpush.xpose.msra.mxu0 0.0
        %1506 = vmatpush.xpose.msra.mxu0 %v1490
        %1507 = vmatpush.xpose.msra.mxu0 %v1488
        %1508 = vmatmul.f32.gmra.mxu0 %v1480
        %v1509 = vpop.f32.mrf.mxu0
        %v1510 = vadd.f32 0.0, %v1509
        %1511 = vmatmul.f32.gmra.mxu0 %v1482
        %v1512 = vpop.f32.mrf.mxu0
        %v1513 = vadd.f32 0.0, %v1512
        %1514 = vmatmul.f32.gmra.mxu0 %v1484
        %v1515 = vpop.f32.mrf.mxu0
        %v1516 = vadd.f32 0.0, %v1515
        %1517 = vmatmul.f32.gmra.mxu0 %v1486
        %v1518 = vpop.f32.mrf.mxu0
        %v1519 = vadd.f32 0.0, %v1518
        %1520 = vdwg.mxu0
        %v1521 = vmul.f32 %v1510, 0.35355338
        %v1522 = vmul.f32 %v1513, 0.35355338
        %v1523 = vmul.f32 %v1516, 0.35355338
        %v1524 = vmul.f32 %v1519, 0.35355338
        %v1525 = vsel %vm733, %v1521, -inf
        %1526 = vmax.xlane.f32.xlu0 %v1525
        %v1527 = vpop.xlane.xlu0 %1526
        %v1528 = vsel %vm733, %v1522, -inf
        %1529 = vmax.xlane.f32.xlu0 %v1528
        %v1530 = vpop.xlane.xlu0 %1529
        %v1531 = vsel %vm733, %v1523, -inf
        %1532 = vmax.xlane.f32.xlu0 %v1531
        %v1533 = vpop.xlane.xlu0 %1532
        %v1534 = vsel %vm733, %v1524, -inf
        %1535 = vmax.xlane.f32.xlu0 %v1534
        %v1536 = vpop.xlane.xlu0 %1535
        %v1537 = vsub.f32 %v1521, %v1527
        %v1538 = vsub.f32 %v1522, %v1530
        %v1539 = vsub.f32 %v1523, %v1533
        %v1540 = vsub.f32 %v1524, %v1536
        %v1541 = vmul.f32 %v1537, 1.442695
        %v1542 = vpow.pop %v1541
        %v1543 = vmul.f32 %v1538, 1.442695
        %v1544 = vpow.pop %v1543
        %v1545 = vmul.f32 %v1539, 1.442695
        %v1546 = vpow.pop %v1545
        %v1547 = vmul.f32 %v1540, 1.442695
        %v1548 = vpow.pop %v1547
        %v1549 = vsel %vm733, %v1542, 0.0
        %1550 = vadd.xlane.f32.xlu0 %v1549
        %v1551 = vpop.xlane.xlu0 %1550
        %v1552 = vsel %vm733, %v1544, 0.0
        %1553 = vadd.xlane.f32.xlu0 %v1552
        %v1554 = vpop.xlane.xlu0 %1553
        %v1555 = vsel %vm733, %v1546, 0.0
        %1556 = vadd.xlane.f32.xlu0 %v1555
        %v1557 = vpop.xlane.xlu0 %1556
        %v1558 = vsel %vm733, %v1548, 0.0
        %1559 = vadd.xlane.f32.xlu0 %v1558
        %v1560 = vpop.xlane.xlu0 %1559
        %v1561 = vrcp.pop %v1551
        %v1562 = vrcp.pop %v1554
        %v1563 = vrcp.pop %v1557
        %v1564 = vrcp.pop %v1560
        %v1565 = vmul.f32 %v1542, %v1561
        %v1566 = vmul.f32 %v1544, %v1562
        %v1567 = vmul.f32 %v1546, %v1563
        %v1568 = vmul.f32 %v1548, %v1564
        %v1569 = vpack.c.bf16 %v1566, %v1565
        %v1570 = vpack.c.bf16 %v1568, %v1567
        %1571 = vrot.lane.b32.xlu0 %v784, 16
        %v1572 = vpop.permute.xlu0 %1571
        %v1575 = vsel %vm733, %v1569, 0
        %v1578 = vsel %vm733, %v1570, 0
        %1580 = vmatpush.bf16.msra.mxu0 0
        %1581 = vmatpush.bf16.msra.mxu0 0
        %1582 = vmatpush.bf16.msra.mxu0 0
        %1583 = vmatpush.bf16.msra.mxu0 0
        %1584 = vmatpush.bf16.msra.mxu0 0
        %1585 = vmatpush.bf16.msra.mxu0 0
        %1586 = vmatpush.bf16.msra.mxu0 0
        %1587 = vmatpush.bf16.msra.mxu0 %v1572
        %1588 = vmatmul.bf16.gmra.mxu0 %v1575
        %v1589 = vpop.f32.mrf.mxu0
        %v1590 = vadd.f32 0.0, %v1589
        %v1591 = vpop.f32.mrf.mxu0
        %v1592 = vadd.f32 0.0, %v1591
        %1593 = vmatmul.bf16.gmra.mxu0 %v1578
        %v1594 = vpop.f32.mrf.mxu0
        %v1595 = vadd.f32 0.0, %v1594
        %v1596 = vpop.f32.mrf.mxu0
        %v1597 = vadd.f32 0.0, %v1596
        %1598 = vdwg.mxu0
        %1599 = vrot.lane.b32.xlu0 %v616, 72
        %v1600 = vpop.permute.xlu0 %1599
        %1601 = vrot.lane.b32.xlu0 %v618, 72
        %v1602 = vpop.permute.xlu0 %1601
        %1603 = vrot.lane.b32.xlu0 %v621, 72
        %v1604 = vpop.permute.xlu0 %1603
        %1605 = vrot.lane.b32.xlu0 %v623, 72
        %v1606 = vpop.permute.xlu0 %1605
        %1607 = vrot.lane.b32.xlu0 %v675, 72
        %v1608 = vpop.permute.xlu0 %1607
        %1609 = vrot.lane.b32.xlu0 %v677, 72
        %v1610 = vpop.permute.xlu0 %1609
        %v1611 = vsel %vm681, %v1600, 0
        %v1613 = vsel %vm681, %v1602, 0
        %v1615 = vsel %vm681, %v1604, 0
        %v1617 = vsel %vm681, %v1606, 0
        %v1619 = vsel %vm681, %v1608, 0
        %v1621 = vsel %vm681, %v1610, 0
        %1623 = vmatpush.xpose.msra.mxu0 0.0
        %1624 = vmatpush.xpose.msra.mxu0 0.0
        %1625 = vmatpush.xpose.msra.mxu0 0.0
        %1626 = vmatpush.xpose.msra.mxu0 0.0
        %1627 = vmatpush.xpose.msra.mxu0 0.0
        %1628 = vmatpush.xpose.msra.mxu0 0.0
        %1629 = vmatpush.xpose.msra.mxu0 0.0
        %1630 = vmatpush.xpose.msra.mxu0 0.0
        %1631 = vmatpush.xpose.msra.mxu0 0.0
        %1632 = vmatpush.xpose.msra.mxu0 0.0
        %1633 = vmatpush.xpose.msra.mxu0 0.0
        %1634 = vmatpush.xpose.msra.mxu0 0.0
        %1635 = vmatpush.xpose.msra.mxu0 0.0
        %1636 = vmatpush.xpose.msra.mxu0 0.0
        %1637 = vmatpush.xpose.msra.mxu0 %v1621
        %1638 = vmatpush.xpose.msra.mxu0 %v1619
        %1639 = vmatmul.f32.gmra.mxu0 %v1611
        %v1640 = vpop.f32.mrf.mxu0
        %v1641 = vadd.f32 0.0, %v1640
        %1642 = vmatmul.f32.gmra.mxu0 %v1613
        %v1643 = vpop.f32.mrf.mxu0
        %v1644 = vadd.f32 0.0, %v1643
        %1645 = vmatmul.f32.gmra.mxu0 %v1615
        %v1646 = vpop.f32.mrf.mxu0
        %v1647 = vadd.f32 0.0, %v1646
        %1648 = vmatmul.f32.gmra.mxu0 %v1617
        %v1649 = vpop.f32.mrf.mxu0
        %v1650 = vadd.f32 0.0, %v1649
        %1651 = vdwg.mxu0
        %v1652 = vmul.f32 %v1641, 0.35355338
        %v1653 = vmul.f32 %v1644, 0.35355338
        %v1654 = vmul.f32 %v1647, 0.35355338
        %v1655 = vmul.f32 %v1650, 0.35355338
        %v1656 = vsel %vm733, %v1652, -inf
        %1657 = vmax.xlane.f32.xlu0 %v1656
        %v1658 = vpop.xlane.xlu0 %1657
        %v1659 = vsel %vm733, %v1653, -inf
        %1660 = vmax.xlane.f32.xlu0 %v1659
        %v1661 = vpop.xlane.xlu0 %1660
        %v1662 = vsel %vm733, %v1654, -inf
        %1663 = vmax.xlane.f32.xlu0 %v1662
        %v1664 = vpop.xlane.xlu0 %1663
        %v1665 = vsel %vm733, %v1655, -inf
        %1666 = vmax.xlane.f32.xlu0 %v1665
        %v1667 = vpop.xlane.xlu0 %1666
        %v1668 = vsub.f32 %v1652, %v1658
        %v1669 = vsub.f32 %v1653, %v1661
        %v1670 = vsub.f32 %v1654, %v1664
        %v1671 = vsub.f32 %v1655, %v1667
        %v1672 = vmul.f32 %v1668, 1.442695
        %v1673 = vpow.pop %v1672
        %v1674 = vmul.f32 %v1669, 1.442695
        %v1675 = vpow.pop %v1674
        %v1676 = vmul.f32 %v1670, 1.442695
        %v1677 = vpow.pop %v1676
        %v1678 = vmul.f32 %v1671, 1.442695
        %v1679 = vpow.pop %v1678
        %v1680 = vsel %vm733, %v1673, 0.0
        %1681 = vadd.xlane.f32.xlu0 %v1680
        %v1682 = vpop.xlane.xlu0 %1681
        %v1683 = vsel %vm733, %v1675, 0.0
        %1684 = vadd.xlane.f32.xlu0 %v1683
        %v1685 = vpop.xlane.xlu0 %1684
        %v1686 = vsel %vm733, %v1677, 0.0
        %1687 = vadd.xlane.f32.xlu0 %v1686
        %v1688 = vpop.xlane.xlu0 %1687
        %v1689 = vsel %vm733, %v1679, 0.0
        %1690 = vadd.xlane.f32.xlu0 %v1689
        %v1691 = vpop.xlane.xlu0 %1690
        %v1692 = vrcp.pop %v1682
        %v1693 = vrcp.pop %v1685
        %v1694 = vrcp.pop %v1688
        %v1695 = vrcp.pop %v1691
        %v1696 = vmul.f32 %v1673, %v1692
        %v1697 = vmul.f32 %v1675, %v1693
        %v1698 = vmul.f32 %v1677, %v1694
        %v1699 = vmul.f32 %v1679, %v1695
        %v1700 = vpack.c.bf16 %v1697, %v1696
        %v1701 = vpack.c.bf16 %v1699, %v1698
        %1702 = vrot.lane.b32.xlu0 %v784, 8
        %v1703 = vpop.permute.xlu0 %1702
        %v1706 = vsel %vm733, %v1700, 0
        %v1709 = vsel %vm733, %v1701, 0
        %1711 = vmatpush.bf16.msra.mxu0 0
        %1712 = vmatpush.bf16.msra.mxu0 0
        %1713 = vmatpush.bf16.msra.mxu0 0
        %1714 = vmatpush.bf16.msra.mxu0 0
        %1715 = vmatpush.bf16.msra.mxu0 0
        %1716 = vmatpush.bf16.msra.mxu0 0
        %1717 = vmatpush.bf16.msra.mxu0 0
        %1718 = vmatpush.bf16.msra.mxu0 %v1703
        %1719 = vmatmul.bf16.gmra.mxu0 %v1706
        %v1720 = vpop.f32.mrf.mxu0
        %v1721 = vadd.f32 0.0, %v1720
        %v1722 = vpop.f32.mrf.mxu0
        %v1723 = vadd.f32 0.0, %v1722
        %1724 = vmatmul.bf16.gmra.mxu0 %v1709
        %v1725 = vpop.f32.mrf.mxu0
        %v1726 = vadd.f32 0.0, %v1725
        %v1727 = vpop.f32.mrf.mxu0
        %v1728 = vadd.f32 0.0, %v1727
        %1729 = vdwg.mxu0
        %1734 = vrot.lane.b32.xlu0 %v935, 8
        %v1735 = vpop.permute.xlu0 %1734
        %1736 = vrot.lane.b32.xlu0 %v937, 8
        %v1737 = vpop.permute.xlu0 %1736
        %1738 = vrot.lane.b32.xlu0 %v940, 8
        %v1739 = vpop.permute.xlu0 %1738
        %1740 = vrot.lane.b32.xlu0 %v942, 8
        %v1741 = vpop.permute.xlu0 %1740
        %1750 = vrot.lane.b32.xlu0 %v1066, 16
        %v1751 = vpop.permute.xlu0 %1750
        %1752 = vrot.lane.b32.xlu0 %v1068, 16
        %v1753 = vpop.permute.xlu0 %1752
        %1754 = vrot.lane.b32.xlu0 %v1071, 16
        %v1755 = vpop.permute.xlu0 %1754
        %1756 = vrot.lane.b32.xlu0 %v1073, 16
        %v1757 = vpop.permute.xlu0 %1756
        %1766 = vrot.lane.b32.xlu0 %v1197, 24
        %v1767 = vpop.permute.xlu0 %1766
        %1768 = vrot.lane.b32.xlu0 %v1199, 24
        %v1769 = vpop.permute.xlu0 %1768
        %1770 = vrot.lane.b32.xlu0 %v1202, 24
        %v1771 = vpop.permute.xlu0 %1770
        %1772 = vrot.lane.b32.xlu0 %v1204, 24
        %v1773 = vpop.permute.xlu0 %1772
        %1782 = vrot.lane.b32.xlu0 %v1328, 32
        %v1783 = vpop.permute.xlu0 %1782
        %1784 = vrot.lane.b32.xlu0 %v1330, 32
        %v1785 = vpop.permute.xlu0 %1784
        %1786 = vrot.lane.b32.xlu0 %v1333, 32
        %v1787 = vpop.permute.xlu0 %1786
        %1788 = vrot.lane.b32.xlu0 %v1335, 32
        %v1789 = vpop.permute.xlu0 %1788
        %1798 = vrot.lane.b32.xlu0 %v1459, 40
        %v1799 = vpop.permute.xlu0 %1798
        %1800 = vrot.lane.b32.xlu0 %v1461, 40
        %v1801 = vpop.permute.xlu0 %1800
        %1802 = vrot.lane.b32.xlu0 %v1464, 40
        %v1803 = vpop.permute.xlu0 %1802
        %1804 = vrot.lane.b32.xlu0 %v1466, 40
        %v1805 = vpop.permute.xlu0 %1804
        %1814 = vrot.lane.b32.xlu0 %v1590, 48
        %v1815 = vpop.permute.xlu0 %1814
        %1816 = vrot.lane.b32.xlu0 %v1592, 48
        %v1817 = vpop.permute.xlu0 %1816
        %1818 = vrot.lane.b32.xlu0 %v1595, 48
        %v1819 = vpop.permute.xlu0 %1818
        %1820 = vrot.lane.b32.xlu0 %v1597, 48
        %v1821 = vpop.permute.xlu0 %1820
        %1830 = vrot.lane.b32.xlu0 %v1721, 56
        %v1831 = vpop.permute.xlu0 %1830
        %1832 = vrot.lane.b32.xlu0 %v1723, 56
        %v1833 = vpop.permute.xlu0 %1832
        %1834 = vrot.lane.b32.xlu0 %v1726, 56
        %v1835 = vpop.permute.xlu0 %1834
        %1836 = vrot.lane.b32.xlu0 %v1728, 56
        %v1837 = vpop.permute.xlu0 %1836
        %v1842 = vsel %vm681, %v804, %v1735
        %v1843 = vsel %vm681, %v806, %v1737
        %v1844 = vsel %vm681, %v809, %v1739
        %v1845 = vsel %vm681, %v811, %v1741
        %v1846 = vsel %vm733, %v1842, %v1751
        %v1847 = vsel %vm733, %v1843, %v1753
        %v1848 = vsel %vm733, %v1844, %v1755
        %v1849 = vsel %vm733, %v1845, %v1757
        %vm1850 = vcmask 195584
        %v1851 = vsel %vm1850, %v1846, %v1767
        %v1852 = vsel %vm1850, %v1847, %v1769
        %v1853 = vsel %vm1850, %v1848, %v1771
        %v1854 = vsel %vm1850, %v1849, %v1773
        %vm1855 = vcmask 261120
        %v1856 = vsel %vm1855, %v1851, %v1783
        %v1857 = vsel %vm1855, %v1852, %v1785
        %v1858 = vsel %vm1855, %v1853, %v1787
        %v1859 = vsel %vm1855, %v1854, %v1789
        %vm1860 = vcmask 326656
        %v1861 = vsel %vm1860, %v1856, %v1799
        %v1862 = vsel %vm1860, %v1857, %v1801
        %v1863 = vsel %vm1860, %v1858, %v1803
        %v1864 = vsel %vm1860, %v1859, %v1805
        %vm1865 = vcmask 392192
        %v1866 = vsel %vm1865, %v1861, %v1815
        %v1867 = vsel %vm1865, %v1862, %v1817
        %v1868 = vsel %vm1865, %v1863, %v1819
        %v1869 = vsel %vm1865, %v1864, %v1821
        %vm1870 = vcmask 457728
        %v1871 = vsel %vm1870, %v1866, %v1831
        %v1872 = vsel %vm1870, %v1867, %v1833
        %v1873 = vsel %vm1870, %v1868, %v1835
        %v1874 = vsel %vm1870, %v1869, %v1837
        %v1875 = vpack.c.bf16 %v1872, %v1871
        %v1876 = vpack.c.bf16 %v1874, %v1873
        %v1877 = vld [vmem:[%s6] sm:$0xf]
        %v1878 = vld [vmem:[%s6 + $0x4] sm:$0xf]
        %v1879 = vld [vmem:[%s6 + $0x8] sm:$0xf]
        %v1880 = vld [vmem:[%s6 + $0xc] sm:$0xf]
        %v1881 = vld [vmem:[%s6 + $0x10] sm:$0xf]
        %v1882 = vld [vmem:[%s6 + $0x14] sm:$0xf]
        %v1883 = vld [vmem:[%s6 + $0x18] sm:$0xf]
        %v1884 = vld [vmem:[%s6 + $0x1c] sm:$0xf]
        %v1885 = vld [vmem:[%s7] sm:$0x1]
        %v1887 = vperm.slane %v1885, 0
        %v1897 = vunpack.c.l.b16 %v1877
        %v1898 = vunpack.c.l.b16 %v1878
        %v1899 = vunpack.c.l.b16 %v1879
        %v1900 = vunpack.c.l.b16 %v1880
        %v1901 = vunpack.c.l.b16 %v1881
        %v1902 = vunpack.c.l.b16 %v1882
        %v1903 = vunpack.c.l.b16 %v1883
        %v1904 = vunpack.c.l.b16 %v1884
        %v1905 = vpack.c.b16 %v1898, %v1897
        %v1906 = vpack.c.b16 %v1900, %v1899
        %v1907 = vpack.c.b16 %v1902, %v1901
        %v1908 = vpack.c.b16 %v1904, %v1903
        %v1914 = vsel %vm599, %v1875, 0
        %v1917 = vsel %vm599, %v1876, 0
        %1919 = vmatpush.bf16.msra.mxu0 0
        %1920 = vmatpush.bf16.msra.mxu0 0
        %1921 = vmatpush.bf16.msra.mxu0 0
        %1922 = vmatpush.bf16.msra.mxu0 0
        %1923 = vmatpush.bf16.msra.mxu0 %v1908
        %1924 = vmatpush.bf16.msra.mxu0 %v1907
        %1925 = vmatpush.bf16.msra.mxu0 %v1906
        %1926 = vmatpush.bf16.msra.mxu0 %v1905
        %1927 = vmatmul.bf16.gmra.mxu0 %v1914
        %v1928 = vpop.f32.mrf.mxu0
        %v1929 = vadd.f32 %v1887, %v1928
        %v1930 = vpop.f32.mrf.mxu0
        %v1931 = vadd.f32 %v1887, %v1930
        %1932 = vmatmul.bf16.gmra.mxu0 %v1917
        %v1933 = vpop.f32.mrf.mxu0
        %v1934 = vadd.f32 %v1887, %v1933
        %v1935 = vpop.f32.mrf.mxu0
        %v1936 = vadd.f32 %v1887, %v1935
        %1937 = vdwg.mxu0
        %v1938 = vlaneseq
        %v1939 = vshrl.u32 %v1938, 7
        %v1940 = vadd.s32 %v1939, 8
        %v1941 = vadd.s32 %v1939, 16
        %v1942 = vadd.s32 %v1939, 24
        %v1943 = vadd.s32 %v1939, 32
        %v1944 = vadd.s32 %v1939, 40
        %vm1945 = vcmp.eq.s32.totalorder %v1939, 0
        %vm1946 = vcmp.eq.s32.totalorder %v1940, 0
        %vm1947 = vcmp.eq.s32.totalorder %v1941, 0
        %vm1948 = vcmp.eq.s32.totalorder %v1942, 0
        %vm1949 = vcmp.eq.s32.totalorder %v1943, 0
        %vm1950 = vcmp.eq.s32.totalorder %v1944, 0
        %v1951 = vrot.slane %v1929, 7
        %v1952 = vrot.slane %v1931, 7
        %v1953 = vrot.slane %v1934, 7
        %v1954 = vrot.slane %v1936, 7
        %v1955 = vrot.slane %v547, 7
        %v1956 = vrot.slane %v548, 7
        %vm1957 = vcmp.lt.s32.totalorder %v1939, 1
        %v1958 = vsel %vm1957, %v1955, %v1956
        %v1959 = vsel %vm1957, %v1954, %v1955
        %v1960 = vsel %vm1957, %v1953, %v1954
        %v1961 = vsel %vm1957, %v1952, %v1953
        %v1962 = vsel %vm1957, %v1951, %v1952
        %v1963 = vsel %vm1957, %v1956, %v1951
        %v1964 = vsel %vm1945, 0.0, %v1963
        %v1965 = vsel %vm1946, 0.0, %v1962
        %v1966 = vsel %vm1947, 0.0, %v1961
        %v1967 = vsel %vm1948, 0.0, %v1960
        %v1968 = vsel %vm1949, 0.0, %v1959
        %v1969 = vsel %vm1950, 0.0, %v1958
        %vm1970 = vcmp.eq.s32.totalorder %v1939, 47
        %vm1971 = vcmp.eq.s32.totalorder %v1940, 47
        %vm1972 = vcmp.eq.s32.totalorder %v1941, 47
        %vm1973 = vcmp.eq.s32.totalorder %v1942, 47
        %vm1974 = vcmp.eq.s32.totalorder %v1943, 47
        %vm1975 = vcmp.eq.s32.totalorder %v1944, 47
        %v1976 = vrot.slane %v1929, 1
        %v1977 = vrot.slane %v1931, 1
        %v1978 = vrot.slane %v1934, 1
        %v1979 = vrot.slane %v1936, 1
        %v1980 = vrot.slane %v547, 1
        %v1981 = vrot.slane %v548, 1
        %vm1982 = vcmp.lt.s32.totalorder %v1939, 7
        %v1983 = vsel %vm1982, %v1980, %v1981
        %v1984 = vsel %vm1982, %v1979, %v1980
        %v1985 = vsel %vm1982, %v1978, %v1979
        %v1986 = vsel %vm1982, %v1977, %v1978
        %v1987 = vsel %vm1982, %v1976, %v1977
        %v1988 = vsel %vm1982, %v1981, %v1976
        %v1989 = vsel %vm1970, 0.0, %v1987
        %v1990 = vsel %vm1971, 0.0, %v1986
        %v1991 = vsel %vm1972, 0.0, %v1985
        %v1992 = vsel %vm1973, 0.0, %v1984
        %v1993 = vsel %vm1974, 0.0, %v1983
        %v1994 = vsel %vm1975, 0.0, %v1988
        %v1995 = vpack.c.bf16 %v1965, %v1964
        %v1996 = vpack.c.bf16 %v1967, %v1966
        %v1997 = vpack.c.bf16 %v1969, %v1968
        %v1998 = vld [vmem:[%s8] sm:$0xf]
        %v1999 = vld [vmem:[%s8 + $0x4] sm:$0xf]
        %v2000 = vld [vmem:[%s8 + $0x8] sm:$0xf]
        %v2001 = vld [vmem:[%s8 + $0xc] sm:$0xf]
        %v2002 = vld [vmem:[%s8 + $0x10] sm:$0xf]
        %v2003 = vld [vmem:[%s8 + $0x14] sm:$0xf]
        %v2004 = vld [vmem:[%s8 + $0x18] sm:$0xf]
        %v2005 = vld [vmem:[%s8 + $0x1c] sm:$0xf]
        %v2006 = vpack.c.bf16 %v1931, %v1929
        %v2007 = vpack.c.bf16 %v1936, %v1934
        %s2008 = scalar_lea.vmem %s8, 32
        %v2009 = vld [vmem:[%s2008] sm:$0xf]
        %v2010 = vld [vmem:[%s2008 + $0x4] sm:$0xf]
        %v2011 = vld [vmem:[%s2008 + $0x8] sm:$0xf]
        %v2012 = vld [vmem:[%s2008 + $0xc] sm:$0xf]
        %v2013 = vld [vmem:[%s2008 + $0x10] sm:$0xf]
        %v2014 = vld [vmem:[%s2008 + $0x14] sm:$0xf]
        %v2015 = vld [vmem:[%s2008 + $0x18] sm:$0xf]
        %v2016 = vld [vmem:[%s2008 + $0x1c] sm:$0xf]
        %v2025 = vunpack.c.l.b16 %v2009
        %v2026 = vunpack.c.l.b16 %v2010
        %v2027 = vunpack.c.l.b16 %v2011
        %v2028 = vunpack.c.l.b16 %v2012
        %v2029 = vunpack.c.l.b16 %v2013
        %v2030 = vunpack.c.l.b16 %v2014
        %v2031 = vunpack.c.l.b16 %v2015
        %v2032 = vunpack.c.l.b16 %v2016
        %v2033 = vpack.c.b16 %v2026, %v2025
        %v2034 = vpack.c.b16 %v2028, %v2027
        %v2035 = vpack.c.b16 %v2030, %v2029
        %v2036 = vpack.c.b16 %v2032, %v2031
        %v2042 = vsel %vm599, %v2006, 0
        %v2045 = vsel %vm599, %v2007, 0
        %2047 = vmatpush.bf16.msra.mxu0 0
        %2048 = vmatpush.bf16.msra.mxu0 0
        %2049 = vmatpush.bf16.msra.mxu0 0
        %2050 = vmatpush.bf16.msra.mxu0 0
        %2051 = vmatpush.bf16.msra.mxu0 %v2036
        %2052 = vmatpush.bf16.msra.mxu0 %v2035
        %2053 = vmatpush.bf16.msra.mxu0 %v2034
        %2054 = vmatpush.bf16.msra.mxu0 %v2033
        %2055 = vmatmul.bf16.gmra.mxu0 %v2042
        %v2056 = vpop.f32.mrf.mxu0
        %v2057 = vadd.f32 0.0, %v2056
        %v2058 = vpop.f32.mrf.mxu0
        %v2059 = vadd.f32 0.0, %v2058
        %2060 = vmatmul.bf16.gmra.mxu0 %v2045
        %v2061 = vpop.f32.mrf.mxu0
        %v2062 = vadd.f32 0.0, %v2061
        %v2063 = vpop.f32.mrf.mxu0
        %v2064 = vadd.f32 0.0, %v2063
        %2065 = vmatmul.bf16.gmra.mxu0 %v663
        %v2066 = vpop.f32.mrf.mxu0
        %v2067 = vadd.f32 0.0, %v2066
        %v2068 = vpop.f32.mrf.mxu0
        %v2069 = vadd.f32 0.0, %v2068
        %2070 = vdwg.mxu0
        %v2079 = vunpack.c.l.b16 %v1998
        %v2080 = vunpack.c.l.b16 %v1999
        %v2081 = vunpack.c.l.b16 %v2000
        %v2082 = vunpack.c.l.b16 %v2001
        %v2083 = vunpack.c.l.b16 %v2002
        %v2084 = vunpack.c.l.b16 %v2003
        %v2085 = vunpack.c.l.b16 %v2004
        %v2086 = vunpack.c.l.b16 %v2005
        %v2087 = vpack.c.b16 %v2080, %v2079
        %v2088 = vpack.c.b16 %v2082, %v2081
        %v2089 = vpack.c.b16 %v2084, %v2083
        %v2090 = vpack.c.b16 %v2086, %v2085
        %v2096 = vsel %vm599, %v1995, 0
        %v2099 = vsel %vm599, %v1996, 0
        %v2102 = vsel %vm599, %v1997, 0
        %2104 = vmatpush.bf16.msra.mxu0 0
        %2105 = vmatpush.bf16.msra.mxu0 0
        %2106 = vmatpush.bf16.msra.mxu0 0
        %2107 = vmatpush.bf16.msra.mxu0 0
        %2108 = vmatpush.bf16.msra.mxu0 %v2090
        %2109 = vmatpush.bf16.msra.mxu0 %v2089
        %2110 = vmatpush.bf16.msra.mxu0 %v2088
        %2111 = vmatpush.bf16.msra.mxu0 %v2087
        %2112 = vmatmul.bf16.gmra.mxu0 %v2096
        %v2113 = vpop.f32.mrf.mxu0
        %v2114 = vadd.f32 %v2057, %v2113
        %v2115 = vpop.f32.mrf.mxu0
        %v2116 = vadd.f32 %v2059, %v2115
        %2117 = vmatmul.bf16.gmra.mxu0 %v2099
        %v2118 = vpop.f32.mrf.mxu0
        %v2119 = vadd.f32 %v2062, %v2118
        %v2120 = vpop.f32.mrf.mxu0
        %v2121 = vadd.f32 %v2064, %v2120
        %2122 = vmatmul.bf16.gmra.mxu0 %v2102
        %v2123 = vpop.f32.mrf.mxu0
        %v2124 = vadd.f32 %v2067, %v2123
        %v2125 = vpop.f32.mrf.mxu0
        %v2126 = vadd.f32 %v2069, %v2125
        %2127 = vdwg.mxu0
        %v2128 = vpack.c.bf16 %v1990, %v1989
        %v2129 = vpack.c.bf16 %v1992, %v1991
        %v2130 = vpack.c.bf16 %v1994, %v1993
        %s2131 = scalar_lea.vmem %s8, 64
        %v2132 = vld [vmem:[%s2131] sm:$0xf]
        %v2133 = vld [vmem:[%s2131 + $0x4] sm:$0xf]
        %v2134 = vld [vmem:[%s2131 + $0x8] sm:$0xf]
        %v2135 = vld [vmem:[%s2131 + $0xc] sm:$0xf]
        %v2136 = vld [vmem:[%s2131 + $0x10] sm:$0xf]
        %v2137 = vld [vmem:[%s2131 + $0x14] sm:$0xf]
        %v2138 = vld [vmem:[%s2131 + $0x18] sm:$0xf]
        %v2139 = vld [vmem:[%s2131 + $0x1c] sm:$0xf]
        %v2148 = vunpack.c.l.b16 %v2132
        %v2149 = vunpack.c.l.b16 %v2133
        %v2150 = vunpack.c.l.b16 %v2134
        %v2151 = vunpack.c.l.b16 %v2135
        %v2152 = vunpack.c.l.b16 %v2136
        %v2153 = vunpack.c.l.b16 %v2137
        %v2154 = vunpack.c.l.b16 %v2138
        %v2155 = vunpack.c.l.b16 %v2139
        %v2156 = vpack.c.b16 %v2149, %v2148
        %v2157 = vpack.c.b16 %v2151, %v2150
        %v2158 = vpack.c.b16 %v2153, %v2152
        %v2159 = vpack.c.b16 %v2155, %v2154
        %v2165 = vsel %vm599, %v2128, 0
        %v2168 = vsel %vm599, %v2129, 0
        %v2171 = vsel %vm599, %v2130, 0
        %2173 = vmatpush.bf16.msra.mxu0 0
        %2174 = vmatpush.bf16.msra.mxu0 0
        %2175 = vmatpush.bf16.msra.mxu0 0
        %2176 = vmatpush.bf16.msra.mxu0 0
        %2177 = vmatpush.bf16.msra.mxu0 %v2159
        %2178 = vmatpush.bf16.msra.mxu0 %v2158
        %2179 = vmatpush.bf16.msra.mxu0 %v2157
        %2180 = vmatpush.bf16.msra.mxu0 %v2156
        %2181 = vmatmul.bf16.gmra.mxu0 %v2165
        %v2182 = vpop.f32.mrf.mxu0
        %v2183 = vadd.f32 0.0, %v2182
        %v2184 = vpop.f32.mrf.mxu0
        %v2185 = vadd.f32 0.0, %v2184
        %2186 = vmatmul.bf16.gmra.mxu0 %v2168
        %v2187 = vpop.f32.mrf.mxu0
        %v2188 = vadd.f32 0.0, %v2187
        %v2189 = vpop.f32.mrf.mxu0
        %v2190 = vadd.f32 0.0, %v2189
        %2191 = vmatmul.bf16.gmra.mxu0 %v2171
        %v2192 = vpop.f32.mrf.mxu0
        %v2193 = vadd.f32 0.0, %v2192
        %v2194 = vpop.f32.mrf.mxu0
        %v2195 = vadd.f32 0.0, %v2194
        %2196 = vdwg.mxu0
        %v2197 = vadd.f32 %v2114, %v2183
        %v2198 = vadd.f32 %v2116, %v2185
        %v2199 = vadd.f32 %v2119, %v2188
        %v2200 = vadd.f32 %v2121, %v2190
        %v2201 = vadd.f32 %v2124, %v2193
        %v2202 = vadd.f32 %v2126, %v2195
        %v2203 = vld [vmem:[%s9] sm:$0x1]
        %v2205 = vperm.slane %v2203, 0
        %v2207 = vadd.f32 %v2197, %v2205
        %v2208 = vadd.f32 %v2198, %v2205
        %v2209 = vadd.f32 %v2199, %v2205
        %v2210 = vadd.f32 %v2200, %v2205
        %v2211 = vadd.f32 %v2201, %v2205
        %v2212 = vadd.f32 %v2202, %v2205
        %v2213 = vsel %vm599, %v2207, 0.0
        %v2214 = vsel %vm599, %v2208, 0.0
        %v2215 = vadd.f32 %v2213, %v2214
        %v2216 = vsel %vm599, %v2209, 0.0
        %v2217 = vadd.f32 %v2215, %v2216
        %v2218 = vsel %vm599, %v2210, 0.0
        %v2219 = vadd.f32 %v2217, %v2218
        %v2220 = vsel %vm599, %v2211, 0.0
        %v2221 = vadd.f32 %v2219, %v2220
        %v2222 = vsel %vm599, %v2212, 0.0
        %v2223 = vadd.f32 %v2221, %v2222
        %v2224 = vrot.slane %v2223, 4
        %v2225 = vadd.f32 %v2223, %v2224
        %v2226 = vrot.slane %v2225, 2
        %v2227 = vadd.f32 %v2225, %v2226
        %v2228 = vrot.slane %v2227, 1
        %v2229 = vadd.f32 %v2227, %v2228
        %v2230 = vlaneseq
        %v2231 = vand.u32 %v2230, 127
        %vm2232 = vcmp.lt.s32.totalorder %v2231, 0
        %v2233 = vsub.s32 0, %v2231
        %v2234 = vsel %vm2232, %v2233, %v2231
        %v2235 = vshrl.u32 %v2234, 1
        %v2236 = vand.u32 %v2234, 1
        %v2237 = vsub.s32 0, %v2236
        %v2238 = vsel %vm2232, %v2237, %v2236
        %vm2239 = vcmp.ne.s32.totalorder %v2238, 0
        %vm2240 = vcmp.lt.s32.totalorder %v2238, 0
        %vm2241 = vmand %vm2240, %vm2239
        %v2242 = vadd.s32 %v2238, 2
        %v2243 = vsel %vm2241, %v2242, %v2238
        %vm2244 = vcmask 1048064
        %2245 = vrot.lane.b32.xlu0 %v2229, 64
        %v2246 = vpop.permute.xlu0 %2245
        %v2247 = vsel %vm2244, %v2246, %v2229
        %2248 = vrot.lane.b32.xlu0 %v2247, 64
        %v2249 = vpop.permute.xlu0 %2248
        %v2250 = vsel %vm2244, %v2249, %v2229
        %vm2251 = vcmp.lt.s32.totalorder %v2243, 1
        %2253 = vrot.lane.b32.xlu0 %v2250, 127
        %v2254 = vpop.permute.xlu0 %2253
        %2256 = vrot.lane.b32.xlu0 %v2250, 65
        %v2257 = vpop.permute.xlu0 %2256
        %v2259 = vsel %vm2251, %v2254, %v2257
        %v2260 = vadd.f32 %v2229, %v2259
        %v2261 = vmul.f32 %v2260, 0.010416667
        %v2262 = vperm.slane %v2261, 0
        %v2263 = vsub.f32 %v2207, %v2262
        %v2264 = vsub.f32 %v2208, %v2262
        %v2265 = vsub.f32 %v2209, %v2262
        %v2266 = vsub.f32 %v2210, %v2262
        %v2267 = vsub.f32 %v2211, %v2262
        %v2268 = vsub.f32 %v2212, %v2262
        %v2269 = vmul.f32 %v2263, %v2263
        %v2270 = vmul.f32 %v2264, %v2264
        %v2271 = vmul.f32 %v2265, %v2265
        %v2272 = vmul.f32 %v2266, %v2266
        %v2273 = vmul.f32 %v2267, %v2267
        %v2274 = vmul.f32 %v2268, %v2268
        %v2275 = vsel %vm599, %v2269, 0.0
        %v2276 = vsel %vm599, %v2270, 0.0
        %v2277 = vadd.f32 %v2275, %v2276
        %v2278 = vsel %vm599, %v2271, 0.0
        %v2279 = vadd.f32 %v2277, %v2278
        %v2280 = vsel %vm599, %v2272, 0.0
        %v2281 = vadd.f32 %v2279, %v2280
        %v2282 = vsel %vm599, %v2273, 0.0
        %v2283 = vadd.f32 %v2281, %v2282
        %v2284 = vsel %vm599, %v2274, 0.0
        %v2285 = vadd.f32 %v2283, %v2284
        %v2286 = vrot.slane %v2285, 4
        %v2287 = vadd.f32 %v2285, %v2286
        %v2288 = vrot.slane %v2287, 2
        %v2289 = vadd.f32 %v2287, %v2288
        %v2290 = vrot.slane %v2289, 1
        %v2291 = vadd.f32 %v2289, %v2290
        %2292 = vrot.lane.b32.xlu0 %v2291, 64
        %v2293 = vpop.permute.xlu0 %2292
        %v2294 = vsel %vm2244, %v2293, %v2291
        %2295 = vrot.lane.b32.xlu0 %v2294, 64
        %v2296 = vpop.permute.xlu0 %2295
        %v2297 = vsel %vm2244, %v2296, %v2291
        %2299 = vrot.lane.b32.xlu0 %v2297, 127
        %v2300 = vpop.permute.xlu0 %2299
        %2302 = vrot.lane.b32.xlu0 %v2297, 65
        %v2303 = vpop.permute.xlu0 %2302
        %v2305 = vsel %vm2251, %v2300, %v2303
        %v2306 = vadd.f32 %v2291, %v2305
        %v2307 = vmul.f32 %v2306, 0.010416667
        %v2308 = vadd.f32 %v2307, 1e-05
        %v2309 = vrsqrt.pop %v2308
        %v2310 = vmul.f32 %v2309, %v2308
        %v2311 = vmul.f32 %v2310, %v2309
        %v2312 = vmul.f32 0.5, %v2311
        %v2313 = vsub.f32 1.5, %v2312
        %v2314 = vmul.f32 %v2309, %v2313
        %vm2315 = vweird.f32 %v2308
        %vm2316 = vweird.f32 %v2309
        %vm2317 = vmor %vm2315, %vm2316
        %v2318 = vsel %vm2317, %v2309, %v2314
        %v2319 = vperm.slane %v2318, 0
        %v2320 = vmul.f32 %v2263, %v2319
        %v2321 = vmul.f32 %v2264, %v2319
        %v2322 = vmul.f32 %v2265, %v2319
        %v2323 = vmul.f32 %v2266, %v2319
        %v2324 = vmul.f32 %v2267, %v2319
        %v2325 = vmul.f32 %v2268, %v2319
        %v2326 = vld [vmem:[%s10] sm:$0x1]
        %v2328 = vperm.slane %v2326, 0
        %v2330 = vmul.f32 %v2320, %v2328
        %v2331 = vmul.f32 %v2321, %v2328
        %v2332 = vmul.f32 %v2322, %v2328
        %v2333 = vmul.f32 %v2323, %v2328
        %v2334 = vmul.f32 %v2324, %v2328
        %v2335 = vmul.f32 %v2325, %v2328
        %v2336 = vld [vmem:[%s11] sm:$0x1]
        %v2338 = vperm.slane %v2336, 0
        %v2340 = vadd.f32 %v2330, %v2338
        %v2341 = vadd.f32 %v2331, %v2338
        %v2342 = vadd.f32 %v2332, %v2338
        %v2343 = vadd.f32 %v2333, %v2338
        %v2344 = vadd.f32 %v2334, %v2338
        %v2345 = vadd.f32 %v2335, %v2338
        %v2346 = vpack.c.bf16 %v2341, %v2340
        %v2347 = vpack.c.bf16 %v2343, %v2342
        %v2348 = vpack.c.bf16 %v2345, %v2344
        %v2349 = vld [vmem:[%s12] sm:$0xff]
        %v2350 = vld [vmem:[%s12 + $0x8] sm:$0xff]
        %v2351 = vld [vmem:[%s12 + $0x10] sm:$0xff]
        %v2352 = vld [vmem:[%s12 + $0x18] sm:$0xff]
        %v2353 = vld [vmem:[%s12 + $0x20] sm:$0xff]
        %v2354 = vld [vmem:[%s12 + $0x28] sm:$0xff]
        %v2355 = vld [vmem:[%s12 + $0x30] sm:$0xff]
        %v2356 = vld [vmem:[%s12 + $0x38] sm:$0xff]
        %v2357 = vld [vmem:[%s13] sm:$0x3]
        %v2359 = vperm.slane %v2357, 0
        %v2360 = vperm.slane %v2357, 1
        %v2371 = vunpack.c.l.b16 %v2349
        %v2372 = vunpack.c.h.b16 %v2349
        %v2373 = vunpack.c.l.b16 %v2350
        %v2374 = vunpack.c.h.b16 %v2350
        %v2375 = vunpack.c.l.b16 %v2351
        %v2376 = vunpack.c.h.b16 %v2351
        %v2377 = vunpack.c.l.b16 %v2352
        %v2378 = vunpack.c.h.b16 %v2352
        %v2379 = vunpack.c.l.b16 %v2353
        %v2380 = vunpack.c.h.b16 %v2353
        %v2381 = vunpack.c.l.b16 %v2354
        %v2382 = vunpack.c.h.b16 %v2354
        %v2383 = vunpack.c.l.b16 %v2355
        %v2384 = vunpack.c.h.b16 %v2355
        %v2385 = vunpack.c.l.b16 %v2356
        %v2386 = vunpack.c.h.b16 %v2356
        %v2387 = vpack.c.b16 %v2373, %v2371
        %v2388 = vpack.c.b16 %v2374, %v2372
        %v2389 = vpack.c.b16 %v2377, %v2375
        %v2390 = vpack.c.b16 %v2378, %v2376
        %v2391 = vpack.c.b16 %v2381, %v2379
        %v2392 = vpack.c.b16 %v2382, %v2380
        %v2393 = vpack.c.b16 %v2385, %v2383
        %v2394 = vpack.c.b16 %v2386, %v2384
        %v2404 = vsel %vm599, %v2346, 0
        %v2407 = vsel %vm599, %v2347, 0
        %v2410 = vsel %vm599, %v2348, 0
        %2412 = vmatpush.bf16.msra.mxu0 0
        %2413 = vmatpush.bf16.msra.mxu0 0
        %2414 = vmatpush.bf16.msra.mxu0 0
        %2415 = vmatpush.bf16.msra.mxu0 0
        %2416 = vmatpush.bf16.msra.mxu0 %v2393
        %2417 = vmatpush.bf16.msra.mxu0 %v2391
        %2418 = vmatpush.bf16.msra.mxu0 %v2389
        %2419 = vmatpush.bf16.msra.mxu0 %v2387
        %2420 = vmatmul.bf16.gmra.mxu0 %v2404
        %v2421 = vpop.f32.mrf.mxu0
        %v2422 = vadd.f32 %v2359, %v2421
        %v2423 = vpop.f32.mrf.mxu0
        %v2424 = vadd.f32 %v2359, %v2423
        %2425 = vmatmul.bf16.gmra.mxu0 %v2407
        %v2426 = vpop.f32.mrf.mxu0
        %v2427 = vadd.f32 %v2359, %v2426
        %v2428 = vpop.f32.mrf.mxu0
        %v2429 = vadd.f32 %v2359, %v2428
        %2430 = vmatmul.bf16.gmra.mxu0 %v2410
        %v2431 = vpop.f32.mrf.mxu0
        %v2432 = vadd.f32 %v2359, %v2431
        %v2433 = vpop.f32.mrf.mxu0
        %v2434 = vadd.f32 %v2359, %v2433
        %2435 = vdwg.mxu0
        %2436 = vmatpush.bf16.msra.mxu0 0
        %2437 = vmatpush.bf16.msra.mxu0 0
        %2438 = vmatpush.bf16.msra.mxu0 0
        %2439 = vmatpush.bf16.msra.mxu0 0
        %2440 = vmatpush.bf16.msra.mxu0 %v2394
        %2441 = vmatpush.bf16.msra.mxu0 %v2392
        %2442 = vmatpush.bf16.msra.mxu0 %v2390
        %2443 = vmatpush.bf16.msra.mxu0 %v2388
        %2444 = vmatmul.bf16.gmra.mxu0 %v2404
        %v2445 = vpop.f32.mrf.mxu0
        %v2446 = vadd.f32 %v2360, %v2445
        %v2447 = vpop.f32.mrf.mxu0
        %v2448 = vadd.f32 %v2360, %v2447
        %2449 = vmatmul.bf16.gmra.mxu0 %v2407
        %v2450 = vpop.f32.mrf.mxu0
        %v2451 = vadd.f32 %v2360, %v2450
        %v2452 = vpop.f32.mrf.mxu0
        %v2453 = vadd.f32 %v2360, %v2452
        %2454 = vmatmul.bf16.gmra.mxu0 %v2410
        %v2455 = vpop.f32.mrf.mxu0
        %v2456 = vadd.f32 %v2360, %v2455
        %v2457 = vpop.f32.mrf.mxu0
        %v2458 = vadd.f32 %v2360, %v2457
        %2459 = vdwg.mxu0
        %v2460 = vpack.c.bf16 %v2446, %v2446
        %v2461 = vpack.c.bf16 %v2448, %v2448
        %v2462 = vpack.c.bf16 %v2451, %v2451
        %v2463 = vpack.c.bf16 %v2453, %v2453
        %v2464 = vpack.c.bf16 %v2456, %v2456
        %v2465 = vpack.c.bf16 %v2458, %v2458
        %2472 = vrot.lane.b32.xlu0 %v2422, 64
        %v2473 = vpop.permute.xlu0 %2472
        %2474 = vrot.lane.b32.xlu0 %v2424, 64
        %v2475 = vpop.permute.xlu0 %2474
        %2476 = vrot.lane.b32.xlu0 %v2427, 64
        %v2477 = vpop.permute.xlu0 %2476
        %2478 = vrot.lane.b32.xlu0 %v2429, 64
        %v2479 = vpop.permute.xlu0 %2478
        %2480 = vrot.lane.b32.xlu0 %v2432, 64
        %v2481 = vpop.permute.xlu0 %2480
        %2482 = vrot.lane.b32.xlu0 %v2434, 64
        %v2483 = vpop.permute.xlu0 %2482
        %v2484 = vsel %vm681, %v2422, 0
        %v2486 = vsel %vm681, %v2424, 0
        %v2488 = vsel %vm681, %v2427, 0
        %v2490 = vsel %vm681, %v2429, 0
        %v2492 = vsel %vm681, %v2432, 0
        %v2494 = vsel %vm681, %v2434, 0
        %v2496 = vsel %vm681, %v2473, 0
        %v2498 = vsel %vm681, %v2475, 0
        %v2500 = vsel %vm681, %v2477, 0
        %v2502 = vsel %vm681, %v2479, 0
        %v2504 = vsel %vm681, %v2481, 0
        %v2506 = vsel %vm681, %v2483, 0
        %2508 = vmatpush.xpose.msra.mxu0 0.0
        %2509 = vmatpush.xpose.msra.mxu0 0.0
        %2510 = vmatpush.xpose.msra.mxu0 0.0
        %2511 = vmatpush.xpose.msra.mxu0 0.0
        %2512 = vmatpush.xpose.msra.mxu0 0.0
        %2513 = vmatpush.xpose.msra.mxu0 0.0
        %2514 = vmatpush.xpose.msra.mxu0 0.0
        %2515 = vmatpush.xpose.msra.mxu0 0.0
        %2516 = vmatpush.xpose.msra.mxu0 0.0
        %2517 = vmatpush.xpose.msra.mxu0 0.0
        %2518 = vmatpush.xpose.msra.mxu0 %v2506
        %2519 = vmatpush.xpose.msra.mxu0 %v2504
        %2520 = vmatpush.xpose.msra.mxu0 %v2502
        %2521 = vmatpush.xpose.msra.mxu0 %v2500
        %2522 = vmatpush.xpose.msra.mxu0 %v2498
        %2523 = vmatpush.xpose.msra.mxu0 %v2496
        %2524 = vmatmul.f32.gmra.mxu0 %v2484
        %v2525 = vpop.f32.mrf.mxu0
        %v2526 = vadd.f32 0.0, %v2525
        %2527 = vmatmul.f32.gmra.mxu0 %v2486
        %v2528 = vpop.f32.mrf.mxu0
        %v2529 = vadd.f32 0.0, %v2528
        %2530 = vmatmul.f32.gmra.mxu0 %v2488
        %v2531 = vpop.f32.mrf.mxu0
        %v2532 = vadd.f32 0.0, %v2531
        %2533 = vmatmul.f32.gmra.mxu0 %v2490
        %v2534 = vpop.f32.mrf.mxu0
        %v2535 = vadd.f32 0.0, %v2534
        %2536 = vmatmul.f32.gmra.mxu0 %v2492
        %v2537 = vpop.f32.mrf.mxu0
        %v2538 = vadd.f32 0.0, %v2537
        %2539 = vmatmul.f32.gmra.mxu0 %v2494
        %v2540 = vpop.f32.mrf.mxu0
        %v2541 = vadd.f32 0.0, %v2540
        %2542 = vdwg.mxu0
        %v2543 = vmul.f32 %v2526, 0.35355338
        %v2544 = vmul.f32 %v2529, 0.35355338
        %v2545 = vmul.f32 %v2532, 0.35355338
        %v2546 = vmul.f32 %v2535, 0.35355338
        %v2547 = vmul.f32 %v2538, 0.35355338
        %v2548 = vmul.f32 %v2541, 0.35355338
        %v2549 = vld [vmem:[%s16] sm:$0xf]
        %v2550 = vld [vmem:[%s16 + $0x4] sm:$0xf]
        %v2551 = vld [vmem:[%s16 + $0x8] sm:$0xf]
        %v2552 = vld [vmem:[%s16 + $0xc] sm:$0xf]
        %v2553 = vld [vmem:[%s16 + $0x10] sm:$0xf]
        %v2554 = vld [vmem:[%s16 + $0x14] sm:$0xf]
        %v2555 = vunpack.c.l.bf16 %v2549
        %v2556 = vunpack.c.l.bf16 %v2550
        %v2557 = vunpack.c.l.bf16 %v2551
        %v2558 = vunpack.c.l.bf16 %v2552
        %v2559 = vunpack.c.l.bf16 %v2553
        %v2560 = vunpack.c.l.bf16 %v2554
        %v2561 = vadd.f32 %v2543, %v2555
        %v2562 = vadd.f32 %v2544, %v2556
        %v2563 = vadd.f32 %v2545, %v2557
        %v2564 = vadd.f32 %v2546, %v2558
        %v2565 = vadd.f32 %v2547, %v2559
        %v2566 = vadd.f32 %v2548, %v2560
        %v2567 = vsel %vm1865, %v2561, -inf
        %2568 = vmax.xlane.f32.xlu0 %v2567
        %v2569 = vpop.xlane.xlu0 %2568
        %v2570 = vsel %vm1865, %v2562, -inf
        %2571 = vmax.xlane.f32.xlu0 %v2570
        %v2572 = vpop.xlane.xlu0 %2571
        %v2573 = vsel %vm1865, %v2563, -inf
        %2574 = vmax.xlane.f32.xlu0 %v2573
        %v2575 = vpop.xlane.xlu0 %2574
        %v2576 = vsel %vm1865, %v2564, -inf
        %2577 = vmax.xlane.f32.xlu0 %v2576
        %v2578 = vpop.xlane.xlu0 %2577
        %v2579 = vsel %vm1865, %v2565, -inf
        %2580 = vmax.xlane.f32.xlu0 %v2579
        %v2581 = vpop.xlane.xlu0 %2580
        %v2582 = vsel %vm1865, %v2566, -inf
        %2583 = vmax.xlane.f32.xlu0 %v2582
        %v2584 = vpop.xlane.xlu0 %2583
        %v2585 = vsub.f32 %v2561, %v2569
        %v2586 = vsub.f32 %v2562, %v2572
        %v2587 = vsub.f32 %v2563, %v2575
        %v2588 = vsub.f32 %v2564, %v2578
        %v2589 = vsub.f32 %v2565, %v2581
        %v2590 = vsub.f32 %v2566, %v2584
        %v2591 = vmul.f32 %v2585, 1.442695
        %v2592 = vpow.pop %v2591
        %v2593 = vmul.f32 %v2586, 1.442695
        %v2594 = vpow.pop %v2593
        %v2595 = vmul.f32 %v2587, 1.442695
        %v2596 = vpow.pop %v2595
        %v2597 = vmul.f32 %v2588, 1.442695
        %v2598 = vpow.pop %v2597
        %v2599 = vmul.f32 %v2589, 1.442695
        %v2600 = vpow.pop %v2599
        %v2601 = vmul.f32 %v2590, 1.442695
        %v2602 = vpow.pop %v2601
        %v2603 = vsel %vm1865, %v2592, 0.0
        %2604 = vadd.xlane.f32.xlu0 %v2603
        %v2605 = vpop.xlane.xlu0 %2604
        %v2606 = vsel %vm1865, %v2594, 0.0
        %2607 = vadd.xlane.f32.xlu0 %v2606
        %v2608 = vpop.xlane.xlu0 %2607
        %v2609 = vsel %vm1865, %v2596, 0.0
        %2610 = vadd.xlane.f32.xlu0 %v2609
        %v2611 = vpop.xlane.xlu0 %2610
        %v2612 = vsel %vm1865, %v2598, 0.0
        %2613 = vadd.xlane.f32.xlu0 %v2612
        %v2614 = vpop.xlane.xlu0 %2613
        %v2615 = vsel %vm1865, %v2600, 0.0
        %2616 = vadd.xlane.f32.xlu0 %v2615
        %v2617 = vpop.xlane.xlu0 %2616
        %v2618 = vsel %vm1865, %v2602, 0.0
        %2619 = vadd.xlane.f32.xlu0 %v2618
        %v2620 = vpop.xlane.xlu0 %2619
        %v2621 = vrcp.pop %v2605
        %v2622 = vrcp.pop %v2608
        %v2623 = vrcp.pop %v2611
        %v2624 = vrcp.pop %v2614
        %v2625 = vrcp.pop %v2617
        %v2626 = vrcp.pop %v2620
        %v2627 = vmul.f32 %v2592, %v2621
        %v2628 = vmul.f32 %v2594, %v2622
        %v2629 = vmul.f32 %v2596, %v2623
        %v2630 = vmul.f32 %v2598, %v2624
        %v2631 = vmul.f32 %v2600, %v2625
        %v2632 = vmul.f32 %v2602, %v2626
        %v2633 = vpack.c.bf16 %v2628, %v2627
        %v2634 = vpack.c.bf16 %v2630, %v2629
        %v2635 = vpack.c.bf16 %v2632, %v2631
        %v2642 = vunpack.c.l.b16 %v2460
        %v2643 = vunpack.c.l.b16 %v2461
        %v2644 = vunpack.c.l.b16 %v2462
        %v2645 = vunpack.c.l.b16 %v2463
        %v2646 = vunpack.c.l.b16 %v2464
        %v2647 = vunpack.c.l.b16 %v2465
        %v2648 = vpack.c.b16 %v2643, %v2642
        %v2649 = vpack.c.b16 %v2645, %v2644
        %v2650 = vpack.c.b16 %v2647, %v2646
        %v2655 = vsel %vm1865, %v2633, 0
        %v2658 = vsel %vm1865, %v2634, 0
        %v2661 = vsel %vm1865, %v2635, 0
        %2663 = vmatpush.bf16.msra.mxu0 0
        %2664 = vmatpush.bf16.msra.mxu0 0
        %2665 = vmatpush.bf16.msra.mxu0 0
        %2666 = vmatpush.bf16.msra.mxu0 0
        %2667 = vmatpush.bf16.msra.mxu0 0
        %2668 = vmatpush.bf16.msra.mxu0 %v2650
        %2669 = vmatpush.bf16.msra.mxu0 %v2649
        %2670 = vmatpush.bf16.msra.mxu0 %v2648
        %2671 = vmatmul.bf16.gmra.mxu0 %v2655
        %v2672 = vpop.f32.mrf.mxu0
        %v2673 = vadd.f32 0.0, %v2672
        %v2674 = vpop.f32.mrf.mxu0
        %v2675 = vadd.f32 0.0, %v2674
        %2676 = vmatmul.bf16.gmra.mxu0 %v2658
        %v2677 = vpop.f32.mrf.mxu0
        %v2678 = vadd.f32 0.0, %v2677
        %v2679 = vpop.f32.mrf.mxu0
        %v2680 = vadd.f32 0.0, %v2679
        %2681 = vmatmul.bf16.gmra.mxu0 %v2661
        %v2682 = vpop.f32.mrf.mxu0
        %v2683 = vadd.f32 0.0, %v2682
        %v2684 = vpop.f32.mrf.mxu0
        %v2685 = vadd.f32 0.0, %v2684
        %2686 = vdwg.mxu0
        %2687 = vrot.lane.b32.xlu0 %v2422, 120
        %v2688 = vpop.permute.xlu0 %2687
        %2689 = vrot.lane.b32.xlu0 %v2424, 120
        %v2690 = vpop.permute.xlu0 %2689
        %2691 = vrot.lane.b32.xlu0 %v2427, 120
        %v2692 = vpop.permute.xlu0 %2691
        %2693 = vrot.lane.b32.xlu0 %v2429, 120
        %v2694 = vpop.permute.xlu0 %2693
        %2695 = vrot.lane.b32.xlu0 %v2432, 120
        %v2696 = vpop.permute.xlu0 %2695
        %2697 = vrot.lane.b32.xlu0 %v2434, 120
        %v2698 = vpop.permute.xlu0 %2697
        %2699 = vrot.lane.b32.xlu0 %v2422, 56
        %v2700 = vpop.permute.xlu0 %2699
        %2701 = vrot.lane.b32.xlu0 %v2424, 56
        %v2702 = vpop.permute.xlu0 %2701
        %2703 = vrot.lane.b32.xlu0 %v2427, 56
        %v2704 = vpop.permute.xlu0 %2703
        %2705 = vrot.lane.b32.xlu0 %v2429, 56
        %v2706 = vpop.permute.xlu0 %2705
        %2707 = vrot.lane.b32.xlu0 %v2432, 56
        %v2708 = vpop.permute.xlu0 %2707
        %2709 = vrot.lane.b32.xlu0 %v2434, 56
        %v2710 = vpop.permute.xlu0 %2709
        %v2711 = vsel %vm681, %v2688, 0
        %v2713 = vsel %vm681, %v2690, 0
        %v2715 = vsel %vm681, %v2692, 0
        %v2717 = vsel %vm681, %v2694, 0
        %v2719 = vsel %vm681, %v2696, 0
        %v2721 = vsel %vm681, %v2698, 0
        %v2723 = vsel %vm681, %v2700, 0
        %v2725 = vsel %vm681, %v2702, 0
        %v2727 = vsel %vm681, %v2704, 0
        %v2729 = vsel %vm681, %v2706, 0
        %v2731 = vsel %vm681, %v2708, 0
        %v2733 = vsel %vm681, %v2710, 0
        %2735 = vmatpush.xpose.msra.mxu0 0.0
        %2736 = vmatpush.xpose.msra.mxu0 0.0
        %2737 = vmatpush.xpose.msra.mxu0 0.0
        %2738 = vmatpush.xpose.msra.mxu0 0.0
        %2739 = vmatpush.xpose.msra.mxu0 0.0
        %2740 = vmatpush.xpose.msra.mxu0 0.0
        %2741 = vmatpush.xpose.msra.mxu0 0.0
        %2742 = vmatpush.xpose.msra.mxu0 0.0
        %2743 = vmatpush.xpose.msra.mxu0 0.0
        %2744 = vmatpush.xpose.msra.mxu0 0.0
        %2745 = vmatpush.xpose.msra.mxu0 %v2733
        %2746 = vmatpush.xpose.msra.mxu0 %v2731
        %2747 = vmatpush.xpose.msra.mxu0 %v2729
        %2748 = vmatpush.xpose.msra.mxu0 %v2727
        %2749 = vmatpush.xpose.msra.mxu0 %v2725
        %2750 = vmatpush.xpose.msra.mxu0 %v2723
        %2751 = vmatmul.f32.gmra.mxu0 %v2711
        %v2752 = vpop.f32.mrf.mxu0
        %v2753 = vadd.f32 0.0, %v2752
        %2754 = vmatmul.f32.gmra.mxu0 %v2713
        %v2755 = vpop.f32.mrf.mxu0
        %v2756 = vadd.f32 0.0, %v2755
        %2757 = vmatmul.f32.gmra.mxu0 %v2715
        %v2758 = vpop.f32.mrf.mxu0
        %v2759 = vadd.f32 0.0, %v2758
        %2760 = vmatmul.f32.gmra.mxu0 %v2717
        %v2761 = vpop.f32.mrf.mxu0
        %v2762 = vadd.f32 0.0, %v2761
        %2763 = vmatmul.f32.gmra.mxu0 %v2719
        %v2764 = vpop.f32.mrf.mxu0
        %v2765 = vadd.f32 0.0, %v2764
        %2766 = vmatmul.f32.gmra.mxu0 %v2721
        %v2767 = vpop.f32.mrf.mxu0
        %v2768 = vadd.f32 0.0, %v2767
        %2769 = vdwg.mxu0
        %v2770 = vmul.f32 %v2753, 0.35355338
        %v2771 = vmul.f32 %v2756, 0.35355338
        %v2772 = vmul.f32 %v2759, 0.35355338
        %v2773 = vmul.f32 %v2762, 0.35355338
        %v2774 = vmul.f32 %v2765, 0.35355338
        %v2775 = vmul.f32 %v2768, 0.35355338
        %s2776 = scalar_lea.vmem %s16, 24
        %v2777 = vld [vmem:[%s2776] sm:$0xf]
        %v2778 = vld [vmem:[%s2776 + $0x4] sm:$0xf]
        %v2779 = vld [vmem:[%s2776 + $0x8] sm:$0xf]
        %v2780 = vld [vmem:[%s2776 + $0xc] sm:$0xf]
        %v2781 = vld [vmem:[%s2776 + $0x10] sm:$0xf]
        %v2782 = vld [vmem:[%s2776 + $0x14] sm:$0xf]
        %v2783 = vunpack.c.l.bf16 %v2777
        %v2784 = vunpack.c.l.bf16 %v2778
        %v2785 = vunpack.c.l.bf16 %v2779
        %v2786 = vunpack.c.l.bf16 %v2780
        %v2787 = vunpack.c.l.bf16 %v2781
        %v2788 = vunpack.c.l.bf16 %v2782
        %v2789 = vadd.f32 %v2770, %v2783
        %v2790 = vadd.f32 %v2771, %v2784
        %v2791 = vadd.f32 %v2772, %v2785
        %v2792 = vadd.f32 %v2773, %v2786
        %v2793 = vadd.f32 %v2774, %v2787
        %v2794 = vadd.f32 %v2775, %v2788
        %v2795 = vsel %vm1865, %v2789, -inf
        %2796 = vmax.xlane.f32.xlu0 %v2795
        %v2797 = vpop.xlane.xlu0 %2796
        %v2798 = vsel %vm1865, %v2790, -inf
        %2799 = vmax.xlane.f32.xlu0 %v2798
        %v2800 = vpop.xlane.xlu0 %2799
        %v2801 = vsel %vm1865, %v2791, -inf
        %2802 = vmax.xlane.f32.xlu0 %v2801
        %v2803 = vpop.xlane.xlu0 %2802
        %v2804 = vsel %vm1865, %v2792, -inf
        %2805 = vmax.xlane.f32.xlu0 %v2804
        %v2806 = vpop.xlane.xlu0 %2805
        %v2807 = vsel %vm1865, %v2793, -inf
        %2808 = vmax.xlane.f32.xlu0 %v2807
        %v2809 = vpop.xlane.xlu0 %2808
        %v2810 = vsel %vm1865, %v2794, -inf
        %2811 = vmax.xlane.f32.xlu0 %v2810
        %v2812 = vpop.xlane.xlu0 %2811
        %v2813 = vsub.f32 %v2789, %v2797
        %v2814 = vsub.f32 %v2790, %v2800
        %v2815 = vsub.f32 %v2791, %v2803
        %v2816 = vsub.f32 %v2792, %v2806
        %v2817 = vsub.f32 %v2793, %v2809
        %v2818 = vsub.f32 %v2794, %v2812
        %v2819 = vmul.f32 %v2813, 1.442695
        %v2820 = vpow.pop %v2819
        %v2821 = vmul.f32 %v2814, 1.442695
        %v2822 = vpow.pop %v2821
        %v2823 = vmul.f32 %v2815, 1.442695
        %v2824 = vpow.pop %v2823
        %v2825 = vmul.f32 %v2816, 1.442695
        %v2826 = vpow.pop %v2825
        %v2827 = vmul.f32 %v2817, 1.442695
        %v2828 = vpow.pop %v2827
        %v2829 = vmul.f32 %v2818, 1.442695
        %v2830 = vpow.pop %v2829
        %v2831 = vsel %vm1865, %v2820, 0.0
        %2832 = vadd.xlane.f32.xlu0 %v2831
        %v2833 = vpop.xlane.xlu0 %2832
        %v2834 = vsel %vm1865, %v2822, 0.0
        %2835 = vadd.xlane.f32.xlu0 %v2834
        %v2836 = vpop.xlane.xlu0 %2835
        %v2837 = vsel %vm1865, %v2824, 0.0
        %2838 = vadd.xlane.f32.xlu0 %v2837
        %v2839 = vpop.xlane.xlu0 %2838
        %v2840 = vsel %vm1865, %v2826, 0.0
        %2841 = vadd.xlane.f32.xlu0 %v2840
        %v2842 = vpop.xlane.xlu0 %2841
        %v2843 = vsel %vm1865, %v2828, 0.0
        %2844 = vadd.xlane.f32.xlu0 %v2843
        %v2845 = vpop.xlane.xlu0 %2844
        %v2846 = vsel %vm1865, %v2830, 0.0
        %2847 = vadd.xlane.f32.xlu0 %v2846
        %v2848 = vpop.xlane.xlu0 %2847
        %v2849 = vrcp.pop %v2833
        %v2850 = vrcp.pop %v2836
        %v2851 = vrcp.pop %v2839
        %v2852 = vrcp.pop %v2842
        %v2853 = vrcp.pop %v2845
        %v2854 = vrcp.pop %v2848
        %v2855 = vmul.f32 %v2820, %v2849
        %v2856 = vmul.f32 %v2822, %v2850
        %v2857 = vmul.f32 %v2824, %v2851
        %v2858 = vmul.f32 %v2826, %v2852
        %v2859 = vmul.f32 %v2828, %v2853
        %v2860 = vmul.f32 %v2830, %v2854
        %v2861 = vpack.c.bf16 %v2856, %v2855
        %v2862 = vpack.c.bf16 %v2858, %v2857
        %v2863 = vpack.c.bf16 %v2860, %v2859
        %2864 = vrot.lane.b32.xlu0 %v2648, 120
        %v2865 = vpop.permute.xlu0 %2864
        %2866 = vrot.lane.b32.xlu0 %v2649, 120
        %v2867 = vpop.permute.xlu0 %2866
        %2868 = vrot.lane.b32.xlu0 %v2650, 120
        %v2869 = vpop.permute.xlu0 %2868
        %v2874 = vsel %vm1865, %v2861, 0
        %v2877 = vsel %vm1865, %v2862, 0
        %v2880 = vsel %vm1865, %v2863, 0
        %2882 = vmatpush.bf16.msra.mxu0 0
        %2883 = vmatpush.bf16.msra.mxu0 0
        %2884 = vmatpush.bf16.msra.mxu0 0
        %2885 = vmatpush.bf16.msra.mxu0 0
        %2886 = vmatpush.bf16.msra.mxu0 0
        %2887 = vmatpush.bf16.msra.mxu0 %v2869
        %2888 = vmatpush.bf16.msra.mxu0 %v2867
        %2889 = vmatpush.bf16.msra.mxu0 %v2865
        %2890 = vmatmul.bf16.gmra.mxu0 %v2874
        %v2891 = vpop.f32.mrf.mxu0
        %v2892 = vadd.f32 0.0, %v2891
        %v2893 = vpop.f32.mrf.mxu0
        %v2894 = vadd.f32 0.0, %v2893
        %2895 = vmatmul.bf16.gmra.mxu0 %v2877
        %v2896 = vpop.f32.mrf.mxu0
        %v2897 = vadd.f32 0.0, %v2896
        %v2898 = vpop.f32.mrf.mxu0
        %v2899 = vadd.f32 0.0, %v2898
        %2900 = vmatmul.bf16.gmra.mxu0 %v2880
        %v2901 = vpop.f32.mrf.mxu0
        %v2902 = vadd.f32 0.0, %v2901
        %v2903 = vpop.f32.mrf.mxu0
        %v2904 = vadd.f32 0.0, %v2903
        %2905 = vdwg.mxu0
        %2906 = vrot.lane.b32.xlu0 %v2422, 112
        %v2907 = vpop.permute.xlu0 %2906
        %2908 = vrot.lane.b32.xlu0 %v2424, 112
        %v2909 = vpop.permute.xlu0 %2908
        %2910 = vrot.lane.b32.xlu0 %v2427, 112
        %v2911 = vpop.permute.xlu0 %2910
        %2912 = vrot.lane.b32.xlu0 %v2429, 112
        %v2913 = vpop.permute.xlu0 %2912
        %2914 = vrot.lane.b32.xlu0 %v2432, 112
        %v2915 = vpop.permute.xlu0 %2914
        %2916 = vrot.lane.b32.xlu0 %v2434, 112
        %v2917 = vpop.permute.xlu0 %2916
        %2918 = vrot.lane.b32.xlu0 %v2422, 48
        %v2919 = vpop.permute.xlu0 %2918
        %2920 = vrot.lane.b32.xlu0 %v2424, 48
        %v2921 = vpop.permute.xlu0 %2920
        %2922 = vrot.lane.b32.xlu0 %v2427, 48
        %v2923 = vpop.permute.xlu0 %2922
        %2924 = vrot.lane.b32.xlu0 %v2429, 48
        %v2925 = vpop.permute.xlu0 %2924
        %2926 = vrot.lane.b32.xlu0 %v2432, 48
        %v2927 = vpop.permute.xlu0 %2926
        %2928 = vrot.lane.b32.xlu0 %v2434, 48
        %v2929 = vpop.permute.xlu0 %2928
        %v2930 = vsel %vm681, %v2907, 0
        %v2932 = vsel %vm681, %v2909, 0
        %v2934 = vsel %vm681, %v2911, 0
        %v2936 = vsel %vm681, %v2913, 0
        %v2938 = vsel %vm681, %v2915, 0
        %v2940 = vsel %vm681, %v2917, 0
        %v2942 = vsel %vm681, %v2919, 0
        %v2944 = vsel %vm681, %v2921, 0
        %v2946 = vsel %vm681, %v2923, 0
        %v2948 = vsel %vm681, %v2925, 0
        %v2950 = vsel %vm681, %v2927, 0
        %v2952 = vsel %vm681, %v2929, 0
        %2954 = vmatpush.xpose.msra.mxu0 0.0
        %2955 = vmatpush.xpose.msra.mxu0 0.0
        %2956 = vmatpush.xpose.msra.mxu0 0.0
        %2957 = vmatpush.xpose.msra.mxu0 0.0
        %2958 = vmatpush.xpose.msra.mxu0 0.0
        %2959 = vmatpush.xpose.msra.mxu0 0.0
        %2960 = vmatpush.xpose.msra.mxu0 0.0
        %2961 = vmatpush.xpose.msra.mxu0 0.0
        %2962 = vmatpush.xpose.msra.mxu0 0.0
        %2963 = vmatpush.xpose.msra.mxu0 0.0
        %2964 = vmatpush.xpose.msra.mxu0 %v2952
        %2965 = vmatpush.xpose.msra.mxu0 %v2950
        %2966 = vmatpush.xpose.msra.mxu0 %v2948
        %2967 = vmatpush.xpose.msra.mxu0 %v2946
        %2968 = vmatpush.xpose.msra.mxu0 %v2944
        %2969 = vmatpush.xpose.msra.mxu0 %v2942
        %2970 = vmatmul.f32.gmra.mxu0 %v2930
        %v2971 = vpop.f32.mrf.mxu0
        %v2972 = vadd.f32 0.0, %v2971
        %2973 = vmatmul.f32.gmra.mxu0 %v2932
        %v2974 = vpop.f32.mrf.mxu0
        %v2975 = vadd.f32 0.0, %v2974
        %2976 = vmatmul.f32.gmra.mxu0 %v2934
        %v2977 = vpop.f32.mrf.mxu0
        %v2978 = vadd.f32 0.0, %v2977
        %2979 = vmatmul.f32.gmra.mxu0 %v2936
        %v2980 = vpop.f32.mrf.mxu0
        %v2981 = vadd.f32 0.0, %v2980
        %2982 = vmatmul.f32.gmra.mxu0 %v2938
        %v2983 = vpop.f32.mrf.mxu0
        %v2984 = vadd.f32 0.0, %v2983
        %2985 = vmatmul.f32.gmra.mxu0 %v2940
        %v2986 = vpop.f32.mrf.mxu0
        %v2987 = vadd.f32 0.0, %v2986
        %2988 = vdwg.mxu0
        %v2989 = vmul.f32 %v2972, 0.35355338
        %v2990 = vmul.f32 %v2975, 0.35355338
        %v2991 = vmul.f32 %v2978, 0.35355338
        %v2992 = vmul.f32 %v2981, 0.35355338
        %v2993 = vmul.f32 %v2984, 0.35355338
        %v2994 = vmul.f32 %v2987, 0.35355338
        %s2995 = scalar_lea.vmem %s16, 48
        %v2996 = vld [vmem:[%s2995] sm:$0xf]
        %v2997 = vld [vmem:[%s2995 + $0x4] sm:$0xf]
        %v2998 = vld [vmem:[%s2995 + $0x8] sm:$0xf]
        %v2999 = vld [vmem:[%s2995 + $0xc] sm:$0xf]
        %v3000 = vld [vmem:[%s2995 + $0x10] sm:$0xf]
        %v3001 = vld [vmem:[%s2995 + $0x14] sm:$0xf]
        %v3002 = vunpack.c.l.bf16 %v2996
        %v3003 = vunpack.c.l.bf16 %v2997
        %v3004 = vunpack.c.l.bf16 %v2998
        %v3005 = vunpack.c.l.bf16 %v2999
        %v3006 = vunpack.c.l.bf16 %v3000
        %v3007 = vunpack.c.l.bf16 %v3001
        %v3008 = vadd.f32 %v2989, %v3002
        %v3009 = vadd.f32 %v2990, %v3003
        %v3010 = vadd.f32 %v2991, %v3004
        %v3011 = vadd.f32 %v2992, %v3005
        %v3012 = vadd.f32 %v2993, %v3006
        %v3013 = vadd.f32 %v2994, %v3007
        %v3014 = vsel %vm1865, %v3008, -inf
        %3015 = vmax.xlane.f32.xlu0 %v3014
        %v3016 = vpop.xlane.xlu0 %3015
        %v3017 = vsel %vm1865, %v3009, -inf
        %3018 = vmax.xlane.f32.xlu0 %v3017
        %v3019 = vpop.xlane.xlu0 %3018
        %v3020 = vsel %vm1865, %v3010, -inf
        %3021 = vmax.xlane.f32.xlu0 %v3020
        %v3022 = vpop.xlane.xlu0 %3021
        %v3023 = vsel %vm1865, %v3011, -inf
        %3024 = vmax.xlane.f32.xlu0 %v3023
        %v3025 = vpop.xlane.xlu0 %3024
        %v3026 = vsel %vm1865, %v3012, -inf
        %3027 = vmax.xlane.f32.xlu0 %v3026
        %v3028 = vpop.xlane.xlu0 %3027
        %v3029 = vsel %vm1865, %v3013, -inf
        %3030 = vmax.xlane.f32.xlu0 %v3029
        %v3031 = vpop.xlane.xlu0 %3030
        %v3032 = vsub.f32 %v3008, %v3016
        %v3033 = vsub.f32 %v3009, %v3019
        %v3034 = vsub.f32 %v3010, %v3022
        %v3035 = vsub.f32 %v3011, %v3025
        %v3036 = vsub.f32 %v3012, %v3028
        %v3037 = vsub.f32 %v3013, %v3031
        %v3038 = vmul.f32 %v3032, 1.442695
        %v3039 = vpow.pop %v3038
        %v3040 = vmul.f32 %v3033, 1.442695
        %v3041 = vpow.pop %v3040
        %v3042 = vmul.f32 %v3034, 1.442695
        %v3043 = vpow.pop %v3042
        %v3044 = vmul.f32 %v3035, 1.442695
        %v3045 = vpow.pop %v3044
        %v3046 = vmul.f32 %v3036, 1.442695
        %v3047 = vpow.pop %v3046
        %v3048 = vmul.f32 %v3037, 1.442695
        %v3049 = vpow.pop %v3048
        %v3050 = vsel %vm1865, %v3039, 0.0
        %3051 = vadd.xlane.f32.xlu0 %v3050
        %v3052 = vpop.xlane.xlu0 %3051
        %v3053 = vsel %vm1865, %v3041, 0.0
        %3054 = vadd.xlane.f32.xlu0 %v3053
        %v3055 = vpop.xlane.xlu0 %3054
        %v3056 = vsel %vm1865, %v3043, 0.0
        %3057 = vadd.xlane.f32.xlu0 %v3056
        %v3058 = vpop.xlane.xlu0 %3057
        %v3059 = vsel %vm1865, %v3045, 0.0
        %3060 = vadd.xlane.f32.xlu0 %v3059
        %v3061 = vpop.xlane.xlu0 %3060
        %v3062 = vsel %vm1865, %v3047, 0.0
        %3063 = vadd.xlane.f32.xlu0 %v3062
        %v3064 = vpop.xlane.xlu0 %3063
        %v3065 = vsel %vm1865, %v3049, 0.0
        %3066 = vadd.xlane.f32.xlu0 %v3065
        %v3067 = vpop.xlane.xlu0 %3066
        %v3068 = vrcp.pop %v3052
        %v3069 = vrcp.pop %v3055
        %v3070 = vrcp.pop %v3058
        %v3071 = vrcp.pop %v3061
        %v3072 = vrcp.pop %v3064
        %v3073 = vrcp.pop %v3067
        %v3074 = vmul.f32 %v3039, %v3068
        %v3075 = vmul.f32 %v3041, %v3069
        %v3076 = vmul.f32 %v3043, %v3070
        %v3077 = vmul.f32 %v3045, %v3071
        %v3078 = vmul.f32 %v3047, %v3072
        %v3079 = vmul.f32 %v3049, %v3073
        %v3080 = vpack.c.bf16 %v3075, %v3074
        %v3081 = vpack.c.bf16 %v3077, %v3076
        %v3082 = vpack.c.bf16 %v3079, %v3078
        %3083 = vrot.lane.b32.xlu0 %v2648, 112
        %v3084 = vpop.permute.xlu0 %3083
        %3085 = vrot.lane.b32.xlu0 %v2649, 112
        %v3086 = vpop.permute.xlu0 %3085
        %3087 = vrot.lane.b32.xlu0 %v2650, 112
        %v3088 = vpop.permute.xlu0 %3087
        %v3093 = vsel %vm1865, %v3080, 0
        %v3096 = vsel %vm1865, %v3081, 0
        %v3099 = vsel %vm1865, %v3082, 0
        %3101 = vmatpush.bf16.msra.mxu0 0
        %3102 = vmatpush.bf16.msra.mxu0 0
        %3103 = vmatpush.bf16.msra.mxu0 0
        %3104 = vmatpush.bf16.msra.mxu0 0
        %3105 = vmatpush.bf16.msra.mxu0 0
        %3106 = vmatpush.bf16.msra.mxu0 %v3088
        %3107 = vmatpush.bf16.msra.mxu0 %v3086
        %3108 = vmatpush.bf16.msra.mxu0 %v3084
        %3109 = vmatmul.bf16.gmra.mxu0 %v3093
        %v3110 = vpop.f32.mrf.mxu0
        %v3111 = vadd.f32 0.0, %v3110
        %v3112 = vpop.f32.mrf.mxu0
        %v3113 = vadd.f32 0.0, %v3112
        %3114 = vmatmul.bf16.gmra.mxu0 %v3096
        %v3115 = vpop.f32.mrf.mxu0
        %v3116 = vadd.f32 0.0, %v3115
        %v3117 = vpop.f32.mrf.mxu0
        %v3118 = vadd.f32 0.0, %v3117
        %3119 = vmatmul.bf16.gmra.mxu0 %v3099
        %v3120 = vpop.f32.mrf.mxu0
        %v3121 = vadd.f32 0.0, %v3120
        %v3122 = vpop.f32.mrf.mxu0
        %v3123 = vadd.f32 0.0, %v3122
        %3124 = vdwg.mxu0
        %3125 = vrot.lane.b32.xlu0 %v2422, 104
        %v3126 = vpop.permute.xlu0 %3125
        %3127 = vrot.lane.b32.xlu0 %v2424, 104
        %v3128 = vpop.permute.xlu0 %3127
        %3129 = vrot.lane.b32.xlu0 %v2427, 104
        %v3130 = vpop.permute.xlu0 %3129
        %3131 = vrot.lane.b32.xlu0 %v2429, 104
        %v3132 = vpop.permute.xlu0 %3131
        %3133 = vrot.lane.b32.xlu0 %v2432, 104
        %v3134 = vpop.permute.xlu0 %3133
        %3135 = vrot.lane.b32.xlu0 %v2434, 104
        %v3136 = vpop.permute.xlu0 %3135
        %3137 = vrot.lane.b32.xlu0 %v2422, 40
        %v3138 = vpop.permute.xlu0 %3137
        %3139 = vrot.lane.b32.xlu0 %v2424, 40
        %v3140 = vpop.permute.xlu0 %3139
        %3141 = vrot.lane.b32.xlu0 %v2427, 40
        %v3142 = vpop.permute.xlu0 %3141
        %3143 = vrot.lane.b32.xlu0 %v2429, 40
        %v3144 = vpop.permute.xlu0 %3143
        %3145 = vrot.lane.b32.xlu0 %v2432, 40
        %v3146 = vpop.permute.xlu0 %3145
        %3147 = vrot.lane.b32.xlu0 %v2434, 40
        %v3148 = vpop.permute.xlu0 %3147
        %v3149 = vsel %vm681, %v3126, 0
        %v3151 = vsel %vm681, %v3128, 0
        %v3153 = vsel %vm681, %v3130, 0
        %v3155 = vsel %vm681, %v3132, 0
        %v3157 = vsel %vm681, %v3134, 0
        %v3159 = vsel %vm681, %v3136, 0
        %v3161 = vsel %vm681, %v3138, 0
        %v3163 = vsel %vm681, %v3140, 0
        %v3165 = vsel %vm681, %v3142, 0
        %v3167 = vsel %vm681, %v3144, 0
        %v3169 = vsel %vm681, %v3146, 0
        %v3171 = vsel %vm681, %v3148, 0
        %3173 = vmatpush.xpose.msra.mxu0 0.0
        %3174 = vmatpush.xpose.msra.mxu0 0.0
        %3175 = vmatpush.xpose.msra.mxu0 0.0
        %3176 = vmatpush.xpose.msra.mxu0 0.0
        %3177 = vmatpush.xpose.msra.mxu0 0.0
        %3178 = vmatpush.xpose.msra.mxu0 0.0
        %3179 = vmatpush.xpose.msra.mxu0 0.0
        %3180 = vmatpush.xpose.msra.mxu0 0.0
        %3181 = vmatpush.xpose.msra.mxu0 0.0
        %3182 = vmatpush.xpose.msra.mxu0 0.0
        %3183 = vmatpush.xpose.msra.mxu0 %v3171
        %3184 = vmatpush.xpose.msra.mxu0 %v3169
        %3185 = vmatpush.xpose.msra.mxu0 %v3167
        %3186 = vmatpush.xpose.msra.mxu0 %v3165
        %3187 = vmatpush.xpose.msra.mxu0 %v3163
        %3188 = vmatpush.xpose.msra.mxu0 %v3161
        %3189 = vmatmul.f32.gmra.mxu0 %v3149
        %v3190 = vpop.f32.mrf.mxu0
        %v3191 = vadd.f32 0.0, %v3190
        %3192 = vmatmul.f32.gmra.mxu0 %v3151
        %v3193 = vpop.f32.mrf.mxu0
        %v3194 = vadd.f32 0.0, %v3193
        %3195 = vmatmul.f32.gmra.mxu0 %v3153
        %v3196 = vpop.f32.mrf.mxu0
        %v3197 = vadd.f32 0.0, %v3196
        %3198 = vmatmul.f32.gmra.mxu0 %v3155
        %v3199 = vpop.f32.mrf.mxu0
        %v3200 = vadd.f32 0.0, %v3199
        %3201 = vmatmul.f32.gmra.mxu0 %v3157
        %v3202 = vpop.f32.mrf.mxu0
        %v3203 = vadd.f32 0.0, %v3202
        %3204 = vmatmul.f32.gmra.mxu0 %v3159
        %v3205 = vpop.f32.mrf.mxu0
        %v3206 = vadd.f32 0.0, %v3205
        %3207 = vdwg.mxu0
        %v3208 = vmul.f32 %v3191, 0.35355338
        %v3209 = vmul.f32 %v3194, 0.35355338
        %v3210 = vmul.f32 %v3197, 0.35355338
        %v3211 = vmul.f32 %v3200, 0.35355338
        %v3212 = vmul.f32 %v3203, 0.35355338
        %v3213 = vmul.f32 %v3206, 0.35355338
        %s3214 = scalar_lea.vmem %s16, 72
        %v3215 = vld [vmem:[%s3214] sm:$0xf]
        %v3216 = vld [vmem:[%s3214 + $0x4] sm:$0xf]
        %v3217 = vld [vmem:[%s3214 + $0x8] sm:$0xf]
        %v3218 = vld [vmem:[%s3214 + $0xc] sm:$0xf]
        %v3219 = vld [vmem:[%s3214 + $0x10] sm:$0xf]
        %v3220 = vld [vmem:[%s3214 + $0x14] sm:$0xf]
        %v3221 = vunpack.c.l.bf16 %v3215
        %v3222 = vunpack.c.l.bf16 %v3216
        %v3223 = vunpack.c.l.bf16 %v3217
        %v3224 = vunpack.c.l.bf16 %v3218
        %v3225 = vunpack.c.l.bf16 %v3219
        %v3226 = vunpack.c.l.bf16 %v3220
        %v3227 = vadd.f32 %v3208, %v3221
        %v3228 = vadd.f32 %v3209, %v3222
        %v3229 = vadd.f32 %v3210, %v3223
        %v3230 = vadd.f32 %v3211, %v3224
        %v3231 = vadd.f32 %v3212, %v3225
        %v3232 = vadd.f32 %v3213, %v3226
        %v3233 = vsel %vm1865, %v3227, -inf
        %3234 = vmax.xlane.f32.xlu0 %v3233
        %v3235 = vpop.xlane.xlu0 %3234
        %v3236 = vsel %vm1865, %v3228, -inf
        %3237 = vmax.xlane.f32.xlu0 %v3236
        %v3238 = vpop.xlane.xlu0 %3237
        %v3239 = vsel %vm1865, %v3229, -inf
        %3240 = vmax.xlane.f32.xlu0 %v3239
        %v3241 = vpop.xlane.xlu0 %3240
        %v3242 = vsel %vm1865, %v3230, -inf
        %3243 = vmax.xlane.f32.xlu0 %v3242
        %v3244 = vpop.xlane.xlu0 %3243
        %v3245 = vsel %vm1865, %v3231, -inf
        %3246 = vmax.xlane.f32.xlu0 %v3245
        %v3247 = vpop.xlane.xlu0 %3246
        %v3248 = vsel %vm1865, %v3232, -inf
        %3249 = vmax.xlane.f32.xlu0 %v3248
        %v3250 = vpop.xlane.xlu0 %3249
        %v3251 = vsub.f32 %v3227, %v3235
        %v3252 = vsub.f32 %v3228, %v3238
        %v3253 = vsub.f32 %v3229, %v3241
        %v3254 = vsub.f32 %v3230, %v3244
        %v3255 = vsub.f32 %v3231, %v3247
        %v3256 = vsub.f32 %v3232, %v3250
        %v3257 = vmul.f32 %v3251, 1.442695
        %v3258 = vpow.pop %v3257
        %v3259 = vmul.f32 %v3252, 1.442695
        %v3260 = vpow.pop %v3259
        %v3261 = vmul.f32 %v3253, 1.442695
        %v3262 = vpow.pop %v3261
        %v3263 = vmul.f32 %v3254, 1.442695
        %v3264 = vpow.pop %v3263
        %v3265 = vmul.f32 %v3255, 1.442695
        %v3266 = vpow.pop %v3265
        %v3267 = vmul.f32 %v3256, 1.442695
        %v3268 = vpow.pop %v3267
        %v3269 = vsel %vm1865, %v3258, 0.0
        %3270 = vadd.xlane.f32.xlu0 %v3269
        %v3271 = vpop.xlane.xlu0 %3270
        %v3272 = vsel %vm1865, %v3260, 0.0
        %3273 = vadd.xlane.f32.xlu0 %v3272
        %v3274 = vpop.xlane.xlu0 %3273
        %v3275 = vsel %vm1865, %v3262, 0.0
        %3276 = vadd.xlane.f32.xlu0 %v3275
        %v3277 = vpop.xlane.xlu0 %3276
        %v3278 = vsel %vm1865, %v3264, 0.0
        %3279 = vadd.xlane.f32.xlu0 %v3278
        %v3280 = vpop.xlane.xlu0 %3279
        %v3281 = vsel %vm1865, %v3266, 0.0
        %3282 = vadd.xlane.f32.xlu0 %v3281
        %v3283 = vpop.xlane.xlu0 %3282
        %v3284 = vsel %vm1865, %v3268, 0.0
        %3285 = vadd.xlane.f32.xlu0 %v3284
        %v3286 = vpop.xlane.xlu0 %3285
        %v3287 = vrcp.pop %v3271
        %v3288 = vrcp.pop %v3274
        %v3289 = vrcp.pop %v3277
        %v3290 = vrcp.pop %v3280
        %v3291 = vrcp.pop %v3283
        %v3292 = vrcp.pop %v3286
        %v3293 = vmul.f32 %v3258, %v3287
        %v3294 = vmul.f32 %v3260, %v3288
        %v3295 = vmul.f32 %v3262, %v3289
        %v3296 = vmul.f32 %v3264, %v3290
        %v3297 = vmul.f32 %v3266, %v3291
        %v3298 = vmul.f32 %v3268, %v3292
        %v3299 = vpack.c.bf16 %v3294, %v3293
        %v3300 = vpack.c.bf16 %v3296, %v3295
        %v3301 = vpack.c.bf16 %v3298, %v3297
        %3302 = vrot.lane.b32.xlu0 %v2648, 104
        %v3303 = vpop.permute.xlu0 %3302
        %3304 = vrot.lane.b32.xlu0 %v2649, 104
        %v3305 = vpop.permute.xlu0 %3304
        %3306 = vrot.lane.b32.xlu0 %v2650, 104
        %v3307 = vpop.permute.xlu0 %3306
        %v3312 = vsel %vm1865, %v3299, 0
        %v3315 = vsel %vm1865, %v3300, 0
        %v3318 = vsel %vm1865, %v3301, 0
        %3320 = vmatpush.bf16.msra.mxu0 0
        %3321 = vmatpush.bf16.msra.mxu0 0
        %3322 = vmatpush.bf16.msra.mxu0 0
        %3323 = vmatpush.bf16.msra.mxu0 0
        %3324 = vmatpush.bf16.msra.mxu0 0
        %3325 = vmatpush.bf16.msra.mxu0 %v3307
        %3326 = vmatpush.bf16.msra.mxu0 %v3305
        %3327 = vmatpush.bf16.msra.mxu0 %v3303
        %3328 = vmatmul.bf16.gmra.mxu0 %v3312
        %v3329 = vpop.f32.mrf.mxu0
        %v3330 = vadd.f32 0.0, %v3329
        %v3331 = vpop.f32.mrf.mxu0
        %v3332 = vadd.f32 0.0, %v3331
        %3333 = vmatmul.bf16.gmra.mxu0 %v3315
        %v3334 = vpop.f32.mrf.mxu0
        %v3335 = vadd.f32 0.0, %v3334
        %v3336 = vpop.f32.mrf.mxu0
        %v3337 = vadd.f32 0.0, %v3336
        %3338 = vmatmul.bf16.gmra.mxu0 %v3318
        %v3339 = vpop.f32.mrf.mxu0
        %v3340 = vadd.f32 0.0, %v3339
        %v3341 = vpop.f32.mrf.mxu0
        %v3342 = vadd.f32 0.0, %v3341
        %3343 = vdwg.mxu0
        %3344 = vrot.lane.b32.xlu0 %v2422, 96
        %v3345 = vpop.permute.xlu0 %3344
        %3346 = vrot.lane.b32.xlu0 %v2424, 96
        %v3347 = vpop.permute.xlu0 %3346
        %3348 = vrot.lane.b32.xlu0 %v2427, 96
        %v3349 = vpop.permute.xlu0 %3348
        %3350 = vrot.lane.b32.xlu0 %v2429, 96
        %v3351 = vpop.permute.xlu0 %3350
        %3352 = vrot.lane.b32.xlu0 %v2432, 96
        %v3353 = vpop.permute.xlu0 %3352
        %3354 = vrot.lane.b32.xlu0 %v2434, 96
        %v3355 = vpop.permute.xlu0 %3354
        %3356 = vrot.lane.b32.xlu0 %v2422, 32
        %v3357 = vpop.permute.xlu0 %3356
        %3358 = vrot.lane.b32.xlu0 %v2424, 32
        %v3359 = vpop.permute.xlu0 %3358
        %3360 = vrot.lane.b32.xlu0 %v2427, 32
        %v3361 = vpop.permute.xlu0 %3360
        %3362 = vrot.lane.b32.xlu0 %v2429, 32
        %v3363 = vpop.permute.xlu0 %3362
        %3364 = vrot.lane.b32.xlu0 %v2432, 32
        %v3365 = vpop.permute.xlu0 %3364
        %3366 = vrot.lane.b32.xlu0 %v2434, 32
        %v3367 = vpop.permute.xlu0 %3366
        %v3368 = vsel %vm681, %v3345, 0
        %v3370 = vsel %vm681, %v3347, 0
        %v3372 = vsel %vm681, %v3349, 0
        %v3374 = vsel %vm681, %v3351, 0
        %v3376 = vsel %vm681, %v3353, 0
        %v3378 = vsel %vm681, %v3355, 0
        %v3380 = vsel %vm681, %v3357, 0
        %v3382 = vsel %vm681, %v3359, 0
        %v3384 = vsel %vm681, %v3361, 0
        %v3386 = vsel %vm681, %v3363, 0
        %v3388 = vsel %vm681, %v3365, 0
        %v3390 = vsel %vm681, %v3367, 0
        %3392 = vmatpush.xpose.msra.mxu0 0.0
        %3393 = vmatpush.xpose.msra.mxu0 0.0
        %3394 = vmatpush.xpose.msra.mxu0 0.0
        %3395 = vmatpush.xpose.msra.mxu0 0.0
        %3396 = vmatpush.xpose.msra.mxu0 0.0
        %3397 = vmatpush.xpose.msra.mxu0 0.0
        %3398 = vmatpush.xpose.msra.mxu0 0.0
        %3399 = vmatpush.xpose.msra.mxu0 0.0
        %3400 = vmatpush.xpose.msra.mxu0 0.0
        %3401 = vmatpush.xpose.msra.mxu0 0.0
        %3402 = vmatpush.xpose.msra.mxu0 %v3390
        %3403 = vmatpush.xpose.msra.mxu0 %v3388
        %3404 = vmatpush.xpose.msra.mxu0 %v3386
        %3405 = vmatpush.xpose.msra.mxu0 %v3384
        %3406 = vmatpush.xpose.msra.mxu0 %v3382
        %3407 = vmatpush.xpose.msra.mxu0 %v3380
        %3408 = vmatmul.f32.gmra.mxu0 %v3368
        %v3409 = vpop.f32.mrf.mxu0
        %v3410 = vadd.f32 0.0, %v3409
        %3411 = vmatmul.f32.gmra.mxu0 %v3370
        %v3412 = vpop.f32.mrf.mxu0
        %v3413 = vadd.f32 0.0, %v3412
        %3414 = vmatmul.f32.gmra.mxu0 %v3372
        %v3415 = vpop.f32.mrf.mxu0
        %v3416 = vadd.f32 0.0, %v3415
        %3417 = vmatmul.f32.gmra.mxu0 %v3374
        %v3418 = vpop.f32.mrf.mxu0
        %v3419 = vadd.f32 0.0, %v3418
        %3420 = vmatmul.f32.gmra.mxu0 %v3376
        %v3421 = vpop.f32.mrf.mxu0
        %v3422 = vadd.f32 0.0, %v3421
        %3423 = vmatmul.f32.gmra.mxu0 %v3378
        %v3424 = vpop.f32.mrf.mxu0
        %v3425 = vadd.f32 0.0, %v3424
        %3426 = vdwg.mxu0
        %v3427 = vmul.f32 %v3410, 0.35355338
        %v3428 = vmul.f32 %v3413, 0.35355338
        %v3429 = vmul.f32 %v3416, 0.35355338
        %v3430 = vmul.f32 %v3419, 0.35355338
        %v3431 = vmul.f32 %v3422, 0.35355338
        %v3432 = vmul.f32 %v3425, 0.35355338
        %s3433 = scalar_lea.vmem %s16, 96
        %v3434 = vld [vmem:[%s3433] sm:$0xf]
        %v3435 = vld [vmem:[%s3433 + $0x4] sm:$0xf]
        %v3436 = vld [vmem:[%s3433 + $0x8] sm:$0xf]
        %v3437 = vld [vmem:[%s3433 + $0xc] sm:$0xf]
        %v3438 = vld [vmem:[%s3433 + $0x10] sm:$0xf]
        %v3439 = vld [vmem:[%s3433 + $0x14] sm:$0xf]
        %v3440 = vunpack.c.l.bf16 %v3434
        %v3441 = vunpack.c.l.bf16 %v3435
        %v3442 = vunpack.c.l.bf16 %v3436
        %v3443 = vunpack.c.l.bf16 %v3437
        %v3444 = vunpack.c.l.bf16 %v3438
        %v3445 = vunpack.c.l.bf16 %v3439
        %v3446 = vadd.f32 %v3427, %v3440
        %v3447 = vadd.f32 %v3428, %v3441
        %v3448 = vadd.f32 %v3429, %v3442
        %v3449 = vadd.f32 %v3430, %v3443
        %v3450 = vadd.f32 %v3431, %v3444
        %v3451 = vadd.f32 %v3432, %v3445
        %v3452 = vsel %vm1865, %v3446, -inf
        %3453 = vmax.xlane.f32.xlu0 %v3452
        %v3454 = vpop.xlane.xlu0 %3453
        %v3455 = vsel %vm1865, %v3447, -inf
        %3456 = vmax.xlane.f32.xlu0 %v3455
        %v3457 = vpop.xlane.xlu0 %3456
        %v3458 = vsel %vm1865, %v3448, -inf
        %3459 = vmax.xlane.f32.xlu0 %v3458
        %v3460 = vpop.xlane.xlu0 %3459
        %v3461 = vsel %vm1865, %v3449, -inf
        %3462 = vmax.xlane.f32.xlu0 %v3461
        %v3463 = vpop.xlane.xlu0 %3462
        %v3464 = vsel %vm1865, %v3450, -inf
        %3465 = vmax.xlane.f32.xlu0 %v3464
        %v3466 = vpop.xlane.xlu0 %3465
        %v3467 = vsel %vm1865, %v3451, -inf
        %3468 = vmax.xlane.f32.xlu0 %v3467
        %v3469 = vpop.xlane.xlu0 %3468
        %v3470 = vsub.f32 %v3446, %v3454
        %v3471 = vsub.f32 %v3447, %v3457
        %v3472 = vsub.f32 %v3448, %v3460
        %v3473 = vsub.f32 %v3449, %v3463
        %v3474 = vsub.f32 %v3450, %v3466
        %v3475 = vsub.f32 %v3451, %v3469
        %v3476 = vmul.f32 %v3470, 1.442695
        %v3477 = vpow.pop %v3476
        %v3478 = vmul.f32 %v3471, 1.442695
        %v3479 = vpow.pop %v3478
        %v3480 = vmul.f32 %v3472, 1.442695
        %v3481 = vpow.pop %v3480
        %v3482 = vmul.f32 %v3473, 1.442695
        %v3483 = vpow.pop %v3482
        %v3484 = vmul.f32 %v3474, 1.442695
        %v3485 = vpow.pop %v3484
        %v3486 = vmul.f32 %v3475, 1.442695
        %v3487 = vpow.pop %v3486
        %v3488 = vsel %vm1865, %v3477, 0.0
        %3489 = vadd.xlane.f32.xlu0 %v3488
        %v3490 = vpop.xlane.xlu0 %3489
        %v3491 = vsel %vm1865, %v3479, 0.0
        %3492 = vadd.xlane.f32.xlu0 %v3491
        %v3493 = vpop.xlane.xlu0 %3492
        %v3494 = vsel %vm1865, %v3481, 0.0
        %3495 = vadd.xlane.f32.xlu0 %v3494
        %v3496 = vpop.xlane.xlu0 %3495
        %v3497 = vsel %vm1865, %v3483, 0.0
        %3498 = vadd.xlane.f32.xlu0 %v3497
        %v3499 = vpop.xlane.xlu0 %3498
        %v3500 = vsel %vm1865, %v3485, 0.0
        %3501 = vadd.xlane.f32.xlu0 %v3500
        %v3502 = vpop.xlane.xlu0 %3501
        %v3503 = vsel %vm1865, %v3487, 0.0
        %3504 = vadd.xlane.f32.xlu0 %v3503
        %v3505 = vpop.xlane.xlu0 %3504
        %v3506 = vrcp.pop %v3490
        %v3507 = vrcp.pop %v3493
        %v3508 = vrcp.pop %v3496
        %v3509 = vrcp.pop %v3499
        %v3510 = vrcp.pop %v3502
        %v3511 = vrcp.pop %v3505
        %v3512 = vmul.f32 %v3477, %v3506
        %v3513 = vmul.f32 %v3479, %v3507
        %v3514 = vmul.f32 %v3481, %v3508
        %v3515 = vmul.f32 %v3483, %v3509
        %v3516 = vmul.f32 %v3485, %v3510
        %v3517 = vmul.f32 %v3487, %v3511
        %v3518 = vpack.c.bf16 %v3513, %v3512
        %v3519 = vpack.c.bf16 %v3515, %v3514
        %v3520 = vpack.c.bf16 %v3517, %v3516
        %3521 = vrot.lane.b32.xlu0 %v2648, 96
        %v3522 = vpop.permute.xlu0 %3521
        %3523 = vrot.lane.b32.xlu0 %v2649, 96
        %v3524 = vpop.permute.xlu0 %3523
        %3525 = vrot.lane.b32.xlu0 %v2650, 96
        %v3526 = vpop.permute.xlu0 %3525
        %v3531 = vsel %vm1865, %v3518, 0
        %v3534 = vsel %vm1865, %v3519, 0
        %v3537 = vsel %vm1865, %v3520, 0
        %3539 = vmatpush.bf16.msra.mxu0 0
        %3540 = vmatpush.bf16.msra.mxu0 0
        %3541 = vmatpush.bf16.msra.mxu0 0
        %3542 = vmatpush.bf16.msra.mxu0 0
        %3543 = vmatpush.bf16.msra.mxu0 0
        %3544 = vmatpush.bf16.msra.mxu0 %v3526
        %3545 = vmatpush.bf16.msra.mxu0 %v3524
        %3546 = vmatpush.bf16.msra.mxu0 %v3522
        %3547 = vmatmul.bf16.gmra.mxu0 %v3531
        %v3548 = vpop.f32.mrf.mxu0
        %v3549 = vadd.f32 0.0, %v3548
        %v3550 = vpop.f32.mrf.mxu0
        %v3551 = vadd.f32 0.0, %v3550
        %3552 = vmatmul.bf16.gmra.mxu0 %v3534
        %v3553 = vpop.f32.mrf.mxu0
        %v3554 = vadd.f32 0.0, %v3553
        %v3555 = vpop.f32.mrf.mxu0
        %v3556 = vadd.f32 0.0, %v3555
        %3557 = vmatmul.bf16.gmra.mxu0 %v3537
        %v3558 = vpop.f32.mrf.mxu0
        %v3559 = vadd.f32 0.0, %v3558
        %v3560 = vpop.f32.mrf.mxu0
        %v3561 = vadd.f32 0.0, %v3560
        %3562 = vdwg.mxu0
        %3563 = vrot.lane.b32.xlu0 %v2422, 88
        %v3564 = vpop.permute.xlu0 %3563
        %3565 = vrot.lane.b32.xlu0 %v2424, 88
        %v3566 = vpop.permute.xlu0 %3565
        %3567 = vrot.lane.b32.xlu0 %v2427, 88
        %v3568 = vpop.permute.xlu0 %3567
        %3569 = vrot.lane.b32.xlu0 %v2429, 88
        %v3570 = vpop.permute.xlu0 %3569
        %3571 = vrot.lane.b32.xlu0 %v2432, 88
        %v3572 = vpop.permute.xlu0 %3571
        %3573 = vrot.lane.b32.xlu0 %v2434, 88
        %v3574 = vpop.permute.xlu0 %3573
        %3575 = vrot.lane.b32.xlu0 %v2422, 24
        %v3576 = vpop.permute.xlu0 %3575
        %3577 = vrot.lane.b32.xlu0 %v2424, 24
        %v3578 = vpop.permute.xlu0 %3577
        %3579 = vrot.lane.b32.xlu0 %v2427, 24
        %v3580 = vpop.permute.xlu0 %3579
        %3581 = vrot.lane.b32.xlu0 %v2429, 24
        %v3582 = vpop.permute.xlu0 %3581
        %3583 = vrot.lane.b32.xlu0 %v2432, 24
        %v3584 = vpop.permute.xlu0 %3583
        %3585 = vrot.lane.b32.xlu0 %v2434, 24
        %v3586 = vpop.permute.xlu0 %3585
        %v3587 = vsel %vm681, %v3564, 0
        %v3589 = vsel %vm681, %v3566, 0
        %v3591 = vsel %vm681, %v3568, 0
        %v3593 = vsel %vm681, %v3570, 0
        %v3595 = vsel %vm681, %v3572, 0
        %v3597 = vsel %vm681, %v3574, 0
        %v3599 = vsel %vm681, %v3576, 0
        %v3601 = vsel %vm681, %v3578, 0
        %v3603 = vsel %vm681, %v3580, 0
        %v3605 = vsel %vm681, %v3582, 0
        %v3607 = vsel %vm681, %v3584, 0
        %v3609 = vsel %vm681, %v3586, 0
        %3611 = vmatpush.xpose.msra.mxu0 0.0
        %3612 = vmatpush.xpose.msra.mxu0 0.0
        %3613 = vmatpush.xpose.msra.mxu0 0.0
        %3614 = vmatpush.xpose.msra.mxu0 0.0
        %3615 = vmatpush.xpose.msra.mxu0 0.0
        %3616 = vmatpush.xpose.msra.mxu0 0.0
        %3617 = vmatpush.xpose.msra.mxu0 0.0
        %3618 = vmatpush.xpose.msra.mxu0 0.0
        %3619 = vmatpush.xpose.msra.mxu0 0.0
        %3620 = vmatpush.xpose.msra.mxu0 0.0
        %3621 = vmatpush.xpose.msra.mxu0 %v3609
        %3622 = vmatpush.xpose.msra.mxu0 %v3607
        %3623 = vmatpush.xpose.msra.mxu0 %v3605
        %3624 = vmatpush.xpose.msra.mxu0 %v3603
        %3625 = vmatpush.xpose.msra.mxu0 %v3601
        %3626 = vmatpush.xpose.msra.mxu0 %v3599
        %3627 = vmatmul.f32.gmra.mxu0 %v3587
        %v3628 = vpop.f32.mrf.mxu0
        %v3629 = vadd.f32 0.0, %v3628
        %3630 = vmatmul.f32.gmra.mxu0 %v3589
        %v3631 = vpop.f32.mrf.mxu0
        %v3632 = vadd.f32 0.0, %v3631
        %3633 = vmatmul.f32.gmra.mxu0 %v3591
        %v3634 = vpop.f32.mrf.mxu0
        %v3635 = vadd.f32 0.0, %v3634
        %3636 = vmatmul.f32.gmra.mxu0 %v3593
        %v3637 = vpop.f32.mrf.mxu0
        %v3638 = vadd.f32 0.0, %v3637
        %3639 = vmatmul.f32.gmra.mxu0 %v3595
        %v3640 = vpop.f32.mrf.mxu0
        %v3641 = vadd.f32 0.0, %v3640
        %3642 = vmatmul.f32.gmra.mxu0 %v3597
        %v3643 = vpop.f32.mrf.mxu0
        %v3644 = vadd.f32 0.0, %v3643
        %3645 = vdwg.mxu0
        %v3646 = vmul.f32 %v3629, 0.35355338
        %v3647 = vmul.f32 %v3632, 0.35355338
        %v3648 = vmul.f32 %v3635, 0.35355338
        %v3649 = vmul.f32 %v3638, 0.35355338
        %v3650 = vmul.f32 %v3641, 0.35355338
        %v3651 = vmul.f32 %v3644, 0.35355338
        %s3652 = scalar_lea.vmem %s16, 120
        %v3653 = vld [vmem:[%s3652] sm:$0xf]
        %v3654 = vld [vmem:[%s3652 + $0x4] sm:$0xf]
        %v3655 = vld [vmem:[%s3652 + $0x8] sm:$0xf]
        %v3656 = vld [vmem:[%s3652 + $0xc] sm:$0xf]
        %v3657 = vld [vmem:[%s3652 + $0x10] sm:$0xf]
        %v3658 = vld [vmem:[%s3652 + $0x14] sm:$0xf]
        %v3659 = vunpack.c.l.bf16 %v3653
        %v3660 = vunpack.c.l.bf16 %v3654
        %v3661 = vunpack.c.l.bf16 %v3655
        %v3662 = vunpack.c.l.bf16 %v3656
        %v3663 = vunpack.c.l.bf16 %v3657
        %v3664 = vunpack.c.l.bf16 %v3658
        %v3665 = vadd.f32 %v3646, %v3659
        %v3666 = vadd.f32 %v3647, %v3660
        %v3667 = vadd.f32 %v3648, %v3661
        %v3668 = vadd.f32 %v3649, %v3662
        %v3669 = vadd.f32 %v3650, %v3663
        %v3670 = vadd.f32 %v3651, %v3664
        %v3671 = vsel %vm1865, %v3665, -inf
        %3672 = vmax.xlane.f32.xlu0 %v3671
        %v3673 = vpop.xlane.xlu0 %3672
        %v3674 = vsel %vm1865, %v3666, -inf
        %3675 = vmax.xlane.f32.xlu0 %v3674
        %v3676 = vpop.xlane.xlu0 %3675
        %v3677 = vsel %vm1865, %v3667, -inf
        %3678 = vmax.xlane.f32.xlu0 %v3677
        %v3679 = vpop.xlane.xlu0 %3678
        %v3680 = vsel %vm1865, %v3668, -inf
        %3681 = vmax.xlane.f32.xlu0 %v3680
        %v3682 = vpop.xlane.xlu0 %3681
        %v3683 = vsel %vm1865, %v3669, -inf
        %3684 = vmax.xlane.f32.xlu0 %v3683
        %v3685 = vpop.xlane.xlu0 %3684
        %v3686 = vsel %vm1865, %v3670, -inf
        %3687 = vmax.xlane.f32.xlu0 %v3686
        %v3688 = vpop.xlane.xlu0 %3687
        %v3689 = vsub.f32 %v3665, %v3673
        %v3690 = vsub.f32 %v3666, %v3676
        %v3691 = vsub.f32 %v3667, %v3679
        %v3692 = vsub.f32 %v3668, %v3682
        %v3693 = vsub.f32 %v3669, %v3685
        %v3694 = vsub.f32 %v3670, %v3688
        %v3695 = vmul.f32 %v3689, 1.442695
        %v3696 = vpow.pop %v3695
        %v3697 = vmul.f32 %v3690, 1.442695
        %v3698 = vpow.pop %v3697
        %v3699 = vmul.f32 %v3691, 1.442695
        %v3700 = vpow.pop %v3699
        %v3701 = vmul.f32 %v3692, 1.442695
        %v3702 = vpow.pop %v3701
        %v3703 = vmul.f32 %v3693, 1.442695
        %v3704 = vpow.pop %v3703
        %v3705 = vmul.f32 %v3694, 1.442695
        %v3706 = vpow.pop %v3705
        %v3707 = vsel %vm1865, %v3696, 0.0
        %3708 = vadd.xlane.f32.xlu0 %v3707
        %v3709 = vpop.xlane.xlu0 %3708
        %v3710 = vsel %vm1865, %v3698, 0.0
        %3711 = vadd.xlane.f32.xlu0 %v3710
        %v3712 = vpop.xlane.xlu0 %3711
        %v3713 = vsel %vm1865, %v3700, 0.0
        %3714 = vadd.xlane.f32.xlu0 %v3713
        %v3715 = vpop.xlane.xlu0 %3714
        %v3716 = vsel %vm1865, %v3702, 0.0
        %3717 = vadd.xlane.f32.xlu0 %v3716
        %v3718 = vpop.xlane.xlu0 %3717
        %v3719 = vsel %vm1865, %v3704, 0.0
        %3720 = vadd.xlane.f32.xlu0 %v3719
        %v3721 = vpop.xlane.xlu0 %3720
        %v3722 = vsel %vm1865, %v3706, 0.0
        %3723 = vadd.xlane.f32.xlu0 %v3722
        %v3724 = vpop.xlane.xlu0 %3723
        %v3725 = vrcp.pop %v3709
        %v3726 = vrcp.pop %v3712
        %v3727 = vrcp.pop %v3715
        %v3728 = vrcp.pop %v3718
        %v3729 = vrcp.pop %v3721
        %v3730 = vrcp.pop %v3724
        %v3731 = vmul.f32 %v3696, %v3725
        %v3732 = vmul.f32 %v3698, %v3726
        %v3733 = vmul.f32 %v3700, %v3727
        %v3734 = vmul.f32 %v3702, %v3728
        %v3735 = vmul.f32 %v3704, %v3729
        %v3736 = vmul.f32 %v3706, %v3730
        %v3737 = vpack.c.bf16 %v3732, %v3731
        %v3738 = vpack.c.bf16 %v3734, %v3733
        %v3739 = vpack.c.bf16 %v3736, %v3735
        %3740 = vrot.lane.b32.xlu0 %v2648, 88
        %v3741 = vpop.permute.xlu0 %3740
        %3742 = vrot.lane.b32.xlu0 %v2649, 88
        %v3743 = vpop.permute.xlu0 %3742
        %3744 = vrot.lane.b32.xlu0 %v2650, 88
        %v3745 = vpop.permute.xlu0 %3744
        %v3750 = vsel %vm1865, %v3737, 0
        %v3753 = vsel %vm1865, %v3738, 0
        %v3756 = vsel %vm1865, %v3739, 0
        %3758 = vmatpush.bf16.msra.mxu0 0
        %3759 = vmatpush.bf16.msra.mxu0 0
        %3760 = vmatpush.bf16.msra.mxu0 0
        %3761 = vmatpush.bf16.msra.mxu0 0
        %3762 = vmatpush.bf16.msra.mxu0 0
        %3763 = vmatpush.bf16.msra.mxu0 %v3745
        %3764 = vmatpush.bf16.msra.mxu0 %v3743
        %3765 = vmatpush.bf16.msra.mxu0 %v3741
        %3766 = vmatmul.bf16.gmra.mxu0 %v3750
        %v3767 = vpop.f32.mrf.mxu0
        %v3768 = vadd.f32 0.0, %v3767
        %v3769 = vpop.f32.mrf.mxu0
        %v3770 = vadd.f32 0.0, %v3769
        %3771 = vmatmul.bf16.gmra.mxu0 %v3753
        %v3772 = vpop.f32.mrf.mxu0
        %v3773 = vadd.f32 0.0, %v3772
        %v3774 = vpop.f32.mrf.mxu0
        %v3775 = vadd.f32 0.0, %v3774
        %3776 = vmatmul.bf16.gmra.mxu0 %v3756
        %v3777 = vpop.f32.mrf.mxu0
        %v3778 = vadd.f32 0.0, %v3777
        %v3779 = vpop.f32.mrf.mxu0
        %v3780 = vadd.f32 0.0, %v3779
        %3781 = vdwg.mxu0
        %3782 = vrot.lane.b32.xlu0 %v2422, 80
        %v3783 = vpop.permute.xlu0 %3782
        %3784 = vrot.lane.b32.xlu0 %v2424, 80
        %v3785 = vpop.permute.xlu0 %3784
        %3786 = vrot.lane.b32.xlu0 %v2427, 80
        %v3787 = vpop.permute.xlu0 %3786
        %3788 = vrot.lane.b32.xlu0 %v2429, 80
        %v3789 = vpop.permute.xlu0 %3788
        %3790 = vrot.lane.b32.xlu0 %v2432, 80
        %v3791 = vpop.permute.xlu0 %3790
        %3792 = vrot.lane.b32.xlu0 %v2434, 80
        %v3793 = vpop.permute.xlu0 %3792
        %3794 = vrot.lane.b32.xlu0 %v2422, 16
        %v3795 = vpop.permute.xlu0 %3794
        %3796 = vrot.lane.b32.xlu0 %v2424, 16
        %v3797 = vpop.permute.xlu0 %3796
        %3798 = vrot.lane.b32.xlu0 %v2427, 16
        %v3799 = vpop.permute.xlu0 %3798
        %3800 = vrot.lane.b32.xlu0 %v2429, 16
        %v3801 = vpop.permute.xlu0 %3800
        %3802 = vrot.lane.b32.xlu0 %v2432, 16
        %v3803 = vpop.permute.xlu0 %3802
        %3804 = vrot.lane.b32.xlu0 %v2434, 16
        %v3805 = vpop.permute.xlu0 %3804
        %v3806 = vsel %vm681, %v3783, 0
        %v3808 = vsel %vm681, %v3785, 0
        %v3810 = vsel %vm681, %v3787, 0
        %v3812 = vsel %vm681, %v3789, 0
        %v3814 = vsel %vm681, %v3791, 0
        %v3816 = vsel %vm681, %v3793, 0
        %v3818 = vsel %vm681, %v3795, 0
        %v3820 = vsel %vm681, %v3797, 0
        %v3822 = vsel %vm681, %v3799, 0
        %v3824 = vsel %vm681, %v3801, 0
        %v3826 = vsel %vm681, %v3803, 0
        %v3828 = vsel %vm681, %v3805, 0
        %3830 = vmatpush.xpose.msra.mxu0 0.0
        %3831 = vmatpush.xpose.msra.mxu0 0.0
        %3832 = vmatpush.xpose.msra.mxu0 0.0
        %3833 = vmatpush.xpose.msra.mxu0 0.0
        %3834 = vmatpush.xpose.msra.mxu0 0.0
        %3835 = vmatpush.xpose.msra.mxu0 0.0
        %3836 = vmatpush.xpose.msra.mxu0 0.0
        %3837 = vmatpush.xpose.msra.mxu0 0.0
        %3838 = vmatpush.xpose.msra.mxu0 0.0
        %3839 = vmatpush.xpose.msra.mxu0 0.0
        %3840 = vmatpush.xpose.msra.mxu0 %v3828
        %3841 = vmatpush.xpose.msra.mxu0 %v3826
        %3842 = vmatpush.xpose.msra.mxu0 %v3824
        %3843 = vmatpush.xpose.msra.mxu0 %v3822
        %3844 = vmatpush.xpose.msra.mxu0 %v3820
        %3845 = vmatpush.xpose.msra.mxu0 %v3818
        %3846 = vmatmul.f32.gmra.mxu0 %v3806
        %v3847 = vpop.f32.mrf.mxu0
        %v3848 = vadd.f32 0.0, %v3847
        %3849 = vmatmul.f32.gmra.mxu0 %v3808
        %v3850 = vpop.f32.mrf.mxu0
        %v3851 = vadd.f32 0.0, %v3850
        %3852 = vmatmul.f32.gmra.mxu0 %v3810
        %v3853 = vpop.f32.mrf.mxu0
        %v3854 = vadd.f32 0.0, %v3853
        %3855 = vmatmul.f32.gmra.mxu0 %v3812
        %v3856 = vpop.f32.mrf.mxu0
        %v3857 = vadd.f32 0.0, %v3856
        %3858 = vmatmul.f32.gmra.mxu0 %v3814
        %v3859 = vpop.f32.mrf.mxu0
        %v3860 = vadd.f32 0.0, %v3859
        %3861 = vmatmul.f32.gmra.mxu0 %v3816
        %v3862 = vpop.f32.mrf.mxu0
        %v3863 = vadd.f32 0.0, %v3862
        %3864 = vdwg.mxu0
        %v3865 = vmul.f32 %v3848, 0.35355338
        %v3866 = vmul.f32 %v3851, 0.35355338
        %v3867 = vmul.f32 %v3854, 0.35355338
        %v3868 = vmul.f32 %v3857, 0.35355338
        %v3869 = vmul.f32 %v3860, 0.35355338
        %v3870 = vmul.f32 %v3863, 0.35355338
        %s3871 = scalar_lea.vmem %s16, 144
        %v3872 = vld [vmem:[%s3871] sm:$0xf]
        %v3873 = vld [vmem:[%s3871 + $0x4] sm:$0xf]
        %v3874 = vld [vmem:[%s3871 + $0x8] sm:$0xf]
        %v3875 = vld [vmem:[%s3871 + $0xc] sm:$0xf]
        %v3876 = vld [vmem:[%s3871 + $0x10] sm:$0xf]
        %v3877 = vld [vmem:[%s3871 + $0x14] sm:$0xf]
        %v3878 = vunpack.c.l.bf16 %v3872
        %v3879 = vunpack.c.l.bf16 %v3873
        %v3880 = vunpack.c.l.bf16 %v3874
        %v3881 = vunpack.c.l.bf16 %v3875
        %v3882 = vunpack.c.l.bf16 %v3876
        %v3883 = vunpack.c.l.bf16 %v3877
        %v3884 = vadd.f32 %v3865, %v3878
        %v3885 = vadd.f32 %v3866, %v3879
        %v3886 = vadd.f32 %v3867, %v3880
        %v3887 = vadd.f32 %v3868, %v3881
        %v3888 = vadd.f32 %v3869, %v3882
        %v3889 = vadd.f32 %v3870, %v3883
        %v3890 = vsel %vm1865, %v3884, -inf
        %3891 = vmax.xlane.f32.xlu0 %v3890
        %v3892 = vpop.xlane.xlu0 %3891
        %v3893 = vsel %vm1865, %v3885, -inf
        %3894 = vmax.xlane.f32.xlu0 %v3893
        %v3895 = vpop.xlane.xlu0 %3894
        %v3896 = vsel %vm1865, %v3886, -inf
        %3897 = vmax.xlane.f32.xlu0 %v3896
        %v3898 = vpop.xlane.xlu0 %3897
        %v3899 = vsel %vm1865, %v3887, -inf
        %3900 = vmax.xlane.f32.xlu0 %v3899
        %v3901 = vpop.xlane.xlu0 %3900
        %v3902 = vsel %vm1865, %v3888, -inf
        %3903 = vmax.xlane.f32.xlu0 %v3902
        %v3904 = vpop.xlane.xlu0 %3903
        %v3905 = vsel %vm1865, %v3889, -inf
        %3906 = vmax.xlane.f32.xlu0 %v3905
        %v3907 = vpop.xlane.xlu0 %3906
        %v3908 = vsub.f32 %v3884, %v3892
        %v3909 = vsub.f32 %v3885, %v3895
        %v3910 = vsub.f32 %v3886, %v3898
        %v3911 = vsub.f32 %v3887, %v3901
        %v3912 = vsub.f32 %v3888, %v3904
        %v3913 = vsub.f32 %v3889, %v3907
        %v3914 = vmul.f32 %v3908, 1.442695
        %v3915 = vpow.pop %v3914
        %v3916 = vmul.f32 %v3909, 1.442695
        %v3917 = vpow.pop %v3916
        %v3918 = vmul.f32 %v3910, 1.442695
        %v3919 = vpow.pop %v3918
        %v3920 = vmul.f32 %v3911, 1.442695
        %v3921 = vpow.pop %v3920
        %v3922 = vmul.f32 %v3912, 1.442695
        %v3923 = vpow.pop %v3922
        %v3924 = vmul.f32 %v3913, 1.442695
        %v3925 = vpow.pop %v3924
        %v3926 = vsel %vm1865, %v3915, 0.0
        %3927 = vadd.xlane.f32.xlu0 %v3926
        %v3928 = vpop.xlane.xlu0 %3927
        %v3929 = vsel %vm1865, %v3917, 0.0
        %3930 = vadd.xlane.f32.xlu0 %v3929
        %v3931 = vpop.xlane.xlu0 %3930
        %v3932 = vsel %vm1865, %v3919, 0.0
        %3933 = vadd.xlane.f32.xlu0 %v3932
        %v3934 = vpop.xlane.xlu0 %3933
        %v3935 = vsel %vm1865, %v3921, 0.0
        %3936 = vadd.xlane.f32.xlu0 %v3935
        %v3937 = vpop.xlane.xlu0 %3936
        %v3938 = vsel %vm1865, %v3923, 0.0
        %3939 = vadd.xlane.f32.xlu0 %v3938
        %v3940 = vpop.xlane.xlu0 %3939
        %v3941 = vsel %vm1865, %v3925, 0.0
        %3942 = vadd.xlane.f32.xlu0 %v3941
        %v3943 = vpop.xlane.xlu0 %3942
        %v3944 = vrcp.pop %v3928
        %v3945 = vrcp.pop %v3931
        %v3946 = vrcp.pop %v3934
        %v3947 = vrcp.pop %v3937
        %v3948 = vrcp.pop %v3940
        %v3949 = vrcp.pop %v3943
        %v3950 = vmul.f32 %v3915, %v3944
        %v3951 = vmul.f32 %v3917, %v3945
        %v3952 = vmul.f32 %v3919, %v3946
        %v3953 = vmul.f32 %v3921, %v3947
        %v3954 = vmul.f32 %v3923, %v3948
        %v3955 = vmul.f32 %v3925, %v3949
        %v3956 = vpack.c.bf16 %v3951, %v3950
        %v3957 = vpack.c.bf16 %v3953, %v3952
        %v3958 = vpack.c.bf16 %v3955, %v3954
        %3959 = vrot.lane.b32.xlu0 %v2648, 80
        %v3960 = vpop.permute.xlu0 %3959
        %3961 = vrot.lane.b32.xlu0 %v2649, 80
        %v3962 = vpop.permute.xlu0 %3961
        %3963 = vrot.lane.b32.xlu0 %v2650, 80
        %v3964 = vpop.permute.xlu0 %3963
        %v3969 = vsel %vm1865, %v3956, 0
        %v3972 = vsel %vm1865, %v3957, 0
        %v3975 = vsel %vm1865, %v3958, 0
        %3977 = vmatpush.bf16.msra.mxu0 0
        %3978 = vmatpush.bf16.msra.mxu0 0
        %3979 = vmatpush.bf16.msra.mxu0 0
        %3980 = vmatpush.bf16.msra.mxu0 0
        %3981 = vmatpush.bf16.msra.mxu0 0
        %3982 = vmatpush.bf16.msra.mxu0 %v3964
        %3983 = vmatpush.bf16.msra.mxu0 %v3962
        %3984 = vmatpush.bf16.msra.mxu0 %v3960
        %3985 = vmatmul.bf16.gmra.mxu0 %v3969
        %v3986 = vpop.f32.mrf.mxu0
        %v3987 = vadd.f32 0.0, %v3986
        %v3988 = vpop.f32.mrf.mxu0
        %v3989 = vadd.f32 0.0, %v3988
        %3990 = vmatmul.bf16.gmra.mxu0 %v3972
        %v3991 = vpop.f32.mrf.mxu0
        %v3992 = vadd.f32 0.0, %v3991
        %v3993 = vpop.f32.mrf.mxu0
        %v3994 = vadd.f32 0.0, %v3993
        %3995 = vmatmul.bf16.gmra.mxu0 %v3975
        %v3996 = vpop.f32.mrf.mxu0
        %v3997 = vadd.f32 0.0, %v3996
        %v3998 = vpop.f32.mrf.mxu0
        %v3999 = vadd.f32 0.0, %v3998
        %4000 = vdwg.mxu0
        %4001 = vrot.lane.b32.xlu0 %v2422, 72
        %v4002 = vpop.permute.xlu0 %4001
        %4003 = vrot.lane.b32.xlu0 %v2424, 72
        %v4004 = vpop.permute.xlu0 %4003
        %4005 = vrot.lane.b32.xlu0 %v2427, 72
        %v4006 = vpop.permute.xlu0 %4005
        %4007 = vrot.lane.b32.xlu0 %v2429, 72
        %v4008 = vpop.permute.xlu0 %4007
        %4009 = vrot.lane.b32.xlu0 %v2432, 72
        %v4010 = vpop.permute.xlu0 %4009
        %4011 = vrot.lane.b32.xlu0 %v2434, 72
        %v4012 = vpop.permute.xlu0 %4011
        %4013 = vrot.lane.b32.xlu0 %v2422, 8
        %v4014 = vpop.permute.xlu0 %4013
        %4015 = vrot.lane.b32.xlu0 %v2424, 8
        %v4016 = vpop.permute.xlu0 %4015
        %4017 = vrot.lane.b32.xlu0 %v2427, 8
        %v4018 = vpop.permute.xlu0 %4017
        %4019 = vrot.lane.b32.xlu0 %v2429, 8
        %v4020 = vpop.permute.xlu0 %4019
        %4021 = vrot.lane.b32.xlu0 %v2432, 8
        %v4022 = vpop.permute.xlu0 %4021
        %4023 = vrot.lane.b32.xlu0 %v2434, 8
        %v4024 = vpop.permute.xlu0 %4023
        %v4025 = vsel %vm681, %v4002, 0
        %v4027 = vsel %vm681, %v4004, 0
        %v4029 = vsel %vm681, %v4006, 0
        %v4031 = vsel %vm681, %v4008, 0
        %v4033 = vsel %vm681, %v4010, 0
        %v4035 = vsel %vm681, %v4012, 0
        %v4037 = vsel %vm681, %v4014, 0
        %v4039 = vsel %vm681, %v4016, 0
        %v4041 = vsel %vm681, %v4018, 0
        %v4043 = vsel %vm681, %v4020, 0
        %v4045 = vsel %vm681, %v4022, 0
        %v4047 = vsel %vm681, %v4024, 0
        %4049 = vmatpush.xpose.msra.mxu0 0.0
        %4050 = vmatpush.xpose.msra.mxu0 0.0
        %4051 = vmatpush.xpose.msra.mxu0 0.0
        %4052 = vmatpush.xpose.msra.mxu0 0.0
        %4053 = vmatpush.xpose.msra.mxu0 0.0
        %4054 = vmatpush.xpose.msra.mxu0 0.0
        %4055 = vmatpush.xpose.msra.mxu0 0.0
        %4056 = vmatpush.xpose.msra.mxu0 0.0
        %4057 = vmatpush.xpose.msra.mxu0 0.0
        %4058 = vmatpush.xpose.msra.mxu0 0.0
        %4059 = vmatpush.xpose.msra.mxu0 %v4047
        %4060 = vmatpush.xpose.msra.mxu0 %v4045
        %4061 = vmatpush.xpose.msra.mxu0 %v4043
        %4062 = vmatpush.xpose.msra.mxu0 %v4041
        %4063 = vmatpush.xpose.msra.mxu0 %v4039
        %4064 = vmatpush.xpose.msra.mxu0 %v4037
        %4065 = vmatmul.f32.gmra.mxu0 %v4025
        %v4066 = vpop.f32.mrf.mxu0
        %v4067 = vadd.f32 0.0, %v4066
        %4068 = vmatmul.f32.gmra.mxu0 %v4027
        %v4069 = vpop.f32.mrf.mxu0
        %v4070 = vadd.f32 0.0, %v4069
        %4071 = vmatmul.f32.gmra.mxu0 %v4029
        %v4072 = vpop.f32.mrf.mxu0
        %v4073 = vadd.f32 0.0, %v4072
        %4074 = vmatmul.f32.gmra.mxu0 %v4031
        %v4075 = vpop.f32.mrf.mxu0
        %v4076 = vadd.f32 0.0, %v4075
        %4077 = vmatmul.f32.gmra.mxu0 %v4033
        %v4078 = vpop.f32.mrf.mxu0
        %v4079 = vadd.f32 0.0, %v4078
        %4080 = vmatmul.f32.gmra.mxu0 %v4035
        %v4081 = vpop.f32.mrf.mxu0
        %v4082 = vadd.f32 0.0, %v4081
        %4083 = vdwg.mxu0
        %v4084 = vmul.f32 %v4067, 0.35355338
        %v4085 = vmul.f32 %v4070, 0.35355338
        %v4086 = vmul.f32 %v4073, 0.35355338
        %v4087 = vmul.f32 %v4076, 0.35355338
        %v4088 = vmul.f32 %v4079, 0.35355338
        %v4089 = vmul.f32 %v4082, 0.35355338
        %s4090 = scalar_lea.vmem %s16, 168
        %v4091 = vld [vmem:[%s4090] sm:$0xf]
        %v4092 = vld [vmem:[%s4090 + $0x4] sm:$0xf]
        %v4093 = vld [vmem:[%s4090 + $0x8] sm:$0xf]
        %v4094 = vld [vmem:[%s4090 + $0xc] sm:$0xf]
        %v4095 = vld [vmem:[%s4090 + $0x10] sm:$0xf]
        %v4096 = vld [vmem:[%s4090 + $0x14] sm:$0xf]
        %v4097 = vunpack.c.l.bf16 %v4091
        %v4098 = vunpack.c.l.bf16 %v4092
        %v4099 = vunpack.c.l.bf16 %v4093
        %v4100 = vunpack.c.l.bf16 %v4094
        %v4101 = vunpack.c.l.bf16 %v4095
        %v4102 = vunpack.c.l.bf16 %v4096
        %v4103 = vadd.f32 %v4084, %v4097
        %v4104 = vadd.f32 %v4085, %v4098
        %v4105 = vadd.f32 %v4086, %v4099
        %v4106 = vadd.f32 %v4087, %v4100
        %v4107 = vadd.f32 %v4088, %v4101
        %v4108 = vadd.f32 %v4089, %v4102
        %v4109 = vsel %vm1865, %v4103, -inf
        %4110 = vmax.xlane.f32.xlu0 %v4109
        %v4111 = vpop.xlane.xlu0 %4110
        %v4112 = vsel %vm1865, %v4104, -inf
        %4113 = vmax.xlane.f32.xlu0 %v4112
        %v4114 = vpop.xlane.xlu0 %4113
        %v4115 = vsel %vm1865, %v4105, -inf
        %4116 = vmax.xlane.f32.xlu0 %v4115
        %v4117 = vpop.xlane.xlu0 %4116
        %v4118 = vsel %vm1865, %v4106, -inf
        %4119 = vmax.xlane.f32.xlu0 %v4118
        %v4120 = vpop.xlane.xlu0 %4119
        %v4121 = vsel %vm1865, %v4107, -inf
        %4122 = vmax.xlane.f32.xlu0 %v4121
        %v4123 = vpop.xlane.xlu0 %4122
        %v4124 = vsel %vm1865, %v4108, -inf
        %4125 = vmax.xlane.f32.xlu0 %v4124
        %v4126 = vpop.xlane.xlu0 %4125
        %v4127 = vsub.f32 %v4103, %v4111
        %v4128 = vsub.f32 %v4104, %v4114
        %v4129 = vsub.f32 %v4105, %v4117
        %v4130 = vsub.f32 %v4106, %v4120
        %v4131 = vsub.f32 %v4107, %v4123
        %v4132 = vsub.f32 %v4108, %v4126
        %v4133 = vmul.f32 %v4127, 1.442695
        %v4134 = vpow.pop %v4133
        %v4135 = vmul.f32 %v4128, 1.442695
        %v4136 = vpow.pop %v4135
        %v4137 = vmul.f32 %v4129, 1.442695
        %v4138 = vpow.pop %v4137
        %v4139 = vmul.f32 %v4130, 1.442695
        %v4140 = vpow.pop %v4139
        %v4141 = vmul.f32 %v4131, 1.442695
        %v4142 = vpow.pop %v4141
        %v4143 = vmul.f32 %v4132, 1.442695
        %v4144 = vpow.pop %v4143
        %v4145 = vsel %vm1865, %v4134, 0.0
        %4146 = vadd.xlane.f32.xlu0 %v4145
        %v4147 = vpop.xlane.xlu0 %4146
        %v4148 = vsel %vm1865, %v4136, 0.0
        %4149 = vadd.xlane.f32.xlu0 %v4148
        %v4150 = vpop.xlane.xlu0 %4149
        %v4151 = vsel %vm1865, %v4138, 0.0
        %4152 = vadd.xlane.f32.xlu0 %v4151
        %v4153 = vpop.xlane.xlu0 %4152
        %v4154 = vsel %vm1865, %v4140, 0.0
        %4155 = vadd.xlane.f32.xlu0 %v4154
        %v4156 = vpop.xlane.xlu0 %4155
        %v4157 = vsel %vm1865, %v4142, 0.0
        %4158 = vadd.xlane.f32.xlu0 %v4157
        %v4159 = vpop.xlane.xlu0 %4158
        %v4160 = vsel %vm1865, %v4144, 0.0
        %4161 = vadd.xlane.f32.xlu0 %v4160
        %v4162 = vpop.xlane.xlu0 %4161
        %v4163 = vrcp.pop %v4147
        %v4164 = vrcp.pop %v4150
        %v4165 = vrcp.pop %v4153
        %v4166 = vrcp.pop %v4156
        %v4167 = vrcp.pop %v4159
        %v4168 = vrcp.pop %v4162
        %v4169 = vmul.f32 %v4134, %v4163
        %v4170 = vmul.f32 %v4136, %v4164
        %v4171 = vmul.f32 %v4138, %v4165
        %v4172 = vmul.f32 %v4140, %v4166
        %v4173 = vmul.f32 %v4142, %v4167
        %v4174 = vmul.f32 %v4144, %v4168
        %v4175 = vpack.c.bf16 %v4170, %v4169
        %v4176 = vpack.c.bf16 %v4172, %v4171
        %v4177 = vpack.c.bf16 %v4174, %v4173
        %4178 = vrot.lane.b32.xlu0 %v2648, 72
        %v4179 = vpop.permute.xlu0 %4178
        %4180 = vrot.lane.b32.xlu0 %v2649, 72
        %v4181 = vpop.permute.xlu0 %4180
        %4182 = vrot.lane.b32.xlu0 %v2650, 72
        %v4183 = vpop.permute.xlu0 %4182
        %v4188 = vsel %vm1865, %v4175, 0
        %v4191 = vsel %vm1865, %v4176, 0
        %v4194 = vsel %vm1865, %v4177, 0
        %4196 = vmatpush.bf16.msra.mxu0 0
        %4197 = vmatpush.bf16.msra.mxu0 0
        %4198 = vmatpush.bf16.msra.mxu0 0
        %4199 = vmatpush.bf16.msra.mxu0 0
        %4200 = vmatpush.bf16.msra.mxu0 0
        %4201 = vmatpush.bf16.msra.mxu0 %v4183
        %4202 = vmatpush.bf16.msra.mxu0 %v4181
        %4203 = vmatpush.bf16.msra.mxu0 %v4179
        %4204 = vmatmul.bf16.gmra.mxu0 %v4188
        %v4205 = vpop.f32.mrf.mxu0
        %v4206 = vadd.f32 0.0, %v4205
        %v4207 = vpop.f32.mrf.mxu0
        %v4208 = vadd.f32 0.0, %v4207
        %4209 = vmatmul.bf16.gmra.mxu0 %v4191
        %v4210 = vpop.f32.mrf.mxu0
        %v4211 = vadd.f32 0.0, %v4210
        %v4212 = vpop.f32.mrf.mxu0
        %v4213 = vadd.f32 0.0, %v4212
        %4214 = vmatmul.bf16.gmra.mxu0 %v4194
        %v4215 = vpop.f32.mrf.mxu0
        %v4216 = vadd.f32 0.0, %v4215
        %v4217 = vpop.f32.mrf.mxu0
        %v4218 = vadd.f32 0.0, %v4217
        %4219 = vdwg.mxu0
        %4226 = vrot.lane.b32.xlu0 %v2892, 8
        %v4227 = vpop.permute.xlu0 %4226
        %4228 = vrot.lane.b32.xlu0 %v2894, 8
        %v4229 = vpop.permute.xlu0 %4228
        %4230 = vrot.lane.b32.xlu0 %v2897, 8
        %v4231 = vpop.permute.xlu0 %4230
        %4232 = vrot.lane.b32.xlu0 %v2899, 8
        %v4233 = vpop.permute.xlu0 %4232
        %4234 = vrot.lane.b32.xlu0 %v2902, 8
        %v4235 = vpop.permute.xlu0 %4234
        %4236 = vrot.lane.b32.xlu0 %v2904, 8
        %v4237 = vpop.permute.xlu0 %4236
        %4250 = vrot.lane.b32.xlu0 %v3111, 16
        %v4251 = vpop.permute.xlu0 %4250
        %4252 = vrot.lane.b32.xlu0 %v3113, 16
        %v4253 = vpop.permute.xlu0 %4252
        %4254 = vrot.lane.b32.xlu0 %v3116, 16
        %v4255 = vpop.permute.xlu0 %4254
        %4256 = vrot.lane.b32.xlu0 %v3118, 16
        %v4257 = vpop.permute.xlu0 %4256
        %4258 = vrot.lane.b32.xlu0 %v3121, 16
        %v4259 = vpop.permute.xlu0 %4258
        %4260 = vrot.lane.b32.xlu0 %v3123, 16
        %v4261 = vpop.permute.xlu0 %4260
        %4274 = vrot.lane.b32.xlu0 %v3330, 24
        %v4275 = vpop.permute.xlu0 %4274
        %4276 = vrot.lane.b32.xlu0 %v3332, 24
        %v4277 = vpop.permute.xlu0 %4276
        %4278 = vrot.lane.b32.xlu0 %v3335, 24
        %v4279 = vpop.permute.xlu0 %4278
        %4280 = vrot.lane.b32.xlu0 %v3337, 24
        %v4281 = vpop.permute.xlu0 %4280
        %4282 = vrot.lane.b32.xlu0 %v3340, 24
        %v4283 = vpop.permute.xlu0 %4282
        %4284 = vrot.lane.b32.xlu0 %v3342, 24
        %v4285 = vpop.permute.xlu0 %4284
        %4298 = vrot.lane.b32.xlu0 %v3549, 32
        %v4299 = vpop.permute.xlu0 %4298
        %4300 = vrot.lane.b32.xlu0 %v3551, 32
        %v4301 = vpop.permute.xlu0 %4300
        %4302 = vrot.lane.b32.xlu0 %v3554, 32
        %v4303 = vpop.permute.xlu0 %4302
        %4304 = vrot.lane.b32.xlu0 %v3556, 32
        %v4305 = vpop.permute.xlu0 %4304
        %4306 = vrot.lane.b32.xlu0 %v3559, 32
        %v4307 = vpop.permute.xlu0 %4306
        %4308 = vrot.lane.b32.xlu0 %v3561, 32
        %v4309 = vpop.permute.xlu0 %4308
        %4322 = vrot.lane.b32.xlu0 %v3768, 40
        %v4323 = vpop.permute.xlu0 %4322
        %4324 = vrot.lane.b32.xlu0 %v3770, 40
        %v4325 = vpop.permute.xlu0 %4324
        %4326 = vrot.lane.b32.xlu0 %v3773, 40
        %v4327 = vpop.permute.xlu0 %4326
        %4328 = vrot.lane.b32.xlu0 %v3775, 40
        %v4329 = vpop.permute.xlu0 %4328
        %4330 = vrot.lane.b32.xlu0 %v3778, 40
        %v4331 = vpop.permute.xlu0 %4330
        %4332 = vrot.lane.b32.xlu0 %v3780, 40
        %v4333 = vpop.permute.xlu0 %4332
        %4346 = vrot.lane.b32.xlu0 %v3987, 48
        %v4347 = vpop.permute.xlu0 %4346
        %4348 = vrot.lane.b32.xlu0 %v3989, 48
        %v4349 = vpop.permute.xlu0 %4348
        %4350 = vrot.lane.b32.xlu0 %v3992, 48
        %v4351 = vpop.permute.xlu0 %4350
        %4352 = vrot.lane.b32.xlu0 %v3994, 48
        %v4353 = vpop.permute.xlu0 %4352
        %4354 = vrot.lane.b32.xlu0 %v3997, 48
        %v4355 = vpop.permute.xlu0 %4354
        %4356 = vrot.lane.b32.xlu0 %v3999, 48
        %v4357 = vpop.permute.xlu0 %4356
        %4370 = vrot.lane.b32.xlu0 %v4206, 56
        %v4371 = vpop.permute.xlu0 %4370
        %4372 = vrot.lane.b32.xlu0 %v4208, 56
        %v4373 = vpop.permute.xlu0 %4372
        %4374 = vrot.lane.b32.xlu0 %v4211, 56
        %v4375 = vpop.permute.xlu0 %4374
        %4376 = vrot.lane.b32.xlu0 %v4213, 56
        %v4377 = vpop.permute.xlu0 %4376
        %4378 = vrot.lane.b32.xlu0 %v4216, 56
        %v4379 = vpop.permute.xlu0 %4378
        %4380 = vrot.lane.b32.xlu0 %v4218, 56
        %v4381 = vpop.permute.xlu0 %4380
        %v4388 = vsel %vm681, %v2673, %v4227
        %v4389 = vsel %vm681, %v2675, %v4229
        %v4390 = vsel %vm681, %v2678, %v4231
        %v4391 = vsel %vm681, %v2680, %v4233
        %v4392 = vsel %vm681, %v2683, %v4235
        %v4393 = vsel %vm681, %v2685, %v4237
        %v4394 = vsel %vm733, %v4388, %v4251
        %v4395 = vsel %vm733, %v4389, %v4253
        %v4396 = vsel %vm733, %v4390, %v4255
        %v4397 = vsel %vm733, %v4391, %v4257
        %v4398 = vsel %vm733, %v4392, %v4259
        %v4399 = vsel %vm733, %v4393, %v4261
        %v4400 = vsel %vm1850, %v4394, %v4275
        %v4401 = vsel %vm1850, %v4395, %v4277
        %v4402 = vsel %vm1850, %v4396, %v4279
        %v4403 = vsel %vm1850, %v4397, %v4281
        %v4404 = vsel %vm1850, %v4398, %v4283
        %v4405 = vsel %vm1850, %v4399, %v4285
        %v4406 = vsel %vm1855, %v4400, %v4299
        %v4407 = vsel %vm1855, %v4401, %v4301
        %v4408 = vsel %vm1855, %v4402, %v4303
        %v4409 = vsel %vm1855, %v4403, %v4305
        %v4410 = vsel %vm1855, %v4404, %v4307
        %v4411 = vsel %vm1855, %v4405, %v4309
        %v4412 = vsel %vm1860, %v4406, %v4323
        %v4413 = vsel %vm1860, %v4407, %v4325
        %v4414 = vsel %vm1860, %v4408, %v4327
        %v4415 = vsel %vm1860, %v4409, %v4329
        %v4416 = vsel %vm1860, %v4410, %v4331
        %v4417 = vsel %vm1860, %v4411, %v4333
        %v4418 = vsel %vm1865, %v4412, %v4347
        %v4419 = vsel %vm1865, %v4413, %v4349
        %v4420 = vsel %vm1865, %v4414, %v4351
        %v4421 = vsel %vm1865, %v4415, %v4353
        %v4422 = vsel %vm1865, %v4416, %v4355
        %v4423 = vsel %vm1865, %v4417, %v4357
        %v4424 = vsel %vm1870, %v4418, %v4371
        %v4425 = vsel %vm1870, %v4419, %v4373
        %v4426 = vsel %vm1870, %v4420, %v4375
        %v4427 = vsel %vm1870, %v4421, %v4377
        %v4428 = vsel %vm1870, %v4422, %v4379
        %v4429 = vsel %vm1870, %v4423, %v4381
        %v4430 = vpack.c.bf16 %v4425, %v4424
        %v4431 = vpack.c.bf16 %v4427, %v4426
        %v4432 = vpack.c.bf16 %v4429, %v4428
        %v4433 = vld [vmem:[%s14] sm:$0xf]
        %v4434 = vld [vmem:[%s14 + $0x4] sm:$0xf]
        %v4435 = vld [vmem:[%s14 + $0x8] sm:$0xf]
        %v4436 = vld [vmem:[%s14 + $0xc] sm:$0xf]
        %v4437 = vld [vmem:[%s14 + $0x10] sm:$0xf]
        %v4438 = vld [vmem:[%s14 + $0x14] sm:$0xf]
        %v4439 = vld [vmem:[%s14 + $0x18] sm:$0xf]
        %v4440 = vld [vmem:[%s14 + $0x1c] sm:$0xf]
        %v4449 = vunpack.c.l.b16 %v4433
        %v4450 = vunpack.c.l.b16 %v4434
        %v4451 = vunpack.c.l.b16 %v4435
        %v4452 = vunpack.c.l.b16 %v4436
        %v4453 = vunpack.c.l.b16 %v4437
        %v4454 = vunpack.c.l.b16 %v4438
        %v4455 = vunpack.c.l.b16 %v4439
        %v4456 = vunpack.c.l.b16 %v4440
        %v4457 = vpack.c.b16 %v4450, %v4449
        %v4458 = vpack.c.b16 %v4452, %v4451
        %v4459 = vpack.c.b16 %v4454, %v4453
        %v4460 = vpack.c.b16 %v4456, %v4455
        %v4466 = vsel %vm599, %v4430, 0
        %v4469 = vsel %vm599, %v4431, 0
        %v4472 = vsel %vm599, %v4432, 0
        %4474 = vmatpush.bf16.msra.mxu0 0
        %4475 = vmatpush.bf16.msra.mxu0 0
        %4476 = vmatpush.bf16.msra.mxu0 0
        %4477 = vmatpush.bf16.msra.mxu0 0
        %4478 = vmatpush.bf16.msra.mxu0 %v4460
        %4479 = vmatpush.bf16.msra.mxu0 %v4459
        %4480 = vmatpush.bf16.msra.mxu0 %v4458
        %4481 = vmatpush.bf16.msra.mxu0 %v4457
        %4482 = vmatmul.bf16.gmra.mxu0 %v4466
        %v4483 = vpop.f32.mrf.mxu0
        %v4484 = vadd.f32 0.0, %v4483
        %v4485 = vpop.f32.mrf.mxu0
        %v4486 = vadd.f32 0.0, %v4485
        %4487 = vmatmul.bf16.gmra.mxu0 %v4469
        %v4488 = vpop.f32.mrf.mxu0
        %v4489 = vadd.f32 0.0, %v4488
        %v4490 = vpop.f32.mrf.mxu0
        %v4491 = vadd.f32 0.0, %v4490
        %4492 = vmatmul.bf16.gmra.mxu0 %v4472
        %v4493 = vpop.f32.mrf.mxu0
        %v4494 = vadd.f32 0.0, %v4493
        %v4495 = vpop.f32.mrf.mxu0
        %v4496 = vadd.f32 0.0, %v4495
        %4497 = vdwg.mxu0
        %v4498 = vadd.f32 %v2207, %v4484
        %v4499 = vadd.f32 %v2208, %v4486
        %v4500 = vadd.f32 %v2209, %v4489
        %v4501 = vadd.f32 %v2210, %v4491
        %v4502 = vadd.f32 %v2211, %v4494
        %v4503 = vadd.f32 %v2212, %v4496
        %v4504 = vld [vmem:[%s15] sm:$0x1]
        %v4506 = vperm.slane %v4504, 0
        %v4508 = vadd.f32 %v4498, %v4506
        %v4509 = vadd.f32 %v4499, %v4506
        %v4510 = vadd.f32 %v4500, %v4506
        %v4511 = vadd.f32 %v4501, %v4506
        %v4512 = vadd.f32 %v4502, %v4506
        %v4513 = vadd.f32 %v4503, %v4506
        %v4514 = vsel %vm599, %v4508, 0.0
        %v4515 = vsel %vm599, %v4509, 0.0
        %v4516 = vadd.f32 %v4514, %v4515
        %v4517 = vsel %vm599, %v4510, 0.0
        %v4518 = vadd.f32 %v4516, %v4517
        %v4519 = vsel %vm599, %v4511, 0.0
        %v4520 = vadd.f32 %v4518, %v4519
        %v4521 = vsel %vm599, %v4512, 0.0
        %v4522 = vadd.f32 %v4520, %v4521
        %v4523 = vsel %vm599, %v4513, 0.0
        %v4524 = vadd.f32 %v4522, %v4523
        %v4525 = vrot.slane %v4524, 4
        %v4526 = vadd.f32 %v4524, %v4525
        %v4527 = vrot.slane %v4526, 2
        %v4528 = vadd.f32 %v4526, %v4527
        %v4529 = vrot.slane %v4528, 1
        %v4530 = vadd.f32 %v4528, %v4529
        %4531 = vrot.lane.b32.xlu0 %v4530, 64
        %v4532 = vpop.permute.xlu0 %4531
        %v4533 = vsel %vm2244, %v4532, %v4530
        %4534 = vrot.lane.b32.xlu0 %v4533, 64
        %v4535 = vpop.permute.xlu0 %4534
        %v4536 = vsel %vm2244, %v4535, %v4530
        %4538 = vrot.lane.b32.xlu0 %v4536, 127
        %v4539 = vpop.permute.xlu0 %4538
        %4541 = vrot.lane.b32.xlu0 %v4536, 65
        %v4542 = vpop.permute.xlu0 %4541
        %v4544 = vsel %vm2251, %v4539, %v4542
        %v4545 = vadd.f32 %v4530, %v4544
        %v4546 = vmul.f32 %v4545, 0.010416667
        %v4547 = vperm.slane %v4546, 0
        %v4548 = vsub.f32 %v4508, %v4547
        %v4549 = vsub.f32 %v4509, %v4547
        %v4550 = vsub.f32 %v4510, %v4547
        %v4551 = vsub.f32 %v4511, %v4547
        %v4552 = vsub.f32 %v4512, %v4547
        %v4553 = vsub.f32 %v4513, %v4547
        %v4554 = vmul.f32 %v4548, %v4548
        %v4555 = vmul.f32 %v4549, %v4549
        %v4556 = vmul.f32 %v4550, %v4550
        %v4557 = vmul.f32 %v4551, %v4551
        %v4558 = vmul.f32 %v4552, %v4552
        %v4559 = vmul.f32 %v4553, %v4553
        %v4560 = vsel %vm599, %v4554, 0.0
        %v4561 = vsel %vm599, %v4555, 0.0
        %v4562 = vadd.f32 %v4560, %v4561
        %v4563 = vsel %vm599, %v4556, 0.0
        %v4564 = vadd.f32 %v4562, %v4563
        %v4565 = vsel %vm599, %v4557, 0.0
        %v4566 = vadd.f32 %v4564, %v4565
        %v4567 = vsel %vm599, %v4558, 0.0
        %v4568 = vadd.f32 %v4566, %v4567
        %v4569 = vsel %vm599, %v4559, 0.0
        %v4570 = vadd.f32 %v4568, %v4569
        %v4571 = vrot.slane %v4570, 4
        %v4572 = vadd.f32 %v4570, %v4571
        %v4573 = vrot.slane %v4572, 2
        %v4574 = vadd.f32 %v4572, %v4573
        %v4575 = vrot.slane %v4574, 1
        %v4576 = vadd.f32 %v4574, %v4575
        %4577 = vrot.lane.b32.xlu0 %v4576, 64
        %v4578 = vpop.permute.xlu0 %4577
        %v4579 = vsel %vm2244, %v4578, %v4576
        %4580 = vrot.lane.b32.xlu0 %v4579, 64
        %v4581 = vpop.permute.xlu0 %4580
        %v4582 = vsel %vm2244, %v4581, %v4576
        %4584 = vrot.lane.b32.xlu0 %v4582, 127
        %v4585 = vpop.permute.xlu0 %4584
        %4587 = vrot.lane.b32.xlu0 %v4582, 65
        %v4588 = vpop.permute.xlu0 %4587
        %v4590 = vsel %vm2251, %v4585, %v4588
        %v4591 = vadd.f32 %v4576, %v4590
        %v4592 = vmul.f32 %v4591, 0.010416667
        %v4593 = vadd.f32 %v4592, 1e-05
        %v4594 = vrsqrt.pop %v4593
        %v4595 = vmul.f32 %v4594, %v4593
        %v4596 = vmul.f32 %v4595, %v4594
        %v4597 = vmul.f32 0.5, %v4596
        %v4598 = vsub.f32 1.5, %v4597
        %v4599 = vmul.f32 %v4594, %v4598
        %vm4600 = vweird.f32 %v4593
        %vm4601 = vweird.f32 %v4594
        %vm4602 = vmor %vm4600, %vm4601
        %v4603 = vsel %vm4602, %v4594, %v4599
        %v4604 = vperm.slane %v4603, 0
        %v4605 = vmul.f32 %v4548, %v4604
        %v4606 = vmul.f32 %v4549, %v4604
        %v4607 = vmul.f32 %v4550, %v4604
        %v4608 = vmul.f32 %v4551, %v4604
        %v4609 = vmul.f32 %v4552, %v4604
        %v4610 = vmul.f32 %v4553, %v4604
        %s4611 = scalar_lea.vmem %s10, 1
        %v4612 = vld [vmem:[%s4611] sm:$0x1]
        %v4614 = vperm.slane %v4612, 0
        %v4616 = vmul.f32 %v4605, %v4614
        %v4617 = vmul.f32 %v4606, %v4614
        %v4618 = vmul.f32 %v4607, %v4614
        %v4619 = vmul.f32 %v4608, %v4614
        %v4620 = vmul.f32 %v4609, %v4614
        %v4621 = vmul.f32 %v4610, %v4614
        %s4622 = scalar_lea.vmem %s11, 1
        %v4623 = vld [vmem:[%s4622] sm:$0x1]
        %v4625 = vperm.slane %v4623, 0
        %v4627 = vadd.f32 %v4616, %v4625
        %v4628 = vadd.f32 %v4617, %v4625
        %v4629 = vadd.f32 %v4618, %v4625
        %v4630 = vadd.f32 %v4619, %v4625
        %v4631 = vadd.f32 %v4620, %v4625
        %v4632 = vadd.f32 %v4621, %v4625
        %v4633 = vpack.c.bf16 %v4628, %v4627
        %v4634 = vpack.c.bf16 %v4630, %v4629
        %v4635 = vpack.c.bf16 %v4632, %v4631
        %s4636 = scalar_lea.vmem %s12, 64
        %v4637 = vld [vmem:[%s4636] sm:$0xff]
        %v4638 = vld [vmem:[%s4636 + $0x8] sm:$0xff]
        %v4639 = vld [vmem:[%s4636 + $0x10] sm:$0xff]
        %v4640 = vld [vmem:[%s4636 + $0x18] sm:$0xff]
        %v4641 = vld [vmem:[%s4636 + $0x20] sm:$0xff]
        %v4642 = vld [vmem:[%s4636 + $0x28] sm:$0xff]
        %v4643 = vld [vmem:[%s4636 + $0x30] sm:$0xff]
        %v4644 = vld [vmem:[%s4636 + $0x38] sm:$0xff]
        %s4645 = scalar_lea.vmem %s13, 2
        %v4646 = vld [vmem:[%s4645] sm:$0x3]
        %v4648 = vperm.slane %v4646, 0
        %v4649 = vperm.slane %v4646, 1
        %v4660 = vunpack.c.l.b16 %v4637
        %v4661 = vunpack.c.h.b16 %v4637
        %v4662 = vunpack.c.l.b16 %v4638
        %v4663 = vunpack.c.h.b16 %v4638
        %v4664 = vunpack.c.l.b16 %v4639
        %v4665 = vunpack.c.h.b16 %v4639
        %v4666 = vunpack.c.l.b16 %v4640
        %v4667 = vunpack.c.h.b16 %v4640
        %v4668 = vunpack.c.l.b16 %v4641
        %v4669 = vunpack.c.h.b16 %v4641
        %v4670 = vunpack.c.l.b16 %v4642
        %v4671 = vunpack.c.h.b16 %v4642
        %v4672 = vunpack.c.l.b16 %v4643
        %v4673 = vunpack.c.h.b16 %v4643
        %v4674 = vunpack.c.l.b16 %v4644
        %v4675 = vunpack.c.h.b16 %v4644
        %v4676 = vpack.c.b16 %v4662, %v4660
        %v4677 = vpack.c.b16 %v4663, %v4661
        %v4678 = vpack.c.b16 %v4666, %v4664
        %v4679 = vpack.c.b16 %v4667, %v4665
        %v4680 = vpack.c.b16 %v4670, %v4668
        %v4681 = vpack.c.b16 %v4671, %v4669
        %v4682 = vpack.c.b16 %v4674, %v4672
        %v4683 = vpack.c.b16 %v4675, %v4673
        %v4693 = vsel %vm599, %v4633, 0
        %v4696 = vsel %vm599, %v4634, 0
        %v4699 = vsel %vm599, %v4635, 0
        %4701 = vmatpush.bf16.msra.mxu0 0
        %4702 = vmatpush.bf16.msra.mxu0 0
        %4703 = vmatpush.bf16.msra.mxu0 0
        %4704 = vmatpush.bf16.msra.mxu0 0
        %4705 = vmatpush.bf16.msra.mxu0 %v4682
        %4706 = vmatpush.bf16.msra.mxu0 %v4680
        %4707 = vmatpush.bf16.msra.mxu0 %v4678
        %4708 = vmatpush.bf16.msra.mxu0 %v4676
        %4709 = vmatmul.bf16.gmra.mxu0 %v4693
        %v4710 = vpop.f32.mrf.mxu0
        %v4711 = vadd.f32 %v4648, %v4710
        %v4712 = vpop.f32.mrf.mxu0
        %v4713 = vadd.f32 %v4648, %v4712
        %4714 = vmatmul.bf16.gmra.mxu0 %v4696
        %v4715 = vpop.f32.mrf.mxu0
        %v4716 = vadd.f32 %v4648, %v4715
        %v4717 = vpop.f32.mrf.mxu0
        %v4718 = vadd.f32 %v4648, %v4717
        %4719 = vmatmul.bf16.gmra.mxu0 %v4699
        %v4720 = vpop.f32.mrf.mxu0
        %v4721 = vadd.f32 %v4648, %v4720
        %v4722 = vpop.f32.mrf.mxu0
        %v4723 = vadd.f32 %v4648, %v4722
        %4724 = vdwg.mxu0
        %4725 = vmatpush.bf16.msra.mxu0 0
        %4726 = vmatpush.bf16.msra.mxu0 0
        %4727 = vmatpush.bf16.msra.mxu0 0
        %4728 = vmatpush.bf16.msra.mxu0 0
        %4729 = vmatpush.bf16.msra.mxu0 %v4683
        %4730 = vmatpush.bf16.msra.mxu0 %v4681
        %4731 = vmatpush.bf16.msra.mxu0 %v4679
        %4732 = vmatpush.bf16.msra.mxu0 %v4677
        %4733 = vmatmul.bf16.gmra.mxu0 %v4693
        %v4734 = vpop.f32.mrf.mxu0
        %v4735 = vadd.f32 %v4649, %v4734
        %v4736 = vpop.f32.mrf.mxu0
        %v4737 = vadd.f32 %v4649, %v4736
        %4738 = vmatmul.bf16.gmra.mxu0 %v4696
        %v4739 = vpop.f32.mrf.mxu0
        %v4740 = vadd.f32 %v4649, %v4739
        %v4741 = vpop.f32.mrf.mxu0
        %v4742 = vadd.f32 %v4649, %v4741
        %4743 = vmatmul.bf16.gmra.mxu0 %v4699
        %v4744 = vpop.f32.mrf.mxu0
        %v4745 = vadd.f32 %v4649, %v4744
        %v4746 = vpop.f32.mrf.mxu0
        %v4747 = vadd.f32 %v4649, %v4746
        %4748 = vdwg.mxu0
        %v4749 = vpack.c.bf16 %v4735, %v4735
        %v4750 = vpack.c.bf16 %v4737, %v4737
        %v4751 = vpack.c.bf16 %v4740, %v4740
        %v4752 = vpack.c.bf16 %v4742, %v4742
        %v4753 = vpack.c.bf16 %v4745, %v4745
        %v4754 = vpack.c.bf16 %v4747, %v4747
        %4761 = vrot.lane.b32.xlu0 %v4711, 64
        %v4762 = vpop.permute.xlu0 %4761
        %4763 = vrot.lane.b32.xlu0 %v4713, 64
        %v4764 = vpop.permute.xlu0 %4763
        %4765 = vrot.lane.b32.xlu0 %v4716, 64
        %v4766 = vpop.permute.xlu0 %4765
        %4767 = vrot.lane.b32.xlu0 %v4718, 64
        %v4768 = vpop.permute.xlu0 %4767
        %4769 = vrot.lane.b32.xlu0 %v4721, 64
        %v4770 = vpop.permute.xlu0 %4769
        %4771 = vrot.lane.b32.xlu0 %v4723, 64
        %v4772 = vpop.permute.xlu0 %4771
        %v4773 = vsel %vm681, %v4711, 0
        %v4775 = vsel %vm681, %v4713, 0
        %v4777 = vsel %vm681, %v4716, 0
        %v4779 = vsel %vm681, %v4718, 0
        %v4781 = vsel %vm681, %v4721, 0
        %v4783 = vsel %vm681, %v4723, 0
        %v4785 = vsel %vm681, %v4762, 0
        %v4787 = vsel %vm681, %v4764, 0
        %v4789 = vsel %vm681, %v4766, 0
        %v4791 = vsel %vm681, %v4768, 0
        %v4793 = vsel %vm681, %v4770, 0
        %v4795 = vsel %vm681, %v4772, 0
        %4797 = vmatpush.xpose.msra.mxu0 0.0
        %4798 = vmatpush.xpose.msra.mxu0 0.0
        %4799 = vmatpush.xpose.msra.mxu0 0.0
        %4800 = vmatpush.xpose.msra.mxu0 0.0
        %4801 = vmatpush.xpose.msra.mxu0 0.0
        %4802 = vmatpush.xpose.msra.mxu0 0.0
        %4803 = vmatpush.xpose.msra.mxu0 0.0
        %4804 = vmatpush.xpose.msra.mxu0 0.0
        %4805 = vmatpush.xpose.msra.mxu0 0.0
        %4806 = vmatpush.xpose.msra.mxu0 0.0
        %4807 = vmatpush.xpose.msra.mxu0 %v4795
        %4808 = vmatpush.xpose.msra.mxu0 %v4793
        %4809 = vmatpush.xpose.msra.mxu0 %v4791
        %4810 = vmatpush.xpose.msra.mxu0 %v4789
        %4811 = vmatpush.xpose.msra.mxu0 %v4787
        %4812 = vmatpush.xpose.msra.mxu0 %v4785
        %4813 = vmatmul.f32.gmra.mxu0 %v4773
        %v4814 = vpop.f32.mrf.mxu0
        %v4815 = vadd.f32 0.0, %v4814
        %4816 = vmatmul.f32.gmra.mxu0 %v4775
        %v4817 = vpop.f32.mrf.mxu0
        %v4818 = vadd.f32 0.0, %v4817
        %4819 = vmatmul.f32.gmra.mxu0 %v4777
        %v4820 = vpop.f32.mrf.mxu0
        %v4821 = vadd.f32 0.0, %v4820
        %4822 = vmatmul.f32.gmra.mxu0 %v4779
        %v4823 = vpop.f32.mrf.mxu0
        %v4824 = vadd.f32 0.0, %v4823
        %4825 = vmatmul.f32.gmra.mxu0 %v4781
        %v4826 = vpop.f32.mrf.mxu0
        %v4827 = vadd.f32 0.0, %v4826
        %4828 = vmatmul.f32.gmra.mxu0 %v4783
        %v4829 = vpop.f32.mrf.mxu0
        %v4830 = vadd.f32 0.0, %v4829
        %4831 = vdwg.mxu0
        %v4832 = vmul.f32 %v4815, 0.35355338
        %v4833 = vmul.f32 %v4818, 0.35355338
        %v4834 = vmul.f32 %v4821, 0.35355338
        %v4835 = vmul.f32 %v4824, 0.35355338
        %v4836 = vmul.f32 %v4827, 0.35355338
        %v4837 = vmul.f32 %v4830, 0.35355338
        %s4838 = scalar_lea.vmem %s16, 192
        %v4839 = vld [vmem:[%s4838] sm:$0xf]
        %v4840 = vld [vmem:[%s4838 + $0x4] sm:$0xf]
        %v4841 = vld [vmem:[%s4838 + $0x8] sm:$0xf]
        %v4842 = vld [vmem:[%s4838 + $0xc] sm:$0xf]
        %v4843 = vld [vmem:[%s4838 + $0x10] sm:$0xf]
        %v4844 = vld [vmem:[%s4838 + $0x14] sm:$0xf]
        %v4845 = vunpack.c.l.bf16 %v4839
        %v4846 = vunpack.c.l.bf16 %v4840
        %v4847 = vunpack.c.l.bf16 %v4841
        %v4848 = vunpack.c.l.bf16 %v4842
        %v4849 = vunpack.c.l.bf16 %v4843
        %v4850 = vunpack.c.l.bf16 %v4844
        %v4851 = vadd.f32 %v4832, %v4845
        %v4852 = vadd.f32 %v4833, %v4846
        %v4853 = vadd.f32 %v4834, %v4847
        %v4854 = vadd.f32 %v4835, %v4848
        %v4855 = vadd.f32 %v4836, %v4849
        %v4856 = vadd.f32 %v4837, %v4850
        %v4857 = vsel %vm1865, %v4851, -inf
        %4858 = vmax.xlane.f32.xlu0 %v4857
        %v4859 = vpop.xlane.xlu0 %4858
        %v4860 = vsel %vm1865, %v4852, -inf
        %4861 = vmax.xlane.f32.xlu0 %v4860
        %v4862 = vpop.xlane.xlu0 %4861
        %v4863 = vsel %vm1865, %v4853, -inf
        %4864 = vmax.xlane.f32.xlu0 %v4863
        %v4865 = vpop.xlane.xlu0 %4864
        %v4866 = vsel %vm1865, %v4854, -inf
        %4867 = vmax.xlane.f32.xlu0 %v4866
        %v4868 = vpop.xlane.xlu0 %4867
        %v4869 = vsel %vm1865, %v4855, -inf
        %4870 = vmax.xlane.f32.xlu0 %v4869
        %v4871 = vpop.xlane.xlu0 %4870
        %v4872 = vsel %vm1865, %v4856, -inf
        %4873 = vmax.xlane.f32.xlu0 %v4872
        %v4874 = vpop.xlane.xlu0 %4873
        %v4875 = vsub.f32 %v4851, %v4859
        %v4876 = vsub.f32 %v4852, %v4862
        %v4877 = vsub.f32 %v4853, %v4865
        %v4878 = vsub.f32 %v4854, %v4868
        %v4879 = vsub.f32 %v4855, %v4871
        %v4880 = vsub.f32 %v4856, %v4874
        %v4881 = vmul.f32 %v4875, 1.442695
        %v4882 = vpow.pop %v4881
        %v4883 = vmul.f32 %v4876, 1.442695
        %v4884 = vpow.pop %v4883
        %v4885 = vmul.f32 %v4877, 1.442695
        %v4886 = vpow.pop %v4885
        %v4887 = vmul.f32 %v4878, 1.442695
        %v4888 = vpow.pop %v4887
        %v4889 = vmul.f32 %v4879, 1.442695
        %v4890 = vpow.pop %v4889
        %v4891 = vmul.f32 %v4880, 1.442695
        %v4892 = vpow.pop %v4891
        %v4893 = vsel %vm1865, %v4882, 0.0
        %4894 = vadd.xlane.f32.xlu0 %v4893
        %v4895 = vpop.xlane.xlu0 %4894
        %v4896 = vsel %vm1865, %v4884, 0.0
        %4897 = vadd.xlane.f32.xlu0 %v4896
        %v4898 = vpop.xlane.xlu0 %4897
        %v4899 = vsel %vm1865, %v4886, 0.0
        %4900 = vadd.xlane.f32.xlu0 %v4899
        %v4901 = vpop.xlane.xlu0 %4900
        %v4902 = vsel %vm1865, %v4888, 0.0
        %4903 = vadd.xlane.f32.xlu0 %v4902
        %v4904 = vpop.xlane.xlu0 %4903
        %v4905 = vsel %vm1865, %v4890, 0.0
        %4906 = vadd.xlane.f32.xlu0 %v4905
        %v4907 = vpop.xlane.xlu0 %4906
        %v4908 = vsel %vm1865, %v4892, 0.0
        %4909 = vadd.xlane.f32.xlu0 %v4908
        %v4910 = vpop.xlane.xlu0 %4909
        %v4911 = vrcp.pop %v4895
        %v4912 = vrcp.pop %v4898
        %v4913 = vrcp.pop %v4901
        %v4914 = vrcp.pop %v4904
        %v4915 = vrcp.pop %v4907
        %v4916 = vrcp.pop %v4910
        %v4917 = vmul.f32 %v4882, %v4911
        %v4918 = vmul.f32 %v4884, %v4912
        %v4919 = vmul.f32 %v4886, %v4913
        %v4920 = vmul.f32 %v4888, %v4914
        %v4921 = vmul.f32 %v4890, %v4915
        %v4922 = vmul.f32 %v4892, %v4916
        %v4923 = vpack.c.bf16 %v4918, %v4917
        %v4924 = vpack.c.bf16 %v4920, %v4919
        %v4925 = vpack.c.bf16 %v4922, %v4921
        %v4932 = vunpack.c.l.b16 %v4749
        %v4933 = vunpack.c.l.b16 %v4750
        %v4934 = vunpack.c.l.b16 %v4751
        %v4935 = vunpack.c.l.b16 %v4752
        %v4936 = vunpack.c.l.b16 %v4753
        %v4937 = vunpack.c.l.b16 %v4754
        %v4938 = vpack.c.b16 %v4933, %v4932
        %v4939 = vpack.c.b16 %v4935, %v4934
        %v4940 = vpack.c.b16 %v4937, %v4936
        %v4945 = vsel %vm1865, %v4923, 0
        %v4948 = vsel %vm1865, %v4924, 0
        %v4951 = vsel %vm1865, %v4925, 0
        %4953 = vmatpush.bf16.msra.mxu0 0
        %4954 = vmatpush.bf16.msra.mxu0 0
        %4955 = vmatpush.bf16.msra.mxu0 0
        %4956 = vmatpush.bf16.msra.mxu0 0
        %4957 = vmatpush.bf16.msra.mxu0 0
        %4958 = vmatpush.bf16.msra.mxu0 %v4940
        %4959 = vmatpush.bf16.msra.mxu0 %v4939
        %4960 = vmatpush.bf16.msra.mxu0 %v4938
        %4961 = vmatmul.bf16.gmra.mxu0 %v4945
        %v4962 = vpop.f32.mrf.mxu0
        %v4963 = vadd.f32 0.0, %v4962
        %v4964 = vpop.f32.mrf.mxu0
        %v4965 = vadd.f32 0.0, %v4964
        %4966 = vmatmul.bf16.gmra.mxu0 %v4948
        %v4967 = vpop.f32.mrf.mxu0
        %v4968 = vadd.f32 0.0, %v4967
        %v4969 = vpop.f32.mrf.mxu0
        %v4970 = vadd.f32 0.0, %v4969
        %4971 = vmatmul.bf16.gmra.mxu0 %v4951
        %v4972 = vpop.f32.mrf.mxu0
        %v4973 = vadd.f32 0.0, %v4972
        %v4974 = vpop.f32.mrf.mxu0
        %v4975 = vadd.f32 0.0, %v4974
        %4976 = vdwg.mxu0
        %4977 = vrot.lane.b32.xlu0 %v4711, 120
        %v4978 = vpop.permute.xlu0 %4977
        %4979 = vrot.lane.b32.xlu0 %v4713, 120
        %v4980 = vpop.permute.xlu0 %4979
        %4981 = vrot.lane.b32.xlu0 %v4716, 120
        %v4982 = vpop.permute.xlu0 %4981
        %4983 = vrot.lane.b32.xlu0 %v4718, 120
        %v4984 = vpop.permute.xlu0 %4983
        %4985 = vrot.lane.b32.xlu0 %v4721, 120
        %v4986 = vpop.permute.xlu0 %4985
        %4987 = vrot.lane.b32.xlu0 %v4723, 120
        %v4988 = vpop.permute.xlu0 %4987
        %4989 = vrot.lane.b32.xlu0 %v4711, 56
        %v4990 = vpop.permute.xlu0 %4989
        %4991 = vrot.lane.b32.xlu0 %v4713, 56
        %v4992 = vpop.permute.xlu0 %4991
        %4993 = vrot.lane.b32.xlu0 %v4716, 56
        %v4994 = vpop.permute.xlu0 %4993
        %4995 = vrot.lane.b32.xlu0 %v4718, 56
        %v4996 = vpop.permute.xlu0 %4995
        %4997 = vrot.lane.b32.xlu0 %v4721, 56
        %v4998 = vpop.permute.xlu0 %4997
        %4999 = vrot.lane.b32.xlu0 %v4723, 56
        %v5000 = vpop.permute.xlu0 %4999
        %v5001 = vsel %vm681, %v4978, 0
        %v5003 = vsel %vm681, %v4980, 0
        %v5005 = vsel %vm681, %v4982, 0
        %v5007 = vsel %vm681, %v4984, 0
        %v5009 = vsel %vm681, %v4986, 0
        %v5011 = vsel %vm681, %v4988, 0
        %v5013 = vsel %vm681, %v4990, 0
        %v5015 = vsel %vm681, %v4992, 0
        %v5017 = vsel %vm681, %v4994, 0
        %v5019 = vsel %vm681, %v4996, 0
        %v5021 = vsel %vm681, %v4998, 0
        %v5023 = vsel %vm681, %v5000, 0
        %5025 = vmatpush.xpose.msra.mxu0 0.0
        %5026 = vmatpush.xpose.msra.mxu0 0.0
        %5027 = vmatpush.xpose.msra.mxu0 0.0
        %5028 = vmatpush.xpose.msra.mxu0 0.0
        %5029 = vmatpush.xpose.msra.mxu0 0.0
        %5030 = vmatpush.xpose.msra.mxu0 0.0
        %5031 = vmatpush.xpose.msra.mxu0 0.0
        %5032 = vmatpush.xpose.msra.mxu0 0.0
        %5033 = vmatpush.xpose.msra.mxu0 0.0
        %5034 = vmatpush.xpose.msra.mxu0 0.0
        %5035 = vmatpush.xpose.msra.mxu0 %v5023
        %5036 = vmatpush.xpose.msra.mxu0 %v5021
        %5037 = vmatpush.xpose.msra.mxu0 %v5019
        %5038 = vmatpush.xpose.msra.mxu0 %v5017
        %5039 = vmatpush.xpose.msra.mxu0 %v5015
        %5040 = vmatpush.xpose.msra.mxu0 %v5013
        %5041 = vmatmul.f32.gmra.mxu0 %v5001
        %v5042 = vpop.f32.mrf.mxu0
        %v5043 = vadd.f32 0.0, %v5042
        %5044 = vmatmul.f32.gmra.mxu0 %v5003
        %v5045 = vpop.f32.mrf.mxu0
        %v5046 = vadd.f32 0.0, %v5045
        %5047 = vmatmul.f32.gmra.mxu0 %v5005
        %v5048 = vpop.f32.mrf.mxu0
        %v5049 = vadd.f32 0.0, %v5048
        %5050 = vmatmul.f32.gmra.mxu0 %v5007
        %v5051 = vpop.f32.mrf.mxu0
        %v5052 = vadd.f32 0.0, %v5051
        %5053 = vmatmul.f32.gmra.mxu0 %v5009
        %v5054 = vpop.f32.mrf.mxu0
        %v5055 = vadd.f32 0.0, %v5054
        %5056 = vmatmul.f32.gmra.mxu0 %v5011
        %v5057 = vpop.f32.mrf.mxu0
        %v5058 = vadd.f32 0.0, %v5057
        %5059 = vdwg.mxu0
        %v5060 = vmul.f32 %v5043, 0.35355338
        %v5061 = vmul.f32 %v5046, 0.35355338
        %v5062 = vmul.f32 %v5049, 0.35355338
        %v5063 = vmul.f32 %v5052, 0.35355338
        %v5064 = vmul.f32 %v5055, 0.35355338
        %v5065 = vmul.f32 %v5058, 0.35355338
        %s5066 = scalar_lea.vmem %s16, 216
        %v5067 = vld [vmem:[%s5066] sm:$0xf]
        %v5068 = vld [vmem:[%s5066 + $0x4] sm:$0xf]
        %v5069 = vld [vmem:[%s5066 + $0x8] sm:$0xf]
        %v5070 = vld [vmem:[%s5066 + $0xc] sm:$0xf]
        %v5071 = vld [vmem:[%s5066 + $0x10] sm:$0xf]
        %v5072 = vld [vmem:[%s5066 + $0x14] sm:$0xf]
        %v5073 = vunpack.c.l.bf16 %v5067
        %v5074 = vunpack.c.l.bf16 %v5068
        %v5075 = vunpack.c.l.bf16 %v5069
        %v5076 = vunpack.c.l.bf16 %v5070
        %v5077 = vunpack.c.l.bf16 %v5071
        %v5078 = vunpack.c.l.bf16 %v5072
        %v5079 = vadd.f32 %v5060, %v5073
        %v5080 = vadd.f32 %v5061, %v5074
        %v5081 = vadd.f32 %v5062, %v5075
        %v5082 = vadd.f32 %v5063, %v5076
        %v5083 = vadd.f32 %v5064, %v5077
        %v5084 = vadd.f32 %v5065, %v5078
        %v5085 = vsel %vm1865, %v5079, -inf
        %5086 = vmax.xlane.f32.xlu0 %v5085
        %v5087 = vpop.xlane.xlu0 %5086
        %v5088 = vsel %vm1865, %v5080, -inf
        %5089 = vmax.xlane.f32.xlu0 %v5088
        %v5090 = vpop.xlane.xlu0 %5089
        %v5091 = vsel %vm1865, %v5081, -inf
        %5092 = vmax.xlane.f32.xlu0 %v5091
        %v5093 = vpop.xlane.xlu0 %5092
        %v5094 = vsel %vm1865, %v5082, -inf
        %5095 = vmax.xlane.f32.xlu0 %v5094
        %v5096 = vpop.xlane.xlu0 %5095
        %v5097 = vsel %vm1865, %v5083, -inf
        %5098 = vmax.xlane.f32.xlu0 %v5097
        %v5099 = vpop.xlane.xlu0 %5098
        %v5100 = vsel %vm1865, %v5084, -inf
        %5101 = vmax.xlane.f32.xlu0 %v5100
        %v5102 = vpop.xlane.xlu0 %5101
        %v5103 = vsub.f32 %v5079, %v5087
        %v5104 = vsub.f32 %v5080, %v5090
        %v5105 = vsub.f32 %v5081, %v5093
        %v5106 = vsub.f32 %v5082, %v5096
        %v5107 = vsub.f32 %v5083, %v5099
        %v5108 = vsub.f32 %v5084, %v5102
        %v5109 = vmul.f32 %v5103, 1.442695
        %v5110 = vpow.pop %v5109
        %v5111 = vmul.f32 %v5104, 1.442695
        %v5112 = vpow.pop %v5111
        %v5113 = vmul.f32 %v5105, 1.442695
        %v5114 = vpow.pop %v5113
        %v5115 = vmul.f32 %v5106, 1.442695
        %v5116 = vpow.pop %v5115
        %v5117 = vmul.f32 %v5107, 1.442695
        %v5118 = vpow.pop %v5117
        %v5119 = vmul.f32 %v5108, 1.442695
        %v5120 = vpow.pop %v5119
        %v5121 = vsel %vm1865, %v5110, 0.0
        %5122 = vadd.xlane.f32.xlu0 %v5121
        %v5123 = vpop.xlane.xlu0 %5122
        %v5124 = vsel %vm1865, %v5112, 0.0
        %5125 = vadd.xlane.f32.xlu0 %v5124
        %v5126 = vpop.xlane.xlu0 %5125
        %v5127 = vsel %vm1865, %v5114, 0.0
        %5128 = vadd.xlane.f32.xlu0 %v5127
        %v5129 = vpop.xlane.xlu0 %5128
        %v5130 = vsel %vm1865, %v5116, 0.0
        %5131 = vadd.xlane.f32.xlu0 %v5130
        %v5132 = vpop.xlane.xlu0 %5131
        %v5133 = vsel %vm1865, %v5118, 0.0
        %5134 = vadd.xlane.f32.xlu0 %v5133
        %v5135 = vpop.xlane.xlu0 %5134
        %v5136 = vsel %vm1865, %v5120, 0.0
        %5137 = vadd.xlane.f32.xlu0 %v5136
        %v5138 = vpop.xlane.xlu0 %5137
        %v5139 = vrcp.pop %v5123
        %v5140 = vrcp.pop %v5126
        %v5141 = vrcp.pop %v5129
        %v5142 = vrcp.pop %v5132
        %v5143 = vrcp.pop %v5135
        %v5144 = vrcp.pop %v5138
        %v5145 = vmul.f32 %v5110, %v5139
        %v5146 = vmul.f32 %v5112, %v5140
        %v5147 = vmul.f32 %v5114, %v5141
        %v5148 = vmul.f32 %v5116, %v5142
        %v5149 = vmul.f32 %v5118, %v5143
        %v5150 = vmul.f32 %v5120, %v5144
        %v5151 = vpack.c.bf16 %v5146, %v5145
        %v5152 = vpack.c.bf16 %v5148, %v5147
        %v5153 = vpack.c.bf16 %v5150, %v5149
        %5154 = vrot.lane.b32.xlu0 %v4938, 120
        %v5155 = vpop.permute.xlu0 %5154
        %5156 = vrot.lane.b32.xlu0 %v4939, 120
        %v5157 = vpop.permute.xlu0 %5156
        %5158 = vrot.lane.b32.xlu0 %v4940, 120
        %v5159 = vpop.permute.xlu0 %5158
        %v5164 = vsel %vm1865, %v5151, 0
        %v5167 = vsel %vm1865, %v5152, 0
        %v5170 = vsel %vm1865, %v5153, 0
        %5172 = vmatpush.bf16.msra.mxu0 0
        %5173 = vmatpush.bf16.msra.mxu0 0
        %5174 = vmatpush.bf16.msra.mxu0 0
        %5175 = vmatpush.bf16.msra.mxu0 0
        %5176 = vmatpush.bf16.msra.mxu0 0
        %5177 = vmatpush.bf16.msra.mxu0 %v5159
        %5178 = vmatpush.bf16.msra.mxu0 %v5157
        %5179 = vmatpush.bf16.msra.mxu0 %v5155
        %5180 = vmatmul.bf16.gmra.mxu0 %v5164
        %v5181 = vpop.f32.mrf.mxu0
        %v5182 = vadd.f32 0.0, %v5181
        %v5183 = vpop.f32.mrf.mxu0
        %v5184 = vadd.f32 0.0, %v5183
        %5185 = vmatmul.bf16.gmra.mxu0 %v5167
        %v5186 = vpop.f32.mrf.mxu0
        %v5187 = vadd.f32 0.0, %v5186
        %v5188 = vpop.f32.mrf.mxu0
        %v5189 = vadd.f32 0.0, %v5188
        %5190 = vmatmul.bf16.gmra.mxu0 %v5170
        %v5191 = vpop.f32.mrf.mxu0
        %v5192 = vadd.f32 0.0, %v5191
        %v5193 = vpop.f32.mrf.mxu0
        %v5194 = vadd.f32 0.0, %v5193
        %5195 = vdwg.mxu0
        %5196 = vrot.lane.b32.xlu0 %v4711, 112
        %v5197 = vpop.permute.xlu0 %5196
        %5198 = vrot.lane.b32.xlu0 %v4713, 112
        %v5199 = vpop.permute.xlu0 %5198
        %5200 = vrot.lane.b32.xlu0 %v4716, 112
        %v5201 = vpop.permute.xlu0 %5200
        %5202 = vrot.lane.b32.xlu0 %v4718, 112
        %v5203 = vpop.permute.xlu0 %5202
        %5204 = vrot.lane.b32.xlu0 %v4721, 112
        %v5205 = vpop.permute.xlu0 %5204
        %5206 = vrot.lane.b32.xlu0 %v4723, 112
        %v5207 = vpop.permute.xlu0 %5206
        %5208 = vrot.lane.b32.xlu0 %v4711, 48
        %v5209 = vpop.permute.xlu0 %5208
        %5210 = vrot.lane.b32.xlu0 %v4713, 48
        %v5211 = vpop.permute.xlu0 %5210
        %5212 = vrot.lane.b32.xlu0 %v4716, 48
        %v5213 = vpop.permute.xlu0 %5212
        %5214 = vrot.lane.b32.xlu0 %v4718, 48
        %v5215 = vpop.permute.xlu0 %5214
        %5216 = vrot.lane.b32.xlu0 %v4721, 48
        %v5217 = vpop.permute.xlu0 %5216
        %5218 = vrot.lane.b32.xlu0 %v4723, 48
        %v5219 = vpop.permute.xlu0 %5218
        %v5220 = vsel %vm681, %v5197, 0
        %v5222 = vsel %vm681, %v5199, 0
        %v5224 = vsel %vm681, %v5201, 0
        %v5226 = vsel %vm681, %v5203, 0
        %v5228 = vsel %vm681, %v5205, 0
        %v5230 = vsel %vm681, %v5207, 0
        %v5232 = vsel %vm681, %v5209, 0
        %v5234 = vsel %vm681, %v5211, 0
        %v5236 = vsel %vm681, %v5213, 0
        %v5238 = vsel %vm681, %v5215, 0
        %v5240 = vsel %vm681, %v5217, 0
        %v5242 = vsel %vm681, %v5219, 0
        %5244 = vmatpush.xpose.msra.mxu0 0.0
        %5245 = vmatpush.xpose.msra.mxu0 0.0
        %5246 = vmatpush.xpose.msra.mxu0 0.0
        %5247 = vmatpush.xpose.msra.mxu0 0.0
        %5248 = vmatpush.xpose.msra.mxu0 0.0
        %5249 = vmatpush.xpose.msra.mxu0 0.0
        %5250 = vmatpush.xpose.msra.mxu0 0.0
        %5251 = vmatpush.xpose.msra.mxu0 0.0
        %5252 = vmatpush.xpose.msra.mxu0 0.0
        %5253 = vmatpush.xpose.msra.mxu0 0.0
        %5254 = vmatpush.xpose.msra.mxu0 %v5242
        %5255 = vmatpush.xpose.msra.mxu0 %v5240
        %5256 = vmatpush.xpose.msra.mxu0 %v5238
        %5257 = vmatpush.xpose.msra.mxu0 %v5236
        %5258 = vmatpush.xpose.msra.mxu0 %v5234
        %5259 = vmatpush.xpose.msra.mxu0 %v5232
        %5260 = vmatmul.f32.gmra.mxu0 %v5220
        %v5261 = vpop.f32.mrf.mxu0
        %v5262 = vadd.f32 0.0, %v5261
        %5263 = vmatmul.f32.gmra.mxu0 %v5222
        %v5264 = vpop.f32.mrf.mxu0
        %v5265 = vadd.f32 0.0, %v5264
        %5266 = vmatmul.f32.gmra.mxu0 %v5224
        %v5267 = vpop.f32.mrf.mxu0
        %v5268 = vadd.f32 0.0, %v5267
        %5269 = vmatmul.f32.gmra.mxu0 %v5226
        %v5270 = vpop.f32.mrf.mxu0
        %v5271 = vadd.f32 0.0, %v5270
        %5272 = vmatmul.f32.gmra.mxu0 %v5228
        %v5273 = vpop.f32.mrf.mxu0
        %v5274 = vadd.f32 0.0, %v5273
        %5275 = vmatmul.f32.gmra.mxu0 %v5230
        %v5276 = vpop.f32.mrf.mxu0
        %v5277 = vadd.f32 0.0, %v5276
        %5278 = vdwg.mxu0
        %v5279 = vmul.f32 %v5262, 0.35355338
        %v5280 = vmul.f32 %v5265, 0.35355338
        %v5281 = vmul.f32 %v5268, 0.35355338
        %v5282 = vmul.f32 %v5271, 0.35355338
        %v5283 = vmul.f32 %v5274, 0.35355338
        %v5284 = vmul.f32 %v5277, 0.35355338
        %s5285 = scalar_lea.vmem %s16, 240
        %v5286 = vld [vmem:[%s5285] sm:$0xf]
        %v5287 = vld [vmem:[%s5285 + $0x4] sm:$0xf]
        %v5288 = vld [vmem:[%s5285 + $0x8] sm:$0xf]
        %v5289 = vld [vmem:[%s5285 + $0xc] sm:$0xf]
        %v5290 = vld [vmem:[%s5285 + $0x10] sm:$0xf]
        %v5291 = vld [vmem:[%s5285 + $0x14] sm:$0xf]
        %v5292 = vunpack.c.l.bf16 %v5286
        %v5293 = vunpack.c.l.bf16 %v5287
        %v5294 = vunpack.c.l.bf16 %v5288
        %v5295 = vunpack.c.l.bf16 %v5289
        %v5296 = vunpack.c.l.bf16 %v5290
        %v5297 = vunpack.c.l.bf16 %v5291
        %v5298 = vadd.f32 %v5279, %v5292
        %v5299 = vadd.f32 %v5280, %v5293
        %v5300 = vadd.f32 %v5281, %v5294
        %v5301 = vadd.f32 %v5282, %v5295
        %v5302 = vadd.f32 %v5283, %v5296
        %v5303 = vadd.f32 %v5284, %v5297
        %v5304 = vsel %vm1865, %v5298, -inf
        %5305 = vmax.xlane.f32.xlu0 %v5304
        %v5306 = vpop.xlane.xlu0 %5305
        %v5307 = vsel %vm1865, %v5299, -inf
        %5308 = vmax.xlane.f32.xlu0 %v5307
        %v5309 = vpop.xlane.xlu0 %5308
        %v5310 = vsel %vm1865, %v5300, -inf
        %5311 = vmax.xlane.f32.xlu0 %v5310
        %v5312 = vpop.xlane.xlu0 %5311
        %v5313 = vsel %vm1865, %v5301, -inf
        %5314 = vmax.xlane.f32.xlu0 %v5313
        %v5315 = vpop.xlane.xlu0 %5314
        %v5316 = vsel %vm1865, %v5302, -inf
        %5317 = vmax.xlane.f32.xlu0 %v5316
        %v5318 = vpop.xlane.xlu0 %5317
        %v5319 = vsel %vm1865, %v5303, -inf
        %5320 = vmax.xlane.f32.xlu0 %v5319
        %v5321 = vpop.xlane.xlu0 %5320
        %v5322 = vsub.f32 %v5298, %v5306
        %v5323 = vsub.f32 %v5299, %v5309
        %v5324 = vsub.f32 %v5300, %v5312
        %v5325 = vsub.f32 %v5301, %v5315
        %v5326 = vsub.f32 %v5302, %v5318
        %v5327 = vsub.f32 %v5303, %v5321
        %v5328 = vmul.f32 %v5322, 1.442695
        %v5329 = vpow.pop %v5328
        %v5330 = vmul.f32 %v5323, 1.442695
        %v5331 = vpow.pop %v5330
        %v5332 = vmul.f32 %v5324, 1.442695
        %v5333 = vpow.pop %v5332
        %v5334 = vmul.f32 %v5325, 1.442695
        %v5335 = vpow.pop %v5334
        %v5336 = vmul.f32 %v5326, 1.442695
        %v5337 = vpow.pop %v5336
        %v5338 = vmul.f32 %v5327, 1.442695
        %v5339 = vpow.pop %v5338
        %v5340 = vsel %vm1865, %v5329, 0.0
        %5341 = vadd.xlane.f32.xlu0 %v5340
        %v5342 = vpop.xlane.xlu0 %5341
        %v5343 = vsel %vm1865, %v5331, 0.0
        %5344 = vadd.xlane.f32.xlu0 %v5343
        %v5345 = vpop.xlane.xlu0 %5344
        %v5346 = vsel %vm1865, %v5333, 0.0
        %5347 = vadd.xlane.f32.xlu0 %v5346
        %v5348 = vpop.xlane.xlu0 %5347
        %v5349 = vsel %vm1865, %v5335, 0.0
        %5350 = vadd.xlane.f32.xlu0 %v5349
        %v5351 = vpop.xlane.xlu0 %5350
        %v5352 = vsel %vm1865, %v5337, 0.0
        %5353 = vadd.xlane.f32.xlu0 %v5352
        %v5354 = vpop.xlane.xlu0 %5353
        %v5355 = vsel %vm1865, %v5339, 0.0
        %5356 = vadd.xlane.f32.xlu0 %v5355
        %v5357 = vpop.xlane.xlu0 %5356
        %v5358 = vrcp.pop %v5342
        %v5359 = vrcp.pop %v5345
        %v5360 = vrcp.pop %v5348
        %v5361 = vrcp.pop %v5351
        %v5362 = vrcp.pop %v5354
        %v5363 = vrcp.pop %v5357
        %v5364 = vmul.f32 %v5329, %v5358
        %v5365 = vmul.f32 %v5331, %v5359
        %v5366 = vmul.f32 %v5333, %v5360
        %v5367 = vmul.f32 %v5335, %v5361
        %v5368 = vmul.f32 %v5337, %v5362
        %v5369 = vmul.f32 %v5339, %v5363
        %v5370 = vpack.c.bf16 %v5365, %v5364
        %v5371 = vpack.c.bf16 %v5367, %v5366
        %v5372 = vpack.c.bf16 %v5369, %v5368
        %5373 = vrot.lane.b32.xlu0 %v4938, 112
        %v5374 = vpop.permute.xlu0 %5373
        %5375 = vrot.lane.b32.xlu0 %v4939, 112
        %v5376 = vpop.permute.xlu0 %5375
        %5377 = vrot.lane.b32.xlu0 %v4940, 112
        %v5378 = vpop.permute.xlu0 %5377
        %v5383 = vsel %vm1865, %v5370, 0
        %v5386 = vsel %vm1865, %v5371, 0
        %v5389 = vsel %vm1865, %v5372, 0
        %5391 = vmatpush.bf16.msra.mxu0 0
        %5392 = vmatpush.bf16.msra.mxu0 0
        %5393 = vmatpush.bf16.msra.mxu0 0
        %5394 = vmatpush.bf16.msra.mxu0 0
        %5395 = vmatpush.bf16.msra.mxu0 0
        %5396 = vmatpush.bf16.msra.mxu0 %v5378
        %5397 = vmatpush.bf16.msra.mxu0 %v5376
        %5398 = vmatpush.bf16.msra.mxu0 %v5374
        %5399 = vmatmul.bf16.gmra.mxu0 %v5383
        %v5400 = vpop.f32.mrf.mxu0
        %v5401 = vadd.f32 0.0, %v5400
        %v5402 = vpop.f32.mrf.mxu0
        %v5403 = vadd.f32 0.0, %v5402
        %5404 = vmatmul.bf16.gmra.mxu0 %v5386
        %v5405 = vpop.f32.mrf.mxu0
        %v5406 = vadd.f32 0.0, %v5405
        %v5407 = vpop.f32.mrf.mxu0
        %v5408 = vadd.f32 0.0, %v5407
        %5409 = vmatmul.bf16.gmra.mxu0 %v5389
        %v5410 = vpop.f32.mrf.mxu0
        %v5411 = vadd.f32 0.0, %v5410
        %v5412 = vpop.f32.mrf.mxu0
        %v5413 = vadd.f32 0.0, %v5412
        %5414 = vdwg.mxu0
        %5415 = vrot.lane.b32.xlu0 %v4711, 104
        %v5416 = vpop.permute.xlu0 %5415
        %5417 = vrot.lane.b32.xlu0 %v4713, 104
        %v5418 = vpop.permute.xlu0 %5417
        %5419 = vrot.lane.b32.xlu0 %v4716, 104
        %v5420 = vpop.permute.xlu0 %5419
        %5421 = vrot.lane.b32.xlu0 %v4718, 104
        %v5422 = vpop.permute.xlu0 %5421
        %5423 = vrot.lane.b32.xlu0 %v4721, 104
        %v5424 = vpop.permute.xlu0 %5423
        %5425 = vrot.lane.b32.xlu0 %v4723, 104
        %v5426 = vpop.permute.xlu0 %5425
        %5427 = vrot.lane.b32.xlu0 %v4711, 40
        %v5428 = vpop.permute.xlu0 %5427
        %5429 = vrot.lane.b32.xlu0 %v4713, 40
        %v5430 = vpop.permute.xlu0 %5429
        %5431 = vrot.lane.b32.xlu0 %v4716, 40
        %v5432 = vpop.permute.xlu0 %5431
        %5433 = vrot.lane.b32.xlu0 %v4718, 40
        %v5434 = vpop.permute.xlu0 %5433
        %5435 = vrot.lane.b32.xlu0 %v4721, 40
        %v5436 = vpop.permute.xlu0 %5435
        %5437 = vrot.lane.b32.xlu0 %v4723, 40
        %v5438 = vpop.permute.xlu0 %5437
        %v5439 = vsel %vm681, %v5416, 0
        %v5441 = vsel %vm681, %v5418, 0
        %v5443 = vsel %vm681, %v5420, 0
        %v5445 = vsel %vm681, %v5422, 0
        %v5447 = vsel %vm681, %v5424, 0
        %v5449 = vsel %vm681, %v5426, 0
        %v5451 = vsel %vm681, %v5428, 0
        %v5453 = vsel %vm681, %v5430, 0
        %v5455 = vsel %vm681, %v5432, 0
        %v5457 = vsel %vm681, %v5434, 0
        %v5459 = vsel %vm681, %v5436, 0
        %v5461 = vsel %vm681, %v5438, 0
        %5463 = vmatpush.xpose.msra.mxu0 0.0
        %5464 = vmatpush.xpose.msra.mxu0 0.0
        %5465 = vmatpush.xpose.msra.mxu0 0.0
        %5466 = vmatpush.xpose.msra.mxu0 0.0
        %5467 = vmatpush.xpose.msra.mxu0 0.0
        %5468 = vmatpush.xpose.msra.mxu0 0.0
        %5469 = vmatpush.xpose.msra.mxu0 0.0
        %5470 = vmatpush.xpose.msra.mxu0 0.0
        %5471 = vmatpush.xpose.msra.mxu0 0.0
        %5472 = vmatpush.xpose.msra.mxu0 0.0
        %5473 = vmatpush.xpose.msra.mxu0 %v5461
        %5474 = vmatpush.xpose.msra.mxu0 %v5459
        %5475 = vmatpush.xpose.msra.mxu0 %v5457
        %5476 = vmatpush.xpose.msra.mxu0 %v5455
        %5477 = vmatpush.xpose.msra.mxu0 %v5453
        %5478 = vmatpush.xpose.msra.mxu0 %v5451
        %5479 = vmatmul.f32.gmra.mxu0 %v5439
        %v5480 = vpop.f32.mrf.mxu0
        %v5481 = vadd.f32 0.0, %v5480
        %5482 = vmatmul.f32.gmra.mxu0 %v5441
        %v5483 = vpop.f32.mrf.mxu0
        %v5484 = vadd.f32 0.0, %v5483
        %5485 = vmatmul.f32.gmra.mxu0 %v5443
        %v5486 = vpop.f32.mrf.mxu0
        %v5487 = vadd.f32 0.0, %v5486
        %5488 = vmatmul.f32.gmra.mxu0 %v5445
        %v5489 = vpop.f32.mrf.mxu0
        %v5490 = vadd.f32 0.0, %v5489
        %5491 = vmatmul.f32.gmra.mxu0 %v5447
        %v5492 = vpop.f32.mrf.mxu0
        %v5493 = vadd.f32 0.0, %v5492
        %5494 = vmatmul.f32.gmra.mxu0 %v5449
        %v5495 = vpop.f32.mrf.mxu0
        %v5496 = vadd.f32 0.0, %v5495
        %5497 = vdwg.mxu0
        %v5498 = vmul.f32 %v5481, 0.35355338
        %v5499 = vmul.f32 %v5484, 0.35355338
        %v5500 = vmul.f32 %v5487, 0.35355338
        %v5501 = vmul.f32 %v5490, 0.35355338
        %v5502 = vmul.f32 %v5493, 0.35355338
        %v5503 = vmul.f32 %v5496, 0.35355338
        %s5504 = scalar_lea.vmem %s16, 264
        %v5505 = vld [vmem:[%s5504] sm:$0xf]
        %v5506 = vld [vmem:[%s5504 + $0x4] sm:$0xf]
        %v5507 = vld [vmem:[%s5504 + $0x8] sm:$0xf]
        %v5508 = vld [vmem:[%s5504 + $0xc] sm:$0xf]
        %v5509 = vld [vmem:[%s5504 + $0x10] sm:$0xf]
        %v5510 = vld [vmem:[%s5504 + $0x14] sm:$0xf]
        %v5511 = vunpack.c.l.bf16 %v5505
        %v5512 = vunpack.c.l.bf16 %v5506
        %v5513 = vunpack.c.l.bf16 %v5507
        %v5514 = vunpack.c.l.bf16 %v5508
        %v5515 = vunpack.c.l.bf16 %v5509
        %v5516 = vunpack.c.l.bf16 %v5510
        %v5517 = vadd.f32 %v5498, %v5511
        %v5518 = vadd.f32 %v5499, %v5512
        %v5519 = vadd.f32 %v5500, %v5513
        %v5520 = vadd.f32 %v5501, %v5514
        %v5521 = vadd.f32 %v5502, %v5515
        %v5522 = vadd.f32 %v5503, %v5516
        %v5523 = vsel %vm1865, %v5517, -inf
        %5524 = vmax.xlane.f32.xlu0 %v5523
        %v5525 = vpop.xlane.xlu0 %5524
        %v5526 = vsel %vm1865, %v5518, -inf
        %5527 = vmax.xlane.f32.xlu0 %v5526
        %v5528 = vpop.xlane.xlu0 %5527
        %v5529 = vsel %vm1865, %v5519, -inf
        %5530 = vmax.xlane.f32.xlu0 %v5529
        %v5531 = vpop.xlane.xlu0 %5530
        %v5532 = vsel %vm1865, %v5520, -inf
        %5533 = vmax.xlane.f32.xlu0 %v5532
        %v5534 = vpop.xlane.xlu0 %5533
        %v5535 = vsel %vm1865, %v5521, -inf
        %5536 = vmax.xlane.f32.xlu0 %v5535
        %v5537 = vpop.xlane.xlu0 %5536
        %v5538 = vsel %vm1865, %v5522, -inf
        %5539 = vmax.xlane.f32.xlu0 %v5538
        %v5540 = vpop.xlane.xlu0 %5539
        %v5541 = vsub.f32 %v5517, %v5525
        %v5542 = vsub.f32 %v5518, %v5528
        %v5543 = vsub.f32 %v5519, %v5531
        %v5544 = vsub.f32 %v5520, %v5534
        %v5545 = vsub.f32 %v5521, %v5537
        %v5546 = vsub.f32 %v5522, %v5540
        %v5547 = vmul.f32 %v5541, 1.442695
        %v5548 = vpow.pop %v5547
        %v5549 = vmul.f32 %v5542, 1.442695
        %v5550 = vpow.pop %v5549
        %v5551 = vmul.f32 %v5543, 1.442695
        %v5552 = vpow.pop %v5551
        %v5553 = vmul.f32 %v5544, 1.442695
        %v5554 = vpow.pop %v5553
        %v5555 = vmul.f32 %v5545, 1.442695
        %v5556 = vpow.pop %v5555
        %v5557 = vmul.f32 %v5546, 1.442695
        %v5558 = vpow.pop %v5557
        %v5559 = vsel %vm1865, %v5548, 0.0
        %5560 = vadd.xlane.f32.xlu0 %v5559
        %v5561 = vpop.xlane.xlu0 %5560
        %v5562 = vsel %vm1865, %v5550, 0.0
        %5563 = vadd.xlane.f32.xlu0 %v5562
        %v5564 = vpop.xlane.xlu0 %5563
        %v5565 = vsel %vm1865, %v5552, 0.0
        %5566 = vadd.xlane.f32.xlu0 %v5565
        %v5567 = vpop.xlane.xlu0 %5566
        %v5568 = vsel %vm1865, %v5554, 0.0
        %5569 = vadd.xlane.f32.xlu0 %v5568
        %v5570 = vpop.xlane.xlu0 %5569
        %v5571 = vsel %vm1865, %v5556, 0.0
        %5572 = vadd.xlane.f32.xlu0 %v5571
        %v5573 = vpop.xlane.xlu0 %5572
        %v5574 = vsel %vm1865, %v5558, 0.0
        %5575 = vadd.xlane.f32.xlu0 %v5574
        %v5576 = vpop.xlane.xlu0 %5575
        %v5577 = vrcp.pop %v5561
        %v5578 = vrcp.pop %v5564
        %v5579 = vrcp.pop %v5567
        %v5580 = vrcp.pop %v5570
        %v5581 = vrcp.pop %v5573
        %v5582 = vrcp.pop %v5576
        %v5583 = vmul.f32 %v5548, %v5577
        %v5584 = vmul.f32 %v5550, %v5578
        %v5585 = vmul.f32 %v5552, %v5579
        %v5586 = vmul.f32 %v5554, %v5580
        %v5587 = vmul.f32 %v5556, %v5581
        %v5588 = vmul.f32 %v5558, %v5582
        %v5589 = vpack.c.bf16 %v5584, %v5583
        %v5590 = vpack.c.bf16 %v5586, %v5585
        %v5591 = vpack.c.bf16 %v5588, %v5587
        %5592 = vrot.lane.b32.xlu0 %v4938, 104
        %v5593 = vpop.permute.xlu0 %5592
        %5594 = vrot.lane.b32.xlu0 %v4939, 104
        %v5595 = vpop.permute.xlu0 %5594
        %5596 = vrot.lane.b32.xlu0 %v4940, 104
        %v5597 = vpop.permute.xlu0 %5596
        %v5602 = vsel %vm1865, %v5589, 0
        %v5605 = vsel %vm1865, %v5590, 0
        %v5608 = vsel %vm1865, %v5591, 0
        %5610 = vmatpush.bf16.msra.mxu0 0
        %5611 = vmatpush.bf16.msra.mxu0 0
        %5612 = vmatpush.bf16.msra.mxu0 0
        %5613 = vmatpush.bf16.msra.mxu0 0
        %5614 = vmatpush.bf16.msra.mxu0 0
        %5615 = vmatpush.bf16.msra.mxu0 %v5597
        %5616 = vmatpush.bf16.msra.mxu0 %v5595
        %5617 = vmatpush.bf16.msra.mxu0 %v5593
        %5618 = vmatmul.bf16.gmra.mxu0 %v5602
        %v5619 = vpop.f32.mrf.mxu0
        %v5620 = vadd.f32 0.0, %v5619
        %v5621 = vpop.f32.mrf.mxu0
        %v5622 = vadd.f32 0.0, %v5621
        %5623 = vmatmul.bf16.gmra.mxu0 %v5605
        %v5624 = vpop.f32.mrf.mxu0
        %v5625 = vadd.f32 0.0, %v5624
        %v5626 = vpop.f32.mrf.mxu0
        %v5627 = vadd.f32 0.0, %v5626
        %5628 = vmatmul.bf16.gmra.mxu0 %v5608
        %v5629 = vpop.f32.mrf.mxu0
        %v5630 = vadd.f32 0.0, %v5629
        %v5631 = vpop.f32.mrf.mxu0
        %v5632 = vadd.f32 0.0, %v5631
        %5633 = vdwg.mxu0
        %5634 = vrot.lane.b32.xlu0 %v4711, 96
        %v5635 = vpop.permute.xlu0 %5634
        %5636 = vrot.lane.b32.xlu0 %v4713, 96
        %v5637 = vpop.permute.xlu0 %5636
        %5638 = vrot.lane.b32.xlu0 %v4716, 96
        %v5639 = vpop.permute.xlu0 %5638
        %5640 = vrot.lane.b32.xlu0 %v4718, 96
        %v5641 = vpop.permute.xlu0 %5640
        %5642 = vrot.lane.b32.xlu0 %v4721, 96
        %v5643 = vpop.permute.xlu0 %5642
        %5644 = vrot.lane.b32.xlu0 %v4723, 96
        %v5645 = vpop.permute.xlu0 %5644
        %5646 = vrot.lane.b32.xlu0 %v4711, 32
        %v5647 = vpop.permute.xlu0 %5646
        %5648 = vrot.lane.b32.xlu0 %v4713, 32
        %v5649 = vpop.permute.xlu0 %5648
        %5650 = vrot.lane.b32.xlu0 %v4716, 32
        %v5651 = vpop.permute.xlu0 %5650
        %5652 = vrot.lane.b32.xlu0 %v4718, 32
        %v5653 = vpop.permute.xlu0 %5652
        %5654 = vrot.lane.b32.xlu0 %v4721, 32
        %v5655 = vpop.permute.xlu0 %5654
        %5656 = vrot.lane.b32.xlu0 %v4723, 32
        %v5657 = vpop.permute.xlu0 %5656
        %v5658 = vsel %vm681, %v5635, 0
        %v5660 = vsel %vm681, %v5637, 0
        %v5662 = vsel %vm681, %v5639, 0
        %v5664 = vsel %vm681, %v5641, 0
        %v5666 = vsel %vm681, %v5643, 0
        %v5668 = vsel %vm681, %v5645, 0
        %v5670 = vsel %vm681, %v5647, 0
        %v5672 = vsel %vm681, %v5649, 0
        %v5674 = vsel %vm681, %v5651, 0
        %v5676 = vsel %vm681, %v5653, 0
        %v5678 = vsel %vm681, %v5655, 0
        %v5680 = vsel %vm681, %v5657, 0
        %5682 = vmatpush.xpose.msra.mxu0 0.0
        %5683 = vmatpush.xpose.msra.mxu0 0.0
        %5684 = vmatpush.xpose.msra.mxu0 0.0
        %5685 = vmatpush.xpose.msra.mxu0 0.0
        %5686 = vmatpush.xpose.msra.mxu0 0.0
        %5687 = vmatpush.xpose.msra.mxu0 0.0
        %5688 = vmatpush.xpose.msra.mxu0 0.0
        %5689 = vmatpush.xpose.msra.mxu0 0.0
        %5690 = vmatpush.xpose.msra.mxu0 0.0
        %5691 = vmatpush.xpose.msra.mxu0 0.0
        %5692 = vmatpush.xpose.msra.mxu0 %v5680
        %5693 = vmatpush.xpose.msra.mxu0 %v5678
        %5694 = vmatpush.xpose.msra.mxu0 %v5676
        %5695 = vmatpush.xpose.msra.mxu0 %v5674
        %5696 = vmatpush.xpose.msra.mxu0 %v5672
        %5697 = vmatpush.xpose.msra.mxu0 %v5670
        %5698 = vmatmul.f32.gmra.mxu0 %v5658
        %v5699 = vpop.f32.mrf.mxu0
        %v5700 = vadd.f32 0.0, %v5699
        %5701 = vmatmul.f32.gmra.mxu0 %v5660
        %v5702 = vpop.f32.mrf.mxu0
        %v5703 = vadd.f32 0.0, %v5702
        %5704 = vmatmul.f32.gmra.mxu0 %v5662
        %v5705 = vpop.f32.mrf.mxu0
        %v5706 = vadd.f32 0.0, %v5705
        %5707 = vmatmul.f32.gmra.mxu0 %v5664
        %v5708 = vpop.f32.mrf.mxu0
        %v5709 = vadd.f32 0.0, %v5708
        %5710 = vmatmul.f32.gmra.mxu0 %v5666
        %v5711 = vpop.f32.mrf.mxu0
        %v5712 = vadd.f32 0.0, %v5711
        %5713 = vmatmul.f32.gmra.mxu0 %v5668
        %v5714 = vpop.f32.mrf.mxu0
        %v5715 = vadd.f32 0.0, %v5714
        %5716 = vdwg.mxu0
        %v5717 = vmul.f32 %v5700, 0.35355338
        %v5718 = vmul.f32 %v5703, 0.35355338
        %v5719 = vmul.f32 %v5706, 0.35355338
        %v5720 = vmul.f32 %v5709, 0.35355338
        %v5721 = vmul.f32 %v5712, 0.35355338
        %v5722 = vmul.f32 %v5715, 0.35355338
        %s5723 = scalar_lea.vmem %s16, 288
        %v5724 = vld [vmem:[%s5723] sm:$0xf]
        %v5725 = vld [vmem:[%s5723 + $0x4] sm:$0xf]
        %v5726 = vld [vmem:[%s5723 + $0x8] sm:$0xf]
        %v5727 = vld [vmem:[%s5723 + $0xc] sm:$0xf]
        %v5728 = vld [vmem:[%s5723 + $0x10] sm:$0xf]
        %v5729 = vld [vmem:[%s5723 + $0x14] sm:$0xf]
        %v5730 = vunpack.c.l.bf16 %v5724
        %v5731 = vunpack.c.l.bf16 %v5725
        %v5732 = vunpack.c.l.bf16 %v5726
        %v5733 = vunpack.c.l.bf16 %v5727
        %v5734 = vunpack.c.l.bf16 %v5728
        %v5735 = vunpack.c.l.bf16 %v5729
        %v5736 = vadd.f32 %v5717, %v5730
        %v5737 = vadd.f32 %v5718, %v5731
        %v5738 = vadd.f32 %v5719, %v5732
        %v5739 = vadd.f32 %v5720, %v5733
        %v5740 = vadd.f32 %v5721, %v5734
        %v5741 = vadd.f32 %v5722, %v5735
        %v5742 = vsel %vm1865, %v5736, -inf
        %5743 = vmax.xlane.f32.xlu0 %v5742
        %v5744 = vpop.xlane.xlu0 %5743
        %v5745 = vsel %vm1865, %v5737, -inf
        %5746 = vmax.xlane.f32.xlu0 %v5745
        %v5747 = vpop.xlane.xlu0 %5746
        %v5748 = vsel %vm1865, %v5738, -inf
        %5749 = vmax.xlane.f32.xlu0 %v5748
        %v5750 = vpop.xlane.xlu0 %5749
        %v5751 = vsel %vm1865, %v5739, -inf
        %5752 = vmax.xlane.f32.xlu0 %v5751
        %v5753 = vpop.xlane.xlu0 %5752
        %v5754 = vsel %vm1865, %v5740, -inf
        %5755 = vmax.xlane.f32.xlu0 %v5754
        %v5756 = vpop.xlane.xlu0 %5755
        %v5757 = vsel %vm1865, %v5741, -inf
        %5758 = vmax.xlane.f32.xlu0 %v5757
        %v5759 = vpop.xlane.xlu0 %5758
        %v5760 = vsub.f32 %v5736, %v5744
        %v5761 = vsub.f32 %v5737, %v5747
        %v5762 = vsub.f32 %v5738, %v5750
        %v5763 = vsub.f32 %v5739, %v5753
        %v5764 = vsub.f32 %v5740, %v5756
        %v5765 = vsub.f32 %v5741, %v5759
        %v5766 = vmul.f32 %v5760, 1.442695
        %v5767 = vpow.pop %v5766
        %v5768 = vmul.f32 %v5761, 1.442695
        %v5769 = vpow.pop %v5768
        %v5770 = vmul.f32 %v5762, 1.442695
        %v5771 = vpow.pop %v5770
        %v5772 = vmul.f32 %v5763, 1.442695
        %v5773 = vpow.pop %v5772
        %v5774 = vmul.f32 %v5764, 1.442695
        %v5775 = vpow.pop %v5774
        %v5776 = vmul.f32 %v5765, 1.442695
        %v5777 = vpow.pop %v5776
        %v5778 = vsel %vm1865, %v5767, 0.0
        %5779 = vadd.xlane.f32.xlu0 %v5778
        %v5780 = vpop.xlane.xlu0 %5779
        %v5781 = vsel %vm1865, %v5769, 0.0
        %5782 = vadd.xlane.f32.xlu0 %v5781
        %v5783 = vpop.xlane.xlu0 %5782
        %v5784 = vsel %vm1865, %v5771, 0.0
        %5785 = vadd.xlane.f32.xlu0 %v5784
        %v5786 = vpop.xlane.xlu0 %5785
        %v5787 = vsel %vm1865, %v5773, 0.0
        %5788 = vadd.xlane.f32.xlu0 %v5787
        %v5789 = vpop.xlane.xlu0 %5788
        %v5790 = vsel %vm1865, %v5775, 0.0
        %5791 = vadd.xlane.f32.xlu0 %v5790
        %v5792 = vpop.xlane.xlu0 %5791
        %v5793 = vsel %vm1865, %v5777, 0.0
        %5794 = vadd.xlane.f32.xlu0 %v5793
        %v5795 = vpop.xlane.xlu0 %5794
        %v5796 = vrcp.pop %v5780
        %v5797 = vrcp.pop %v5783
        %v5798 = vrcp.pop %v5786
        %v5799 = vrcp.pop %v5789
        %v5800 = vrcp.pop %v5792
        %v5801 = vrcp.pop %v5795
        %v5802 = vmul.f32 %v5767, %v5796
        %v5803 = vmul.f32 %v5769, %v5797
        %v5804 = vmul.f32 %v5771, %v5798
        %v5805 = vmul.f32 %v5773, %v5799
        %v5806 = vmul.f32 %v5775, %v5800
        %v5807 = vmul.f32 %v5777, %v5801
        %v5808 = vpack.c.bf16 %v5803, %v5802
        %v5809 = vpack.c.bf16 %v5805, %v5804
        %v5810 = vpack.c.bf16 %v5807, %v5806
        %5811 = vrot.lane.b32.xlu0 %v4938, 96
        %v5812 = vpop.permute.xlu0 %5811
        %5813 = vrot.lane.b32.xlu0 %v4939, 96
        %v5814 = vpop.permute.xlu0 %5813
        %5815 = vrot.lane.b32.xlu0 %v4940, 96
        %v5816 = vpop.permute.xlu0 %5815
        %v5821 = vsel %vm1865, %v5808, 0
        %v5824 = vsel %vm1865, %v5809, 0
        %v5827 = vsel %vm1865, %v5810, 0
        %5829 = vmatpush.bf16.msra.mxu0 0
        %5830 = vmatpush.bf16.msra.mxu0 0
        %5831 = vmatpush.bf16.msra.mxu0 0
        %5832 = vmatpush.bf16.msra.mxu0 0
        %5833 = vmatpush.bf16.msra.mxu0 0
        %5834 = vmatpush.bf16.msra.mxu0 %v5816
        %5835 = vmatpush.bf16.msra.mxu0 %v5814
        %5836 = vmatpush.bf16.msra.mxu0 %v5812
        %5837 = vmatmul.bf16.gmra.mxu0 %v5821
        %v5838 = vpop.f32.mrf.mxu0
        %v5839 = vadd.f32 0.0, %v5838
        %v5840 = vpop.f32.mrf.mxu0
        %v5841 = vadd.f32 0.0, %v5840
        %5842 = vmatmul.bf16.gmra.mxu0 %v5824
        %v5843 = vpop.f32.mrf.mxu0
        %v5844 = vadd.f32 0.0, %v5843
        %v5845 = vpop.f32.mrf.mxu0
        %v5846 = vadd.f32 0.0, %v5845
        %5847 = vmatmul.bf16.gmra.mxu0 %v5827
        %v5848 = vpop.f32.mrf.mxu0
        %v5849 = vadd.f32 0.0, %v5848
        %v5850 = vpop.f32.mrf.mxu0
        %v5851 = vadd.f32 0.0, %v5850
        %5852 = vdwg.mxu0
        %5853 = vrot.lane.b32.xlu0 %v4711, 88
        %v5854 = vpop.permute.xlu0 %5853
        %5855 = vrot.lane.b32.xlu0 %v4713, 88
        %v5856 = vpop.permute.xlu0 %5855
        %5857 = vrot.lane.b32.xlu0 %v4716, 88
        %v5858 = vpop.permute.xlu0 %5857
        %5859 = vrot.lane.b32.xlu0 %v4718, 88
        %v5860 = vpop.permute.xlu0 %5859
        %5861 = vrot.lane.b32.xlu0 %v4721, 88
        %v5862 = vpop.permute.xlu0 %5861
        %5863 = vrot.lane.b32.xlu0 %v4723, 88
        %v5864 = vpop.permute.xlu0 %5863
        %5865 = vrot.lane.b32.xlu0 %v4711, 24
        %v5866 = vpop.permute.xlu0 %5865
        %5867 = vrot.lane.b32.xlu0 %v4713, 24
        %v5868 = vpop.permute.xlu0 %5867
        %5869 = vrot.lane.b32.xlu0 %v4716, 24
        %v5870 = vpop.permute.xlu0 %5869
        %5871 = vrot.lane.b32.xlu0 %v4718, 24
        %v5872 = vpop.permute.xlu0 %5871
        %5873 = vrot.lane.b32.xlu0 %v4721, 24
        %v5874 = vpop.permute.xlu0 %5873
        %5875 = vrot.lane.b32.xlu0 %v4723, 24
        %v5876 = vpop.permute.xlu0 %5875
        %v5877 = vsel %vm681, %v5854, 0
        %v5879 = vsel %vm681, %v5856, 0
        %v5881 = vsel %vm681, %v5858, 0
        %v5883 = vsel %vm681, %v5860, 0
        %v5885 = vsel %vm681, %v5862, 0
        %v5887 = vsel %vm681, %v5864, 0
        %v5889 = vsel %vm681, %v5866, 0
        %v5891 = vsel %vm681, %v5868, 0
        %v5893 = vsel %vm681, %v5870, 0
        %v5895 = vsel %vm681, %v5872, 0
        %v5897 = vsel %vm681, %v5874, 0
        %v5899 = vsel %vm681, %v5876, 0
        %5901 = vmatpush.xpose.msra.mxu0 0.0
        %5902 = vmatpush.xpose.msra.mxu0 0.0
        %5903 = vmatpush.xpose.msra.mxu0 0.0
        %5904 = vmatpush.xpose.msra.mxu0 0.0
        %5905 = vmatpush.xpose.msra.mxu0 0.0
        %5906 = vmatpush.xpose.msra.mxu0 0.0
        %5907 = vmatpush.xpose.msra.mxu0 0.0
        %5908 = vmatpush.xpose.msra.mxu0 0.0
        %5909 = vmatpush.xpose.msra.mxu0 0.0
        %5910 = vmatpush.xpose.msra.mxu0 0.0
        %5911 = vmatpush.xpose.msra.mxu0 %v5899
        %5912 = vmatpush.xpose.msra.mxu0 %v5897
        %5913 = vmatpush.xpose.msra.mxu0 %v5895
        %5914 = vmatpush.xpose.msra.mxu0 %v5893
        %5915 = vmatpush.xpose.msra.mxu0 %v5891
        %5916 = vmatpush.xpose.msra.mxu0 %v5889
        %5917 = vmatmul.f32.gmra.mxu0 %v5877
        %v5918 = vpop.f32.mrf.mxu0
        %v5919 = vadd.f32 0.0, %v5918
        %5920 = vmatmul.f32.gmra.mxu0 %v5879
        %v5921 = vpop.f32.mrf.mxu0
        %v5922 = vadd.f32 0.0, %v5921
        %5923 = vmatmul.f32.gmra.mxu0 %v5881
        %v5924 = vpop.f32.mrf.mxu0
        %v5925 = vadd.f32 0.0, %v5924
        %5926 = vmatmul.f32.gmra.mxu0 %v5883
        %v5927 = vpop.f32.mrf.mxu0
        %v5928 = vadd.f32 0.0, %v5927
        %5929 = vmatmul.f32.gmra.mxu0 %v5885
        %v5930 = vpop.f32.mrf.mxu0
        %v5931 = vadd.f32 0.0, %v5930
        %5932 = vmatmul.f32.gmra.mxu0 %v5887
        %v5933 = vpop.f32.mrf.mxu0
        %v5934 = vadd.f32 0.0, %v5933
        %5935 = vdwg.mxu0
        %v5936 = vmul.f32 %v5919, 0.35355338
        %v5937 = vmul.f32 %v5922, 0.35355338
        %v5938 = vmul.f32 %v5925, 0.35355338
        %v5939 = vmul.f32 %v5928, 0.35355338
        %v5940 = vmul.f32 %v5931, 0.35355338
        %v5941 = vmul.f32 %v5934, 0.35355338
        %s5942 = scalar_lea.vmem %s16, 312
        %v5943 = vld [vmem:[%s5942] sm:$0xf]
        %v5944 = vld [vmem:[%s5942 + $0x4] sm:$0xf]
        %v5945 = vld [vmem:[%s5942 + $0x8] sm:$0xf]
        %v5946 = vld [vmem:[%s5942 + $0xc] sm:$0xf]
        %v5947 = vld [vmem:[%s5942 + $0x10] sm:$0xf]
        %v5948 = vld [vmem:[%s5942 + $0x14] sm:$0xf]
        %v5949 = vunpack.c.l.bf16 %v5943
        %v5950 = vunpack.c.l.bf16 %v5944
        %v5951 = vunpack.c.l.bf16 %v5945
        %v5952 = vunpack.c.l.bf16 %v5946
        %v5953 = vunpack.c.l.bf16 %v5947
        %v5954 = vunpack.c.l.bf16 %v5948
        %v5955 = vadd.f32 %v5936, %v5949
        %v5956 = vadd.f32 %v5937, %v5950
        %v5957 = vadd.f32 %v5938, %v5951
        %v5958 = vadd.f32 %v5939, %v5952
        %v5959 = vadd.f32 %v5940, %v5953
        %v5960 = vadd.f32 %v5941, %v5954
        %v5961 = vsel %vm1865, %v5955, -inf
        %5962 = vmax.xlane.f32.xlu0 %v5961
        %v5963 = vpop.xlane.xlu0 %5962
        %v5964 = vsel %vm1865, %v5956, -inf
        %5965 = vmax.xlane.f32.xlu0 %v5964
        %v5966 = vpop.xlane.xlu0 %5965
        %v5967 = vsel %vm1865, %v5957, -inf
        %5968 = vmax.xlane.f32.xlu0 %v5967
        %v5969 = vpop.xlane.xlu0 %5968
        %v5970 = vsel %vm1865, %v5958, -inf
        %5971 = vmax.xlane.f32.xlu0 %v5970
        %v5972 = vpop.xlane.xlu0 %5971
        %v5973 = vsel %vm1865, %v5959, -inf
        %5974 = vmax.xlane.f32.xlu0 %v5973
        %v5975 = vpop.xlane.xlu0 %5974
        %v5976 = vsel %vm1865, %v5960, -inf
        %5977 = vmax.xlane.f32.xlu0 %v5976
        %v5978 = vpop.xlane.xlu0 %5977
        %v5979 = vsub.f32 %v5955, %v5963
        %v5980 = vsub.f32 %v5956, %v5966
        %v5981 = vsub.f32 %v5957, %v5969
        %v5982 = vsub.f32 %v5958, %v5972
        %v5983 = vsub.f32 %v5959, %v5975
        %v5984 = vsub.f32 %v5960, %v5978
        %v5985 = vmul.f32 %v5979, 1.442695
        %v5986 = vpow.pop %v5985
        %v5987 = vmul.f32 %v5980, 1.442695
        %v5988 = vpow.pop %v5987
        %v5989 = vmul.f32 %v5981, 1.442695
        %v5990 = vpow.pop %v5989
        %v5991 = vmul.f32 %v5982, 1.442695
        %v5992 = vpow.pop %v5991
        %v5993 = vmul.f32 %v5983, 1.442695
        %v5994 = vpow.pop %v5993
        %v5995 = vmul.f32 %v5984, 1.442695
        %v5996 = vpow.pop %v5995
        %v5997 = vsel %vm1865, %v5986, 0.0
        %5998 = vadd.xlane.f32.xlu0 %v5997
        %v5999 = vpop.xlane.xlu0 %5998
        %v6000 = vsel %vm1865, %v5988, 0.0
        %6001 = vadd.xlane.f32.xlu0 %v6000
        %v6002 = vpop.xlane.xlu0 %6001
        %v6003 = vsel %vm1865, %v5990, 0.0
        %6004 = vadd.xlane.f32.xlu0 %v6003
        %v6005 = vpop.xlane.xlu0 %6004
        %v6006 = vsel %vm1865, %v5992, 0.0
        %6007 = vadd.xlane.f32.xlu0 %v6006
        %v6008 = vpop.xlane.xlu0 %6007
        %v6009 = vsel %vm1865, %v5994, 0.0
        %6010 = vadd.xlane.f32.xlu0 %v6009
        %v6011 = vpop.xlane.xlu0 %6010
        %v6012 = vsel %vm1865, %v5996, 0.0
        %6013 = vadd.xlane.f32.xlu0 %v6012
        %v6014 = vpop.xlane.xlu0 %6013
        %v6015 = vrcp.pop %v5999
        %v6016 = vrcp.pop %v6002
        %v6017 = vrcp.pop %v6005
        %v6018 = vrcp.pop %v6008
        %v6019 = vrcp.pop %v6011
        %v6020 = vrcp.pop %v6014
        %v6021 = vmul.f32 %v5986, %v6015
        %v6022 = vmul.f32 %v5988, %v6016
        %v6023 = vmul.f32 %v5990, %v6017
        %v6024 = vmul.f32 %v5992, %v6018
        %v6025 = vmul.f32 %v5994, %v6019
        %v6026 = vmul.f32 %v5996, %v6020
        %v6027 = vpack.c.bf16 %v6022, %v6021
        %v6028 = vpack.c.bf16 %v6024, %v6023
        %v6029 = vpack.c.bf16 %v6026, %v6025
        %6030 = vrot.lane.b32.xlu0 %v4938, 88
        %v6031 = vpop.permute.xlu0 %6030
        %6032 = vrot.lane.b32.xlu0 %v4939, 88
        %v6033 = vpop.permute.xlu0 %6032
        %6034 = vrot.lane.b32.xlu0 %v4940, 88
        %v6035 = vpop.permute.xlu0 %6034
        %v6040 = vsel %vm1865, %v6027, 0
        %v6043 = vsel %vm1865, %v6028, 0
        %v6046 = vsel %vm1865, %v6029, 0
        %6048 = vmatpush.bf16.msra.mxu0 0
        %6049 = vmatpush.bf16.msra.mxu0 0
        %6050 = vmatpush.bf16.msra.mxu0 0
        %6051 = vmatpush.bf16.msra.mxu0 0
        %6052 = vmatpush.bf16.msra.mxu0 0
        %6053 = vmatpush.bf16.msra.mxu0 %v6035
        %6054 = vmatpush.bf16.msra.mxu0 %v6033
        %6055 = vmatpush.bf16.msra.mxu0 %v6031
        %6056 = vmatmul.bf16.gmra.mxu0 %v6040
        %v6057 = vpop.f32.mrf.mxu0
        %v6058 = vadd.f32 0.0, %v6057
        %v6059 = vpop.f32.mrf.mxu0
        %v6060 = vadd.f32 0.0, %v6059
        %6061 = vmatmul.bf16.gmra.mxu0 %v6043
        %v6062 = vpop.f32.mrf.mxu0
        %v6063 = vadd.f32 0.0, %v6062
        %v6064 = vpop.f32.mrf.mxu0
        %v6065 = vadd.f32 0.0, %v6064
        %6066 = vmatmul.bf16.gmra.mxu0 %v6046
        %v6067 = vpop.f32.mrf.mxu0
        %v6068 = vadd.f32 0.0, %v6067
        %v6069 = vpop.f32.mrf.mxu0
        %v6070 = vadd.f32 0.0, %v6069
        %6071 = vdwg.mxu0
        %6072 = vrot.lane.b32.xlu0 %v4711, 80
        %v6073 = vpop.permute.xlu0 %6072
        %6074 = vrot.lane.b32.xlu0 %v4713, 80
        %v6075 = vpop.permute.xlu0 %6074
        %6076 = vrot.lane.b32.xlu0 %v4716, 80
        %v6077 = vpop.permute.xlu0 %6076
        %6078 = vrot.lane.b32.xlu0 %v4718, 80
        %v6079 = vpop.permute.xlu0 %6078
        %6080 = vrot.lane.b32.xlu0 %v4721, 80
        %v6081 = vpop.permute.xlu0 %6080
        %6082 = vrot.lane.b32.xlu0 %v4723, 80
        %v6083 = vpop.permute.xlu0 %6082
        %6084 = vrot.lane.b32.xlu0 %v4711, 16
        %v6085 = vpop.permute.xlu0 %6084
        %6086 = vrot.lane.b32.xlu0 %v4713, 16
        %v6087 = vpop.permute.xlu0 %6086
        %6088 = vrot.lane.b32.xlu0 %v4716, 16
        %v6089 = vpop.permute.xlu0 %6088
        %6090 = vrot.lane.b32.xlu0 %v4718, 16
        %v6091 = vpop.permute.xlu0 %6090
        %6092 = vrot.lane.b32.xlu0 %v4721, 16
        %v6093 = vpop.permute.xlu0 %6092
        %6094 = vrot.lane.b32.xlu0 %v4723, 16
        %v6095 = vpop.permute.xlu0 %6094
        %v6096 = vsel %vm681, %v6073, 0
        %v6098 = vsel %vm681, %v6075, 0
        %v6100 = vsel %vm681, %v6077, 0
        %v6102 = vsel %vm681, %v6079, 0
        %v6104 = vsel %vm681, %v6081, 0
        %v6106 = vsel %vm681, %v6083, 0
        %v6108 = vsel %vm681, %v6085, 0
        %v6110 = vsel %vm681, %v6087, 0
        %v6112 = vsel %vm681, %v6089, 0
        %v6114 = vsel %vm681, %v6091, 0
        %v6116 = vsel %vm681, %v6093, 0
        %v6118 = vsel %vm681, %v6095, 0
        %6120 = vmatpush.xpose.msra.mxu0 0.0
        %6121 = vmatpush.xpose.msra.mxu0 0.0
        %6122 = vmatpush.xpose.msra.mxu0 0.0
        %6123 = vmatpush.xpose.msra.mxu0 0.0
        %6124 = vmatpush.xpose.msra.mxu0 0.0
        %6125 = vmatpush.xpose.msra.mxu0 0.0
        %6126 = vmatpush.xpose.msra.mxu0 0.0
        %6127 = vmatpush.xpose.msra.mxu0 0.0
        %6128 = vmatpush.xpose.msra.mxu0 0.0
        %6129 = vmatpush.xpose.msra.mxu0 0.0
        %6130 = vmatpush.xpose.msra.mxu0 %v6118
        %6131 = vmatpush.xpose.msra.mxu0 %v6116
        %6132 = vmatpush.xpose.msra.mxu0 %v6114
        %6133 = vmatpush.xpose.msra.mxu0 %v6112
        %6134 = vmatpush.xpose.msra.mxu0 %v6110
        %6135 = vmatpush.xpose.msra.mxu0 %v6108
        %6136 = vmatmul.f32.gmra.mxu0 %v6096
        %v6137 = vpop.f32.mrf.mxu0
        %v6138 = vadd.f32 0.0, %v6137
        %6139 = vmatmul.f32.gmra.mxu0 %v6098
        %v6140 = vpop.f32.mrf.mxu0
        %v6141 = vadd.f32 0.0, %v6140
        %6142 = vmatmul.f32.gmra.mxu0 %v6100
        %v6143 = vpop.f32.mrf.mxu0
        %v6144 = vadd.f32 0.0, %v6143
        %6145 = vmatmul.f32.gmra.mxu0 %v6102
        %v6146 = vpop.f32.mrf.mxu0
        %v6147 = vadd.f32 0.0, %v6146
        %6148 = vmatmul.f32.gmra.mxu0 %v6104
        %v6149 = vpop.f32.mrf.mxu0
        %v6150 = vadd.f32 0.0, %v6149
        %6151 = vmatmul.f32.gmra.mxu0 %v6106
        %v6152 = vpop.f32.mrf.mxu0
        %v6153 = vadd.f32 0.0, %v6152
        %6154 = vdwg.mxu0
        %v6155 = vmul.f32 %v6138, 0.35355338
        %v6156 = vmul.f32 %v6141, 0.35355338
        %v6157 = vmul.f32 %v6144, 0.35355338
        %v6158 = vmul.f32 %v6147, 0.35355338
        %v6159 = vmul.f32 %v6150, 0.35355338
        %v6160 = vmul.f32 %v6153, 0.35355338
        %s6161 = scalar_lea.vmem %s16, 336
        %v6162 = vld [vmem:[%s6161] sm:$0xf]
        %v6163 = vld [vmem:[%s6161 + $0x4] sm:$0xf]
        %v6164 = vld [vmem:[%s6161 + $0x8] sm:$0xf]
        %v6165 = vld [vmem:[%s6161 + $0xc] sm:$0xf]
        %v6166 = vld [vmem:[%s6161 + $0x10] sm:$0xf]
        %v6167 = vld [vmem:[%s6161 + $0x14] sm:$0xf]
        %v6168 = vunpack.c.l.bf16 %v6162
        %v6169 = vunpack.c.l.bf16 %v6163
        %v6170 = vunpack.c.l.bf16 %v6164
        %v6171 = vunpack.c.l.bf16 %v6165
        %v6172 = vunpack.c.l.bf16 %v6166
        %v6173 = vunpack.c.l.bf16 %v6167
        %v6174 = vadd.f32 %v6155, %v6168
        %v6175 = vadd.f32 %v6156, %v6169
        %v6176 = vadd.f32 %v6157, %v6170
        %v6177 = vadd.f32 %v6158, %v6171
        %v6178 = vadd.f32 %v6159, %v6172
        %v6179 = vadd.f32 %v6160, %v6173
        %v6180 = vsel %vm1865, %v6174, -inf
        %6181 = vmax.xlane.f32.xlu0 %v6180
        %v6182 = vpop.xlane.xlu0 %6181
        %v6183 = vsel %vm1865, %v6175, -inf
        %6184 = vmax.xlane.f32.xlu0 %v6183
        %v6185 = vpop.xlane.xlu0 %6184
        %v6186 = vsel %vm1865, %v6176, -inf
        %6187 = vmax.xlane.f32.xlu0 %v6186
        %v6188 = vpop.xlane.xlu0 %6187
        %v6189 = vsel %vm1865, %v6177, -inf
        %6190 = vmax.xlane.f32.xlu0 %v6189
        %v6191 = vpop.xlane.xlu0 %6190
        %v6192 = vsel %vm1865, %v6178, -inf
        %6193 = vmax.xlane.f32.xlu0 %v6192
        %v6194 = vpop.xlane.xlu0 %6193
        %v6195 = vsel %vm1865, %v6179, -inf
        %6196 = vmax.xlane.f32.xlu0 %v6195
        %v6197 = vpop.xlane.xlu0 %6196
        %v6198 = vsub.f32 %v6174, %v6182
        %v6199 = vsub.f32 %v6175, %v6185
        %v6200 = vsub.f32 %v6176, %v6188
        %v6201 = vsub.f32 %v6177, %v6191
        %v6202 = vsub.f32 %v6178, %v6194
        %v6203 = vsub.f32 %v6179, %v6197
        %v6204 = vmul.f32 %v6198, 1.442695
        %v6205 = vpow.pop %v6204
        %v6206 = vmul.f32 %v6199, 1.442695
        %v6207 = vpow.pop %v6206
        %v6208 = vmul.f32 %v6200, 1.442695
        %v6209 = vpow.pop %v6208
        %v6210 = vmul.f32 %v6201, 1.442695
        %v6211 = vpow.pop %v6210
        %v6212 = vmul.f32 %v6202, 1.442695
        %v6213 = vpow.pop %v6212
        %v6214 = vmul.f32 %v6203, 1.442695
        %v6215 = vpow.pop %v6214
        %v6216 = vsel %vm1865, %v6205, 0.0
        %6217 = vadd.xlane.f32.xlu0 %v6216
        %v6218 = vpop.xlane.xlu0 %6217
        %v6219 = vsel %vm1865, %v6207, 0.0
        %6220 = vadd.xlane.f32.xlu0 %v6219
        %v6221 = vpop.xlane.xlu0 %6220
        %v6222 = vsel %vm1865, %v6209, 0.0
        %6223 = vadd.xlane.f32.xlu0 %v6222
        %v6224 = vpop.xlane.xlu0 %6223
        %v6225 = vsel %vm1865, %v6211, 0.0
        %6226 = vadd.xlane.f32.xlu0 %v6225
        %v6227 = vpop.xlane.xlu0 %6226
        %v6228 = vsel %vm1865, %v6213, 0.0
        %6229 = vadd.xlane.f32.xlu0 %v6228
        %v6230 = vpop.xlane.xlu0 %6229
        %v6231 = vsel %vm1865, %v6215, 0.0
        %6232 = vadd.xlane.f32.xlu0 %v6231
        %v6233 = vpop.xlane.xlu0 %6232
        %v6234 = vrcp.pop %v6218
        %v6235 = vrcp.pop %v6221
        %v6236 = vrcp.pop %v6224
        %v6237 = vrcp.pop %v6227
        %v6238 = vrcp.pop %v6230
        %v6239 = vrcp.pop %v6233
        %v6240 = vmul.f32 %v6205, %v6234
        %v6241 = vmul.f32 %v6207, %v6235
        %v6242 = vmul.f32 %v6209, %v6236
        %v6243 = vmul.f32 %v6211, %v6237
        %v6244 = vmul.f32 %v6213, %v6238
        %v6245 = vmul.f32 %v6215, %v6239
        %v6246 = vpack.c.bf16 %v6241, %v6240
        %v6247 = vpack.c.bf16 %v6243, %v6242
        %v6248 = vpack.c.bf16 %v6245, %v6244
        %6249 = vrot.lane.b32.xlu0 %v4938, 80
        %v6250 = vpop.permute.xlu0 %6249
        %6251 = vrot.lane.b32.xlu0 %v4939, 80
        %v6252 = vpop.permute.xlu0 %6251
        %6253 = vrot.lane.b32.xlu0 %v4940, 80
        %v6254 = vpop.permute.xlu0 %6253
        %v6259 = vsel %vm1865, %v6246, 0
        %v6262 = vsel %vm1865, %v6247, 0
        %v6265 = vsel %vm1865, %v6248, 0
        %6267 = vmatpush.bf16.msra.mxu0 0
        %6268 = vmatpush.bf16.msra.mxu0 0
        %6269 = vmatpush.bf16.msra.mxu0 0
        %6270 = vmatpush.bf16.msra.mxu0 0
        %6271 = vmatpush.bf16.msra.mxu0 0
        %6272 = vmatpush.bf16.msra.mxu0 %v6254
        %6273 = vmatpush.bf16.msra.mxu0 %v6252
        %6274 = vmatpush.bf16.msra.mxu0 %v6250
        %6275 = vmatmul.bf16.gmra.mxu0 %v6259
        %v6276 = vpop.f32.mrf.mxu0
        %v6277 = vadd.f32 0.0, %v6276
        %v6278 = vpop.f32.mrf.mxu0
        %v6279 = vadd.f32 0.0, %v6278
        %6280 = vmatmul.bf16.gmra.mxu0 %v6262
        %v6281 = vpop.f32.mrf.mxu0
        %v6282 = vadd.f32 0.0, %v6281
        %v6283 = vpop.f32.mrf.mxu0
        %v6284 = vadd.f32 0.0, %v6283
        %6285 = vmatmul.bf16.gmra.mxu0 %v6265
        %v6286 = vpop.f32.mrf.mxu0
        %v6287 = vadd.f32 0.0, %v6286
        %v6288 = vpop.f32.mrf.mxu0
        %v6289 = vadd.f32 0.0, %v6288
        %6290 = vdwg.mxu0
        %6291 = vrot.lane.b32.xlu0 %v4711, 72
        %v6292 = vpop.permute.xlu0 %6291
        %6293 = vrot.lane.b32.xlu0 %v4713, 72
        %v6294 = vpop.permute.xlu0 %6293
        %6295 = vrot.lane.b32.xlu0 %v4716, 72
        %v6296 = vpop.permute.xlu0 %6295
        %6297 = vrot.lane.b32.xlu0 %v4718, 72
        %v6298 = vpop.permute.xlu0 %6297
        %6299 = vrot.lane.b32.xlu0 %v4721, 72
        %v6300 = vpop.permute.xlu0 %6299
        %6301 = vrot.lane.b32.xlu0 %v4723, 72
        %v6302 = vpop.permute.xlu0 %6301
        %6303 = vrot.lane.b32.xlu0 %v4711, 8
        %v6304 = vpop.permute.xlu0 %6303
        %6305 = vrot.lane.b32.xlu0 %v4713, 8
        %v6306 = vpop.permute.xlu0 %6305
        %6307 = vrot.lane.b32.xlu0 %v4716, 8
        %v6308 = vpop.permute.xlu0 %6307
        %6309 = vrot.lane.b32.xlu0 %v4718, 8
        %v6310 = vpop.permute.xlu0 %6309
        %6311 = vrot.lane.b32.xlu0 %v4721, 8
        %v6312 = vpop.permute.xlu0 %6311
        %6313 = vrot.lane.b32.xlu0 %v4723, 8
        %v6314 = vpop.permute.xlu0 %6313
        %v6315 = vsel %vm681, %v6292, 0
        %v6317 = vsel %vm681, %v6294, 0
        %v6319 = vsel %vm681, %v6296, 0
        %v6321 = vsel %vm681, %v6298, 0
        %v6323 = vsel %vm681, %v6300, 0
        %v6325 = vsel %vm681, %v6302, 0
        %v6327 = vsel %vm681, %v6304, 0
        %v6329 = vsel %vm681, %v6306, 0
        %v6331 = vsel %vm681, %v6308, 0
        %v6333 = vsel %vm681, %v6310, 0
        %v6335 = vsel %vm681, %v6312, 0
        %v6337 = vsel %vm681, %v6314, 0
        %6339 = vmatpush.xpose.msra.mxu0 0.0
        %6340 = vmatpush.xpose.msra.mxu0 0.0
        %6341 = vmatpush.xpose.msra.mxu0 0.0
        %6342 = vmatpush.xpose.msra.mxu0 0.0
        %6343 = vmatpush.xpose.msra.mxu0 0.0
        %6344 = vmatpush.xpose.msra.mxu0 0.0
        %6345 = vmatpush.xpose.msra.mxu0 0.0
        %6346 = vmatpush.xpose.msra.mxu0 0.0
        %6347 = vmatpush.xpose.msra.mxu0 0.0
        %6348 = vmatpush.xpose.msra.mxu0 0.0
        %6349 = vmatpush.xpose.msra.mxu0 %v6337
        %6350 = vmatpush.xpose.msra.mxu0 %v6335
        %6351 = vmatpush.xpose.msra.mxu0 %v6333
        %6352 = vmatpush.xpose.msra.mxu0 %v6331
        %6353 = vmatpush.xpose.msra.mxu0 %v6329
        %6354 = vmatpush.xpose.msra.mxu0 %v6327
        %6355 = vmatmul.f32.gmra.mxu0 %v6315
        %v6356 = vpop.f32.mrf.mxu0
        %v6357 = vadd.f32 0.0, %v6356
        %6358 = vmatmul.f32.gmra.mxu0 %v6317
        %v6359 = vpop.f32.mrf.mxu0
        %v6360 = vadd.f32 0.0, %v6359
        %6361 = vmatmul.f32.gmra.mxu0 %v6319
        %v6362 = vpop.f32.mrf.mxu0
        %v6363 = vadd.f32 0.0, %v6362
        %6364 = vmatmul.f32.gmra.mxu0 %v6321
        %v6365 = vpop.f32.mrf.mxu0
        %v6366 = vadd.f32 0.0, %v6365
        %6367 = vmatmul.f32.gmra.mxu0 %v6323
        %v6368 = vpop.f32.mrf.mxu0
        %v6369 = vadd.f32 0.0, %v6368
        %6370 = vmatmul.f32.gmra.mxu0 %v6325
        %v6371 = vpop.f32.mrf.mxu0
        %v6372 = vadd.f32 0.0, %v6371
        %6373 = vdwg.mxu0
        %v6374 = vmul.f32 %v6357, 0.35355338
        %v6375 = vmul.f32 %v6360, 0.35355338
        %v6376 = vmul.f32 %v6363, 0.35355338
        %v6377 = vmul.f32 %v6366, 0.35355338
        %v6378 = vmul.f32 %v6369, 0.35355338
        %v6379 = vmul.f32 %v6372, 0.35355338
        %s6380 = scalar_lea.vmem %s16, 360
        %v6381 = vld [vmem:[%s6380] sm:$0xf]
        %v6382 = vld [vmem:[%s6380 + $0x4] sm:$0xf]
        %v6383 = vld [vmem:[%s6380 + $0x8] sm:$0xf]
        %v6384 = vld [vmem:[%s6380 + $0xc] sm:$0xf]
        %v6385 = vld [vmem:[%s6380 + $0x10] sm:$0xf]
        %v6386 = vld [vmem:[%s6380 + $0x14] sm:$0xf]
        %v6387 = vunpack.c.l.bf16 %v6381
        %v6388 = vunpack.c.l.bf16 %v6382
        %v6389 = vunpack.c.l.bf16 %v6383
        %v6390 = vunpack.c.l.bf16 %v6384
        %v6391 = vunpack.c.l.bf16 %v6385
        %v6392 = vunpack.c.l.bf16 %v6386
        %v6393 = vadd.f32 %v6374, %v6387
        %v6394 = vadd.f32 %v6375, %v6388
        %v6395 = vadd.f32 %v6376, %v6389
        %v6396 = vadd.f32 %v6377, %v6390
        %v6397 = vadd.f32 %v6378, %v6391
        %v6398 = vadd.f32 %v6379, %v6392
        %v6399 = vsel %vm1865, %v6393, -inf
        %6400 = vmax.xlane.f32.xlu0 %v6399
        %v6401 = vpop.xlane.xlu0 %6400
        %v6402 = vsel %vm1865, %v6394, -inf
        %6403 = vmax.xlane.f32.xlu0 %v6402
        %v6404 = vpop.xlane.xlu0 %6403
        %v6405 = vsel %vm1865, %v6395, -inf
        %6406 = vmax.xlane.f32.xlu0 %v6405
        %v6407 = vpop.xlane.xlu0 %6406
        %v6408 = vsel %vm1865, %v6396, -inf
        %6409 = vmax.xlane.f32.xlu0 %v6408
        %v6410 = vpop.xlane.xlu0 %6409
        %v6411 = vsel %vm1865, %v6397, -inf
        %6412 = vmax.xlane.f32.xlu0 %v6411
        %v6413 = vpop.xlane.xlu0 %6412
        %v6414 = vsel %vm1865, %v6398, -inf
        %6415 = vmax.xlane.f32.xlu0 %v6414
        %v6416 = vpop.xlane.xlu0 %6415
        %v6417 = vsub.f32 %v6393, %v6401
        %v6418 = vsub.f32 %v6394, %v6404
        %v6419 = vsub.f32 %v6395, %v6407
        %v6420 = vsub.f32 %v6396, %v6410
        %v6421 = vsub.f32 %v6397, %v6413
        %v6422 = vsub.f32 %v6398, %v6416
        %v6423 = vmul.f32 %v6417, 1.442695
        %v6424 = vpow.pop %v6423
        %v6425 = vmul.f32 %v6418, 1.442695
        %v6426 = vpow.pop %v6425
        %v6427 = vmul.f32 %v6419, 1.442695
        %v6428 = vpow.pop %v6427
        %v6429 = vmul.f32 %v6420, 1.442695
        %v6430 = vpow.pop %v6429
        %v6431 = vmul.f32 %v6421, 1.442695
        %v6432 = vpow.pop %v6431
        %v6433 = vmul.f32 %v6422, 1.442695
        %v6434 = vpow.pop %v6433
        %v6435 = vsel %vm1865, %v6424, 0.0
        %6436 = vadd.xlane.f32.xlu0 %v6435
        %v6437 = vpop.xlane.xlu0 %6436
        %v6438 = vsel %vm1865, %v6426, 0.0
        %6439 = vadd.xlane.f32.xlu0 %v6438
        %v6440 = vpop.xlane.xlu0 %6439
        %v6441 = vsel %vm1865, %v6428, 0.0
        %6442 = vadd.xlane.f32.xlu0 %v6441
        %v6443 = vpop.xlane.xlu0 %6442
        %v6444 = vsel %vm1865, %v6430, 0.0
        %6445 = vadd.xlane.f32.xlu0 %v6444
        %v6446 = vpop.xlane.xlu0 %6445
        %v6447 = vsel %vm1865, %v6432, 0.0
        %6448 = vadd.xlane.f32.xlu0 %v6447
        %v6449 = vpop.xlane.xlu0 %6448
        %v6450 = vsel %vm1865, %v6434, 0.0
        %6451 = vadd.xlane.f32.xlu0 %v6450
        %v6452 = vpop.xlane.xlu0 %6451
        %v6453 = vrcp.pop %v6437
        %v6454 = vrcp.pop %v6440
        %v6455 = vrcp.pop %v6443
        %v6456 = vrcp.pop %v6446
        %v6457 = vrcp.pop %v6449
        %v6458 = vrcp.pop %v6452
        %v6459 = vmul.f32 %v6424, %v6453
        %v6460 = vmul.f32 %v6426, %v6454
        %v6461 = vmul.f32 %v6428, %v6455
        %v6462 = vmul.f32 %v6430, %v6456
        %v6463 = vmul.f32 %v6432, %v6457
        %v6464 = vmul.f32 %v6434, %v6458
        %v6465 = vpack.c.bf16 %v6460, %v6459
        %v6466 = vpack.c.bf16 %v6462, %v6461
        %v6467 = vpack.c.bf16 %v6464, %v6463
        %6468 = vrot.lane.b32.xlu0 %v4938, 72
        %v6469 = vpop.permute.xlu0 %6468
        %6470 = vrot.lane.b32.xlu0 %v4939, 72
        %v6471 = vpop.permute.xlu0 %6470
        %6472 = vrot.lane.b32.xlu0 %v4940, 72
        %v6473 = vpop.permute.xlu0 %6472
        %v6478 = vsel %vm1865, %v6465, 0
        %v6481 = vsel %vm1865, %v6466, 0
        %v6484 = vsel %vm1865, %v6467, 0
        %6486 = vmatpush.bf16.msra.mxu0 0
        %6487 = vmatpush.bf16.msra.mxu0 0
        %6488 = vmatpush.bf16.msra.mxu0 0
        %6489 = vmatpush.bf16.msra.mxu0 0
        %6490 = vmatpush.bf16.msra.mxu0 0
        %6491 = vmatpush.bf16.msra.mxu0 %v6473
        %6492 = vmatpush.bf16.msra.mxu0 %v6471
        %6493 = vmatpush.bf16.msra.mxu0 %v6469
        %6494 = vmatmul.bf16.gmra.mxu0 %v6478
        %v6495 = vpop.f32.mrf.mxu0
        %v6496 = vadd.f32 0.0, %v6495
        %v6497 = vpop.f32.mrf.mxu0
        %v6498 = vadd.f32 0.0, %v6497
        %6499 = vmatmul.bf16.gmra.mxu0 %v6481
        %v6500 = vpop.f32.mrf.mxu0
        %v6501 = vadd.f32 0.0, %v6500
        %v6502 = vpop.f32.mrf.mxu0
        %v6503 = vadd.f32 0.0, %v6502
        %6504 = vmatmul.bf16.gmra.mxu0 %v6484
        %v6505 = vpop.f32.mrf.mxu0
        %v6506 = vadd.f32 0.0, %v6505
        %v6507 = vpop.f32.mrf.mxu0
        %v6508 = vadd.f32 0.0, %v6507
        %6509 = vdwg.mxu0
        %6516 = vrot.lane.b32.xlu0 %v5182, 8
        %v6517 = vpop.permute.xlu0 %6516
        %6518 = vrot.lane.b32.xlu0 %v5184, 8
        %v6519 = vpop.permute.xlu0 %6518
        %6520 = vrot.lane.b32.xlu0 %v5187, 8
        %v6521 = vpop.permute.xlu0 %6520
        %6522 = vrot.lane.b32.xlu0 %v5189, 8
        %v6523 = vpop.permute.xlu0 %6522
        %6524 = vrot.lane.b32.xlu0 %v5192, 8
        %v6525 = vpop.permute.xlu0 %6524
        %6526 = vrot.lane.b32.xlu0 %v5194, 8
        %v6527 = vpop.permute.xlu0 %6526
        %6540 = vrot.lane.b32.xlu0 %v5401, 16
        %v6541 = vpop.permute.xlu0 %6540
        %6542 = vrot.lane.b32.xlu0 %v5403, 16
        %v6543 = vpop.permute.xlu0 %6542
        %6544 = vrot.lane.b32.xlu0 %v5406, 16
        %v6545 = vpop.permute.xlu0 %6544
        %6546 = vrot.lane.b32.xlu0 %v5408, 16
        %v6547 = vpop.permute.xlu0 %6546
        %6548 = vrot.lane.b32.xlu0 %v5411, 16
        %v6549 = vpop.permute.xlu0 %6548
        %6550 = vrot.lane.b32.xlu0 %v5413, 16
        %v6551 = vpop.permute.xlu0 %6550
        %6564 = vrot.lane.b32.xlu0 %v5620, 24
        %v6565 = vpop.permute.xlu0 %6564
        %6566 = vrot.lane.b32.xlu0 %v5622, 24
        %v6567 = vpop.permute.xlu0 %6566
        %6568 = vrot.lane.b32.xlu0 %v5625, 24
        %v6569 = vpop.permute.xlu0 %6568
        %6570 = vrot.lane.b32.xlu0 %v5627, 24
        %v6571 = vpop.permute.xlu0 %6570
        %6572 = vrot.lane.b32.xlu0 %v5630, 24
        %v6573 = vpop.permute.xlu0 %6572
        %6574 = vrot.lane.b32.xlu0 %v5632, 24
        %v6575 = vpop.permute.xlu0 %6574
        %6588 = vrot.lane.b32.xlu0 %v5839, 32
        %v6589 = vpop.permute.xlu0 %6588
        %6590 = vrot.lane.b32.xlu0 %v5841, 32
        %v6591 = vpop.permute.xlu0 %6590
        %6592 = vrot.lane.b32.xlu0 %v5844, 32
        %v6593 = vpop.permute.xlu0 %6592
        %6594 = vrot.lane.b32.xlu0 %v5846, 32
        %v6595 = vpop.permute.xlu0 %6594
        %6596 = vrot.lane.b32.xlu0 %v5849, 32
        %v6597 = vpop.permute.xlu0 %6596
        %6598 = vrot.lane.b32.xlu0 %v5851, 32
        %v6599 = vpop.permute.xlu0 %6598
        %6612 = vrot.lane.b32.xlu0 %v6058, 40
        %v6613 = vpop.permute.xlu0 %6612
        %6614 = vrot.lane.b32.xlu0 %v6060, 40
        %v6615 = vpop.permute.xlu0 %6614
        %6616 = vrot.lane.b32.xlu0 %v6063, 40
        %v6617 = vpop.permute.xlu0 %6616
        %6618 = vrot.lane.b32.xlu0 %v6065, 40
        %v6619 = vpop.permute.xlu0 %6618
        %6620 = vrot.lane.b32.xlu0 %v6068, 40
        %v6621 = vpop.permute.xlu0 %6620
        %6622 = vrot.lane.b32.xlu0 %v6070, 40
        %v6623 = vpop.permute.xlu0 %6622
        %6636 = vrot.lane.b32.xlu0 %v6277, 48
        %v6637 = vpop.permute.xlu0 %6636
        %6638 = vrot.lane.b32.xlu0 %v6279, 48
        %v6639 = vpop.permute.xlu0 %6638
        %6640 = vrot.lane.b32.xlu0 %v6282, 48
        %v6641 = vpop.permute.xlu0 %6640
        %6642 = vrot.lane.b32.xlu0 %v6284, 48
        %v6643 = vpop.permute.xlu0 %6642
        %6644 = vrot.lane.b32.xlu0 %v6287, 48
        %v6645 = vpop.permute.xlu0 %6644
        %6646 = vrot.lane.b32.xlu0 %v6289, 48
        %v6647 = vpop.permute.xlu0 %6646
        %6660 = vrot.lane.b32.xlu0 %v6496, 56
        %v6661 = vpop.permute.xlu0 %6660
        %6662 = vrot.lane.b32.xlu0 %v6498, 56
        %v6663 = vpop.permute.xlu0 %6662
        %6664 = vrot.lane.b32.xlu0 %v6501, 56
        %v6665 = vpop.permute.xlu0 %6664
        %6666 = vrot.lane.b32.xlu0 %v6503, 56
        %v6667 = vpop.permute.xlu0 %6666
        %6668 = vrot.lane.b32.xlu0 %v6506, 56
        %v6669 = vpop.permute.xlu0 %6668
        %6670 = vrot.lane.b32.xlu0 %v6508, 56
        %v6671 = vpop.permute.xlu0 %6670
        %v6678 = vsel %vm681, %v4963, %v6517
        %v6679 = vsel %vm681, %v4965, %v6519
        %v6680 = vsel %vm681, %v4968, %v6521
        %v6681 = vsel %vm681, %v4970, %v6523
        %v6682 = vsel %vm681, %v4973, %v6525
        %v6683 = vsel %vm681, %v4975, %v6527
        %v6684 = vsel %vm733, %v6678, %v6541
        %v6685 = vsel %vm733, %v6679, %v6543
        %v6686 = vsel %vm733, %v6680, %v6545
        %v6687 = vsel %vm733, %v6681, %v6547
        %v6688 = vsel %vm733, %v6682, %v6549
        %v6689 = vsel %vm733, %v6683, %v6551
        %v6690 = vsel %vm1850, %v6684, %v6565
        %v6691 = vsel %vm1850, %v6685, %v6567
        %v6692 = vsel %vm1850, %v6686, %v6569
        %v6693 = vsel %vm1850, %v6687, %v6571
        %v6694 = vsel %vm1850, %v6688, %v6573
        %v6695 = vsel %vm1850, %v6689, %v6575
        %v6696 = vsel %vm1855, %v6690, %v6589
        %v6697 = vsel %vm1855, %v6691, %v6591
        %v6698 = vsel %vm1855, %v6692, %v6593
        %v6699 = vsel %vm1855, %v6693, %v6595
        %v6700 = vsel %vm1855, %v6694, %v6597
        %v6701 = vsel %vm1855, %v6695, %v6599
        %v6702 = vsel %vm1860, %v6696, %v6613
        %v6703 = vsel %vm1860, %v6697, %v6615
        %v6704 = vsel %vm1860, %v6698, %v6617
        %v6705 = vsel %vm1860, %v6699, %v6619
        %v6706 = vsel %vm1860, %v6700, %v6621
        %v6707 = vsel %vm1860, %v6701, %v6623
        %v6708 = vsel %vm1865, %v6702, %v6637
        %v6709 = vsel %vm1865, %v6703, %v6639
        %v6710 = vsel %vm1865, %v6704, %v6641
        %v6711 = vsel %vm1865, %v6705, %v6643
        %v6712 = vsel %vm1865, %v6706, %v6645
        %v6713 = vsel %vm1865, %v6707, %v6647
        %v6714 = vsel %vm1870, %v6708, %v6661
        %v6715 = vsel %vm1870, %v6709, %v6663
        %v6716 = vsel %vm1870, %v6710, %v6665
        %v6717 = vsel %vm1870, %v6711, %v6667
        %v6718 = vsel %vm1870, %v6712, %v6669
        %v6719 = vsel %vm1870, %v6713, %v6671
        %v6720 = vpack.c.bf16 %v6715, %v6714
        %v6721 = vpack.c.bf16 %v6717, %v6716
        %v6722 = vpack.c.bf16 %v6719, %v6718
        %s6723 = scalar_lea.vmem %s14, 32
        %v6724 = vld [vmem:[%s6723] sm:$0xf]
        %v6725 = vld [vmem:[%s6723 + $0x4] sm:$0xf]
        %v6726 = vld [vmem:[%s6723 + $0x8] sm:$0xf]
        %v6727 = vld [vmem:[%s6723 + $0xc] sm:$0xf]
        %v6728 = vld [vmem:[%s6723 + $0x10] sm:$0xf]
        %v6729 = vld [vmem:[%s6723 + $0x14] sm:$0xf]
        %v6730 = vld [vmem:[%s6723 + $0x18] sm:$0xf]
        %v6731 = vld [vmem:[%s6723 + $0x1c] sm:$0xf]
        %v6740 = vunpack.c.l.b16 %v6724
        %v6741 = vunpack.c.l.b16 %v6725
        %v6742 = vunpack.c.l.b16 %v6726
        %v6743 = vunpack.c.l.b16 %v6727
        %v6744 = vunpack.c.l.b16 %v6728
        %v6745 = vunpack.c.l.b16 %v6729
        %v6746 = vunpack.c.l.b16 %v6730
        %v6747 = vunpack.c.l.b16 %v6731
        %v6748 = vpack.c.b16 %v6741, %v6740
        %v6749 = vpack.c.b16 %v6743, %v6742
        %v6750 = vpack.c.b16 %v6745, %v6744
        %v6751 = vpack.c.b16 %v6747, %v6746
        %v6757 = vsel %vm599, %v6720, 0
        %v6760 = vsel %vm599, %v6721, 0
        %v6763 = vsel %vm599, %v6722, 0
        %6765 = vmatpush.bf16.msra.mxu0 0
        %6766 = vmatpush.bf16.msra.mxu0 0
        %6767 = vmatpush.bf16.msra.mxu0 0
        %6768 = vmatpush.bf16.msra.mxu0 0
        %6769 = vmatpush.bf16.msra.mxu0 %v6751
        %6770 = vmatpush.bf16.msra.mxu0 %v6750
        %6771 = vmatpush.bf16.msra.mxu0 %v6749
        %6772 = vmatpush.bf16.msra.mxu0 %v6748
        %6773 = vmatmul.bf16.gmra.mxu0 %v6757
        %v6774 = vpop.f32.mrf.mxu0
        %v6775 = vadd.f32 0.0, %v6774
        %v6776 = vpop.f32.mrf.mxu0
        %v6777 = vadd.f32 0.0, %v6776
        %6778 = vmatmul.bf16.gmra.mxu0 %v6760
        %v6779 = vpop.f32.mrf.mxu0
        %v6780 = vadd.f32 0.0, %v6779
        %v6781 = vpop.f32.mrf.mxu0
        %v6782 = vadd.f32 0.0, %v6781
        %6783 = vmatmul.bf16.gmra.mxu0 %v6763
        %v6784 = vpop.f32.mrf.mxu0
        %v6785 = vadd.f32 0.0, %v6784
        %v6786 = vpop.f32.mrf.mxu0
        %v6787 = vadd.f32 0.0, %v6786
        %6788 = vdwg.mxu0
        %v6789 = vadd.f32 %v4508, %v6775
        %v6790 = vadd.f32 %v4509, %v6777
        %v6791 = vadd.f32 %v4510, %v6780
        %v6792 = vadd.f32 %v4511, %v6782
        %v6793 = vadd.f32 %v4512, %v6785
        %v6794 = vadd.f32 %v4513, %v6787
        %s6795 = scalar_lea.vmem %s15, 1
        %v6796 = vld [vmem:[%s6795] sm:$0x1]
        %v6798 = vperm.slane %v6796, 0
        %v6800 = vadd.f32 %v6789, %v6798
        %v6801 = vadd.f32 %v6790, %v6798
        %v6802 = vadd.f32 %v6791, %v6798
        %v6803 = vadd.f32 %v6792, %v6798
        %v6804 = vadd.f32 %v6793, %v6798
        %v6805 = vadd.f32 %v6794, %v6798
        %v6806 = vsel %vm599, %v6800, 0.0
        %v6807 = vsel %vm599, %v6801, 0.0
        %v6808 = vadd.f32 %v6806, %v6807
        %v6809 = vsel %vm599, %v6802, 0.0
        %v6810 = vadd.f32 %v6808, %v6809
        %v6811 = vsel %vm599, %v6803, 0.0
        %v6812 = vadd.f32 %v6810, %v6811
        %v6813 = vsel %vm599, %v6804, 0.0
        %v6814 = vadd.f32 %v6812, %v6813
        %v6815 = vsel %vm599, %v6805, 0.0
        %v6816 = vadd.f32 %v6814, %v6815
        %v6817 = vrot.slane %v6816, 4
        %v6818 = vadd.f32 %v6816, %v6817
        %v6819 = vrot.slane %v6818, 2
        %v6820 = vadd.f32 %v6818, %v6819
        %v6821 = vrot.slane %v6820, 1
        %v6822 = vadd.f32 %v6820, %v6821
        %6823 = vrot.lane.b32.xlu0 %v6822, 64
        %v6824 = vpop.permute.xlu0 %6823
        %v6825 = vsel %vm2244, %v6824, %v6822
        %6826 = vrot.lane.b32.xlu0 %v6825, 64
        %v6827 = vpop.permute.xlu0 %6826
        %v6828 = vsel %vm2244, %v6827, %v6822
        %6830 = vrot.lane.b32.xlu0 %v6828, 127
        %v6831 = vpop.permute.xlu0 %6830
        %6833 = vrot.lane.b32.xlu0 %v6828, 65
        %v6834 = vpop.permute.xlu0 %6833
        %v6836 = vsel %vm2251, %v6831, %v6834
        %v6837 = vadd.f32 %v6822, %v6836
        %v6838 = vmul.f32 %v6837, 0.010416667
        %v6839 = vperm.slane %v6838, 0
        %v6840 = vsub.f32 %v6800, %v6839
        %v6841 = vsub.f32 %v6801, %v6839
        %v6842 = vsub.f32 %v6802, %v6839
        %v6843 = vsub.f32 %v6803, %v6839
        %v6844 = vsub.f32 %v6804, %v6839
        %v6845 = vsub.f32 %v6805, %v6839
        %v6846 = vmul.f32 %v6840, %v6840
        %v6847 = vmul.f32 %v6841, %v6841
        %v6848 = vmul.f32 %v6842, %v6842
        %v6849 = vmul.f32 %v6843, %v6843
        %v6850 = vmul.f32 %v6844, %v6844
        %v6851 = vmul.f32 %v6845, %v6845
        %v6852 = vsel %vm599, %v6846, 0.0
        %v6853 = vsel %vm599, %v6847, 0.0
        %v6854 = vadd.f32 %v6852, %v6853
        %v6855 = vsel %vm599, %v6848, 0.0
        %v6856 = vadd.f32 %v6854, %v6855
        %v6857 = vsel %vm599, %v6849, 0.0
        %v6858 = vadd.f32 %v6856, %v6857
        %v6859 = vsel %vm599, %v6850, 0.0
        %v6860 = vadd.f32 %v6858, %v6859
        %v6861 = vsel %vm599, %v6851, 0.0
        %v6862 = vadd.f32 %v6860, %v6861
        %v6863 = vrot.slane %v6862, 4
        %v6864 = vadd.f32 %v6862, %v6863
        %v6865 = vrot.slane %v6864, 2
        %v6866 = vadd.f32 %v6864, %v6865
        %v6867 = vrot.slane %v6866, 1
        %v6868 = vadd.f32 %v6866, %v6867
        %6869 = vrot.lane.b32.xlu0 %v6868, 64
        %v6870 = vpop.permute.xlu0 %6869
        %v6871 = vsel %vm2244, %v6870, %v6868
        %6872 = vrot.lane.b32.xlu0 %v6871, 64
        %v6873 = vpop.permute.xlu0 %6872
        %v6874 = vsel %vm2244, %v6873, %v6868
        %6876 = vrot.lane.b32.xlu0 %v6874, 127
        %v6877 = vpop.permute.xlu0 %6876
        %6879 = vrot.lane.b32.xlu0 %v6874, 65
        %v6880 = vpop.permute.xlu0 %6879
        %v6882 = vsel %vm2251, %v6877, %v6880
        %v6883 = vadd.f32 %v6868, %v6882
        %v6884 = vmul.f32 %v6883, 0.010416667
        %v6885 = vadd.f32 %v6884, 1e-05
        %v6886 = vrsqrt.pop %v6885
        %v6887 = vmul.f32 %v6886, %v6885
        %v6888 = vmul.f32 %v6887, %v6886
        %v6889 = vmul.f32 0.5, %v6888
        %v6890 = vsub.f32 1.5, %v6889
        %v6891 = vmul.f32 %v6886, %v6890
        %vm6892 = vweird.f32 %v6885
        %vm6893 = vweird.f32 %v6886
        %vm6894 = vmor %vm6892, %vm6893
        %v6895 = vsel %vm6894, %v6886, %v6891
        %v6896 = vperm.slane %v6895, 0
        %v6897 = vmul.f32 %v6840, %v6896
        %v6898 = vmul.f32 %v6841, %v6896
        %v6899 = vmul.f32 %v6842, %v6896
        %v6900 = vmul.f32 %v6843, %v6896
        %v6901 = vmul.f32 %v6844, %v6896
        %v6902 = vmul.f32 %v6845, %v6896
        %s6903 = scalar_lea.vmem %s10, 2
        %v6904 = vld [vmem:[%s6903] sm:$0x1]
        %v6906 = vperm.slane %v6904, 0
        %v6908 = vmul.f32 %v6897, %v6906
        %v6909 = vmul.f32 %v6898, %v6906
        %v6910 = vmul.f32 %v6899, %v6906
        %v6911 = vmul.f32 %v6900, %v6906
        %v6912 = vmul.f32 %v6901, %v6906
        %v6913 = vmul.f32 %v6902, %v6906
        %s6914 = scalar_lea.vmem %s11, 2
        %v6915 = vld [vmem:[%s6914] sm:$0x1]
        %v6917 = vperm.slane %v6915, 0
        %v6919 = vadd.f32 %v6908, %v6917
        %v6920 = vadd.f32 %v6909, %v6917
        %v6921 = vadd.f32 %v6910, %v6917
        %v6922 = vadd.f32 %v6911, %v6917
        %v6923 = vadd.f32 %v6912, %v6917
        %v6924 = vadd.f32 %v6913, %v6917
        %v6925 = vpack.c.bf16 %v6920, %v6919
        %v6926 = vpack.c.bf16 %v6922, %v6921
        %v6927 = vpack.c.bf16 %v6924, %v6923
        %s6928 = scalar_lea.vmem %s12, 128
        %v6929 = vld [vmem:[%s6928] sm:$0xff]
        %v6930 = vld [vmem:[%s6928 + $0x8] sm:$0xff]
        %v6931 = vld [vmem:[%s6928 + $0x10] sm:$0xff]
        %v6932 = vld [vmem:[%s6928 + $0x18] sm:$0xff]
        %v6933 = vld [vmem:[%s6928 + $0x20] sm:$0xff]
        %v6934 = vld [vmem:[%s6928 + $0x28] sm:$0xff]
        %v6935 = vld [vmem:[%s6928 + $0x30] sm:$0xff]
        %v6936 = vld [vmem:[%s6928 + $0x38] sm:$0xff]
        %s6937 = scalar_lea.vmem %s13, 4
        %v6938 = vld [vmem:[%s6937] sm:$0x3]
        %v6940 = vperm.slane %v6938, 0
        %v6941 = vperm.slane %v6938, 1
        %v6952 = vunpack.c.l.b16 %v6929
        %v6953 = vunpack.c.h.b16 %v6929
        %v6954 = vunpack.c.l.b16 %v6930
        %v6955 = vunpack.c.h.b16 %v6930
        %v6956 = vunpack.c.l.b16 %v6931
        %v6957 = vunpack.c.h.b16 %v6931
        %v6958 = vunpack.c.l.b16 %v6932
        %v6959 = vunpack.c.h.b16 %v6932
        %v6960 = vunpack.c.l.b16 %v6933
        %v6961 = vunpack.c.h.b16 %v6933
        %v6962 = vunpack.c.l.b16 %v6934
        %v6963 = vunpack.c.h.b16 %v6934
        %v6964 = vunpack.c.l.b16 %v6935
        %v6965 = vunpack.c.h.b16 %v6935
        %v6966 = vunpack.c.l.b16 %v6936
        %v6967 = vunpack.c.h.b16 %v6936
        %v6968 = vpack.c.b16 %v6954, %v6952
        %v6969 = vpack.c.b16 %v6955, %v6953
        %v6970 = vpack.c.b16 %v6958, %v6956
        %v6971 = vpack.c.b16 %v6959, %v6957
        %v6972 = vpack.c.b16 %v6962, %v6960
        %v6973 = vpack.c.b16 %v6963, %v6961
        %v6974 = vpack.c.b16 %v6966, %v6964
        %v6975 = vpack.c.b16 %v6967, %v6965
        %v6985 = vsel %vm599, %v6925, 0
        %v6988 = vsel %vm599, %v6926, 0
        %v6991 = vsel %vm599, %v6927, 0
        %6993 = vmatpush.bf16.msra.mxu0 0
        %6994 = vmatpush.bf16.msra.mxu0 0
        %6995 = vmatpush.bf16.msra.mxu0 0
        %6996 = vmatpush.bf16.msra.mxu0 0
        %6997 = vmatpush.bf16.msra.mxu0 %v6974
        %6998 = vmatpush.bf16.msra.mxu0 %v6972
        %6999 = vmatpush.bf16.msra.mxu0 %v6970
        %7000 = vmatpush.bf16.msra.mxu0 %v6968
        %7001 = vmatmul.bf16.gmra.mxu0 %v6985
        %v7002 = vpop.f32.mrf.mxu0
        %v7003 = vadd.f32 %v6940, %v7002
        %v7004 = vpop.f32.mrf.mxu0
        %v7005 = vadd.f32 %v6940, %v7004
        %7006 = vmatmul.bf16.gmra.mxu0 %v6988
        %v7007 = vpop.f32.mrf.mxu0
        %v7008 = vadd.f32 %v6940, %v7007
        %v7009 = vpop.f32.mrf.mxu0
        %v7010 = vadd.f32 %v6940, %v7009
        %7011 = vmatmul.bf16.gmra.mxu0 %v6991
        %v7012 = vpop.f32.mrf.mxu0
        %v7013 = vadd.f32 %v6940, %v7012
        %v7014 = vpop.f32.mrf.mxu0
        %v7015 = vadd.f32 %v6940, %v7014
        %7016 = vdwg.mxu0
        %7017 = vmatpush.bf16.msra.mxu0 0
        %7018 = vmatpush.bf16.msra.mxu0 0
        %7019 = vmatpush.bf16.msra.mxu0 0
        %7020 = vmatpush.bf16.msra.mxu0 0
        %7021 = vmatpush.bf16.msra.mxu0 %v6975
        %7022 = vmatpush.bf16.msra.mxu0 %v6973
        %7023 = vmatpush.bf16.msra.mxu0 %v6971
        %7024 = vmatpush.bf16.msra.mxu0 %v6969
        %7025 = vmatmul.bf16.gmra.mxu0 %v6985
        %v7026 = vpop.f32.mrf.mxu0
        %v7027 = vadd.f32 %v6941, %v7026
        %v7028 = vpop.f32.mrf.mxu0
        %v7029 = vadd.f32 %v6941, %v7028
        %7030 = vmatmul.bf16.gmra.mxu0 %v6988
        %v7031 = vpop.f32.mrf.mxu0
        %v7032 = vadd.f32 %v6941, %v7031
        %v7033 = vpop.f32.mrf.mxu0
        %v7034 = vadd.f32 %v6941, %v7033
        %7035 = vmatmul.bf16.gmra.mxu0 %v6991
        %v7036 = vpop.f32.mrf.mxu0
        %v7037 = vadd.f32 %v6941, %v7036
        %v7038 = vpop.f32.mrf.mxu0
        %v7039 = vadd.f32 %v6941, %v7038
        %7040 = vdwg.mxu0
        %v7041 = vpack.c.bf16 %v7027, %v7027
        %v7042 = vpack.c.bf16 %v7029, %v7029
        %v7043 = vpack.c.bf16 %v7032, %v7032
        %v7044 = vpack.c.bf16 %v7034, %v7034
        %v7045 = vpack.c.bf16 %v7037, %v7037
        %v7046 = vpack.c.bf16 %v7039, %v7039
        %7053 = vrot.lane.b32.xlu0 %v7003, 64
        %v7054 = vpop.permute.xlu0 %7053
        %7055 = vrot.lane.b32.xlu0 %v7005, 64
        %v7056 = vpop.permute.xlu0 %7055
        %7057 = vrot.lane.b32.xlu0 %v7008, 64
        %v7058 = vpop.permute.xlu0 %7057
        %7059 = vrot.lane.b32.xlu0 %v7010, 64
        %v7060 = vpop.permute.xlu0 %7059
        %7061 = vrot.lane.b32.xlu0 %v7013, 64
        %v7062 = vpop.permute.xlu0 %7061
        %7063 = vrot.lane.b32.xlu0 %v7015, 64
        %v7064 = vpop.permute.xlu0 %7063
        %v7065 = vsel %vm681, %v7003, 0
        %v7067 = vsel %vm681, %v7005, 0
        %v7069 = vsel %vm681, %v7008, 0
        %v7071 = vsel %vm681, %v7010, 0
        %v7073 = vsel %vm681, %v7013, 0
        %v7075 = vsel %vm681, %v7015, 0
        %v7077 = vsel %vm681, %v7054, 0
        %v7079 = vsel %vm681, %v7056, 0
        %v7081 = vsel %vm681, %v7058, 0
        %v7083 = vsel %vm681, %v7060, 0
        %v7085 = vsel %vm681, %v7062, 0
        %v7087 = vsel %vm681, %v7064, 0
        %7089 = vmatpush.xpose.msra.mxu0 0.0
        %7090 = vmatpush.xpose.msra.mxu0 0.0
        %7091 = vmatpush.xpose.msra.mxu0 0.0
        %7092 = vmatpush.xpose.msra.mxu0 0.0
        %7093 = vmatpush.xpose.msra.mxu0 0.0
        %7094 = vmatpush.xpose.msra.mxu0 0.0
        %7095 = vmatpush.xpose.msra.mxu0 0.0
        %7096 = vmatpush.xpose.msra.mxu0 0.0
        %7097 = vmatpush.xpose.msra.mxu0 0.0
        %7098 = vmatpush.xpose.msra.mxu0 0.0
        %7099 = vmatpush.xpose.msra.mxu0 %v7087
        %7100 = vmatpush.xpose.msra.mxu0 %v7085
        %7101 = vmatpush.xpose.msra.mxu0 %v7083
        %7102 = vmatpush.xpose.msra.mxu0 %v7081
        %7103 = vmatpush.xpose.msra.mxu0 %v7079
        %7104 = vmatpush.xpose.msra.mxu0 %v7077
        %7105 = vmatmul.f32.gmra.mxu0 %v7065
        %v7106 = vpop.f32.mrf.mxu0
        %v7107 = vadd.f32 0.0, %v7106
        %7108 = vmatmul.f32.gmra.mxu0 %v7067
        %v7109 = vpop.f32.mrf.mxu0
        %v7110 = vadd.f32 0.0, %v7109
        %7111 = vmatmul.f32.gmra.mxu0 %v7069
        %v7112 = vpop.f32.mrf.mxu0
        %v7113 = vadd.f32 0.0, %v7112
        %7114 = vmatmul.f32.gmra.mxu0 %v7071
        %v7115 = vpop.f32.mrf.mxu0
        %v7116 = vadd.f32 0.0, %v7115
        %7117 = vmatmul.f32.gmra.mxu0 %v7073
        %v7118 = vpop.f32.mrf.mxu0
        %v7119 = vadd.f32 0.0, %v7118
        %7120 = vmatmul.f32.gmra.mxu0 %v7075
        %v7121 = vpop.f32.mrf.mxu0
        %v7122 = vadd.f32 0.0, %v7121
        %7123 = vdwg.mxu0
        %v7124 = vmul.f32 %v7107, 0.35355338
        %v7125 = vmul.f32 %v7110, 0.35355338
        %v7126 = vmul.f32 %v7113, 0.35355338
        %v7127 = vmul.f32 %v7116, 0.35355338
        %v7128 = vmul.f32 %v7119, 0.35355338
        %v7129 = vmul.f32 %v7122, 0.35355338
        %s7130 = scalar_lea.vmem %s16, 384
        %v7131 = vld [vmem:[%s7130] sm:$0xf]
        %v7132 = vld [vmem:[%s7130 + $0x4] sm:$0xf]
        %v7133 = vld [vmem:[%s7130 + $0x8] sm:$0xf]
        %v7134 = vld [vmem:[%s7130 + $0xc] sm:$0xf]
        %v7135 = vld [vmem:[%s7130 + $0x10] sm:$0xf]
        %v7136 = vld [vmem:[%s7130 + $0x14] sm:$0xf]
        %v7137 = vunpack.c.l.bf16 %v7131
        %v7138 = vunpack.c.l.bf16 %v7132
        %v7139 = vunpack.c.l.bf16 %v7133
        %v7140 = vunpack.c.l.bf16 %v7134
        %v7141 = vunpack.c.l.bf16 %v7135
        %v7142 = vunpack.c.l.bf16 %v7136
        %v7143 = vadd.f32 %v7124, %v7137
        %v7144 = vadd.f32 %v7125, %v7138
        %v7145 = vadd.f32 %v7126, %v7139
        %v7146 = vadd.f32 %v7127, %v7140
        %v7147 = vadd.f32 %v7128, %v7141
        %v7148 = vadd.f32 %v7129, %v7142
        %v7149 = vsel %vm1865, %v7143, -inf
        %7150 = vmax.xlane.f32.xlu0 %v7149
        %v7151 = vpop.xlane.xlu0 %7150
        %v7152 = vsel %vm1865, %v7144, -inf
        %7153 = vmax.xlane.f32.xlu0 %v7152
        %v7154 = vpop.xlane.xlu0 %7153
        %v7155 = vsel %vm1865, %v7145, -inf
        %7156 = vmax.xlane.f32.xlu0 %v7155
        %v7157 = vpop.xlane.xlu0 %7156
        %v7158 = vsel %vm1865, %v7146, -inf
        %7159 = vmax.xlane.f32.xlu0 %v7158
        %v7160 = vpop.xlane.xlu0 %7159
        %v7161 = vsel %vm1865, %v7147, -inf
        %7162 = vmax.xlane.f32.xlu0 %v7161
        %v7163 = vpop.xlane.xlu0 %7162
        %v7164 = vsel %vm1865, %v7148, -inf
        %7165 = vmax.xlane.f32.xlu0 %v7164
        %v7166 = vpop.xlane.xlu0 %7165
        %v7167 = vsub.f32 %v7143, %v7151
        %v7168 = vsub.f32 %v7144, %v7154
        %v7169 = vsub.f32 %v7145, %v7157
        %v7170 = vsub.f32 %v7146, %v7160
        %v7171 = vsub.f32 %v7147, %v7163
        %v7172 = vsub.f32 %v7148, %v7166
        %v7173 = vmul.f32 %v7167, 1.442695
        %v7174 = vpow.pop %v7173
        %v7175 = vmul.f32 %v7168, 1.442695
        %v7176 = vpow.pop %v7175
        %v7177 = vmul.f32 %v7169, 1.442695
        %v7178 = vpow.pop %v7177
        %v7179 = vmul.f32 %v7170, 1.442695
        %v7180 = vpow.pop %v7179
        %v7181 = vmul.f32 %v7171, 1.442695
        %v7182 = vpow.pop %v7181
        %v7183 = vmul.f32 %v7172, 1.442695
        %v7184 = vpow.pop %v7183
        %v7185 = vsel %vm1865, %v7174, 0.0
        %7186 = vadd.xlane.f32.xlu0 %v7185
        %v7187 = vpop.xlane.xlu0 %7186
        %v7188 = vsel %vm1865, %v7176, 0.0
        %7189 = vadd.xlane.f32.xlu0 %v7188
        %v7190 = vpop.xlane.xlu0 %7189
        %v7191 = vsel %vm1865, %v7178, 0.0
        %7192 = vadd.xlane.f32.xlu0 %v7191
        %v7193 = vpop.xlane.xlu0 %7192
        %v7194 = vsel %vm1865, %v7180, 0.0
        %7195 = vadd.xlane.f32.xlu0 %v7194
        %v7196 = vpop.xlane.xlu0 %7195
        %v7197 = vsel %vm1865, %v7182, 0.0
        %7198 = vadd.xlane.f32.xlu0 %v7197
        %v7199 = vpop.xlane.xlu0 %7198
        %v7200 = vsel %vm1865, %v7184, 0.0
        %7201 = vadd.xlane.f32.xlu0 %v7200
        %v7202 = vpop.xlane.xlu0 %7201
        %v7203 = vrcp.pop %v7187
        %v7204 = vrcp.pop %v7190
        %v7205 = vrcp.pop %v7193
        %v7206 = vrcp.pop %v7196
        %v7207 = vrcp.pop %v7199
        %v7208 = vrcp.pop %v7202
        %v7209 = vmul.f32 %v7174, %v7203
        %v7210 = vmul.f32 %v7176, %v7204
        %v7211 = vmul.f32 %v7178, %v7205
        %v7212 = vmul.f32 %v7180, %v7206
        %v7213 = vmul.f32 %v7182, %v7207
        %v7214 = vmul.f32 %v7184, %v7208
        %v7215 = vpack.c.bf16 %v7210, %v7209
        %v7216 = vpack.c.bf16 %v7212, %v7211
        %v7217 = vpack.c.bf16 %v7214, %v7213
        %v7224 = vunpack.c.l.b16 %v7041
        %v7225 = vunpack.c.l.b16 %v7042
        %v7226 = vunpack.c.l.b16 %v7043
        %v7227 = vunpack.c.l.b16 %v7044
        %v7228 = vunpack.c.l.b16 %v7045
        %v7229 = vunpack.c.l.b16 %v7046
        %v7230 = vpack.c.b16 %v7225, %v7224
        %v7231 = vpack.c.b16 %v7227, %v7226
        %v7232 = vpack.c.b16 %v7229, %v7228
        %v7237 = vsel %vm1865, %v7215, 0
        %v7240 = vsel %vm1865, %v7216, 0
        %v7243 = vsel %vm1865, %v7217, 0
        %7245 = vmatpush.bf16.msra.mxu0 0
        %7246 = vmatpush.bf16.msra.mxu0 0
        %7247 = vmatpush.bf16.msra.mxu0 0
        %7248 = vmatpush.bf16.msra.mxu0 0
        %7249 = vmatpush.bf16.msra.mxu0 0
        %7250 = vmatpush.bf16.msra.mxu0 %v7232
        %7251 = vmatpush.bf16.msra.mxu0 %v7231
        %7252 = vmatpush.bf16.msra.mxu0 %v7230
        %7253 = vmatmul.bf16.gmra.mxu0 %v7237
        %v7254 = vpop.f32.mrf.mxu0
        %v7255 = vadd.f32 0.0, %v7254
        %v7256 = vpop.f32.mrf.mxu0
        %v7257 = vadd.f32 0.0, %v7256
        %7258 = vmatmul.bf16.gmra.mxu0 %v7240
        %v7259 = vpop.f32.mrf.mxu0
        %v7260 = vadd.f32 0.0, %v7259
        %v7261 = vpop.f32.mrf.mxu0
        %v7262 = vadd.f32 0.0, %v7261
        %7263 = vmatmul.bf16.gmra.mxu0 %v7243
        %v7264 = vpop.f32.mrf.mxu0
        %v7265 = vadd.f32 0.0, %v7264
        %v7266 = vpop.f32.mrf.mxu0
        %v7267 = vadd.f32 0.0, %v7266
        %7268 = vdwg.mxu0
        %7269 = vrot.lane.b32.xlu0 %v7003, 120
        %v7270 = vpop.permute.xlu0 %7269
        %7271 = vrot.lane.b32.xlu0 %v7005, 120
        %v7272 = vpop.permute.xlu0 %7271
        %7273 = vrot.lane.b32.xlu0 %v7008, 120
        %v7274 = vpop.permute.xlu0 %7273
        %7275 = vrot.lane.b32.xlu0 %v7010, 120
        %v7276 = vpop.permute.xlu0 %7275
        %7277 = vrot.lane.b32.xlu0 %v7013, 120
        %v7278 = vpop.permute.xlu0 %7277
        %7279 = vrot.lane.b32.xlu0 %v7015, 120
        %v7280 = vpop.permute.xlu0 %7279
        %7281 = vrot.lane.b32.xlu0 %v7003, 56
        %v7282 = vpop.permute.xlu0 %7281
        %7283 = vrot.lane.b32.xlu0 %v7005, 56
        %v7284 = vpop.permute.xlu0 %7283
        %7285 = vrot.lane.b32.xlu0 %v7008, 56
        %v7286 = vpop.permute.xlu0 %7285
        %7287 = vrot.lane.b32.xlu0 %v7010, 56
        %v7288 = vpop.permute.xlu0 %7287
        %7289 = vrot.lane.b32.xlu0 %v7013, 56
        %v7290 = vpop.permute.xlu0 %7289
        %7291 = vrot.lane.b32.xlu0 %v7015, 56
        %v7292 = vpop.permute.xlu0 %7291
        %v7293 = vsel %vm681, %v7270, 0
        %v7295 = vsel %vm681, %v7272, 0
        %v7297 = vsel %vm681, %v7274, 0
        %v7299 = vsel %vm681, %v7276, 0
        %v7301 = vsel %vm681, %v7278, 0
        %v7303 = vsel %vm681, %v7280, 0
        %v7305 = vsel %vm681, %v7282, 0
        %v7307 = vsel %vm681, %v7284, 0
        %v7309 = vsel %vm681, %v7286, 0
        %v7311 = vsel %vm681, %v7288, 0
        %v7313 = vsel %vm681, %v7290, 0
        %v7315 = vsel %vm681, %v7292, 0
        %7317 = vmatpush.xpose.msra.mxu0 0.0
        %7318 = vmatpush.xpose.msra.mxu0 0.0
        %7319 = vmatpush.xpose.msra.mxu0 0.0
        %7320 = vmatpush.xpose.msra.mxu0 0.0
        %7321 = vmatpush.xpose.msra.mxu0 0.0
        %7322 = vmatpush.xpose.msra.mxu0 0.0
        %7323 = vmatpush.xpose.msra.mxu0 0.0
        %7324 = vmatpush.xpose.msra.mxu0 0.0
        %7325 = vmatpush.xpose.msra.mxu0 0.0
        %7326 = vmatpush.xpose.msra.mxu0 0.0
        %7327 = vmatpush.xpose.msra.mxu0 %v7315
        %7328 = vmatpush.xpose.msra.mxu0 %v7313
        %7329 = vmatpush.xpose.msra.mxu0 %v7311
        %7330 = vmatpush.xpose.msra.mxu0 %v7309
        %7331 = vmatpush.xpose.msra.mxu0 %v7307
        %7332 = vmatpush.xpose.msra.mxu0 %v7305
        %7333 = vmatmul.f32.gmra.mxu0 %v7293
        %v7334 = vpop.f32.mrf.mxu0
        %v7335 = vadd.f32 0.0, %v7334
        %7336 = vmatmul.f32.gmra.mxu0 %v7295
        %v7337 = vpop.f32.mrf.mxu0
        %v7338 = vadd.f32 0.0, %v7337
        %7339 = vmatmul.f32.gmra.mxu0 %v7297
        %v7340 = vpop.f32.mrf.mxu0
        %v7341 = vadd.f32 0.0, %v7340
        %7342 = vmatmul.f32.gmra.mxu0 %v7299
        %v7343 = vpop.f32.mrf.mxu0
        %v7344 = vadd.f32 0.0, %v7343
        %7345 = vmatmul.f32.gmra.mxu0 %v7301
        %v7346 = vpop.f32.mrf.mxu0
        %v7347 = vadd.f32 0.0, %v7346
        %7348 = vmatmul.f32.gmra.mxu0 %v7303
        %v7349 = vpop.f32.mrf.mxu0
        %v7350 = vadd.f32 0.0, %v7349
        %7351 = vdwg.mxu0
        %v7352 = vmul.f32 %v7335, 0.35355338
        %v7353 = vmul.f32 %v7338, 0.35355338
        %v7354 = vmul.f32 %v7341, 0.35355338
        %v7355 = vmul.f32 %v7344, 0.35355338
        %v7356 = vmul.f32 %v7347, 0.35355338
        %v7357 = vmul.f32 %v7350, 0.35355338
        %s7358 = scalar_lea.vmem %s16, 408
        %v7359 = vld [vmem:[%s7358] sm:$0xf]
        %v7360 = vld [vmem:[%s7358 + $0x4] sm:$0xf]
        %v7361 = vld [vmem:[%s7358 + $0x8] sm:$0xf]
        %v7362 = vld [vmem:[%s7358 + $0xc] sm:$0xf]
        %v7363 = vld [vmem:[%s7358 + $0x10] sm:$0xf]
        %v7364 = vld [vmem:[%s7358 + $0x14] sm:$0xf]
        %v7365 = vunpack.c.l.bf16 %v7359
        %v7366 = vunpack.c.l.bf16 %v7360
        %v7367 = vunpack.c.l.bf16 %v7361
        %v7368 = vunpack.c.l.bf16 %v7362
        %v7369 = vunpack.c.l.bf16 %v7363
        %v7370 = vunpack.c.l.bf16 %v7364
        %v7371 = vadd.f32 %v7352, %v7365
        %v7372 = vadd.f32 %v7353, %v7366
        %v7373 = vadd.f32 %v7354, %v7367
        %v7374 = vadd.f32 %v7355, %v7368
        %v7375 = vadd.f32 %v7356, %v7369
        %v7376 = vadd.f32 %v7357, %v7370
        %v7377 = vsel %vm1865, %v7371, -inf
        %7378 = vmax.xlane.f32.xlu0 %v7377
        %v7379 = vpop.xlane.xlu0 %7378
        %v7380 = vsel %vm1865, %v7372, -inf
        %7381 = vmax.xlane.f32.xlu0 %v7380
        %v7382 = vpop.xlane.xlu0 %7381
        %v7383 = vsel %vm1865, %v7373, -inf
        %7384 = vmax.xlane.f32.xlu0 %v7383
        %v7385 = vpop.xlane.xlu0 %7384
        %v7386 = vsel %vm1865, %v7374, -inf
        %7387 = vmax.xlane.f32.xlu0 %v7386
        %v7388 = vpop.xlane.xlu0 %7387
        %v7389 = vsel %vm1865, %v7375, -inf
        %7390 = vmax.xlane.f32.xlu0 %v7389
        %v7391 = vpop.xlane.xlu0 %7390
        %v7392 = vsel %vm1865, %v7376, -inf
        %7393 = vmax.xlane.f32.xlu0 %v7392
        %v7394 = vpop.xlane.xlu0 %7393
        %v7395 = vsub.f32 %v7371, %v7379
        %v7396 = vsub.f32 %v7372, %v7382
        %v7397 = vsub.f32 %v7373, %v7385
        %v7398 = vsub.f32 %v7374, %v7388
        %v7399 = vsub.f32 %v7375, %v7391
        %v7400 = vsub.f32 %v7376, %v7394
        %v7401 = vmul.f32 %v7395, 1.442695
        %v7402 = vpow.pop %v7401
        %v7403 = vmul.f32 %v7396, 1.442695
        %v7404 = vpow.pop %v7403
        %v7405 = vmul.f32 %v7397, 1.442695
        %v7406 = vpow.pop %v7405
        %v7407 = vmul.f32 %v7398, 1.442695
        %v7408 = vpow.pop %v7407
        %v7409 = vmul.f32 %v7399, 1.442695
        %v7410 = vpow.pop %v7409
        %v7411 = vmul.f32 %v7400, 1.442695
        %v7412 = vpow.pop %v7411
        %v7413 = vsel %vm1865, %v7402, 0.0
        %7414 = vadd.xlane.f32.xlu0 %v7413
        %v7415 = vpop.xlane.xlu0 %7414
        %v7416 = vsel %vm1865, %v7404, 0.0
        %7417 = vadd.xlane.f32.xlu0 %v7416
        %v7418 = vpop.xlane.xlu0 %7417
        %v7419 = vsel %vm1865, %v7406, 0.0
        %7420 = vadd.xlane.f32.xlu0 %v7419
        %v7421 = vpop.xlane.xlu0 %7420
        %v7422 = vsel %vm1865, %v7408, 0.0
        %7423 = vadd.xlane.f32.xlu0 %v7422
        %v7424 = vpop.xlane.xlu0 %7423
        %v7425 = vsel %vm1865, %v7410, 0.0
        %7426 = vadd.xlane.f32.xlu0 %v7425
        %v7427 = vpop.xlane.xlu0 %7426
        %v7428 = vsel %vm1865, %v7412, 0.0
        %7429 = vadd.xlane.f32.xlu0 %v7428
        %v7430 = vpop.xlane.xlu0 %7429
        %v7431 = vrcp.pop %v7415
        %v7432 = vrcp.pop %v7418
        %v7433 = vrcp.pop %v7421
        %v7434 = vrcp.pop %v7424
        %v7435 = vrcp.pop %v7427
        %v7436 = vrcp.pop %v7430
        %v7437 = vmul.f32 %v7402, %v7431
        %v7438 = vmul.f32 %v7404, %v7432
        %v7439 = vmul.f32 %v7406, %v7433
        %v7440 = vmul.f32 %v7408, %v7434
        %v7441 = vmul.f32 %v7410, %v7435
        %v7442 = vmul.f32 %v7412, %v7436
        %v7443 = vpack.c.bf16 %v7438, %v7437
        %v7444 = vpack.c.bf16 %v7440, %v7439
        %v7445 = vpack.c.bf16 %v7442, %v7441
        %7446 = vrot.lane.b32.xlu0 %v7230, 120
        %v7447 = vpop.permute.xlu0 %7446
        %7448 = vrot.lane.b32.xlu0 %v7231, 120
        %v7449 = vpop.permute.xlu0 %7448
        %7450 = vrot.lane.b32.xlu0 %v7232, 120
        %v7451 = vpop.permute.xlu0 %7450
        %v7456 = vsel %vm1865, %v7443, 0
        %v7459 = vsel %vm1865, %v7444, 0
        %v7462 = vsel %vm1865, %v7445, 0
        %7464 = vmatpush.bf16.msra.mxu0 0
        %7465 = vmatpush.bf16.msra.mxu0 0
        %7466 = vmatpush.bf16.msra.mxu0 0
        %7467 = vmatpush.bf16.msra.mxu0 0
        %7468 = vmatpush.bf16.msra.mxu0 0
        %7469 = vmatpush.bf16.msra.mxu0 %v7451
        %7470 = vmatpush.bf16.msra.mxu0 %v7449
        %7471 = vmatpush.bf16.msra.mxu0 %v7447
        %7472 = vmatmul.bf16.gmra.mxu0 %v7456
        %v7473 = vpop.f32.mrf.mxu0
        %v7474 = vadd.f32 0.0, %v7473
        %v7475 = vpop.f32.mrf.mxu0
        %v7476 = vadd.f32 0.0, %v7475
        %7477 = vmatmul.bf16.gmra.mxu0 %v7459
        %v7478 = vpop.f32.mrf.mxu0
        %v7479 = vadd.f32 0.0, %v7478
        %v7480 = vpop.f32.mrf.mxu0
        %v7481 = vadd.f32 0.0, %v7480
        %7482 = vmatmul.bf16.gmra.mxu0 %v7462
        %v7483 = vpop.f32.mrf.mxu0
        %v7484 = vadd.f32 0.0, %v7483
        %v7485 = vpop.f32.mrf.mxu0
        %v7486 = vadd.f32 0.0, %v7485
        %7487 = vdwg.mxu0
        %7488 = vrot.lane.b32.xlu0 %v7003, 112
        %v7489 = vpop.permute.xlu0 %7488
        %7490 = vrot.lane.b32.xlu0 %v7005, 112
        %v7491 = vpop.permute.xlu0 %7490
        %7492 = vrot.lane.b32.xlu0 %v7008, 112
        %v7493 = vpop.permute.xlu0 %7492
        %7494 = vrot.lane.b32.xlu0 %v7010, 112
        %v7495 = vpop.permute.xlu0 %7494
        %7496 = vrot.lane.b32.xlu0 %v7013, 112
        %v7497 = vpop.permute.xlu0 %7496
        %7498 = vrot.lane.b32.xlu0 %v7015, 112
        %v7499 = vpop.permute.xlu0 %7498
        %7500 = vrot.lane.b32.xlu0 %v7003, 48
        %v7501 = vpop.permute.xlu0 %7500
        %7502 = vrot.lane.b32.xlu0 %v7005, 48
        %v7503 = vpop.permute.xlu0 %7502
        %7504 = vrot.lane.b32.xlu0 %v7008, 48
        %v7505 = vpop.permute.xlu0 %7504
        %7506 = vrot.lane.b32.xlu0 %v7010, 48
        %v7507 = vpop.permute.xlu0 %7506
        %7508 = vrot.lane.b32.xlu0 %v7013, 48
        %v7509 = vpop.permute.xlu0 %7508
        %7510 = vrot.lane.b32.xlu0 %v7015, 48
        %v7511 = vpop.permute.xlu0 %7510
        %v7512 = vsel %vm681, %v7489, 0
        %v7514 = vsel %vm681, %v7491, 0
        %v7516 = vsel %vm681, %v7493, 0
        %v7518 = vsel %vm681, %v7495, 0
        %v7520 = vsel %vm681, %v7497, 0
        %v7522 = vsel %vm681, %v7499, 0
        %v7524 = vsel %vm681, %v7501, 0
        %v7526 = vsel %vm681, %v7503, 0
        %v7528 = vsel %vm681, %v7505, 0
        %v7530 = vsel %vm681, %v7507, 0
        %v7532 = vsel %vm681, %v7509, 0
        %v7534 = vsel %vm681, %v7511, 0
        %7536 = vmatpush.xpose.msra.mxu0 0.0
        %7537 = vmatpush.xpose.msra.mxu0 0.0
        %7538 = vmatpush.xpose.msra.mxu0 0.0
        %7539 = vmatpush.xpose.msra.mxu0 0.0
        %7540 = vmatpush.xpose.msra.mxu0 0.0
        %7541 = vmatpush.xpose.msra.mxu0 0.0
        %7542 = vmatpush.xpose.msra.mxu0 0.0
        %7543 = vmatpush.xpose.msra.mxu0 0.0
        %7544 = vmatpush.xpose.msra.mxu0 0.0
        %7545 = vmatpush.xpose.msra.mxu0 0.0
        %7546 = vmatpush.xpose.msra.mxu0 %v7534
        %7547 = vmatpush.xpose.msra.mxu0 %v7532
        %7548 = vmatpush.xpose.msra.mxu0 %v7530
        %7549 = vmatpush.xpose.msra.mxu0 %v7528
        %7550 = vmatpush.xpose.msra.mxu0 %v7526
        %7551 = vmatpush.xpose.msra.mxu0 %v7524
        %7552 = vmatmul.f32.gmra.mxu0 %v7512
        %v7553 = vpop.f32.mrf.mxu0
        %v7554 = vadd.f32 0.0, %v7553
        %7555 = vmatmul.f32.gmra.mxu0 %v7514
        %v7556 = vpop.f32.mrf.mxu0
        %v7557 = vadd.f32 0.0, %v7556
        %7558 = vmatmul.f32.gmra.mxu0 %v7516
        %v7559 = vpop.f32.mrf.mxu0
        %v7560 = vadd.f32 0.0, %v7559
        %7561 = vmatmul.f32.gmra.mxu0 %v7518
        %v7562 = vpop.f32.mrf.mxu0
        %v7563 = vadd.f32 0.0, %v7562
        %7564 = vmatmul.f32.gmra.mxu0 %v7520
        %v7565 = vpop.f32.mrf.mxu0
        %v7566 = vadd.f32 0.0, %v7565
        %7567 = vmatmul.f32.gmra.mxu0 %v7522
        %v7568 = vpop.f32.mrf.mxu0
        %v7569 = vadd.f32 0.0, %v7568
        %7570 = vdwg.mxu0
        %v7571 = vmul.f32 %v7554, 0.35355338
        %v7572 = vmul.f32 %v7557, 0.35355338
        %v7573 = vmul.f32 %v7560, 0.35355338
        %v7574 = vmul.f32 %v7563, 0.35355338
        %v7575 = vmul.f32 %v7566, 0.35355338
        %v7576 = vmul.f32 %v7569, 0.35355338
        %s7577 = scalar_lea.vmem %s16, 432
        %v7578 = vld [vmem:[%s7577] sm:$0xf]
        %v7579 = vld [vmem:[%s7577 + $0x4] sm:$0xf]
        %v7580 = vld [vmem:[%s7577 + $0x8] sm:$0xf]
        %v7581 = vld [vmem:[%s7577 + $0xc] sm:$0xf]
        %v7582 = vld [vmem:[%s7577 + $0x10] sm:$0xf]
        %v7583 = vld [vmem:[%s7577 + $0x14] sm:$0xf]
        %v7584 = vunpack.c.l.bf16 %v7578
        %v7585 = vunpack.c.l.bf16 %v7579
        %v7586 = vunpack.c.l.bf16 %v7580
        %v7587 = vunpack.c.l.bf16 %v7581
        %v7588 = vunpack.c.l.bf16 %v7582
        %v7589 = vunpack.c.l.bf16 %v7583
        %v7590 = vadd.f32 %v7571, %v7584
        %v7591 = vadd.f32 %v7572, %v7585
        %v7592 = vadd.f32 %v7573, %v7586
        %v7593 = vadd.f32 %v7574, %v7587
        %v7594 = vadd.f32 %v7575, %v7588
        %v7595 = vadd.f32 %v7576, %v7589
        %v7596 = vsel %vm1865, %v7590, -inf
        %7597 = vmax.xlane.f32.xlu0 %v7596
        %v7598 = vpop.xlane.xlu0 %7597
        %v7599 = vsel %vm1865, %v7591, -inf
        %7600 = vmax.xlane.f32.xlu0 %v7599
        %v7601 = vpop.xlane.xlu0 %7600
        %v7602 = vsel %vm1865, %v7592, -inf
        %7603 = vmax.xlane.f32.xlu0 %v7602
        %v7604 = vpop.xlane.xlu0 %7603
        %v7605 = vsel %vm1865, %v7593, -inf
        %7606 = vmax.xlane.f32.xlu0 %v7605
        %v7607 = vpop.xlane.xlu0 %7606
        %v7608 = vsel %vm1865, %v7594, -inf
        %7609 = vmax.xlane.f32.xlu0 %v7608
        %v7610 = vpop.xlane.xlu0 %7609
        %v7611 = vsel %vm1865, %v7595, -inf
        %7612 = vmax.xlane.f32.xlu0 %v7611
        %v7613 = vpop.xlane.xlu0 %7612
        %v7614 = vsub.f32 %v7590, %v7598
        %v7615 = vsub.f32 %v7591, %v7601
        %v7616 = vsub.f32 %v7592, %v7604
        %v7617 = vsub.f32 %v7593, %v7607
        %v7618 = vsub.f32 %v7594, %v7610
        %v7619 = vsub.f32 %v7595, %v7613
        %v7620 = vmul.f32 %v7614, 1.442695
        %v7621 = vpow.pop %v7620
        %v7622 = vmul.f32 %v7615, 1.442695
        %v7623 = vpow.pop %v7622
        %v7624 = vmul.f32 %v7616, 1.442695
        %v7625 = vpow.pop %v7624
        %v7626 = vmul.f32 %v7617, 1.442695
        %v7627 = vpow.pop %v7626
        %v7628 = vmul.f32 %v7618, 1.442695
        %v7629 = vpow.pop %v7628
        %v7630 = vmul.f32 %v7619, 1.442695
        %v7631 = vpow.pop %v7630
        %v7632 = vsel %vm1865, %v7621, 0.0
        %7633 = vadd.xlane.f32.xlu0 %v7632
        %v7634 = vpop.xlane.xlu0 %7633
        %v7635 = vsel %vm1865, %v7623, 0.0
        %7636 = vadd.xlane.f32.xlu0 %v7635
        %v7637 = vpop.xlane.xlu0 %7636
        %v7638 = vsel %vm1865, %v7625, 0.0
        %7639 = vadd.xlane.f32.xlu0 %v7638
        %v7640 = vpop.xlane.xlu0 %7639
        %v7641 = vsel %vm1865, %v7627, 0.0
        %7642 = vadd.xlane.f32.xlu0 %v7641
        %v7643 = vpop.xlane.xlu0 %7642
        %v7644 = vsel %vm1865, %v7629, 0.0
        %7645 = vadd.xlane.f32.xlu0 %v7644
        %v7646 = vpop.xlane.xlu0 %7645
        %v7647 = vsel %vm1865, %v7631, 0.0
        %7648 = vadd.xlane.f32.xlu0 %v7647
        %v7649 = vpop.xlane.xlu0 %7648
        %v7650 = vrcp.pop %v7634
        %v7651 = vrcp.pop %v7637
        %v7652 = vrcp.pop %v7640
        %v7653 = vrcp.pop %v7643
        %v7654 = vrcp.pop %v7646
        %v7655 = vrcp.pop %v7649
        %v7656 = vmul.f32 %v7621, %v7650
        %v7657 = vmul.f32 %v7623, %v7651
        %v7658 = vmul.f32 %v7625, %v7652
        %v7659 = vmul.f32 %v7627, %v7653
        %v7660 = vmul.f32 %v7629, %v7654
        %v7661 = vmul.f32 %v7631, %v7655
        %v7662 = vpack.c.bf16 %v7657, %v7656
        %v7663 = vpack.c.bf16 %v7659, %v7658
        %v7664 = vpack.c.bf16 %v7661, %v7660
        %7665 = vrot.lane.b32.xlu0 %v7230, 112
        %v7666 = vpop.permute.xlu0 %7665
        %7667 = vrot.lane.b32.xlu0 %v7231, 112
        %v7668 = vpop.permute.xlu0 %7667
        %7669 = vrot.lane.b32.xlu0 %v7232, 112
        %v7670 = vpop.permute.xlu0 %7669
        %v7675 = vsel %vm1865, %v7662, 0
        %v7678 = vsel %vm1865, %v7663, 0
        %v7681 = vsel %vm1865, %v7664, 0
        %7683 = vmatpush.bf16.msra.mxu0 0
        %7684 = vmatpush.bf16.msra.mxu0 0
        %7685 = vmatpush.bf16.msra.mxu0 0
        %7686 = vmatpush.bf16.msra.mxu0 0
        %7687 = vmatpush.bf16.msra.mxu0 0
        %7688 = vmatpush.bf16.msra.mxu0 %v7670
        %7689 = vmatpush.bf16.msra.mxu0 %v7668
        %7690 = vmatpush.bf16.msra.mxu0 %v7666
        %7691 = vmatmul.bf16.gmra.mxu0 %v7675
        %v7692 = vpop.f32.mrf.mxu0
        %v7693 = vadd.f32 0.0, %v7692
        %v7694 = vpop.f32.mrf.mxu0
        %v7695 = vadd.f32 0.0, %v7694
        %7696 = vmatmul.bf16.gmra.mxu0 %v7678
        %v7697 = vpop.f32.mrf.mxu0
        %v7698 = vadd.f32 0.0, %v7697
        %v7699 = vpop.f32.mrf.mxu0
        %v7700 = vadd.f32 0.0, %v7699
        %7701 = vmatmul.bf16.gmra.mxu0 %v7681
        %v7702 = vpop.f32.mrf.mxu0
        %v7703 = vadd.f32 0.0, %v7702
        %v7704 = vpop.f32.mrf.mxu0
        %v7705 = vadd.f32 0.0, %v7704
        %7706 = vdwg.mxu0
        %7707 = vrot.lane.b32.xlu0 %v7003, 104
        %v7708 = vpop.permute.xlu0 %7707
        %7709 = vrot.lane.b32.xlu0 %v7005, 104
        %v7710 = vpop.permute.xlu0 %7709
        %7711 = vrot.lane.b32.xlu0 %v7008, 104
        %v7712 = vpop.permute.xlu0 %7711
        %7713 = vrot.lane.b32.xlu0 %v7010, 104
        %v7714 = vpop.permute.xlu0 %7713
        %7715 = vrot.lane.b32.xlu0 %v7013, 104
        %v7716 = vpop.permute.xlu0 %7715
        %7717 = vrot.lane.b32.xlu0 %v7015, 104
        %v7718 = vpop.permute.xlu0 %7717
        %7719 = vrot.lane.b32.xlu0 %v7003, 40
        %v7720 = vpop.permute.xlu0 %7719
        %7721 = vrot.lane.b32.xlu0 %v7005, 40
        %v7722 = vpop.permute.xlu0 %7721
        %7723 = vrot.lane.b32.xlu0 %v7008, 40
        %v7724 = vpop.permute.xlu0 %7723
        %7725 = vrot.lane.b32.xlu0 %v7010, 40
        %v7726 = vpop.permute.xlu0 %7725
        %7727 = vrot.lane.b32.xlu0 %v7013, 40
        %v7728 = vpop.permute.xlu0 %7727
        %7729 = vrot.lane.b32.xlu0 %v7015, 40
        %v7730 = vpop.permute.xlu0 %7729
        %v7731 = vsel %vm681, %v7708, 0
        %v7733 = vsel %vm681, %v7710, 0
        %v7735 = vsel %vm681, %v7712, 0
        %v7737 = vsel %vm681, %v7714, 0
        %v7739 = vsel %vm681, %v7716, 0
        %v7741 = vsel %vm681, %v7718, 0
        %v7743 = vsel %vm681, %v7720, 0
        %v7745 = vsel %vm681, %v7722, 0
        %v7747 = vsel %vm681, %v7724, 0
        %v7749 = vsel %vm681, %v7726, 0
        %v7751 = vsel %vm681, %v7728, 0
        %v7753 = vsel %vm681, %v7730, 0
        %7755 = vmatpush.xpose.msra.mxu0 0.0
        %7756 = vmatpush.xpose.msra.mxu0 0.0
        %7757 = vmatpush.xpose.msra.mxu0 0.0
        %7758 = vmatpush.xpose.msra.mxu0 0.0
        %7759 = vmatpush.xpose.msra.mxu0 0.0
        %7760 = vmatpush.xpose.msra.mxu0 0.0
        %7761 = vmatpush.xpose.msra.mxu0 0.0
        %7762 = vmatpush.xpose.msra.mxu0 0.0
        %7763 = vmatpush.xpose.msra.mxu0 0.0
        %7764 = vmatpush.xpose.msra.mxu0 0.0
        %7765 = vmatpush.xpose.msra.mxu0 %v7753
        %7766 = vmatpush.xpose.msra.mxu0 %v7751
        %7767 = vmatpush.xpose.msra.mxu0 %v7749
        %7768 = vmatpush.xpose.msra.mxu0 %v7747
        %7769 = vmatpush.xpose.msra.mxu0 %v7745
        %7770 = vmatpush.xpose.msra.mxu0 %v7743
        %7771 = vmatmul.f32.gmra.mxu0 %v7731
        %v7772 = vpop.f32.mrf.mxu0
        %v7773 = vadd.f32 0.0, %v7772
        %7774 = vmatmul.f32.gmra.mxu0 %v7733
        %v7775 = vpop.f32.mrf.mxu0
        %v7776 = vadd.f32 0.0, %v7775
        %7777 = vmatmul.f32.gmra.mxu0 %v7735
        %v7778 = vpop.f32.mrf.mxu0
        %v7779 = vadd.f32 0.0, %v7778
        %7780 = vmatmul.f32.gmra.mxu0 %v7737
        %v7781 = vpop.f32.mrf.mxu0
        %v7782 = vadd.f32 0.0, %v7781
        %7783 = vmatmul.f32.gmra.mxu0 %v7739
        %v7784 = vpop.f32.mrf.mxu0
        %v7785 = vadd.f32 0.0, %v7784
        %7786 = vmatmul.f32.gmra.mxu0 %v7741
        %v7787 = vpop.f32.mrf.mxu0
        %v7788 = vadd.f32 0.0, %v7787
        %7789 = vdwg.mxu0
        %v7790 = vmul.f32 %v7773, 0.35355338
        %v7791 = vmul.f32 %v7776, 0.35355338
        %v7792 = vmul.f32 %v7779, 0.35355338
        %v7793 = vmul.f32 %v7782, 0.35355338
        %v7794 = vmul.f32 %v7785, 0.35355338
        %v7795 = vmul.f32 %v7788, 0.35355338
        %s7796 = scalar_lea.vmem %s16, 456
        %v7797 = vld [vmem:[%s7796] sm:$0xf]
        %v7798 = vld [vmem:[%s7796 + $0x4] sm:$0xf]
        %v7799 = vld [vmem:[%s7796 + $0x8] sm:$0xf]
        %v7800 = vld [vmem:[%s7796 + $0xc] sm:$0xf]
        %v7801 = vld [vmem:[%s7796 + $0x10] sm:$0xf]
        %v7802 = vld [vmem:[%s7796 + $0x14] sm:$0xf]
        %v7803 = vunpack.c.l.bf16 %v7797
        %v7804 = vunpack.c.l.bf16 %v7798
        %v7805 = vunpack.c.l.bf16 %v7799
        %v7806 = vunpack.c.l.bf16 %v7800
        %v7807 = vunpack.c.l.bf16 %v7801
        %v7808 = vunpack.c.l.bf16 %v7802
        %v7809 = vadd.f32 %v7790, %v7803
        %v7810 = vadd.f32 %v7791, %v7804
        %v7811 = vadd.f32 %v7792, %v7805
        %v7812 = vadd.f32 %v7793, %v7806
        %v7813 = vadd.f32 %v7794, %v7807
        %v7814 = vadd.f32 %v7795, %v7808
        %v7815 = vsel %vm1865, %v7809, -inf
        %7816 = vmax.xlane.f32.xlu0 %v7815
        %v7817 = vpop.xlane.xlu0 %7816
        %v7818 = vsel %vm1865, %v7810, -inf
        %7819 = vmax.xlane.f32.xlu0 %v7818
        %v7820 = vpop.xlane.xlu0 %7819
        %v7821 = vsel %vm1865, %v7811, -inf
        %7822 = vmax.xlane.f32.xlu0 %v7821
        %v7823 = vpop.xlane.xlu0 %7822
        %v7824 = vsel %vm1865, %v7812, -inf
        %7825 = vmax.xlane.f32.xlu0 %v7824
        %v7826 = vpop.xlane.xlu0 %7825
        %v7827 = vsel %vm1865, %v7813, -inf
        %7828 = vmax.xlane.f32.xlu0 %v7827
        %v7829 = vpop.xlane.xlu0 %7828
        %v7830 = vsel %vm1865, %v7814, -inf
        %7831 = vmax.xlane.f32.xlu0 %v7830
        %v7832 = vpop.xlane.xlu0 %7831
        %v7833 = vsub.f32 %v7809, %v7817
        %v7834 = vsub.f32 %v7810, %v7820
        %v7835 = vsub.f32 %v7811, %v7823
        %v7836 = vsub.f32 %v7812, %v7826
        %v7837 = vsub.f32 %v7813, %v7829
        %v7838 = vsub.f32 %v7814, %v7832
        %v7839 = vmul.f32 %v7833, 1.442695
        %v7840 = vpow.pop %v7839
        %v7841 = vmul.f32 %v7834, 1.442695
        %v7842 = vpow.pop %v7841
        %v7843 = vmul.f32 %v7835, 1.442695
        %v7844 = vpow.pop %v7843
        %v7845 = vmul.f32 %v7836, 1.442695
        %v7846 = vpow.pop %v7845
        %v7847 = vmul.f32 %v7837, 1.442695
        %v7848 = vpow.pop %v7847
        %v7849 = vmul.f32 %v7838, 1.442695
        %v7850 = vpow.pop %v7849
        %v7851 = vsel %vm1865, %v7840, 0.0
        %7852 = vadd.xlane.f32.xlu0 %v7851
        %v7853 = vpop.xlane.xlu0 %7852
        %v7854 = vsel %vm1865, %v7842, 0.0
        %7855 = vadd.xlane.f32.xlu0 %v7854
        %v7856 = vpop.xlane.xlu0 %7855
        %v7857 = vsel %vm1865, %v7844, 0.0
        %7858 = vadd.xlane.f32.xlu0 %v7857
        %v7859 = vpop.xlane.xlu0 %7858
        %v7860 = vsel %vm1865, %v7846, 0.0
        %7861 = vadd.xlane.f32.xlu0 %v7860
        %v7862 = vpop.xlane.xlu0 %7861
        %v7863 = vsel %vm1865, %v7848, 0.0
        %7864 = vadd.xlane.f32.xlu0 %v7863
        %v7865 = vpop.xlane.xlu0 %7864
        %v7866 = vsel %vm1865, %v7850, 0.0
        %7867 = vadd.xlane.f32.xlu0 %v7866
        %v7868 = vpop.xlane.xlu0 %7867
        %v7869 = vrcp.pop %v7853
        %v7870 = vrcp.pop %v7856
        %v7871 = vrcp.pop %v7859
        %v7872 = vrcp.pop %v7862
        %v7873 = vrcp.pop %v7865
        %v7874 = vrcp.pop %v7868
        %v7875 = vmul.f32 %v7840, %v7869
        %v7876 = vmul.f32 %v7842, %v7870
        %v7877 = vmul.f32 %v7844, %v7871
        %v7878 = vmul.f32 %v7846, %v7872
        %v7879 = vmul.f32 %v7848, %v7873
        %v7880 = vmul.f32 %v7850, %v7874
        %v7881 = vpack.c.bf16 %v7876, %v7875
        %v7882 = vpack.c.bf16 %v7878, %v7877
        %v7883 = vpack.c.bf16 %v7880, %v7879
        %7884 = vrot.lane.b32.xlu0 %v7230, 104
        %v7885 = vpop.permute.xlu0 %7884
        %7886 = vrot.lane.b32.xlu0 %v7231, 104
        %v7887 = vpop.permute.xlu0 %7886
        %7888 = vrot.lane.b32.xlu0 %v7232, 104
        %v7889 = vpop.permute.xlu0 %7888
        %v7894 = vsel %vm1865, %v7881, 0
        %v7897 = vsel %vm1865, %v7882, 0
        %v7900 = vsel %vm1865, %v7883, 0
        %7902 = vmatpush.bf16.msra.mxu0 0
        %7903 = vmatpush.bf16.msra.mxu0 0
        %7904 = vmatpush.bf16.msra.mxu0 0
        %7905 = vmatpush.bf16.msra.mxu0 0
        %7906 = vmatpush.bf16.msra.mxu0 0
        %7907 = vmatpush.bf16.msra.mxu0 %v7889
        %7908 = vmatpush.bf16.msra.mxu0 %v7887
        %7909 = vmatpush.bf16.msra.mxu0 %v7885
        %7910 = vmatmul.bf16.gmra.mxu0 %v7894
        %v7911 = vpop.f32.mrf.mxu0
        %v7912 = vadd.f32 0.0, %v7911
        %v7913 = vpop.f32.mrf.mxu0
        %v7914 = vadd.f32 0.0, %v7913
        %7915 = vmatmul.bf16.gmra.mxu0 %v7897
        %v7916 = vpop.f32.mrf.mxu0
        %v7917 = vadd.f32 0.0, %v7916
        %v7918 = vpop.f32.mrf.mxu0
        %v7919 = vadd.f32 0.0, %v7918
        %7920 = vmatmul.bf16.gmra.mxu0 %v7900
        %v7921 = vpop.f32.mrf.mxu0
        %v7922 = vadd.f32 0.0, %v7921
        %v7923 = vpop.f32.mrf.mxu0
        %v7924 = vadd.f32 0.0, %v7923
        %7925 = vdwg.mxu0
        %7926 = vrot.lane.b32.xlu0 %v7003, 96
        %v7927 = vpop.permute.xlu0 %7926
        %7928 = vrot.lane.b32.xlu0 %v7005, 96
        %v7929 = vpop.permute.xlu0 %7928
        %7930 = vrot.lane.b32.xlu0 %v7008, 96
        %v7931 = vpop.permute.xlu0 %7930
        %7932 = vrot.lane.b32.xlu0 %v7010, 96
        %v7933 = vpop.permute.xlu0 %7932
        %7934 = vrot.lane.b32.xlu0 %v7013, 96
        %v7935 = vpop.permute.xlu0 %7934
        %7936 = vrot.lane.b32.xlu0 %v7015, 96
        %v7937 = vpop.permute.xlu0 %7936
        %7938 = vrot.lane.b32.xlu0 %v7003, 32
        %v7939 = vpop.permute.xlu0 %7938
        %7940 = vrot.lane.b32.xlu0 %v7005, 32
        %v7941 = vpop.permute.xlu0 %7940
        %7942 = vrot.lane.b32.xlu0 %v7008, 32
        %v7943 = vpop.permute.xlu0 %7942
        %7944 = vrot.lane.b32.xlu0 %v7010, 32
        %v7945 = vpop.permute.xlu0 %7944
        %7946 = vrot.lane.b32.xlu0 %v7013, 32
        %v7947 = vpop.permute.xlu0 %7946
        %7948 = vrot.lane.b32.xlu0 %v7015, 32
        %v7949 = vpop.permute.xlu0 %7948
        %v7950 = vsel %vm681, %v7927, 0
        %v7952 = vsel %vm681, %v7929, 0
        %v7954 = vsel %vm681, %v7931, 0
        %v7956 = vsel %vm681, %v7933, 0
        %v7958 = vsel %vm681, %v7935, 0
        %v7960 = vsel %vm681, %v7937, 0
        %v7962 = vsel %vm681, %v7939, 0
        %v7964 = vsel %vm681, %v7941, 0
        %v7966 = vsel %vm681, %v7943, 0
        %v7968 = vsel %vm681, %v7945, 0
        %v7970 = vsel %vm681, %v7947, 0
        %v7972 = vsel %vm681, %v7949, 0
        %7974 = vmatpush.xpose.msra.mxu0 0.0
        %7975 = vmatpush.xpose.msra.mxu0 0.0
        %7976 = vmatpush.xpose.msra.mxu0 0.0
        %7977 = vmatpush.xpose.msra.mxu0 0.0
        %7978 = vmatpush.xpose.msra.mxu0 0.0
        %7979 = vmatpush.xpose.msra.mxu0 0.0
        %7980 = vmatpush.xpose.msra.mxu0 0.0
        %7981 = vmatpush.xpose.msra.mxu0 0.0
        %7982 = vmatpush.xpose.msra.mxu0 0.0
        %7983 = vmatpush.xpose.msra.mxu0 0.0
        %7984 = vmatpush.xpose.msra.mxu0 %v7972
        %7985 = vmatpush.xpose.msra.mxu0 %v7970
        %7986 = vmatpush.xpose.msra.mxu0 %v7968
        %7987 = vmatpush.xpose.msra.mxu0 %v7966
        %7988 = vmatpush.xpose.msra.mxu0 %v7964
        %7989 = vmatpush.xpose.msra.mxu0 %v7962
        %7990 = vmatmul.f32.gmra.mxu0 %v7950
        %v7991 = vpop.f32.mrf.mxu0
        %v7992 = vadd.f32 0.0, %v7991
        %7993 = vmatmul.f32.gmra.mxu0 %v7952
        %v7994 = vpop.f32.mrf.mxu0
        %v7995 = vadd.f32 0.0, %v7994
        %7996 = vmatmul.f32.gmra.mxu0 %v7954
        %v7997 = vpop.f32.mrf.mxu0
        %v7998 = vadd.f32 0.0, %v7997
        %7999 = vmatmul.f32.gmra.mxu0 %v7956
        %v8000 = vpop.f32.mrf.mxu0
        %v8001 = vadd.f32 0.0, %v8000
        %8002 = vmatmul.f32.gmra.mxu0 %v7958
        %v8003 = vpop.f32.mrf.mxu0
        %v8004 = vadd.f32 0.0, %v8003
        %8005 = vmatmul.f32.gmra.mxu0 %v7960
        %v8006 = vpop.f32.mrf.mxu0
        %v8007 = vadd.f32 0.0, %v8006
        %8008 = vdwg.mxu0
        %v8009 = vmul.f32 %v7992, 0.35355338
        %v8010 = vmul.f32 %v7995, 0.35355338
        %v8011 = vmul.f32 %v7998, 0.35355338
        %v8012 = vmul.f32 %v8001, 0.35355338
        %v8013 = vmul.f32 %v8004, 0.35355338
        %v8014 = vmul.f32 %v8007, 0.35355338
        %s8015 = scalar_lea.vmem %s16, 480
        %v8016 = vld [vmem:[%s8015] sm:$0xf]
        %v8017 = vld [vmem:[%s8015 + $0x4] sm:$0xf]
        %v8018 = vld [vmem:[%s8015 + $0x8] sm:$0xf]
        %v8019 = vld [vmem:[%s8015 + $0xc] sm:$0xf]
        %v8020 = vld [vmem:[%s8015 + $0x10] sm:$0xf]
        %v8021 = vld [vmem:[%s8015 + $0x14] sm:$0xf]
        %v8022 = vunpack.c.l.bf16 %v8016
        %v8023 = vunpack.c.l.bf16 %v8017
        %v8024 = vunpack.c.l.bf16 %v8018
        %v8025 = vunpack.c.l.bf16 %v8019
        %v8026 = vunpack.c.l.bf16 %v8020
        %v8027 = vunpack.c.l.bf16 %v8021
        %v8028 = vadd.f32 %v8009, %v8022
        %v8029 = vadd.f32 %v8010, %v8023
        %v8030 = vadd.f32 %v8011, %v8024
        %v8031 = vadd.f32 %v8012, %v8025
        %v8032 = vadd.f32 %v8013, %v8026
        %v8033 = vadd.f32 %v8014, %v8027
        %v8034 = vsel %vm1865, %v8028, -inf
        %8035 = vmax.xlane.f32.xlu0 %v8034
        %v8036 = vpop.xlane.xlu0 %8035
        %v8037 = vsel %vm1865, %v8029, -inf
        %8038 = vmax.xlane.f32.xlu0 %v8037
        %v8039 = vpop.xlane.xlu0 %8038
        %v8040 = vsel %vm1865, %v8030, -inf
        %8041 = vmax.xlane.f32.xlu0 %v8040
        %v8042 = vpop.xlane.xlu0 %8041
        %v8043 = vsel %vm1865, %v8031, -inf
        %8044 = vmax.xlane.f32.xlu0 %v8043
        %v8045 = vpop.xlane.xlu0 %8044
        %v8046 = vsel %vm1865, %v8032, -inf
        %8047 = vmax.xlane.f32.xlu0 %v8046
        %v8048 = vpop.xlane.xlu0 %8047
        %v8049 = vsel %vm1865, %v8033, -inf
        %8050 = vmax.xlane.f32.xlu0 %v8049
        %v8051 = vpop.xlane.xlu0 %8050
        %v8052 = vsub.f32 %v8028, %v8036
        %v8053 = vsub.f32 %v8029, %v8039
        %v8054 = vsub.f32 %v8030, %v8042
        %v8055 = vsub.f32 %v8031, %v8045
        %v8056 = vsub.f32 %v8032, %v8048
        %v8057 = vsub.f32 %v8033, %v8051
        %v8058 = vmul.f32 %v8052, 1.442695
        %v8059 = vpow.pop %v8058
        %v8060 = vmul.f32 %v8053, 1.442695
        %v8061 = vpow.pop %v8060
        %v8062 = vmul.f32 %v8054, 1.442695
        %v8063 = vpow.pop %v8062
        %v8064 = vmul.f32 %v8055, 1.442695
        %v8065 = vpow.pop %v8064
        %v8066 = vmul.f32 %v8056, 1.442695
        %v8067 = vpow.pop %v8066
        %v8068 = vmul.f32 %v8057, 1.442695
        %v8069 = vpow.pop %v8068
        %v8070 = vsel %vm1865, %v8059, 0.0
        %8071 = vadd.xlane.f32.xlu0 %v8070
        %v8072 = vpop.xlane.xlu0 %8071
        %v8073 = vsel %vm1865, %v8061, 0.0
        %8074 = vadd.xlane.f32.xlu0 %v8073
        %v8075 = vpop.xlane.xlu0 %8074
        %v8076 = vsel %vm1865, %v8063, 0.0
        %8077 = vadd.xlane.f32.xlu0 %v8076
        %v8078 = vpop.xlane.xlu0 %8077
        %v8079 = vsel %vm1865, %v8065, 0.0
        %8080 = vadd.xlane.f32.xlu0 %v8079
        %v8081 = vpop.xlane.xlu0 %8080
        %v8082 = vsel %vm1865, %v8067, 0.0
        %8083 = vadd.xlane.f32.xlu0 %v8082
        %v8084 = vpop.xlane.xlu0 %8083
        %v8085 = vsel %vm1865, %v8069, 0.0
        %8086 = vadd.xlane.f32.xlu0 %v8085
        %v8087 = vpop.xlane.xlu0 %8086
        %v8088 = vrcp.pop %v8072
        %v8089 = vrcp.pop %v8075
        %v8090 = vrcp.pop %v8078
        %v8091 = vrcp.pop %v8081
        %v8092 = vrcp.pop %v8084
        %v8093 = vrcp.pop %v8087
        %v8094 = vmul.f32 %v8059, %v8088
        %v8095 = vmul.f32 %v8061, %v8089
        %v8096 = vmul.f32 %v8063, %v8090
        %v8097 = vmul.f32 %v8065, %v8091
        %v8098 = vmul.f32 %v8067, %v8092
        %v8099 = vmul.f32 %v8069, %v8093
        %v8100 = vpack.c.bf16 %v8095, %v8094
        %v8101 = vpack.c.bf16 %v8097, %v8096
        %v8102 = vpack.c.bf16 %v8099, %v8098
        %8103 = vrot.lane.b32.xlu0 %v7230, 96
        %v8104 = vpop.permute.xlu0 %8103
        %8105 = vrot.lane.b32.xlu0 %v7231, 96
        %v8106 = vpop.permute.xlu0 %8105
        %8107 = vrot.lane.b32.xlu0 %v7232, 96
        %v8108 = vpop.permute.xlu0 %8107
        %v8113 = vsel %vm1865, %v8100, 0
        %v8116 = vsel %vm1865, %v8101, 0
        %v8119 = vsel %vm1865, %v8102, 0
        %8121 = vmatpush.bf16.msra.mxu0 0
        %8122 = vmatpush.bf16.msra.mxu0 0
        %8123 = vmatpush.bf16.msra.mxu0 0
        %8124 = vmatpush.bf16.msra.mxu0 0
        %8125 = vmatpush.bf16.msra.mxu0 0
        %8126 = vmatpush.bf16.msra.mxu0 %v8108
        %8127 = vmatpush.bf16.msra.mxu0 %v8106
        %8128 = vmatpush.bf16.msra.mxu0 %v8104
        %8129 = vmatmul.bf16.gmra.mxu0 %v8113
        %v8130 = vpop.f32.mrf.mxu0
        %v8131 = vadd.f32 0.0, %v8130
        %v8132 = vpop.f32.mrf.mxu0
        %v8133 = vadd.f32 0.0, %v8132
        %8134 = vmatmul.bf16.gmra.mxu0 %v8116
        %v8135 = vpop.f32.mrf.mxu0
        %v8136 = vadd.f32 0.0, %v8135
        %v8137 = vpop.f32.mrf.mxu0
        %v8138 = vadd.f32 0.0, %v8137
        %8139 = vmatmul.bf16.gmra.mxu0 %v8119
        %v8140 = vpop.f32.mrf.mxu0
        %v8141 = vadd.f32 0.0, %v8140
        %v8142 = vpop.f32.mrf.mxu0
        %v8143 = vadd.f32 0.0, %v8142
        %8144 = vdwg.mxu0
        %8145 = vrot.lane.b32.xlu0 %v7003, 88
        %v8146 = vpop.permute.xlu0 %8145
        %8147 = vrot.lane.b32.xlu0 %v7005, 88
        %v8148 = vpop.permute.xlu0 %8147
        %8149 = vrot.lane.b32.xlu0 %v7008, 88
        %v8150 = vpop.permute.xlu0 %8149
        %8151 = vrot.lane.b32.xlu0 %v7010, 88
        %v8152 = vpop.permute.xlu0 %8151
        %8153 = vrot.lane.b32.xlu0 %v7013, 88
        %v8154 = vpop.permute.xlu0 %8153
        %8155 = vrot.lane.b32.xlu0 %v7015, 88
        %v8156 = vpop.permute.xlu0 %8155
        %8157 = vrot.lane.b32.xlu0 %v7003, 24
        %v8158 = vpop.permute.xlu0 %8157
        %8159 = vrot.lane.b32.xlu0 %v7005, 24
        %v8160 = vpop.permute.xlu0 %8159
        %8161 = vrot.lane.b32.xlu0 %v7008, 24
        %v8162 = vpop.permute.xlu0 %8161
        %8163 = vrot.lane.b32.xlu0 %v7010, 24
        %v8164 = vpop.permute.xlu0 %8163
        %8165 = vrot.lane.b32.xlu0 %v7013, 24
        %v8166 = vpop.permute.xlu0 %8165
        %8167 = vrot.lane.b32.xlu0 %v7015, 24
        %v8168 = vpop.permute.xlu0 %8167
        %v8169 = vsel %vm681, %v8146, 0
        %v8171 = vsel %vm681, %v8148, 0
        %v8173 = vsel %vm681, %v8150, 0
        %v8175 = vsel %vm681, %v8152, 0
        %v8177 = vsel %vm681, %v8154, 0
        %v8179 = vsel %vm681, %v8156, 0
        %v8181 = vsel %vm681, %v8158, 0
        %v8183 = vsel %vm681, %v8160, 0
        %v8185 = vsel %vm681, %v8162, 0
        %v8187 = vsel %vm681, %v8164, 0
        %v8189 = vsel %vm681, %v8166, 0
        %v8191 = vsel %vm681, %v8168, 0
        %8193 = vmatpush.xpose.msra.mxu0 0.0
        %8194 = vmatpush.xpose.msra.mxu0 0.0
        %8195 = vmatpush.xpose.msra.mxu0 0.0
        %8196 = vmatpush.xpose.msra.mxu0 0.0
        %8197 = vmatpush.xpose.msra.mxu0 0.0
        %8198 = vmatpush.xpose.msra.mxu0 0.0
        %8199 = vmatpush.xpose.msra.mxu0 0.0
        %8200 = vmatpush.xpose.msra.mxu0 0.0
        %8201 = vmatpush.xpose.msra.mxu0 0.0
        %8202 = vmatpush.xpose.msra.mxu0 0.0
        %8203 = vmatpush.xpose.msra.mxu0 %v8191
        %8204 = vmatpush.xpose.msra.mxu0 %v8189
        %8205 = vmatpush.xpose.msra.mxu0 %v8187
        %8206 = vmatpush.xpose.msra.mxu0 %v8185
        %8207 = vmatpush.xpose.msra.mxu0 %v8183
        %8208 = vmatpush.xpose.msra.mxu0 %v8181
        %8209 = vmatmul.f32.gmra.mxu0 %v8169
        %v8210 = vpop.f32.mrf.mxu0
        %v8211 = vadd.f32 0.0, %v8210
        %8212 = vmatmul.f32.gmra.mxu0 %v8171
        %v8213 = vpop.f32.mrf.mxu0
        %v8214 = vadd.f32 0.0, %v8213
        %8215 = vmatmul.f32.gmra.mxu0 %v8173
        %v8216 = vpop.f32.mrf.mxu0
        %v8217 = vadd.f32 0.0, %v8216
        %8218 = vmatmul.f32.gmra.mxu0 %v8175
        %v8219 = vpop.f32.mrf.mxu0
        %v8220 = vadd.f32 0.0, %v8219
        %8221 = vmatmul.f32.gmra.mxu0 %v8177
        %v8222 = vpop.f32.mrf.mxu0
        %v8223 = vadd.f32 0.0, %v8222
        %8224 = vmatmul.f32.gmra.mxu0 %v8179
        %v8225 = vpop.f32.mrf.mxu0
        %v8226 = vadd.f32 0.0, %v8225
        %8227 = vdwg.mxu0
        %v8228 = vmul.f32 %v8211, 0.35355338
        %v8229 = vmul.f32 %v8214, 0.35355338
        %v8230 = vmul.f32 %v8217, 0.35355338
        %v8231 = vmul.f32 %v8220, 0.35355338
        %v8232 = vmul.f32 %v8223, 0.35355338
        %v8233 = vmul.f32 %v8226, 0.35355338
        %s8234 = scalar_lea.vmem %s16, 504
        %v8235 = vld [vmem:[%s8234] sm:$0xf]
        %v8236 = vld [vmem:[%s8234 + $0x4] sm:$0xf]
        %v8237 = vld [vmem:[%s8234 + $0x8] sm:$0xf]
        %v8238 = vld [vmem:[%s8234 + $0xc] sm:$0xf]
        %v8239 = vld [vmem:[%s8234 + $0x10] sm:$0xf]
        %v8240 = vld [vmem:[%s8234 + $0x14] sm:$0xf]
        %v8241 = vunpack.c.l.bf16 %v8235
        %v8242 = vunpack.c.l.bf16 %v8236
        %v8243 = vunpack.c.l.bf16 %v8237
        %v8244 = vunpack.c.l.bf16 %v8238
        %v8245 = vunpack.c.l.bf16 %v8239
        %v8246 = vunpack.c.l.bf16 %v8240
        %v8247 = vadd.f32 %v8228, %v8241
        %v8248 = vadd.f32 %v8229, %v8242
        %v8249 = vadd.f32 %v8230, %v8243
        %v8250 = vadd.f32 %v8231, %v8244
        %v8251 = vadd.f32 %v8232, %v8245
        %v8252 = vadd.f32 %v8233, %v8246
        %v8253 = vsel %vm1865, %v8247, -inf
        %8254 = vmax.xlane.f32.xlu0 %v8253
        %v8255 = vpop.xlane.xlu0 %8254
        %v8256 = vsel %vm1865, %v8248, -inf
        %8257 = vmax.xlane.f32.xlu0 %v8256
        %v8258 = vpop.xlane.xlu0 %8257
        %v8259 = vsel %vm1865, %v8249, -inf
        %8260 = vmax.xlane.f32.xlu0 %v8259
        %v8261 = vpop.xlane.xlu0 %8260
        %v8262 = vsel %vm1865, %v8250, -inf
        %8263 = vmax.xlane.f32.xlu0 %v8262
        %v8264 = vpop.xlane.xlu0 %8263
        %v8265 = vsel %vm1865, %v8251, -inf
        %8266 = vmax.xlane.f32.xlu0 %v8265
        %v8267 = vpop.xlane.xlu0 %8266
        %v8268 = vsel %vm1865, %v8252, -inf
        %8269 = vmax.xlane.f32.xlu0 %v8268
        %v8270 = vpop.xlane.xlu0 %8269
        %v8271 = vsub.f32 %v8247, %v8255
        %v8272 = vsub.f32 %v8248, %v8258
        %v8273 = vsub.f32 %v8249, %v8261
        %v8274 = vsub.f32 %v8250, %v8264
        %v8275 = vsub.f32 %v8251, %v8267
        %v8276 = vsub.f32 %v8252, %v8270
        %v8277 = vmul.f32 %v8271, 1.442695
        %v8278 = vpow.pop %v8277
        %v8279 = vmul.f32 %v8272, 1.442695
        %v8280 = vpow.pop %v8279
        %v8281 = vmul.f32 %v8273, 1.442695
        %v8282 = vpow.pop %v8281
        %v8283 = vmul.f32 %v8274, 1.442695
        %v8284 = vpow.pop %v8283
        %v8285 = vmul.f32 %v8275, 1.442695
        %v8286 = vpow.pop %v8285
        %v8287 = vmul.f32 %v8276, 1.442695
        %v8288 = vpow.pop %v8287
        %v8289 = vsel %vm1865, %v8278, 0.0
        %8290 = vadd.xlane.f32.xlu0 %v8289
        %v8291 = vpop.xlane.xlu0 %8290
        %v8292 = vsel %vm1865, %v8280, 0.0
        %8293 = vadd.xlane.f32.xlu0 %v8292
        %v8294 = vpop.xlane.xlu0 %8293
        %v8295 = vsel %vm1865, %v8282, 0.0
        %8296 = vadd.xlane.f32.xlu0 %v8295
        %v8297 = vpop.xlane.xlu0 %8296
        %v8298 = vsel %vm1865, %v8284, 0.0
        %8299 = vadd.xlane.f32.xlu0 %v8298
        %v8300 = vpop.xlane.xlu0 %8299
        %v8301 = vsel %vm1865, %v8286, 0.0
        %8302 = vadd.xlane.f32.xlu0 %v8301
        %v8303 = vpop.xlane.xlu0 %8302
        %v8304 = vsel %vm1865, %v8288, 0.0
        %8305 = vadd.xlane.f32.xlu0 %v8304
        %v8306 = vpop.xlane.xlu0 %8305
        %v8307 = vrcp.pop %v8291
        %v8308 = vrcp.pop %v8294
        %v8309 = vrcp.pop %v8297
        %v8310 = vrcp.pop %v8300
        %v8311 = vrcp.pop %v8303
        %v8312 = vrcp.pop %v8306
        %v8313 = vmul.f32 %v8278, %v8307
        %v8314 = vmul.f32 %v8280, %v8308
        %v8315 = vmul.f32 %v8282, %v8309
        %v8316 = vmul.f32 %v8284, %v8310
        %v8317 = vmul.f32 %v8286, %v8311
        %v8318 = vmul.f32 %v8288, %v8312
        %v8319 = vpack.c.bf16 %v8314, %v8313
        %v8320 = vpack.c.bf16 %v8316, %v8315
        %v8321 = vpack.c.bf16 %v8318, %v8317
        %8322 = vrot.lane.b32.xlu0 %v7230, 88
        %v8323 = vpop.permute.xlu0 %8322
        %8324 = vrot.lane.b32.xlu0 %v7231, 88
        %v8325 = vpop.permute.xlu0 %8324
        %8326 = vrot.lane.b32.xlu0 %v7232, 88
        %v8327 = vpop.permute.xlu0 %8326
        %v8332 = vsel %vm1865, %v8319, 0
        %v8335 = vsel %vm1865, %v8320, 0
        %v8338 = vsel %vm1865, %v8321, 0
        %8340 = vmatpush.bf16.msra.mxu0 0
        %8341 = vmatpush.bf16.msra.mxu0 0
        %8342 = vmatpush.bf16.msra.mxu0 0
        %8343 = vmatpush.bf16.msra.mxu0 0
        %8344 = vmatpush.bf16.msra.mxu0 0
        %8345 = vmatpush.bf16.msra.mxu0 %v8327
        %8346 = vmatpush.bf16.msra.mxu0 %v8325
        %8347 = vmatpush.bf16.msra.mxu0 %v8323
        %8348 = vmatmul.bf16.gmra.mxu0 %v8332
        %v8349 = vpop.f32.mrf.mxu0
        %v8350 = vadd.f32 0.0, %v8349
        %v8351 = vpop.f32.mrf.mxu0
        %v8352 = vadd.f32 0.0, %v8351
        %8353 = vmatmul.bf16.gmra.mxu0 %v8335
        %v8354 = vpop.f32.mrf.mxu0
        %v8355 = vadd.f32 0.0, %v8354
        %v8356 = vpop.f32.mrf.mxu0
        %v8357 = vadd.f32 0.0, %v8356
        %8358 = vmatmul.bf16.gmra.mxu0 %v8338
        %v8359 = vpop.f32.mrf.mxu0
        %v8360 = vadd.f32 0.0, %v8359
        %v8361 = vpop.f32.mrf.mxu0
        %v8362 = vadd.f32 0.0, %v8361
        %8363 = vdwg.mxu0
        %8364 = vrot.lane.b32.xlu0 %v7003, 80
        %v8365 = vpop.permute.xlu0 %8364
        %8366 = vrot.lane.b32.xlu0 %v7005, 80
        %v8367 = vpop.permute.xlu0 %8366
        %8368 = vrot.lane.b32.xlu0 %v7008, 80
        %v8369 = vpop.permute.xlu0 %8368
        %8370 = vrot.lane.b32.xlu0 %v7010, 80
        %v8371 = vpop.permute.xlu0 %8370
        %8372 = vrot.lane.b32.xlu0 %v7013, 80
        %v8373 = vpop.permute.xlu0 %8372
        %8374 = vrot.lane.b32.xlu0 %v7015, 80
        %v8375 = vpop.permute.xlu0 %8374
        %8376 = vrot.lane.b32.xlu0 %v7003, 16
        %v8377 = vpop.permute.xlu0 %8376
        %8378 = vrot.lane.b32.xlu0 %v7005, 16
        %v8379 = vpop.permute.xlu0 %8378
        %8380 = vrot.lane.b32.xlu0 %v7008, 16
        %v8381 = vpop.permute.xlu0 %8380
        %8382 = vrot.lane.b32.xlu0 %v7010, 16
        %v8383 = vpop.permute.xlu0 %8382
        %8384 = vrot.lane.b32.xlu0 %v7013, 16
        %v8385 = vpop.permute.xlu0 %8384
        %8386 = vrot.lane.b32.xlu0 %v7015, 16
        %v8387 = vpop.permute.xlu0 %8386
        %v8388 = vsel %vm681, %v8365, 0
        %v8390 = vsel %vm681, %v8367, 0
        %v8392 = vsel %vm681, %v8369, 0
        %v8394 = vsel %vm681, %v8371, 0
        %v8396 = vsel %vm681, %v8373, 0
        %v8398 = vsel %vm681, %v8375, 0
        %v8400 = vsel %vm681, %v8377, 0
        %v8402 = vsel %vm681, %v8379, 0
        %v8404 = vsel %vm681, %v8381, 0
        %v8406 = vsel %vm681, %v8383, 0
        %v8408 = vsel %vm681, %v8385, 0
        %v8410 = vsel %vm681, %v8387, 0
        %8412 = vmatpush.xpose.msra.mxu0 0.0
        %8413 = vmatpush.xpose.msra.mxu0 0.0
        %8414 = vmatpush.xpose.msra.mxu0 0.0
        %8415 = vmatpush.xpose.msra.mxu0 0.0
        %8416 = vmatpush.xpose.msra.mxu0 0.0
        %8417 = vmatpush.xpose.msra.mxu0 0.0
        %8418 = vmatpush.xpose.msra.mxu0 0.0
        %8419 = vmatpush.xpose.msra.mxu0 0.0
        %8420 = vmatpush.xpose.msra.mxu0 0.0
        %8421 = vmatpush.xpose.msra.mxu0 0.0
        %8422 = vmatpush.xpose.msra.mxu0 %v8410
        %8423 = vmatpush.xpose.msra.mxu0 %v8408
        %8424 = vmatpush.xpose.msra.mxu0 %v8406
        %8425 = vmatpush.xpose.msra.mxu0 %v8404
        %8426 = vmatpush.xpose.msra.mxu0 %v8402
        %8427 = vmatpush.xpose.msra.mxu0 %v8400
        %8428 = vmatmul.f32.gmra.mxu0 %v8388
        %v8429 = vpop.f32.mrf.mxu0
        %v8430 = vadd.f32 0.0, %v8429
        %8431 = vmatmul.f32.gmra.mxu0 %v8390
        %v8432 = vpop.f32.mrf.mxu0
        %v8433 = vadd.f32 0.0, %v8432
        %8434 = vmatmul.f32.gmra.mxu0 %v8392
        %v8435 = vpop.f32.mrf.mxu0
        %v8436 = vadd.f32 0.0, %v8435
        %8437 = vmatmul.f32.gmra.mxu0 %v8394
        %v8438 = vpop.f32.mrf.mxu0
        %v8439 = vadd.f32 0.0, %v8438
        %8440 = vmatmul.f32.gmra.mxu0 %v8396
        %v8441 = vpop.f32.mrf.mxu0
        %v8442 = vadd.f32 0.0, %v8441
        %8443 = vmatmul.f32.gmra.mxu0 %v8398
        %v8444 = vpop.f32.mrf.mxu0
        %v8445 = vadd.f32 0.0, %v8444
        %8446 = vdwg.mxu0
        %v8447 = vmul.f32 %v8430, 0.35355338
        %v8448 = vmul.f32 %v8433, 0.35355338
        %v8449 = vmul.f32 %v8436, 0.35355338
        %v8450 = vmul.f32 %v8439, 0.35355338
        %v8451 = vmul.f32 %v8442, 0.35355338
        %v8452 = vmul.f32 %v8445, 0.35355338
        %s8453 = scalar_lea.vmem %s16, 528
        %v8454 = vld [vmem:[%s8453] sm:$0xf]
        %v8455 = vld [vmem:[%s8453 + $0x4] sm:$0xf]
        %v8456 = vld [vmem:[%s8453 + $0x8] sm:$0xf]
        %v8457 = vld [vmem:[%s8453 + $0xc] sm:$0xf]
        %v8458 = vld [vmem:[%s8453 + $0x10] sm:$0xf]
        %v8459 = vld [vmem:[%s8453 + $0x14] sm:$0xf]
        %v8460 = vunpack.c.l.bf16 %v8454
        %v8461 = vunpack.c.l.bf16 %v8455
        %v8462 = vunpack.c.l.bf16 %v8456
        %v8463 = vunpack.c.l.bf16 %v8457
        %v8464 = vunpack.c.l.bf16 %v8458
        %v8465 = vunpack.c.l.bf16 %v8459
        %v8466 = vadd.f32 %v8447, %v8460
        %v8467 = vadd.f32 %v8448, %v8461
        %v8468 = vadd.f32 %v8449, %v8462
        %v8469 = vadd.f32 %v8450, %v8463
        %v8470 = vadd.f32 %v8451, %v8464
        %v8471 = vadd.f32 %v8452, %v8465
        %v8472 = vsel %vm1865, %v8466, -inf
        %8473 = vmax.xlane.f32.xlu0 %v8472
        %v8474 = vpop.xlane.xlu0 %8473
        %v8475 = vsel %vm1865, %v8467, -inf
        %8476 = vmax.xlane.f32.xlu0 %v8475
        %v8477 = vpop.xlane.xlu0 %8476
        %v8478 = vsel %vm1865, %v8468, -inf
        %8479 = vmax.xlane.f32.xlu0 %v8478
        %v8480 = vpop.xlane.xlu0 %8479
        %v8481 = vsel %vm1865, %v8469, -inf
        %8482 = vmax.xlane.f32.xlu0 %v8481
        %v8483 = vpop.xlane.xlu0 %8482
        %v8484 = vsel %vm1865, %v8470, -inf
        %8485 = vmax.xlane.f32.xlu0 %v8484
        %v8486 = vpop.xlane.xlu0 %8485
        %v8487 = vsel %vm1865, %v8471, -inf
        %8488 = vmax.xlane.f32.xlu0 %v8487
        %v8489 = vpop.xlane.xlu0 %8488
        %v8490 = vsub.f32 %v8466, %v8474
        %v8491 = vsub.f32 %v8467, %v8477
        %v8492 = vsub.f32 %v8468, %v8480
        %v8493 = vsub.f32 %v8469, %v8483
        %v8494 = vsub.f32 %v8470, %v8486
        %v8495 = vsub.f32 %v8471, %v8489
        %v8496 = vmul.f32 %v8490, 1.442695
        %v8497 = vpow.pop %v8496
        %v8498 = vmul.f32 %v8491, 1.442695
        %v8499 = vpow.pop %v8498
        %v8500 = vmul.f32 %v8492, 1.442695
        %v8501 = vpow.pop %v8500
        %v8502 = vmul.f32 %v8493, 1.442695
        %v8503 = vpow.pop %v8502
        %v8504 = vmul.f32 %v8494, 1.442695
        %v8505 = vpow.pop %v8504
        %v8506 = vmul.f32 %v8495, 1.442695
        %v8507 = vpow.pop %v8506
        %v8508 = vsel %vm1865, %v8497, 0.0
        %8509 = vadd.xlane.f32.xlu0 %v8508
        %v8510 = vpop.xlane.xlu0 %8509
        %v8511 = vsel %vm1865, %v8499, 0.0
        %8512 = vadd.xlane.f32.xlu0 %v8511
        %v8513 = vpop.xlane.xlu0 %8512
        %v8514 = vsel %vm1865, %v8501, 0.0
        %8515 = vadd.xlane.f32.xlu0 %v8514
        %v8516 = vpop.xlane.xlu0 %8515
        %v8517 = vsel %vm1865, %v8503, 0.0
        %8518 = vadd.xlane.f32.xlu0 %v8517
        %v8519 = vpop.xlane.xlu0 %8518
        %v8520 = vsel %vm1865, %v8505, 0.0
        %8521 = vadd.xlane.f32.xlu0 %v8520
        %v8522 = vpop.xlane.xlu0 %8521
        %v8523 = vsel %vm1865, %v8507, 0.0
        %8524 = vadd.xlane.f32.xlu0 %v8523
        %v8525 = vpop.xlane.xlu0 %8524
        %v8526 = vrcp.pop %v8510
        %v8527 = vrcp.pop %v8513
        %v8528 = vrcp.pop %v8516
        %v8529 = vrcp.pop %v8519
        %v8530 = vrcp.pop %v8522
        %v8531 = vrcp.pop %v8525
        %v8532 = vmul.f32 %v8497, %v8526
        %v8533 = vmul.f32 %v8499, %v8527
        %v8534 = vmul.f32 %v8501, %v8528
        %v8535 = vmul.f32 %v8503, %v8529
        %v8536 = vmul.f32 %v8505, %v8530
        %v8537 = vmul.f32 %v8507, %v8531
        %v8538 = vpack.c.bf16 %v8533, %v8532
        %v8539 = vpack.c.bf16 %v8535, %v8534
        %v8540 = vpack.c.bf16 %v8537, %v8536
        %8541 = vrot.lane.b32.xlu0 %v7230, 80
        %v8542 = vpop.permute.xlu0 %8541
        %8543 = vrot.lane.b32.xlu0 %v7231, 80
        %v8544 = vpop.permute.xlu0 %8543
        %8545 = vrot.lane.b32.xlu0 %v7232, 80
        %v8546 = vpop.permute.xlu0 %8545
        %v8551 = vsel %vm1865, %v8538, 0
        %v8554 = vsel %vm1865, %v8539, 0
        %v8557 = vsel %vm1865, %v8540, 0
        %8559 = vmatpush.bf16.msra.mxu0 0
        %8560 = vmatpush.bf16.msra.mxu0 0
        %8561 = vmatpush.bf16.msra.mxu0 0
        %8562 = vmatpush.bf16.msra.mxu0 0
        %8563 = vmatpush.bf16.msra.mxu0 0
        %8564 = vmatpush.bf16.msra.mxu0 %v8546
        %8565 = vmatpush.bf16.msra.mxu0 %v8544
        %8566 = vmatpush.bf16.msra.mxu0 %v8542
        %8567 = vmatmul.bf16.gmra.mxu0 %v8551
        %v8568 = vpop.f32.mrf.mxu0
        %v8569 = vadd.f32 0.0, %v8568
        %v8570 = vpop.f32.mrf.mxu0
        %v8571 = vadd.f32 0.0, %v8570
        %8572 = vmatmul.bf16.gmra.mxu0 %v8554
        %v8573 = vpop.f32.mrf.mxu0
        %v8574 = vadd.f32 0.0, %v8573
        %v8575 = vpop.f32.mrf.mxu0
        %v8576 = vadd.f32 0.0, %v8575
        %8577 = vmatmul.bf16.gmra.mxu0 %v8557
        %v8578 = vpop.f32.mrf.mxu0
        %v8579 = vadd.f32 0.0, %v8578
        %v8580 = vpop.f32.mrf.mxu0
        %v8581 = vadd.f32 0.0, %v8580
        %8582 = vdwg.mxu0
        %8583 = vrot.lane.b32.xlu0 %v7003, 72
        %v8584 = vpop.permute.xlu0 %8583
        %8585 = vrot.lane.b32.xlu0 %v7005, 72
        %v8586 = vpop.permute.xlu0 %8585
        %8587 = vrot.lane.b32.xlu0 %v7008, 72
        %v8588 = vpop.permute.xlu0 %8587
        %8589 = vrot.lane.b32.xlu0 %v7010, 72
        %v8590 = vpop.permute.xlu0 %8589
        %8591 = vrot.lane.b32.xlu0 %v7013, 72
        %v8592 = vpop.permute.xlu0 %8591
        %8593 = vrot.lane.b32.xlu0 %v7015, 72
        %v8594 = vpop.permute.xlu0 %8593
        %8595 = vrot.lane.b32.xlu0 %v7003, 8
        %v8596 = vpop.permute.xlu0 %8595
        %8597 = vrot.lane.b32.xlu0 %v7005, 8
        %v8598 = vpop.permute.xlu0 %8597
        %8599 = vrot.lane.b32.xlu0 %v7008, 8
        %v8600 = vpop.permute.xlu0 %8599
        %8601 = vrot.lane.b32.xlu0 %v7010, 8
        %v8602 = vpop.permute.xlu0 %8601
        %8603 = vrot.lane.b32.xlu0 %v7013, 8
        %v8604 = vpop.permute.xlu0 %8603
        %8605 = vrot.lane.b32.xlu0 %v7015, 8
        %v8606 = vpop.permute.xlu0 %8605
        %v8607 = vsel %vm681, %v8584, 0
        %v8609 = vsel %vm681, %v8586, 0
        %v8611 = vsel %vm681, %v8588, 0
        %v8613 = vsel %vm681, %v8590, 0
        %v8615 = vsel %vm681, %v8592, 0
        %v8617 = vsel %vm681, %v8594, 0
        %v8619 = vsel %vm681, %v8596, 0
        %v8621 = vsel %vm681, %v8598, 0
        %v8623 = vsel %vm681, %v8600, 0
        %v8625 = vsel %vm681, %v8602, 0
        %v8627 = vsel %vm681, %v8604, 0
        %v8629 = vsel %vm681, %v8606, 0
        %8631 = vmatpush.xpose.msra.mxu0 0.0
        %8632 = vmatpush.xpose.msra.mxu0 0.0
        %8633 = vmatpush.xpose.msra.mxu0 0.0
        %8634 = vmatpush.xpose.msra.mxu0 0.0
        %8635 = vmatpush.xpose.msra.mxu0 0.0
        %8636 = vmatpush.xpose.msra.mxu0 0.0
        %8637 = vmatpush.xpose.msra.mxu0 0.0
        %8638 = vmatpush.xpose.msra.mxu0 0.0
        %8639 = vmatpush.xpose.msra.mxu0 0.0
        %8640 = vmatpush.xpose.msra.mxu0 0.0
        %8641 = vmatpush.xpose.msra.mxu0 %v8629
        %8642 = vmatpush.xpose.msra.mxu0 %v8627
        %8643 = vmatpush.xpose.msra.mxu0 %v8625
        %8644 = vmatpush.xpose.msra.mxu0 %v8623
        %8645 = vmatpush.xpose.msra.mxu0 %v8621
        %8646 = vmatpush.xpose.msra.mxu0 %v8619
        %8647 = vmatmul.f32.gmra.mxu0 %v8607
        %v8648 = vpop.f32.mrf.mxu0
        %v8649 = vadd.f32 0.0, %v8648
        %8650 = vmatmul.f32.gmra.mxu0 %v8609
        %v8651 = vpop.f32.mrf.mxu0
        %v8652 = vadd.f32 0.0, %v8651
        %8653 = vmatmul.f32.gmra.mxu0 %v8611
        %v8654 = vpop.f32.mrf.mxu0
        %v8655 = vadd.f32 0.0, %v8654
        %8656 = vmatmul.f32.gmra.mxu0 %v8613
        %v8657 = vpop.f32.mrf.mxu0
        %v8658 = vadd.f32 0.0, %v8657
        %8659 = vmatmul.f32.gmra.mxu0 %v8615
        %v8660 = vpop.f32.mrf.mxu0
        %v8661 = vadd.f32 0.0, %v8660
        %8662 = vmatmul.f32.gmra.mxu0 %v8617
        %v8663 = vpop.f32.mrf.mxu0
        %v8664 = vadd.f32 0.0, %v8663
        %8665 = vdwg.mxu0
        %v8666 = vmul.f32 %v8649, 0.35355338
        %v8667 = vmul.f32 %v8652, 0.35355338
        %v8668 = vmul.f32 %v8655, 0.35355338
        %v8669 = vmul.f32 %v8658, 0.35355338
        %v8670 = vmul.f32 %v8661, 0.35355338
        %v8671 = vmul.f32 %v8664, 0.35355338
        %s8672 = scalar_lea.vmem %s16, 552
        %v8673 = vld [vmem:[%s8672] sm:$0xf]
        %v8674 = vld [vmem:[%s8672 + $0x4] sm:$0xf]
        %v8675 = vld [vmem:[%s8672 + $0x8] sm:$0xf]
        %v8676 = vld [vmem:[%s8672 + $0xc] sm:$0xf]
        %v8677 = vld [vmem:[%s8672 + $0x10] sm:$0xf]
        %v8678 = vld [vmem:[%s8672 + $0x14] sm:$0xf]
        %v8679 = vunpack.c.l.bf16 %v8673
        %v8680 = vunpack.c.l.bf16 %v8674
        %v8681 = vunpack.c.l.bf16 %v8675
        %v8682 = vunpack.c.l.bf16 %v8676
        %v8683 = vunpack.c.l.bf16 %v8677
        %v8684 = vunpack.c.l.bf16 %v8678
        %v8685 = vadd.f32 %v8666, %v8679
        %v8686 = vadd.f32 %v8667, %v8680
        %v8687 = vadd.f32 %v8668, %v8681
        %v8688 = vadd.f32 %v8669, %v8682
        %v8689 = vadd.f32 %v8670, %v8683
        %v8690 = vadd.f32 %v8671, %v8684
        %v8691 = vsel %vm1865, %v8685, -inf
        %8692 = vmax.xlane.f32.xlu0 %v8691
        %v8693 = vpop.xlane.xlu0 %8692
        %v8694 = vsel %vm1865, %v8686, -inf
        %8695 = vmax.xlane.f32.xlu0 %v8694
        %v8696 = vpop.xlane.xlu0 %8695
        %v8697 = vsel %vm1865, %v8687, -inf
        %8698 = vmax.xlane.f32.xlu0 %v8697
        %v8699 = vpop.xlane.xlu0 %8698
        %v8700 = vsel %vm1865, %v8688, -inf
        %8701 = vmax.xlane.f32.xlu0 %v8700
        %v8702 = vpop.xlane.xlu0 %8701
        %v8703 = vsel %vm1865, %v8689, -inf
        %8704 = vmax.xlane.f32.xlu0 %v8703
        %v8705 = vpop.xlane.xlu0 %8704
        %v8706 = vsel %vm1865, %v8690, -inf
        %8707 = vmax.xlane.f32.xlu0 %v8706
        %v8708 = vpop.xlane.xlu0 %8707
        %v8709 = vsub.f32 %v8685, %v8693
        %v8710 = vsub.f32 %v8686, %v8696
        %v8711 = vsub.f32 %v8687, %v8699
        %v8712 = vsub.f32 %v8688, %v8702
        %v8713 = vsub.f32 %v8689, %v8705
        %v8714 = vsub.f32 %v8690, %v8708
        %v8715 = vmul.f32 %v8709, 1.442695
        %v8716 = vpow.pop %v8715
        %v8717 = vmul.f32 %v8710, 1.442695
        %v8718 = vpow.pop %v8717
        %v8719 = vmul.f32 %v8711, 1.442695
        %v8720 = vpow.pop %v8719
        %v8721 = vmul.f32 %v8712, 1.442695
        %v8722 = vpow.pop %v8721
        %v8723 = vmul.f32 %v8713, 1.442695
        %v8724 = vpow.pop %v8723
        %v8725 = vmul.f32 %v8714, 1.442695
        %v8726 = vpow.pop %v8725
        %v8727 = vsel %vm1865, %v8716, 0.0
        %8728 = vadd.xlane.f32.xlu0 %v8727
        %v8729 = vpop.xlane.xlu0 %8728
        %v8730 = vsel %vm1865, %v8718, 0.0
        %8731 = vadd.xlane.f32.xlu0 %v8730
        %v8732 = vpop.xlane.xlu0 %8731
        %v8733 = vsel %vm1865, %v8720, 0.0
        %8734 = vadd.xlane.f32.xlu0 %v8733
        %v8735 = vpop.xlane.xlu0 %8734
        %v8736 = vsel %vm1865, %v8722, 0.0
        %8737 = vadd.xlane.f32.xlu0 %v8736
        %v8738 = vpop.xlane.xlu0 %8737
        %v8739 = vsel %vm1865, %v8724, 0.0
        %8740 = vadd.xlane.f32.xlu0 %v8739
        %v8741 = vpop.xlane.xlu0 %8740
        %v8742 = vsel %vm1865, %v8726, 0.0
        %8743 = vadd.xlane.f32.xlu0 %v8742
        %v8744 = vpop.xlane.xlu0 %8743
        %v8745 = vrcp.pop %v8729
        %v8746 = vrcp.pop %v8732
        %v8747 = vrcp.pop %v8735
        %v8748 = vrcp.pop %v8738
        %v8749 = vrcp.pop %v8741
        %v8750 = vrcp.pop %v8744
        %v8751 = vmul.f32 %v8716, %v8745
        %v8752 = vmul.f32 %v8718, %v8746
        %v8753 = vmul.f32 %v8720, %v8747
        %v8754 = vmul.f32 %v8722, %v8748
        %v8755 = vmul.f32 %v8724, %v8749
        %v8756 = vmul.f32 %v8726, %v8750
        %v8757 = vpack.c.bf16 %v8752, %v8751
        %v8758 = vpack.c.bf16 %v8754, %v8753
        %v8759 = vpack.c.bf16 %v8756, %v8755
        %8760 = vrot.lane.b32.xlu0 %v7230, 72
        %v8761 = vpop.permute.xlu0 %8760
        %8762 = vrot.lane.b32.xlu0 %v7231, 72
        %v8763 = vpop.permute.xlu0 %8762
        %8764 = vrot.lane.b32.xlu0 %v7232, 72
        %v8765 = vpop.permute.xlu0 %8764
        %v8770 = vsel %vm1865, %v8757, 0
        %v8773 = vsel %vm1865, %v8758, 0
        %v8776 = vsel %vm1865, %v8759, 0
        %8778 = vmatpush.bf16.msra.mxu0 0
        %8779 = vmatpush.bf16.msra.mxu0 0
        %8780 = vmatpush.bf16.msra.mxu0 0
        %8781 = vmatpush.bf16.msra.mxu0 0
        %8782 = vmatpush.bf16.msra.mxu0 0
        %8783 = vmatpush.bf16.msra.mxu0 %v8765
        %8784 = vmatpush.bf16.msra.mxu0 %v8763
        %8785 = vmatpush.bf16.msra.mxu0 %v8761
        %8786 = vmatmul.bf16.gmra.mxu0 %v8770
        %v8787 = vpop.f32.mrf.mxu0
        %v8788 = vadd.f32 0.0, %v8787
        %v8789 = vpop.f32.mrf.mxu0
        %v8790 = vadd.f32 0.0, %v8789
        %8791 = vmatmul.bf16.gmra.mxu0 %v8773
        %v8792 = vpop.f32.mrf.mxu0
        %v8793 = vadd.f32 0.0, %v8792
        %v8794 = vpop.f32.mrf.mxu0
        %v8795 = vadd.f32 0.0, %v8794
        %8796 = vmatmul.bf16.gmra.mxu0 %v8776
        %v8797 = vpop.f32.mrf.mxu0
        %v8798 = vadd.f32 0.0, %v8797
        %v8799 = vpop.f32.mrf.mxu0
        %v8800 = vadd.f32 0.0, %v8799
        %8801 = vdwg.mxu0
        %8808 = vrot.lane.b32.xlu0 %v7474, 8
        %v8809 = vpop.permute.xlu0 %8808
        %8810 = vrot.lane.b32.xlu0 %v7476, 8
        %v8811 = vpop.permute.xlu0 %8810
        %8812 = vrot.lane.b32.xlu0 %v7479, 8
        %v8813 = vpop.permute.xlu0 %8812
        %8814 = vrot.lane.b32.xlu0 %v7481, 8
        %v8815 = vpop.permute.xlu0 %8814
        %8816 = vrot.lane.b32.xlu0 %v7484, 8
        %v8817 = vpop.permute.xlu0 %8816
        %8818 = vrot.lane.b32.xlu0 %v7486, 8
        %v8819 = vpop.permute.xlu0 %8818
        %8832 = vrot.lane.b32.xlu0 %v7693, 16
        %v8833 = vpop.permute.xlu0 %8832
        %8834 = vrot.lane.b32.xlu0 %v7695, 16
        %v8835 = vpop.permute.xlu0 %8834
        %8836 = vrot.lane.b32.xlu0 %v7698, 16
        %v8837 = vpop.permute.xlu0 %8836
        %8838 = vrot.lane.b32.xlu0 %v7700, 16
        %v8839 = vpop.permute.xlu0 %8838
        %8840 = vrot.lane.b32.xlu0 %v7703, 16
        %v8841 = vpop.permute.xlu0 %8840
        %8842 = vrot.lane.b32.xlu0 %v7705, 16
        %v8843 = vpop.permute.xlu0 %8842
        %8856 = vrot.lane.b32.xlu0 %v7912, 24
        %v8857 = vpop.permute.xlu0 %8856
        %8858 = vrot.lane.b32.xlu0 %v7914, 24
        %v8859 = vpop.permute.xlu0 %8858
        %8860 = vrot.lane.b32.xlu0 %v7917, 24
        %v8861 = vpop.permute.xlu0 %8860
        %8862 = vrot.lane.b32.xlu0 %v7919, 24
        %v8863 = vpop.permute.xlu0 %8862
        %8864 = vrot.lane.b32.xlu0 %v7922, 24
        %v8865 = vpop.permute.xlu0 %8864
        %8866 = vrot.lane.b32.xlu0 %v7924, 24
        %v8867 = vpop.permute.xlu0 %8866
        %8880 = vrot.lane.b32.xlu0 %v8131, 32
        %v8881 = vpop.permute.xlu0 %8880
        %8882 = vrot.lane.b32.xlu0 %v8133, 32
        %v8883 = vpop.permute.xlu0 %8882
        %8884 = vrot.lane.b32.xlu0 %v8136, 32
        %v8885 = vpop.permute.xlu0 %8884
        %8886 = vrot.lane.b32.xlu0 %v8138, 32
        %v8887 = vpop.permute.xlu0 %8886
        %8888 = vrot.lane.b32.xlu0 %v8141, 32
        %v8889 = vpop.permute.xlu0 %8888
        %8890 = vrot.lane.b32.xlu0 %v8143, 32
        %v8891 = vpop.permute.xlu0 %8890
        %8904 = vrot.lane.b32.xlu0 %v8350, 40
        %v8905 = vpop.permute.xlu0 %8904
        %8906 = vrot.lane.b32.xlu0 %v8352, 40
        %v8907 = vpop.permute.xlu0 %8906
        %8908 = vrot.lane.b32.xlu0 %v8355, 40
        %v8909 = vpop.permute.xlu0 %8908
        %8910 = vrot.lane.b32.xlu0 %v8357, 40
        %v8911 = vpop.permute.xlu0 %8910
        %8912 = vrot.lane.b32.xlu0 %v8360, 40
        %v8913 = vpop.permute.xlu0 %8912
        %8914 = vrot.lane.b32.xlu0 %v8362, 40
        %v8915 = vpop.permute.xlu0 %8914
        %8928 = vrot.lane.b32.xlu0 %v8569, 48
        %v8929 = vpop.permute.xlu0 %8928
        %8930 = vrot.lane.b32.xlu0 %v8571, 48
        %v8931 = vpop.permute.xlu0 %8930
        %8932 = vrot.lane.b32.xlu0 %v8574, 48
        %v8933 = vpop.permute.xlu0 %8932
        %8934 = vrot.lane.b32.xlu0 %v8576, 48
        %v8935 = vpop.permute.xlu0 %8934
        %8936 = vrot.lane.b32.xlu0 %v8579, 48
        %v8937 = vpop.permute.xlu0 %8936
        %8938 = vrot.lane.b32.xlu0 %v8581, 48
        %v8939 = vpop.permute.xlu0 %8938
        %8952 = vrot.lane.b32.xlu0 %v8788, 56
        %v8953 = vpop.permute.xlu0 %8952
        %8954 = vrot.lane.b32.xlu0 %v8790, 56
        %v8955 = vpop.permute.xlu0 %8954
        %8956 = vrot.lane.b32.xlu0 %v8793, 56
        %v8957 = vpop.permute.xlu0 %8956
        %8958 = vrot.lane.b32.xlu0 %v8795, 56
        %v8959 = vpop.permute.xlu0 %8958
        %8960 = vrot.lane.b32.xlu0 %v8798, 56
        %v8961 = vpop.permute.xlu0 %8960
        %8962 = vrot.lane.b32.xlu0 %v8800, 56
        %v8963 = vpop.permute.xlu0 %8962
        %v8970 = vsel %vm681, %v7255, %v8809
        %v8971 = vsel %vm681, %v7257, %v8811
        %v8972 = vsel %vm681, %v7260, %v8813
        %v8973 = vsel %vm681, %v7262, %v8815
        %v8974 = vsel %vm681, %v7265, %v8817
        %v8975 = vsel %vm681, %v7267, %v8819
        %v8976 = vsel %vm733, %v8970, %v8833
        %v8977 = vsel %vm733, %v8971, %v8835
        %v8978 = vsel %vm733, %v8972, %v8837
        %v8979 = vsel %vm733, %v8973, %v8839
        %v8980 = vsel %vm733, %v8974, %v8841
        %v8981 = vsel %vm733, %v8975, %v8843
        %v8982 = vsel %vm1850, %v8976, %v8857
        %v8983 = vsel %vm1850, %v8977, %v8859
        %v8984 = vsel %vm1850, %v8978, %v8861
        %v8985 = vsel %vm1850, %v8979, %v8863
        %v8986 = vsel %vm1850, %v8980, %v8865
        %v8987 = vsel %vm1850, %v8981, %v8867
        %v8988 = vsel %vm1855, %v8982, %v8881
        %v8989 = vsel %vm1855, %v8983, %v8883
        %v8990 = vsel %vm1855, %v8984, %v8885
        %v8991 = vsel %vm1855, %v8985, %v8887
        %v8992 = vsel %vm1855, %v8986, %v8889
        %v8993 = vsel %vm1855, %v8987, %v8891
        %v8994 = vsel %vm1860, %v8988, %v8905
        %v8995 = vsel %vm1860, %v8989, %v8907
        %v8996 = vsel %vm1860, %v8990, %v8909
        %v8997 = vsel %vm1860, %v8991, %v8911
        %v8998 = vsel %vm1860, %v8992, %v8913
        %v8999 = vsel %vm1860, %v8993, %v8915
        %v9000 = vsel %vm1865, %v8994, %v8929
        %v9001 = vsel %vm1865, %v8995, %v8931
        %v9002 = vsel %vm1865, %v8996, %v8933
        %v9003 = vsel %vm1865, %v8997, %v8935
        %v9004 = vsel %vm1865, %v8998, %v8937
        %v9005 = vsel %vm1865, %v8999, %v8939
        %v9006 = vsel %vm1870, %v9000, %v8953
        %v9007 = vsel %vm1870, %v9001, %v8955
        %v9008 = vsel %vm1870, %v9002, %v8957
        %v9009 = vsel %vm1870, %v9003, %v8959
        %v9010 = vsel %vm1870, %v9004, %v8961
        %v9011 = vsel %vm1870, %v9005, %v8963
        %v9012 = vpack.c.bf16 %v9007, %v9006
        %v9013 = vpack.c.bf16 %v9009, %v9008
        %v9014 = vpack.c.bf16 %v9011, %v9010
        %s9015 = scalar_lea.vmem %s14, 64
        %v9016 = vld [vmem:[%s9015] sm:$0xf]
        %v9017 = vld [vmem:[%s9015 + $0x4] sm:$0xf]
        %v9018 = vld [vmem:[%s9015 + $0x8] sm:$0xf]
        %v9019 = vld [vmem:[%s9015 + $0xc] sm:$0xf]
        %v9020 = vld [vmem:[%s9015 + $0x10] sm:$0xf]
        %v9021 = vld [vmem:[%s9015 + $0x14] sm:$0xf]
        %v9022 = vld [vmem:[%s9015 + $0x18] sm:$0xf]
        %v9023 = vld [vmem:[%s9015 + $0x1c] sm:$0xf]
        %v9032 = vunpack.c.l.b16 %v9016
        %v9033 = vunpack.c.l.b16 %v9017
        %v9034 = vunpack.c.l.b16 %v9018
        %v9035 = vunpack.c.l.b16 %v9019
        %v9036 = vunpack.c.l.b16 %v9020
        %v9037 = vunpack.c.l.b16 %v9021
        %v9038 = vunpack.c.l.b16 %v9022
        %v9039 = vunpack.c.l.b16 %v9023
        %v9040 = vpack.c.b16 %v9033, %v9032
        %v9041 = vpack.c.b16 %v9035, %v9034
        %v9042 = vpack.c.b16 %v9037, %v9036
        %v9043 = vpack.c.b16 %v9039, %v9038
        %v9049 = vsel %vm599, %v9012, 0
        %v9052 = vsel %vm599, %v9013, 0
        %v9055 = vsel %vm599, %v9014, 0
        %9057 = vmatpush.bf16.msra.mxu0 0
        %9058 = vmatpush.bf16.msra.mxu0 0
        %9059 = vmatpush.bf16.msra.mxu0 0
        %9060 = vmatpush.bf16.msra.mxu0 0
        %9061 = vmatpush.bf16.msra.mxu0 %v9043
        %9062 = vmatpush.bf16.msra.mxu0 %v9042
        %9063 = vmatpush.bf16.msra.mxu0 %v9041
        %9064 = vmatpush.bf16.msra.mxu0 %v9040
        %9065 = vmatmul.bf16.gmra.mxu0 %v9049
        %v9066 = vpop.f32.mrf.mxu0
        %v9067 = vadd.f32 0.0, %v9066
        %v9068 = vpop.f32.mrf.mxu0
        %v9069 = vadd.f32 0.0, %v9068
        %9070 = vmatmul.bf16.gmra.mxu0 %v9052
        %v9071 = vpop.f32.mrf.mxu0
        %v9072 = vadd.f32 0.0, %v9071
        %v9073 = vpop.f32.mrf.mxu0
        %v9074 = vadd.f32 0.0, %v9073
        %9075 = vmatmul.bf16.gmra.mxu0 %v9055
        %v9076 = vpop.f32.mrf.mxu0
        %v9077 = vadd.f32 0.0, %v9076
        %v9078 = vpop.f32.mrf.mxu0
        %v9079 = vadd.f32 0.0, %v9078
        %9080 = vdwg.mxu0
        %v9081 = vadd.f32 %v6800, %v9067
        %v9082 = vadd.f32 %v6801, %v9069
        %v9083 = vadd.f32 %v6802, %v9072
        %v9084 = vadd.f32 %v6803, %v9074
        %v9085 = vadd.f32 %v6804, %v9077
        %v9086 = vadd.f32 %v6805, %v9079
        %s9087 = scalar_lea.vmem %s15, 2
        %v9088 = vld [vmem:[%s9087] sm:$0x1]
        %v9090 = vperm.slane %v9088, 0
        %v9092 = vadd.f32 %v9081, %v9090
        %v9093 = vadd.f32 %v9082, %v9090
        %v9094 = vadd.f32 %v9083, %v9090
        %v9095 = vadd.f32 %v9084, %v9090
        %v9096 = vadd.f32 %v9085, %v9090
        %v9097 = vadd.f32 %v9086, %v9090
        %v9098 = vsel %vm599, %v9092, 0.0
        %v9099 = vsel %vm599, %v9093, 0.0
        %v9100 = vadd.f32 %v9098, %v9099
        %v9101 = vsel %vm599, %v9094, 0.0
        %v9102 = vadd.f32 %v9100, %v9101
        %v9103 = vsel %vm599, %v9095, 0.0
        %v9104 = vadd.f32 %v9102, %v9103
        %v9105 = vsel %vm599, %v9096, 0.0
        %v9106 = vadd.f32 %v9104, %v9105
        %v9107 = vsel %vm599, %v9097, 0.0
        %v9108 = vadd.f32 %v9106, %v9107
        %v9109 = vrot.slane %v9108, 4
        %v9110 = vadd.f32 %v9108, %v9109
        %v9111 = vrot.slane %v9110, 2
        %v9112 = vadd.f32 %v9110, %v9111
        %v9113 = vrot.slane %v9112, 1
        %v9114 = vadd.f32 %v9112, %v9113
        %v9115 = vrcp.pop 48.0
        %v9116 = vmul.f32 48.0, %v9115
        %v9117 = vsub.f32 1.0, %v9116
        %v9118 = vmul.f32 %v9115, %v9117
        %v9119 = vadd.f32 %v9115, %v9118
        %vm9120 = vweird.f32 %v9115
        %v9121 = vsel %vm9120, %v9115, %v9119
        %v9122 = vmul.f32 %v9114, %v9121
        %vm9123 = vcmask 516096
        %9124 = vst.msk [vmem:[%s540] sm:$0x1] %vm9123, %v9122
        %s9125 = sand.u32 %s401, 1
        %s9126 = scalar_lea.sflag [#allocation3], %s9125
        %s9127 = sand.u32 %s401, 1
        %s9128 = scalar_lea.vmem [#allocation2], %s9127
        // Predicated region
        $region89: #{ref_encoder_forward.1} parent=87 // pred_check
          %p9129 = pneg %p411
        $region90: #{ref_encoder_forward.1} parent=87 // pred_check_branch
          %9131 = sbr.rel (%p9129) target = $region92
        $region91: #{ref_encoder_forward.1} parent=87 // pred_region
          %9133 = vsyncadd %s9126, 0
          %s9134 = scalar_lea.hbm %s17, %s31
          %s9136 = sshll.u32 %s9128, 4
          %s9137 = int_to_ptr.vmem [resolvable:$true] %s9136
          %s9138 = sshll.u32 %s9134, 4
          %s9139 = int_to_ptr.hbm [resolvable:$true] %s9138
          %9141 = dma.vmem_to_hbm [thread:$0]  %s9137, 16, %s9139, %s9126
        $region92: #{ref_encoder_forward.1} parent=87 // pred_fallthru
          _
      $region88: #{ref_encoder_forward.1} parent=5 // pred_fallthru
        _
      %p9142 = scmp.le.s32.totalorder 2, %s26
      // Predicated region
      $region93: #{ref_encoder_forward.1} parent=5 // pred_check
        %p9143 = pneg %p9142
      $region94: #{ref_encoder_forward.1} parent=5 // pred_check_branch
        %9145 = sbr.rel (%p9143) target = $region96
      $region95: #{ref_encoder_forward.1} parent=5 // pred_region
        %s9146 = ssub.s32 %s26, 2
        // Predicated region
        $region97: #{ref_encoder_forward.1} parent=95 // pred_check
          %p9147 = pneg %p417
        $region98: #{ref_encoder_forward.1} parent=95 // pred_check_branch
          %9149 = sbr.rel (%p9147) target = $region100
        $region99: #{ref_encoder_forward.1} parent=95 // pred_region
          %s9150 = sand.u32 %s402, 1
          %s9151 = scalar_lea.sflag [#allocation3], %s9150
          %s9152 = sand.u32 %s402, 1
          %s9153 = scalar_lea.vmem [#allocation2], %s9152
          %9155 = dma.done %s9151, 16
        $region100: #{ref_encoder_forward.1} parent=95 // pred_fallthru
          _
      $region96: #{ref_encoder_forward.1} parent=5 // pred_fallthru
        _
    $region6: #{ref_encoder_forward.1} parent=1 // loop_footer
      %s30 = sadd.s32 1, %s26
    $region7: #{ref_encoder_forward.1} parent=1 // loop_footer_branch
      %25 = sbr.rel target = $region3
    $region8: #{ref_encoder_forward.1} parent=1 // loop_exit
      _
    %9156 = vsyncpa [#allocation3], 1
    %s9157 = scalar_lea.sflag [#allocation3], 1
    %9158 = vsyncpa %s9157, 1

</llo_original>
